<compile_context>
chip_gen: v7x
topology: tpu7x:2x2x1
jax: 0.10.0
libtpu: 0.0.40
codegen_flags: <defaults>
</compile_context>

<pallas_src>
import jax
import jax.numpy as jnp
from jax.experimental import pallas as pl
from jax.experimental.pallas import tpu as pltpu


def _round_up(n, m):
    return ((n + m - 1) // m) * m


# ---------------------------------------------------------------------------
# Fused forward kernel (padded, lane-dense shapes).
# inputs : x (bm, NP) bf16, eps (bm, 128) f32, bias_pack (8, W) f32,
#          7 bf16 weights (fc1, fc2, fc31, fused mu||logvar head, fc3, fc32, fc4)
# outputs: z (bm,128), x_bar (bm,NP), mu (bm,128), logvar (bm,128), all f32
# ---------------------------------------------------------------------------
def ae_forward_kernel(
    x_ref, eps_ref, bias_ref,
    w1_ref, w2_ref, w31_ref, whead_ref, w3_ref, w32_ref, w4_ref,
    z_ref, xbar_ref, mu_ref, logvar_ref,
):
    np_out = xbar_ref.shape[-1]

    def mm(a_bf16, w_ref):
        # bf16 x bf16 on the MXU with fp32 accumulation.
        return jnp.dot(a_bf16, w_ref[...], preferred_element_type=jnp.float32)

    def relu_bf16(v_f32):
        # bias-add/ReLU in fp32 (v5e has no bf16 VALU), then keep the
        # activation in bf16 so the next matmul consumes it directly.
        return jnp.maximum(v_f32, 0.0).astype(jnp.bfloat16)

    x = x_ref[...]                                              # bf16

    # ---- encoder ----
    h1 = relu_bf16(mm(x, w1_ref) + bias_ref[0:1, :512])
    h2 = relu_bf16(mm(h1, w2_ref) + bias_ref[1:2, :512])
    h3 = relu_bf16(mm(h2, w31_ref) + bias_ref[2:3, :512])

    # fused mu/logvar head: one lane-dense (512, 256) matmul
    head = mm(h3, whead_ref) + bias_ref[3:4, :256]              # fp32
    mu = head[:, :128]
    logvar = head[:, 128:256]

    # ---- reparametrize (fp32) ----
    std = jnp.exp(0.5 * logvar)
    z = eps_ref[...] * std + mu

    # ---- decoder ----
    d3 = relu_bf16(mm(z.astype(jnp.bfloat16), w3_ref) + bias_ref[4:5, :512])
    d4 = relu_bf16(mm(d3, w32_ref) + bias_ref[5:6, :512])
    xbar = jax.nn.sigmoid(mm(d4, w4_ref) + bias_ref[6:7, :np_out])

    # fp32 outputs for strict parity with the PyTorch reference; for large-B
    # training workloads x_bar/z could be emitted bf16 to halve output DMA.
    z_ref[...] = z
    xbar_ref[...] = xbar
    mu_ref[...] = mu
    logvar_ref[...] = logvar


# ---------------------------------------------------------------------------
# Host-side packing (call ONCE, outside the forward path; reuse the result):
# pad to lane-dense shapes, fuse the mu/logvar head, cast weights to bf16,
# pack all biases into a single (8, W) fp32 array (one DMA instead of 8).
# ---------------------------------------------------------------------------
def pack_params(p, n_input):
    NP = _round_up(n_input, 128)
    W = max(512, NP)

    def padw(w, rows, cols):
        r, c = w.shape
        return jnp.pad(w, ((0, rows - r), (0, cols - c))).astype(jnp.bfloat16)

    def padb(b, width):
        b = jnp.asarray(b, jnp.float32).reshape(1, -1)
        return jnp.pad(b, ((0, 0), (0, width - b.shape[-1])))

    weights = (
        padw(p["w1"], NP, 512),                                         # fc1
        padw(p["w2"], 512, 512),                                        # fc2
        padw(p["w31"], 512, 512),                                       # fc31
        jnp.concatenate([padw(p["w21"], 512, 128),                      # fused head
                         padw(p["w22"], 512, 128)], axis=1),            # mu || logvar
        padw(p["w3"], 128, 512),                                        # fc3
        padw(p["w32"], 512, 512),                                       # fc32
        padw(p["w4"], 512, NP),                                         # fc4
    )

    b_head = jnp.concatenate([padb(p["b21"], 128), padb(p["b22"], 128)], axis=1)
    bias_pack = jnp.concatenate([
        padb(p["b1"], W), padb(p["b2"], W), padb(p["b31"], W), padb(b_head, W),
        padb(p["b3"], W), padb(p["b32"], W), padb(p["b4"], W),
        jnp.zeros((1, W), jnp.float32),          # pad to 8 sublane rows
    ], axis=0)
    return weights, bias_pack


def _choose_tiling(B):
    """Pick (row tile bm, padded batch Bp)."""
    if B <= 16:
        bm = _round_up(B, 16)                 # single tiny block
        return bm, bm
    if B <= 512:
        bm = _round_up(-(-B // 2), 16)        # two "parallel" blocks -> both TCs on v7x
        return bm, 2 * bm
    bm = 256                                  # amortize ~0.35 us/step grid overhead
    return bm, _round_up(B, bm)


def ae_forward(x, eps, packed, n_input):
    """x: (B, n_input) f32, eps: (B, 100) f32, packed: output of pack_params()."""
    weights, bias_pack = packed
    B = x.shape[0]
    n_z = eps.shape[-1]
    NP = _round_up(n_input, 128)

    bm, Bp = _choose_tiling(B)
    grid = (Bp // bm,)

    # bf16 x halves the input DMA; eps stays fp32 (reparametrize math is fp32).
    x_p = jnp.pad(x.astype(jnp.bfloat16), ((0, Bp - B), (0, NP - n_input)))
    eps_p = jnp.pad(eps.astype(jnp.float32), ((0, Bp - B), (0, 128 - n_z)))

    def row_spec(width):
        return pl.BlockSpec((bm, width), lambda i: (i, 0))

    def resident_spec(shape, single_buffer):
        # Constant index_map -> block never changes; single-buffering halves
        # the resident-weight VMEM footprint.
        kwargs = {"pipeline_mode": pl.Buffered(1)} if single_buffer else {}
        return pl.BlockSpec(shape, lambda i: (0,) * len(shape), **kwargs)

    out_specs = (row_spec(128), row_spec(NP), row_spec(128), row_spec(128))
    out_shape = (
        jax.ShapeDtypeStruct((Bp, 128), jnp.float32),   # z      (padded)
        jax.ShapeDtypeStruct((Bp, NP), jnp.float32),    # x_bar  (padded)
        jax.ShapeDtypeStruct((Bp, 128), jnp.float32),   # mu     (padded)
        jax.ShapeDtypeStruct((Bp, 128), jnp.float32),   # logvar (padded)
    )

    compiler_kwargs = dict(dimension_semantics=("parallel",))
    if bm >= 256:
        # v5e's default scoped-VMEM budget is 16 MiB; give the larger tile headroom.
        compiler_kwargs["vmem_limit_bytes"] = 32 * 1024 * 1024

    def run(single_buffer):
        in_specs = [row_spec(NP), row_spec(128),
                    resident_spec(bias_pack.shape, single_buffer)]
        in_specs += [resident_spec(w.shape, single_buffer) for w in weights]
        return pl.pallas_call(
            ae_forward_kernel,
            out_shape=out_shape,
            grid=grid,
            in_specs=in_specs,
            out_specs=out_specs,
            compiler_params=pltpu.CompilerParams(**compiler_kwargs),
        )(x_p, eps_p, bias_pack, *weights)

    try:
        z_p, xbar_p, mu_p, logvar_p = run(single_buffer=True)
    except Exception:
        # pl.Buffered(1) not accepted by this jax version/backend: fall back to
        # default double-buffered weights (~2 MB extra VMEM, otherwise identical).
        z_p, xbar_p, mu_p, logvar_p = run(single_buffer=False)

    # TODO(synk): for production serving, pin the packed bf16 weights in VMEM
    # across calls (persistent-weights kernel / cross-call prefetch future or
    # input_output_aliases) instead of re-streaming ~2.2 MB of weights per call.

    return (z_p[:B, :n_z], xbar_p[:B, :n_input],
            mu_p[:B, :n_z], logvar_p[:B, :n_z])


def init_params(key, n_input):
    """Deterministic parameter init mirroring the nn.Linear shapes of AE.__init__.

    Weights stored as (in, out) = PyTorch W^T; biases as (1, out); all fp32.
    """
    dims = {
        "1": (n_input, 500),
        "2": (500, 500),
        "31": (500, 500),
        "21": (500, 100),
        "22": (500, 100),
        "3": (100, 500),
        "32": (500, 500),
        "4": (500, n_input),
    }
    params = {}
    keys = jax.random.split(key, 2 * len(dims))
    for i, (name, (fan_in, fan_out)) in enumerate(dims.items()):
        wk, bk = keys[2 * i], keys[2 * i + 1]
        bound = 1.0 / jnp.sqrt(fan_in)
        params[f"w{name}"] = jax.random.uniform(
            wk, (fan_in, fan_out), jnp.float32, -bound, bound)
        params[f"b{name}"] = jax.random.uniform(
            bk, (1, fan_out), jnp.float32, -bound, bound)
    return params


def reference_forward(x, eps, p):
    """Pure-JAX reference using the same bf16-matmul / fp32-accumulate numerics."""
    def mm(a, w):
        return jnp.dot(a.astype(jnp.bfloat16), w.astype(jnp.bfloat16),
                       preferred_element_type=jnp.float32)
    h1 = jax.nn.relu(mm(x, p["w1"]) + p["b1"])
    h2 = jax.nn.relu(mm(h1, p["w2"]) + p["b2"])
    h3 = jax.nn.relu(mm(h2, p["w31"]) + p["b31"])
    mu = mm(h3, p["w21"]) + p["b21"]
    logvar = mm(h3, p["w22"]) + p["b22"]
    z = eps * jnp.exp(0.5 * logvar) + mu
    d3 = jax.nn.relu(mm(z, p["w3"]) + p["b3"])
    d4 = jax.nn.relu(mm(d3, p["w32"]) + p["b32"])
    xbar = jax.nn.sigmoid(mm(d4, p["w4"]) + p["b4"])
    return z, xbar, mu, logvar


if __name__ == "__main__":
    B = 8
    N_INPUT = 32  # small n_input; hidden widths 500/100 are fixed by the module

    key = jax.random.PRNGKey(0)
    kx, keps, kp = jax.random.split(key, 3)

    x = jax.random.normal(kx, (B, N_INPUT), jnp.float32)
    eps = jax.random.normal(keps, (B, 100), jnp.float32)  # reparametrize noise
    params = init_params(kp, N_INPUT)

    # Pack ONCE (pad + bf16 cast + head fusion + bias packing), reuse every call.
    packed = pack_params(params, N_INPUT)
    packed = jax.block_until_ready(packed)

    outs = ae_forward(x, eps, packed, N_INPUT)
    jax.block_until_ready(outs)
    z, x_bar, mu, logvar = outs

    # sanity check against pure-JAX reference (same bf16 matmul numerics)
    z_r, xbar_r, mu_r, logvar_r = reference_forward(x, eps, params)
    assert z.shape == (B, 100) and x_bar.shape == (B, N_INPUT)
    assert mu.shape == (B, 100) and logvar.shape == (B, 100)
    assert jnp.allclose(mu, mu_r, atol=2e-2, rtol=2e-2)
    assert jnp.allclose(logvar, logvar_r, atol=2e-2, rtol=2e-2)
    assert jnp.allclose(z, z_r, atol=2e-2, rtol=2e-2)
    assert jnp.allclose(x_bar, xbar_r, atol=2e-2, rtol=2e-2)

    print("KERNEL_OK")
</pallas_src>

<mosaic_0001>
module attributes {stable_mosaic.version = 11 : i64} {
  func.func @ae_forward_kernel(%arg0: i32, %arg1: memref<16x128xbf16, #tpu.memory_space<vmem>>, %arg2: memref<16x128xf32, #tpu.memory_space<vmem>>, %arg3: memref<8x512xf32, #tpu.memory_space<vmem>>, %arg4: memref<128x512xbf16, #tpu.memory_space<vmem>>, %arg5: memref<512x512xbf16, #tpu.memory_space<vmem>>, %arg6: memref<512x512xbf16, #tpu.memory_space<vmem>>, %arg7: memref<512x256xbf16, #tpu.memory_space<vmem>>, %arg8: memref<128x512xbf16, #tpu.memory_space<vmem>>, %arg9: memref<512x512xbf16, #tpu.memory_space<vmem>>, %arg10: memref<512x128xbf16, #tpu.memory_space<vmem>>, %arg11: memref<16x128xf32, #tpu.memory_space<vmem>>, %arg12: memref<16x128xf32, #tpu.memory_space<vmem>>, %arg13: memref<16x128xf32, #tpu.memory_space<vmem>>, %arg14: memref<16x128xf32, #tpu.memory_space<vmem>>) attributes {dimension_semantics = [#tpu.dimension_semantics<parallel>], iteration_bounds = array<i64: 1>, scalar_prefetch = 0 : i64, scratch_operands = 0 : i64, tpu.core_type = #tpu.core_type<tc>, window_params = [{transform_indices = @transform_0, window_bounds = array<i64: 16, 128>}, {transform_indices = @transform_1, window_bounds = array<i64: 16, 128>}, {pipeline_mode = #tpu.pipeline_mode<synchronous>, transform_indices = @transform_2, window_bounds = array<i64: 8, 512>}, {pipeline_mode = #tpu.pipeline_mode<synchronous>, transform_indices = @transform_3, window_bounds = array<i64: 128, 512>}, {pipeline_mode = #tpu.pipeline_mode<synchronous>, transform_indices = @transform_4, window_bounds = array<i64: 512, 512>}, {pipeline_mode = #tpu.pipeline_mode<synchronous>, transform_indices = @transform_5, window_bounds = array<i64: 512, 512>}, {pipeline_mode = #tpu.pipeline_mode<synchronous>, transform_indices = @transform_6, window_bounds = array<i64: 512, 256>}, {pipeline_mode = #tpu.pipeline_mode<synchronous>, transform_indices = @transform_7, window_bounds = array<i64: 128, 512>}, {pipeline_mode = #tpu.pipeline_mode<synchronous>, transform_indices = @transform_8, window_bounds = array<i64: 512, 512>}, {pipeline_mode = #tpu.pipeline_mode<synchronous>, transform_indices = @transform_9, window_bounds = array<i64: 512, 128>}, {transform_indices = @transform_10, window_bounds = array<i64: 16, 128>}, {transform_indices = @transform_11, window_bounds = array<i64: 16, 128>}, {transform_indices = @transform_12, window_bounds = array<i64: 16, 128>}, {transform_indices = @transform_13, window_bounds = array<i64: 16, 128>}]} {
    %c0 = arith.constant 0 : index
    %c0_0 = arith.constant 0 : index
    %0 = vector.load %arg1[%c0, %c0_0] : memref<16x128xbf16, #tpu.memory_space<vmem>>, vector<16x128xbf16>
    %c0_1 = arith.constant 0 : index
    %c0_2 = arith.constant 0 : index
    %1 = vector.load %arg4[%c0_1, %c0_2] : memref<128x512xbf16, #tpu.memory_space<vmem>>, vector<128x512xbf16>
    %cst = arith.constant dense<0.000000e+00> : vector<16x512xf32>
    %2 = tpu.matmul %0, %1, %cst {dimension_numbers = #tpu.dot_dimension_numbers<[1], [0], [0], [1], [0, 0, 1, 1], [], []>} : vector<16x128xbf16>, vector<128x512xbf16>, vector<16x512xf32> -> vector<16x512xf32>
    %c0_3 = arith.constant 0 : index
    %c0_4 = arith.constant 0 : index
    %3 = vector.load %arg3[%c0_3, %c0_4] : memref<8x512xf32, #tpu.memory_space<vmem>>, vector<1x512xf32>
    %4 = vector.broadcast %3 : vector<1x512xf32> to vector<16x512xf32>
    %5 = arith.addf %2, %4 : vector<16x512xf32>
    %cst_5 = arith.constant 0.000000e+00 : f32
    %6 = vector.broadcast %cst_5 : f32 to vector<16x512xf32>
    %7 = arith.maximumf %5, %6 : vector<16x512xf32>
    %8 = arith.truncf %7 : vector<16x512xf32> to vector<16x512xbf16>
    %c0_6 = arith.constant 0 : index
    %c0_7 = arith.constant 0 : index
    %9 = vector.load %arg5[%c0_6, %c0_7] : memref<512x512xbf16, #tpu.memory_space<vmem>>, vector<512x512xbf16>
    %cst_8 = arith.constant dense<0.000000e+00> : vector<16x512xf32>
    %10 = tpu.matmul %8, %9, %cst_8 {dimension_numbers = #tpu.dot_dimension_numbers<[1], [0], [0], [1], [0, 0, 1, 1], [], []>} : vector<16x512xbf16>, vector<512x512xbf16>, vector<16x512xf32> -> vector<16x512xf32>
    %c1 = arith.constant 1 : index
    %c0_9 = arith.constant 0 : index
    %11 = vector.load %arg3[%c1, %c0_9] : memref<8x512xf32, #tpu.memory_space<vmem>>, vector<1x512xf32>
    %12 = vector.broadcast %11 : vector<1x512xf32> to vector<16x512xf32>
    %13 = arith.addf %10, %12 : vector<16x512xf32>
    %cst_10 = arith.constant 0.000000e+00 : f32
    %14 = vector.broadcast %cst_10 : f32 to vector<16x512xf32>
    %15 = arith.maximumf %13, %14 : vector<16x512xf32>
    %16 = arith.truncf %15 : vector<16x512xf32> to vector<16x512xbf16>
    %c0_11 = arith.constant 0 : index
    %c0_12 = arith.constant 0 : index
    %17 = vector.load %arg6[%c0_11, %c0_12] : memref<512x512xbf16, #tpu.memory_space<vmem>>, vector<512x512xbf16>
    %cst_13 = arith.constant dense<0.000000e+00> : vector<16x512xf32>
    %18 = tpu.matmul %16, %17, %cst_13 {dimension_numbers = #tpu.dot_dimension_numbers<[1], [0], [0], [1], [0, 0, 1, 1], [], []>} : vector<16x512xbf16>, vector<512x512xbf16>, vector<16x512xf32> -> vector<16x512xf32>
    %c2 = arith.constant 2 : index
    %c0_14 = arith.constant 0 : index
    %19 = vector.load %arg3[%c2, %c0_14] : memref<8x512xf32, #tpu.memory_space<vmem>>, vector<1x512xf32>
    %20 = vector.broadcast %19 : vector<1x512xf32> to vector<16x512xf32>
    %21 = arith.addf %18, %20 : vector<16x512xf32>
    %cst_15 = arith.constant 0.000000e+00 : f32
    %22 = vector.broadcast %cst_15 : f32 to vector<16x512xf32>
    %23 = arith.maximumf %21, %22 : vector<16x512xf32>
    %24 = arith.truncf %23 : vector<16x512xf32> to vector<16x512xbf16>
    %c0_16 = arith.constant 0 : index
    %c0_17 = arith.constant 0 : index
    %25 = vector.load %arg7[%c0_16, %c0_17] : memref<512x256xbf16, #tpu.memory_space<vmem>>, vector<512x256xbf16>
    %cst_18 = arith.constant dense<0.000000e+00> : vector<16x256xf32>
    %26 = tpu.matmul %24, %25, %cst_18 {dimension_numbers = #tpu.dot_dimension_numbers<[1], [0], [0], [1], [0, 0, 1, 1], [], []>} : vector<16x512xbf16>, vector<512x256xbf16>, vector<16x256xf32> -> vector<16x256xf32>
    %c3 = arith.constant 3 : index
    %c0_19 = arith.constant 0 : index
    %27 = vector.load %arg3[%c3, %c0_19] : memref<8x512xf32, #tpu.memory_space<vmem>>, vector<1x256xf32>
    %28 = vector.broadcast %27 : vector<1x256xf32> to vector<16x256xf32>
    %29 = arith.addf %26, %28 : vector<16x256xf32>
    %30 = vector.extract_strided_slice %29 {offsets = [0, 0], sizes = [16, 128], strides = [1, 1]} : vector<16x256xf32> to vector<16x128xf32>
    %31 = vector.extract_strided_slice %29 {offsets = [0, 128], sizes = [16, 128], strides = [1, 1]} : vector<16x256xf32> to vector<16x128xf32>
    %cst_20 = arith.constant 5.000000e-01 : f32
    %32 = vector.broadcast %cst_20 : f32 to vector<16x128xf32>
    %33 = arith.mulf %32, %31 : vector<16x128xf32>
    %34 = math.exp %33 : vector<16x128xf32>
    %c0_21 = arith.constant 0 : index
    %c0_22 = arith.constant 0 : index
    %35 = vector.load %arg2[%c0_21, %c0_22] : memref<16x128xf32, #tpu.memory_space<vmem>>, vector<16x128xf32>
    %36 = arith.mulf %35, %34 : vector<16x128xf32>
    %37 = arith.addf %36, %30 : vector<16x128xf32>
    %38 = arith.truncf %37 : vector<16x128xf32> to vector<16x128xbf16>
    %c0_23 = arith.constant 0 : index
    %c0_24 = arith.constant 0 : index
    %39 = vector.load %arg8[%c0_23, %c0_24] : memref<128x512xbf16, #tpu.memory_space<vmem>>, vector<128x512xbf16>
    %cst_25 = arith.constant dense<0.000000e+00> : vector<16x512xf32>
    %40 = tpu.matmul %38, %39, %cst_25 {dimension_numbers = #tpu.dot_dimension_numbers<[1], [0], [0], [1], [0, 0, 1, 1], [], []>} : vector<16x128xbf16>, vector<128x512xbf16>, vector<16x512xf32> -> vector<16x512xf32>
    %c4 = arith.constant 4 : index
    %c0_26 = arith.constant 0 : index
    %41 = vector.load %arg3[%c4, %c0_26] : memref<8x512xf32, #tpu.memory_space<vmem>>, vector<1x512xf32>
    %42 = vector.broadcast %41 : vector<1x512xf32> to vector<16x512xf32>
    %43 = arith.addf %40, %42 : vector<16x512xf32>
    %cst_27 = arith.constant 0.000000e+00 : f32
    %44 = vector.broadcast %cst_27 : f32 to vector<16x512xf32>
    %45 = arith.maximumf %43, %44 : vector<16x512xf32>
    %46 = arith.truncf %45 : vector<16x512xf32> to vector<16x512xbf16>
    %c0_28 = arith.constant 0 : index
    %c0_29 = arith.constant 0 : index
    %47 = vector.load %arg9[%c0_28, %c0_29] : memref<512x512xbf16, #tpu.memory_space<vmem>>, vector<512x512xbf16>
    %cst_30 = arith.constant dense<0.000000e+00> : vector<16x512xf32>
    %48 = tpu.matmul %46, %47, %cst_30 {dimension_numbers = #tpu.dot_dimension_numbers<[1], [0], [0], [1], [0, 0, 1, 1], [], []>} : vector<16x512xbf16>, vector<512x512xbf16>, vector<16x512xf32> -> vector<16x512xf32>
    %c5 = arith.constant 5 : index
    %c0_31 = arith.constant 0 : index
    %49 = vector.load %arg3[%c5, %c0_31] : memref<8x512xf32, #tpu.memory_space<vmem>>, vector<1x512xf32>
    %50 = vector.broadcast %49 : vector<1x512xf32> to vector<16x512xf32>
    %51 = arith.addf %48, %50 : vector<16x512xf32>
    %cst_32 = arith.constant 0.000000e+00 : f32
    %52 = vector.broadcast %cst_32 : f32 to vector<16x512xf32>
    %53 = arith.maximumf %51, %52 : vector<16x512xf32>
    %54 = arith.truncf %53 : vector<16x512xf32> to vector<16x512xbf16>
    %c0_33 = arith.constant 0 : index
    %c0_34 = arith.constant 0 : index
    %55 = vector.load %arg10[%c0_33, %c0_34] : memref<512x128xbf16, #tpu.memory_space<vmem>>, vector<512x128xbf16>
    %cst_35 = arith.constant dense<0.000000e+00> : vector<16x128xf32>
    %56 = tpu.matmul %54, %55, %cst_35 {dimension_numbers = #tpu.dot_dimension_numbers<[1], [0], [0], [1], [0, 0, 1, 1], [], []>} : vector<16x512xbf16>, vector<512x128xbf16>, vector<16x128xf32> -> vector<16x128xf32>
    %c6 = arith.constant 6 : index
    %c0_36 = arith.constant 0 : index
    %57 = vector.load %arg3[%c6, %c0_36] : memref<8x512xf32, #tpu.memory_space<vmem>>, vector<1x128xf32>
    %58 = vector.broadcast %57 : vector<1x128xf32> to vector<16x128xf32>
    %59 = arith.addf %56, %58 : vector<16x128xf32>
    %60 = arith.negf %59 : vector<16x128xf32>
    %61 = math.exp %60 : vector<16x128xf32>
    %cst_37 = arith.constant 1.000000e+00 : f32
    %62 = vector.broadcast %cst_37 : f32 to vector<16x128xf32>
    %63 = arith.addf %62, %61 : vector<16x128xf32>
    %64 = arith.divf %62, %63 : vector<16x128xf32>
    %c0_38 = arith.constant 0 : index
    %c0_39 = arith.constant 0 : index
    %65 = vector.load %arg11[%c0_38, %c0_39] : memref<16x128xf32, #tpu.memory_space<vmem>>, vector<16x128xf32>
    tpu.vector_store %arg11[%c0_38, %c0_39], %37 {strides = array<i32>} : memref<16x128xf32, #tpu.memory_space<vmem>>, vector<16x128xf32>,
    %c0_40 = arith.constant 0 : index
    %c0_41 = arith.constant 0 : index
    %66 = vector.load %arg12[%c0_40, %c0_41] : memref<16x128xf32, #tpu.memory_space<vmem>>, vector<16x128xf32>
    tpu.vector_store %arg12[%c0_40, %c0_41], %64 {strides = array<i32>} : memref<16x128xf32, #tpu.memory_space<vmem>>, vector<16x128xf32>,
    %c0_42 = arith.constant 0 : index
    %c0_43 = arith.constant 0 : index
    %67 = vector.load %arg13[%c0_42, %c0_43] : memref<16x128xf32, #tpu.memory_space<vmem>>, vector<16x128xf32>
    tpu.vector_store %arg13[%c0_42, %c0_43], %30 {strides = array<i32>} : memref<16x128xf32, #tpu.memory_space<vmem>>, vector<16x128xf32>,
    %c0_44 = arith.constant 0 : index
    %c0_45 = arith.constant 0 : index
    %68 = vector.load %arg14[%c0_44, %c0_45] : memref<16x128xf32, #tpu.memory_space<vmem>>, vector<16x128xf32>
    tpu.vector_store %arg14[%c0_44, %c0_45], %31 {strides = array<i32>} : memref<16x128xf32, #tpu.memory_space<vmem>>, vector<16x128xf32>,
    return
  }
  func.func @transform_0(%arg0: i32) -> (i32, i32) {
    %c0_i32 = arith.constant 0 : i32
    %c0_i32_0 = arith.constant 0 : i32
    return %arg0, %c0_i32 : i32, i32
  }
  func.func @transform_1(%arg0: i32) -> (i32, i32) {
    %c0_i32 = arith.constant 0 : i32
    %c0_i32_0 = arith.constant 0 : i32
    return %arg0, %c0_i32 : i32, i32
  }
  func.func @transform_2(%arg0: i32) -> (i32, i32) {
    %c0_i32 = arith.constant 0 : i32
    %c0_i32_0 = arith.constant 0 : i32
    %c0_i32_1 = arith.constant 0 : i32
    return %c0_i32, %c0_i32_0 : i32, i32
  }
  func.func @transform_3(%arg0: i32) -> (i32, i32) {
    %c0_i32 = arith.constant 0 : i32
    %c0_i32_0 = arith.constant 0 : i32
    %c0_i32_1 = arith.constant 0 : i32
    return %c0_i32, %c0_i32_0 : i32, i32
  }
  func.func @transform_4(%arg0: i32) -> (i32, i32) {
    %c0_i32 = arith.constant 0 : i32
    %c0_i32_0 = arith.constant 0 : i32
    %c0_i32_1 = arith.constant 0 : i32
    return %c0_i32, %c0_i32_0 : i32, i32
  }
  func.func @transform_5(%arg0: i32) -> (i32, i32) {
    %c0_i32 = arith.constant 0 : i32
    %c0_i32_0 = arith.constant 0 : i32
    %c0_i32_1 = arith.constant 0 : i32
    return %c0_i32, %c0_i32_0 : i32, i32
  }
  func.func @transform_6(%arg0: i32) -> (i32, i32) {
    %c0_i32 = arith.constant 0 : i32
    %c0_i32_0 = arith.constant 0 : i32
    %c0_i32_1 = arith.constant 0 : i32
    return %c0_i32, %c0_i32_0 : i32, i32
  }
  func.func @transform_7(%arg0: i32) -> (i32, i32) {
    %c0_i32 = arith.constant 0 : i32
    %c0_i32_0 = arith.constant 0 : i32
    %c0_i32_1 = arith.constant 0 : i32
    return %c0_i32, %c0_i32_0 : i32, i32
  }
  func.func @transform_8(%arg0: i32) -> (i32, i32) {
    %c0_i32 = arith.constant 0 : i32
    %c0_i32_0 = arith.constant 0 : i32
    %c0_i32_1 = arith.constant 0 : i32
    return %c0_i32, %c0_i32_0 : i32, i32
  }
  func.func @transform_9(%arg0: i32) -> (i32, i32) {
    %c0_i32 = arith.constant 0 : i32
    %c0_i32_0 = arith.constant 0 : i32
    %c0_i32_1 = arith.constant 0 : i32
    return %c0_i32, %c0_i32_0 : i32, i32
  }
  func.func @transform_10(%arg0: i32) -> (i32, i32) {
    %c0_i32 = arith.constant 0 : i32
    %c0_i32_0 = arith.constant 0 : i32
    return %arg0, %c0_i32 : i32, i32
  }
  func.func @transform_11(%arg0: i32) -> (i32, i32) {
    %c0_i32 = arith.constant 0 : i32
    %c0_i32_0 = arith.constant 0 : i32
    return %arg0, %c0_i32 : i32, i32
  }
  func.func @transform_12(%arg0: i32) -> (i32, i32) {
    %c0_i32 = arith.constant 0 : i32
    %c0_i32_0 = arith.constant 0 : i32
    return %arg0, %c0_i32 : i32, i32
  }
  func.func @transform_13(%arg0: i32) -> (i32, i32) {
    %c0_i32 = arith.constant 0 : i32
    %c0_i32_0 = arith.constant 0 : i32
    return %arg0, %c0_i32 : i32, i32
  }
}

module attributes {stable_mosaic.version = 11 : i64} {
  func.func @ae_forward_kernel(%arg0: i32, %arg1: memref<16x128xbf16, #tpu.memory_space<vmem>>, %arg2: memref<16x128xf32, #tpu.memory_space<vmem>>, %arg3: memref<8x512xf32, #tpu.memory_space<vmem>>, %arg4: memref<128x512xbf16, #tpu.memory_space<vmem>>, %arg5: memref<512x512xbf16, #tpu.memory_space<vmem>>, %arg6: memref<512x512xbf16, #tpu.memory_space<vmem>>, %arg7: memref<512x256xbf16, #tpu.memory_space<vmem>>, %arg8: memref<128x512xbf16, #tpu.memory_space<vmem>>, %arg9: memref<512x512xbf16, #tpu.memory_space<vmem>>, %arg10: memref<512x128xbf16, #tpu.memory_space<vmem>>, %arg11: memref<16x128xf32, #tpu.memory_space<vmem>>, %arg12: memref<16x128xf32, #tpu.memory_space<vmem>>, %arg13: memref<16x128xf32, #tpu.memory_space<vmem>>, %arg14: memref<16x128xf32, #tpu.memory_space<vmem>>) attributes {dimension_semantics = [#tpu.dimension_semantics<parallel>], iteration_bounds = array<i64: 1>, scalar_prefetch = 0 : i64, scratch_operands = 0 : i64, tpu.core_type = #tpu.core_type<tc>, window_params = [{transform_indices = @transform_0, window_bounds = array<i64: 16, 128>}, {transform_indices = @transform_1, window_bounds = array<i64: 16, 128>}, {pipeline_mode = #tpu.pipeline_mode<synchronous>, transform_indices = @transform_2, window_bounds = array<i64: 8, 512>}, {pipeline_mode = #tpu.pipeline_mode<synchronous>, transform_indices = @transform_3, window_bounds = array<i64: 128, 512>}, {pipeline_mode = #tpu.pipeline_mode<synchronous>, transform_indices = @transform_4, window_bounds = array<i64: 512, 512>}, {pipeline_mode = #tpu.pipeline_mode<synchronous>, transform_indices = @transform_5, window_bounds = array<i64: 512, 512>}, {pipeline_mode = #tpu.pipeline_mode<synchronous>, transform_indices = @transform_6, window_bounds = array<i64: 512, 256>}, {pipeline_mode = #tpu.pipeline_mode<synchronous>, transform_indices = @transform_7, window_bounds = array<i64: 128, 512>}, {pipeline_mode = #tpu.pipeline_mode<synchronous>, transform_indices = @transform_8, window_bounds = array<i64: 512, 512>}, {pipeline_mode = #tpu.pipeline_mode<synchronous>, transform_indices = @transform_9, window_bounds = array<i64: 512, 128>}, {transform_indices = @transform_10, window_bounds = array<i64: 16, 128>}, {transform_indices = @transform_11, window_bounds = array<i64: 16, 128>}, {transform_indices = @transform_12, window_bounds = array<i64: 16, 128>}, {transform_indices = @transform_13, window_bounds = array<i64: 16, 128>}]} {
    %c0 = arith.constant 0 : index
    %c0_0 = arith.constant 0 : index
    %0 = vector.load %arg1[%c0, %c0_0] : memref<16x128xbf16, #tpu.memory_space<vmem>>, vector<16x128xbf16>
    %c0_1 = arith.constant 0 : index
    %c0_2 = arith.constant 0 : index
    %1 = vector.load %arg4[%c0_1, %c0_2] : memref<128x512xbf16, #tpu.memory_space<vmem>>, vector<128x512xbf16>
    %cst = arith.constant dense<0.000000e+00> : vector<16x512xf32>
    %2 = tpu.matmul %0, %1, %cst {dimension_numbers = #tpu.dot_dimension_numbers<[1], [0], [0], [1], [0, 0, 1, 1], [], []>} : vector<16x128xbf16>, vector<128x512xbf16>, vector<16x512xf32> -> vector<16x512xf32>
    %c0_3 = arith.constant 0 : index
    %c0_4 = arith.constant 0 : index
    %3 = vector.load %arg3[%c0_3, %c0_4] : memref<8x512xf32, #tpu.memory_space<vmem>>, vector<1x512xf32>
    %4 = vector.broadcast %3 : vector<1x512xf32> to vector<16x512xf32>
    %5 = arith.addf %2, %4 : vector<16x512xf32>
    %cst_5 = arith.constant 0.000000e+00 : f32
    %6 = vector.broadcast %cst_5 : f32 to vector<16x512xf32>
    %7 = arith.maximumf %5, %6 : vector<16x512xf32>
    %8 = arith.truncf %7 : vector<16x512xf32> to vector<16x512xbf16>
    %c0_6 = arith.constant 0 : index
    %c0_7 = arith.constant 0 : index
    %9 = vector.load %arg5[%c0_6, %c0_7] : memref<512x512xbf16, #tpu.memory_space<vmem>>, vector<512x512xbf16>
    %cst_8 = arith.constant dense<0.000000e+00> : vector<16x512xf32>
    %10 = tpu.matmul %8, %9, %cst_8 {dimension_numbers = #tpu.dot_dimension_numbers<[1], [0], [0], [1], [0, 0, 1, 1], [], []>} : vector<16x512xbf16>, vector<512x512xbf16>, vector<16x512xf32> -> vector<16x512xf32>
    %c1 = arith.constant 1 : index
    %c0_9 = arith.constant 0 : index
    %11 = vector.load %arg3[%c1, %c0_9] : memref<8x512xf32, #tpu.memory_space<vmem>>, vector<1x512xf32>
    %12 = vector.broadcast %11 : vector<1x512xf32> to vector<16x512xf32>
    %13 = arith.addf %10, %12 : vector<16x512xf32>
    %cst_10 = arith.constant 0.000000e+00 : f32
    %14 = vector.broadcast %cst_10 : f32 to vector<16x512xf32>
    %15 = arith.maximumf %13, %14 : vector<16x512xf32>
    %16 = arith.truncf %15 : vector<16x512xf32> to vector<16x512xbf16>
    %c0_11 = arith.constant 0 : index
    %c0_12 = arith.constant 0 : index
    %17 = vector.load %arg6[%c0_11, %c0_12] : memref<512x512xbf16, #tpu.memory_space<vmem>>, vector<512x512xbf16>
    %cst_13 = arith.constant dense<0.000000e+00> : vector<16x512xf32>
    %18 = tpu.matmul %16, %17, %cst_13 {dimension_numbers = #tpu.dot_dimension_numbers<[1], [0], [0], [1], [0, 0, 1, 1], [], []>} : vector<16x512xbf16>, vector<512x512xbf16>, vector<16x512xf32> -> vector<16x512xf32>
    %c2 = arith.constant 2 : index
    %c0_14 = arith.constant 0 : index
    %19 = vector.load %arg3[%c2, %c0_14] : memref<8x512xf32, #tpu.memory_space<vmem>>, vector<1x512xf32>
    %20 = vector.broadcast %19 : vector<1x512xf32> to vector<16x512xf32>
    %21 = arith.addf %18, %20 : vector<16x512xf32>
    %cst_15 = arith.constant 0.000000e+00 : f32
    %22 = vector.broadcast %cst_15 : f32 to vector<16x512xf32>
    %23 = arith.maximumf %21, %22 : vector<16x512xf32>
    %24 = arith.truncf %23 : vector<16x512xf32> to vector<16x512xbf16>
    %c0_16 = arith.constant 0 : index
    %c0_17 = arith.constant 0 : index
    %25 = vector.load %arg7[%c0_16, %c0_17] : memref<512x256xbf16, #tpu.memory_space<vmem>>, vector<512x256xbf16>
    %cst_18 = arith.constant dense<0.000000e+00> : vector<16x256xf32>
    %26 = tpu.matmul %24, %25, %cst_18 {dimension_numbers = #tpu.dot_dimension_numbers<[1], [0], [0], [1], [0, 0, 1, 1], [], []>} : vector<16x512xbf16>, vector<512x256xbf16>, vector<16x256xf32> -> vector<16x256xf32>
    %c3 = arith.constant 3 : index
    %c0_19 = arith.constant 0 : index
    %27 = vector.load %arg3[%c3, %c0_19] : memref<8x512xf32, #tpu.memory_space<vmem>>, vector<1x256xf32>
    %28 = vector.broadcast %27 : vector<1x256xf32> to vector<16x256xf32>
    %29 = arith.addf %26, %28 : vector<16x256xf32>
    %30 = vector.extract_strided_slice %29 {offsets = [0, 0], sizes = [16, 128], strides = [1, 1]} : vector<16x256xf32> to vector<16x128xf32>
    %31 = vector.extract_strided_slice %29 {offsets = [0, 128], sizes = [16, 128], strides = [1, 1]} : vector<16x256xf32> to vector<16x128xf32>
    %cst_20 = arith.constant 5.000000e-01 : f32
    %32 = vector.broadcast %cst_20 : f32 to vector<16x128xf32>
    %33 = arith.mulf %32, %31 : vector<16x128xf32>
    %34 = math.exp %33 : vector<16x128xf32>
    %c0_21 = arith.constant 0 : index
    %c0_22 = arith.constant 0 : index
    %35 = vector.load %arg2[%c0_21, %c0_22] : memref<16x128xf32, #tpu.memory_space<vmem>>, vector<16x128xf32>
    %36 = arith.mulf %35, %34 : vector<16x128xf32>
    %37 = arith.addf %36, %30 : vector<16x128xf32>
    %38 = arith.truncf %37 : vector<16x128xf32> to vector<16x128xbf16>
    %c0_23 = arith.constant 0 : index
    %c0_24 = arith.constant 0 : index
    %39 = vector.load %arg8[%c0_23, %c0_24] : memref<128x512xbf16, #tpu.memory_space<vmem>>, vector<128x512xbf16>
    %cst_25 = arith.constant dense<0.000000e+00> : vector<16x512xf32>
    %40 = tpu.matmul %38, %39, %cst_25 {dimension_numbers = #tpu.dot_dimension_numbers<[1], [0], [0], [1], [0, 0, 1, 1], [], []>} : vector<16x128xbf16>, vector<128x512xbf16>, vector<16x512xf32> -> vector<16x512xf32>
    %c4 = arith.constant 4 : index
    %c0_26 = arith.constant 0 : index
    %41 = vector.load %arg3[%c4, %c0_26] : memref<8x512xf32, #tpu.memory_space<vmem>>, vector<1x512xf32>
    %42 = vector.broadcast %41 : vector<1x512xf32> to vector<16x512xf32>
    %43 = arith.addf %40, %42 : vector<16x512xf32>
    %cst_27 = arith.constant 0.000000e+00 : f32
    %44 = vector.broadcast %cst_27 : f32 to vector<16x512xf32>
    %45 = arith.maximumf %43, %44 : vector<16x512xf32>
    %46 = arith.truncf %45 : vector<16x512xf32> to vector<16x512xbf16>
    %c0_28 = arith.constant 0 : index
    %c0_29 = arith.constant 0 : index
    %47 = vector.load %arg9[%c0_28, %c0_29] : memref<512x512xbf16, #tpu.memory_space<vmem>>, vector<512x512xbf16>
    %cst_30 = arith.constant dense<0.000000e+00> : vector<16x512xf32>
    %48 = tpu.matmul %46, %47, %cst_30 {dimension_numbers = #tpu.dot_dimension_numbers<[1], [0], [0], [1], [0, 0, 1, 1], [], []>} : vector<16x512xbf16>, vector<512x512xbf16>, vector<16x512xf32> -> vector<16x512xf32>
    %c5 = arith.constant 5 : index
    %c0_31 = arith.constant 0 : index
    %49 = vector.load %arg3[%c5, %c0_31] : memref<8x512xf32, #tpu.memory_space<vmem>>, vector<1x512xf32>
    %50 = vector.broadcast %49 : vector<1x512xf32> to vector<16x512xf32>
    %51 = arith.addf %48, %50 : vector<16x512xf32>
    %cst_32 = arith.constant 0.000000e+00 : f32
    %52 = vector.broadcast %cst_32 : f32 to vector<16x512xf32>
    %53 = arith.maximumf %51, %52 : vector<16x512xf32>
    %54 = arith.truncf %53 : vector<16x512xf32> to vector<16x512xbf16>
    %c0_33 = arith.constant 0 : index
    %c0_34 = arith.constant 0 : index
    %55 = vector.load %arg10[%c0_33, %c0_34] : memref<512x128xbf16, #tpu.memory_space<vmem>>, vector<512x128xbf16>
    %cst_35 = arith.constant dense<0.000000e+00> : vector<16x128xf32>
    %56 = tpu.matmul %54, %55, %cst_35 {dimension_numbers = #tpu.dot_dimension_numbers<[1], [0], [0], [1], [0, 0, 1, 1], [], []>} : vector<16x512xbf16>, vector<512x128xbf16>, vector<16x128xf32> -> vector<16x128xf32>
    %c6 = arith.constant 6 : index
    %c0_36 = arith.constant 0 : index
    %57 = vector.load %arg3[%c6, %c0_36] : memref<8x512xf32, #tpu.memory_space<vmem>>, vector<1x128xf32>
    %58 = vector.broadcast %57 : vector<1x128xf32> to vector<16x128xf32>
    %59 = arith.addf %56, %58 : vector<16x128xf32>
    %60 = arith.negf %59 : vector<16x128xf32>
    %61 = math.exp %60 : vector<16x128xf32>
    %cst_37 = arith.constant 1.000000e+00 : f32
    %62 = vector.broadcast %cst_37 : f32 to vector<16x128xf32>
    %63 = arith.addf %62, %61 : vector<16x128xf32>
    %64 = arith.divf %62, %63 : vector<16x128xf32>
    %c0_38 = arith.constant 0 : index
    %c0_39 = arith.constant 0 : index
    %65 = vector.load %arg11[%c0_38, %c0_39] : memref<16x128xf32, #tpu.memory_space<vmem>>, vector<16x128xf32>
    tpu.vector_store %arg11[%c0_38, %c0_39], %37 {strides = array<i32>} : memref<16x128xf32, #tpu.memory_space<vmem>>, vector<16x128xf32>,
    %c0_40 = arith.constant 0 : index
    %c0_41 = arith.constant 0 : index
    %66 = vector.load %arg12[%c0_40, %c0_41] : memref<16x128xf32, #tpu.memory_space<vmem>>, vector<16x128xf32>
    tpu.vector_store %arg12[%c0_40, %c0_41], %64 {strides = array<i32>} : memref<16x128xf32, #tpu.memory_space<vmem>>, vector<16x128xf32>,
    %c0_42 = arith.constant 0 : index
    %c0_43 = arith.constant 0 : index
    %67 = vector.load %arg13[%c0_42, %c0_43] : memref<16x128xf32, #tpu.memory_space<vmem>>, vector<16x128xf32>
    tpu.vector_store %arg13[%c0_42, %c0_43], %30 {strides = array<i32>} : memref<16x128xf32, #tpu.memory_space<vmem>>, vector<16x128xf32>,
    %c0_44 = arith.constant 0 : index
    %c0_45 = arith.constant 0 : index
    %68 = vector.load %arg14[%c0_44, %c0_45] : memref<16x128xf32, #tpu.memory_space<vmem>>, vector<16x128xf32>
    tpu.vector_store %arg14[%c0_44, %c0_45], %31 {strides = array<i32>} : memref<16x128xf32, #tpu.memory_space<vmem>>, vector<16x128xf32>,
    return
  }
  func.func @transform_0(%arg0: i32) -> (i32, i32) {
    %c0_i32 = arith.constant 0 : i32
    %c0_i32_0 = arith.constant 0 : i32
    return %arg0, %c0_i32 : i32, i32
  }
  func.func @transform_1(%arg0: i32) -> (i32, i32) {
    %c0_i32 = arith.constant 0 : i32
    %c0_i32_0 = arith.constant 0 : i32
    return %arg0, %c0_i32 : i32, i32
  }
  func.func @transform_2(%arg0: i32) -> (i32, i32) {
    %c0_i32 = arith.constant 0 : i32
    %c0_i32_0 = arith.constant 0 : i32
    %c0_i32_1 = arith.constant 0 : i32
    return %c0_i32, %c0_i32_0 : i32, i32
  }
  func.func @transform_3(%arg0: i32) -> (i32, i32) {
    %c0_i32 = arith.constant 0 : i32
    %c0_i32_0 = arith.constant 0 : i32
    %c0_i32_1 = arith.constant 0 : i32
    return %c0_i32, %c0_i32_0 : i32, i32
  }
  func.func @transform_4(%arg0: i32) -> (i32, i32) {
    %c0_i32 = arith.constant 0 : i32
    %c0_i32_0 = arith.constant 0 : i32
    %c0_i32_1 = arith.constant 0 : i32
    return %c0_i32, %c0_i32_0 : i32, i32
  }
  func.func @transform_5(%arg0: i32) -> (i32, i32) {
    %c0_i32 = arith.constant 0 : i32
    %c0_i32_0 = arith.constant 0 : i32
    %c0_i32_1 = arith.constant 0 : i32
    return %c0_i32, %c0_i32_0 : i32, i32
  }
  func.func @transform_6(%arg0: i32) -> (i32, i32) {
    %c0_i32 = arith.constant 0 : i32
    %c0_i32_0 = arith.constant 0 : i32
    %c0_i32_1 = arith.constant 0 : i32
    return %c0_i32, %c0_i32_0 : i32, i32
  }
  func.func @transform_7(%arg0: i32) -> (i32, i32) {
    %c0_i32 = arith.constant 0 : i32
    %c0_i32_0 = arith.constant 0 : i32
    %c0_i32_1 = arith.constant 0 : i32
    return %c0_i32, %c0_i32_0 : i32, i32
  }
  func.func @transform_8(%arg0: i32) -> (i32, i32) {
    %c0_i32 = arith.constant 0 : i32
    %c0_i32_0 = arith.constant 0 : i32
    %c0_i32_1 = arith.constant 0 : i32
    return %c0_i32, %c0_i32_0 : i32, i32
  }
  func.func @transform_9(%arg0: i32) -> (i32, i32) {
    %c0_i32 = arith.constant 0 : i32
    %c0_i32_0 = arith.constant 0 : i32
    %c0_i32_1 = arith.constant 0 : i32
    return %c0_i32, %c0_i32_0 : i32, i32
  }
  func.func @transform_10(%arg0: i32) -> (i32, i32) {
    %c0_i32 = arith.constant 0 : i32
    %c0_i32_0 = arith.constant 0 : i32
    return %arg0, %c0_i32 : i32, i32
  }
  func.func @transform_11(%arg0: i32) -> (i32, i32) {
    %c0_i32 = arith.constant 0 : i32
    %c0_i32_0 = arith.constant 0 : i32
    return %arg0, %c0_i32 : i32, i32
  }
  func.func @transform_12(%arg0: i32) -> (i32, i32) {
    %c0_i32 = arith.constant 0 : i32
    %c0_i32_0 = arith.constant 0 : i32
    return %arg0, %c0_i32 : i32, i32
  }
  func.func @transform_13(%arg0: i32) -> (i32, i32) {
    %c0_i32 = arith.constant 0 : i32
    %c0_i32_0 = arith.constant 0 : i32
    return %arg0, %c0_i32 : i32, i32
  }
}

</mosaic_0001>

<llo_original>
// kernel: tpu_custom_call.1
$region0: #{tpu_custom_call.1}
  #allocation0 [shape = 'u32[]', space=smem, size = 0x4, offset = 0x4, fixed_abs, tag = 'smem constant byte address 0x4 - core index']
  #allocation1 [shape = 'u32[144,128]{1,0:T(1,128)}', space=vmem, size = 0x12000, scoped, tag = 'internal scratch']
  %s0 = inlined_call_operand.hbm [shape: bf16[16,128], index: 0, kind: input, shape index: {}]
  %s1 = inlined_call_operand.hbm [shape: f32[16,128], index: 1, kind: input, shape index: {}]
  %s2 = inlined_call_operand.hbm [shape: f32[8,512], index: 2, kind: input, shape index: {}]
  %s3 = inlined_call_operand.hbm [shape: bf16[128,512], index: 3, kind: input, shape index: {}]
  %s4 = inlined_call_operand.hbm [shape: bf16[512,512], index: 4, kind: input, shape index: {}]
  %s5 = inlined_call_operand.hbm [shape: bf16[512,512], index: 5, kind: input, shape index: {}]
  %s6 = inlined_call_operand.hbm [shape: bf16[512,256], index: 6, kind: input, shape index: {}]
  %s7 = inlined_call_operand.hbm [shape: bf16[128,512], index: 7, kind: input, shape index: {}]
  %s8 = inlined_call_operand.hbm [shape: bf16[512,512], index: 8, kind: input, shape index: {}]
  %s9 = inlined_call_operand.hbm [shape: bf16[512,128], index: 9, kind: input, shape index: {}]
  %s10 = inlined_call_operand.hbm [shape: f32[16,128], index: 10, kind: output, shape index: {0}]
  %s11 = inlined_call_operand.hbm [shape: f32[16,128], index: 11, kind: output, shape index: {1}]
  %s12 = inlined_call_operand.hbm [shape: f32[16,128], index: 12, kind: output, shape index: {2}]
  %s13 = inlined_call_operand.hbm [shape: f32[16,128], index: 13, kind: output, shape index: {3}]
  %14 = xla_tuple %s10, %s11, %s12, %s13
  %s15 = sld [smem:[#allocation0]]
  $region114: #{tpu_custom_call.1} parent=0
    _
  %s17 = ssub.s32 1, %s15
  %s18 = scalar_select 0, %s17, %s15
  $region1: #{tpu_custom_call.1} parent=0
    #allocation2 [shape = 'u8[4096]{0}', space=vmem, size = 0x1000, scoped, tag = 'input window, operand 0, single buffered']
    #allocation3 [shape = 's32[1]{0}', space=sflag, size = 0x4, scoped, tag = 'scoped memory for tpu_custom_call.1']
    #allocation4 [shape = 's32[1]{0}', space=sflag, size = 0x4, scoped, tag = 'scoped memory for tpu_custom_call.1']
    #allocation5 [shape = 'u8[8192]{0}', space=vmem, size = 0x2000, scoped, tag = 'input window, operand 1, single buffered']
    #allocation6 [shape = 's32[1]{0}', space=sflag, size = 0x4, scoped, tag = 'scoped memory for tpu_custom_call.1']
    #allocation7 [shape = 'u8[16384]{0}', space=vmem, size = 0x4000, scoped, tag = 'input window, operand 2, single buffered']
    #allocation8 [shape = 'u8[131072]{0}', space=vmem, size = 0x20000, scoped, tag = 'input window, operand 3, single buffered']
    #allocation9 [shape = 's32[1]{0}', space=sflag, size = 0x4, scoped, tag = 'scoped memory for tpu_custom_call.1']
    #allocation10 [shape = 'u8[524288]{0}', space=vmem, size = 0x80000, scoped, tag = 'input window, operand 4, single buffered']
    #allocation11 [shape = 'u8[524288]{0}', space=vmem, size = 0x80000, scoped, tag = 'input window, operand 5, single buffered']
    #allocation12 [shape = 's32[1]{0}', space=sflag, size = 0x4, scoped, tag = 'scoped memory for tpu_custom_call.1']
    #allocation13 [shape = 'u8[262144]{0}', space=vmem, size = 0x40000, scoped, tag = 'input window, operand 6, single buffered']
    #allocation14 [shape = 'u8[131072]{0}', space=vmem, size = 0x20000, scoped, tag = 'input window, operand 7, single buffered']
    #allocation15 [shape = 's32[1]{0}', space=sflag, size = 0x4, scoped, tag = 'scoped memory for tpu_custom_call.1']
    #allocation16 [shape = 'u8[524288]{0}', space=vmem, size = 0x80000, scoped, tag = 'input window, operand 8, single buffered']
    #allocation17 [shape = 'u8[131072]{0}', space=vmem, size = 0x20000, scoped, tag = 'input window, operand 9, single buffered']
    #allocation18 [shape = 's32[1]{0}', space=sflag, size = 0x4, scoped, tag = 'scoped memory for tpu_custom_call.1']
    #allocation19 [shape = 'u8[8192]{0}', space=vmem, size = 0x2000, scoped, tag = 'output window, operand 0, single buffered']
    #allocation20 [shape = 'u8[8192]{0}', space=vmem, size = 0x2000, scoped, tag = 'output window, operand 1, single buffered']
    #allocation21 [shape = 's32[1]{0}', space=sflag, size = 0x4, scoped, tag = 'scoped memory for tpu_custom_call.1']
    #allocation22 [shape = 'u8[8192]{0}', space=vmem, size = 0x2000, scoped, tag = 'output window, operand 2, single buffered']
    #allocation23 [shape = 'u8[8192]{0}', space=vmem, size = 0x2000, scoped, tag = 'output window, operand 3, single buffered']
    #allocation24 [shape = 's32[1]{0}', space=sflag, size = 0x4, scoped, tag = 'scoped memory for tpu_custom_call.1']
    %19 = vsyncpa [#allocation3], 0
    %20 = vsyncpa [#allocation6], 0
    %21 = vsyncpa [#allocation9], 0
    %22 = vsyncpa [#allocation12], 0
    %23 = vsyncpa [#allocation15], 0
    %24 = vsyncpa [#allocation18], 0
    %25 = vsyncpa [#allocation4], 0
    %26 = vsyncpa [#allocation21], 0
    %27 = vsyncpa [#allocation24], 0
    // Predicated region
    $region2: #{tpu_custom_call.1} parent=1 // pred_check
      _
    $region3: #{tpu_custom_call.1} parent=1 // pred_check_branch
      %29 = sbr.rel (0) target = $region5
    $region4: #{tpu_custom_call.1} parent=1 // pred_region
      %s31 = ssub.s32 128, 128
      %32 = vsyncadd [#allocation3], %s31
      %s33 = sshll.u32 [#allocation2], 4
      %s34 = int_to_ptr.vmem [resolvable:$true] %s33
      %39 = dma.hbm_to_vmem [thread:$0]  %s0, 128, %s34, [#allocation3], 64, 64, 4
    $region5: #{tpu_custom_call.1} parent=1 // pred_fallthru
      _
    // Predicated region
    $region6: #{tpu_custom_call.1} parent=1 // pred_check
      _
    $region7: #{tpu_custom_call.1} parent=1 // pred_check_branch
      %41 = sbr.rel (0) target = $region9
    $region8: #{tpu_custom_call.1} parent=1 // pred_region
      %s43 = ssub.s32 256, 256
      %44 = vsyncadd [#allocation6], %s43
      %s45 = sshll.u32 [#allocation5], 4
      %s46 = int_to_ptr.vmem [resolvable:$true] %s45
      %51 = dma.hbm_to_vmem [thread:$0]  %s1, 256, %s46, [#allocation6], 128, 128, 8
    $region9: #{tpu_custom_call.1} parent=1 // pred_fallthru
      _
    // Predicated region
    $region10: #{tpu_custom_call.1} parent=1 // pred_check
      _
    $region11: #{tpu_custom_call.1} parent=1 // pred_check_branch
      %53 = sbr.rel (0) target = $region13
    $region12: #{tpu_custom_call.1} parent=1 // pred_region
      %s55 = ssub.s32 512, 512
      %56 = vsyncadd [#allocation6], %s55
      %s58 = sshll.u32 [#allocation7], 4
      %s59 = int_to_ptr.vmem [resolvable:$true] %s58
      %61 = dma.hbm_to_vmem [thread:$0]  %s2, 512, %s59, [#allocation6]
    $region13: #{tpu_custom_call.1} parent=1 // pred_fallthru
      _
    // Predicated region
    $region14: #{tpu_custom_call.1} parent=1 // pred_check
      _
    $region15: #{tpu_custom_call.1} parent=1 // pred_check_branch
      %63 = sbr.rel (0) target = $region17
    $region16: #{tpu_custom_call.1} parent=1 // pred_region
      %s65 = ssub.s32 4096, 4096
      %66 = vsyncadd [#allocation9], %s65
      %s67 = sshll.u32 [#allocation8], 4
      %s68 = int_to_ptr.vmem [resolvable:$true] %s67
      %73 = dma.hbm_to_vmem [thread:$0]  %s3, 4096, %s68, [#allocation9], 256, 256, 16
    $region17: #{tpu_custom_call.1} parent=1 // pred_fallthru
      _
    // Predicated region
    $region18: #{tpu_custom_call.1} parent=1 // pred_check
      _
    $region19: #{tpu_custom_call.1} parent=1 // pred_check_branch
      %75 = sbr.rel (0) target = $region21
    $region20: #{tpu_custom_call.1} parent=1 // pred_region
      %s77 = ssub.s32 16384, 16384
      %78 = vsyncadd [#allocation9], %s77
      %s79 = sshll.u32 [#allocation10], 4
      %s80 = int_to_ptr.vmem [resolvable:$true] %s79
      %85 = dma.hbm_to_vmem [thread:$0]  %s4, 16384, %s80, [#allocation9], 256, 256, 16
    $region21: #{tpu_custom_call.1} parent=1 // pred_fallthru
      _
    // Predicated region
    $region22: #{tpu_custom_call.1} parent=1 // pred_check
      _
    $region23: #{tpu_custom_call.1} parent=1 // pred_check_branch
      %87 = sbr.rel (0) target = $region25
    $region24: #{tpu_custom_call.1} parent=1 // pred_region
      %s89 = ssub.s32 16384, 16384
      %90 = vsyncadd [#allocation12], %s89
      %s91 = sshll.u32 [#allocation11], 4
      %s92 = int_to_ptr.vmem [resolvable:$true] %s91
      %97 = dma.hbm_to_vmem [thread:$0]  %s5, 16384, %s92, [#allocation12], 256, 256, 16
    $region25: #{tpu_custom_call.1} parent=1 // pred_fallthru
      _
    // Predicated region
    $region26: #{tpu_custom_call.1} parent=1 // pred_check
      _
    $region27: #{tpu_custom_call.1} parent=1 // pred_check_branch
      %99 = sbr.rel (0) target = $region29
    $region28: #{tpu_custom_call.1} parent=1 // pred_region
      %s101 = ssub.s32 8192, 8192
      %102 = vsyncadd [#allocation12], %s101
      %s103 = sshll.u32 [#allocation13], 4
      %s104 = int_to_ptr.vmem [resolvable:$true] %s103
      %109 = dma.hbm_to_vmem [thread:$0]  %s6, 8192, %s104, [#allocation12], 128, 128, 8
    $region29: #{tpu_custom_call.1} parent=1 // pred_fallthru
      _
    // Predicated region
    $region30: #{tpu_custom_call.1} parent=1 // pred_check
      _
    $region31: #{tpu_custom_call.1} parent=1 // pred_check_branch
      %111 = sbr.rel (0) target = $region33
    $region32: #{tpu_custom_call.1} parent=1 // pred_region
      %s113 = ssub.s32 4096, 4096
      %114 = vsyncadd [#allocation15], %s113
      %s115 = sshll.u32 [#allocation14], 4
      %s116 = int_to_ptr.vmem [resolvable:$true] %s115
      %121 = dma.hbm_to_vmem [thread:$0]  %s7, 4096, %s116, [#allocation15], 256, 256, 16
    $region33: #{tpu_custom_call.1} parent=1 // pred_fallthru
      _
    // Predicated region
    $region34: #{tpu_custom_call.1} parent=1 // pred_check
      _
    $region35: #{tpu_custom_call.1} parent=1 // pred_check_branch
      %123 = sbr.rel (0) target = $region37
    $region36: #{tpu_custom_call.1} parent=1 // pred_region
      %s125 = ssub.s32 16384, 16384
      %126 = vsyncadd [#allocation15], %s125
      %s127 = sshll.u32 [#allocation16], 4
      %s128 = int_to_ptr.vmem [resolvable:$true] %s127
      %133 = dma.hbm_to_vmem [thread:$0]  %s8, 16384, %s128, [#allocation15], 256, 256, 16
    $region37: #{tpu_custom_call.1} parent=1 // pred_fallthru
      _
    // Predicated region
    $region38: #{tpu_custom_call.1} parent=1 // pred_check
      _
    $region39: #{tpu_custom_call.1} parent=1 // pred_check_branch
      %135 = sbr.rel (0) target = $region41
    $region40: #{tpu_custom_call.1} parent=1 // pred_region
      %s137 = ssub.s32 4096, 4096
      %138 = vsyncadd [#allocation18], %s137
      %s139 = sshll.u32 [#allocation17], 4
      %s140 = int_to_ptr.vmem [resolvable:$true] %s139
      %145 = dma.hbm_to_vmem [thread:$0]  %s9, 4096, %s140, [#allocation18], 64, 64, 4
    $region41: #{tpu_custom_call.1} parent=1 // pred_fallthru
      _
    // Predicated region
    $region42: #{tpu_custom_call.1} parent=1 // pred_check
      _
    $region43: #{tpu_custom_call.1} parent=1 // pred_check_branch
      %147 = sbr.rel (0) target = $region45
    $region44: #{tpu_custom_call.1} parent=1 // pred_region
      %148 = dma.done [#allocation3], 128
    $region45: #{tpu_custom_call.1} parent=1 // pred_fallthru
      _
    // Predicated region
    $region46: #{tpu_custom_call.1} parent=1 // pred_check
      _
    $region47: #{tpu_custom_call.1} parent=1 // pred_check_branch
      %150 = sbr.rel (0) target = $region49
    $region48: #{tpu_custom_call.1} parent=1 // pred_region
      %151 = dma.done [#allocation6], 256
    $region49: #{tpu_custom_call.1} parent=1 // pred_fallthru
      _
    // Predicated region
    $region50: #{tpu_custom_call.1} parent=1 // pred_check
      _
    $region51: #{tpu_custom_call.1} parent=1 // pred_check_branch
      %153 = sbr.rel (0) target = $region53
    $region52: #{tpu_custom_call.1} parent=1 // pred_region
      %154 = dma.done [#allocation6], 512
    $region53: #{tpu_custom_call.1} parent=1 // pred_fallthru
      _
    // Predicated region
    $region54: #{tpu_custom_call.1} parent=1 // pred_check
      _
    $region55: #{tpu_custom_call.1} parent=1 // pred_check_branch
      %156 = sbr.rel (0) target = $region57
    $region56: #{tpu_custom_call.1} parent=1 // pred_region
      %157 = dma.done [#allocation9], 4096
    $region57: #{tpu_custom_call.1} parent=1 // pred_fallthru
      _
    // Predicated region
    $region58: #{tpu_custom_call.1} parent=1 // pred_check
      _
    $region59: #{tpu_custom_call.1} parent=1 // pred_check_branch
      %159 = sbr.rel (0) target = $region61
    $region60: #{tpu_custom_call.1} parent=1 // pred_region
      %160 = dma.done [#allocation9], 16384
    $region61: #{tpu_custom_call.1} parent=1 // pred_fallthru
      _
    // Predicated region
    $region62: #{tpu_custom_call.1} parent=1 // pred_check
      _
    $region63: #{tpu_custom_call.1} parent=1 // pred_check_branch
      %162 = sbr.rel (0) target = $region65
    $region64: #{tpu_custom_call.1} parent=1 // pred_region
      %163 = dma.done [#allocation12], 16384
    $region65: #{tpu_custom_call.1} parent=1 // pred_fallthru
      _
    // Predicated region
    $region66: #{tpu_custom_call.1} parent=1 // pred_check
      _
    $region67: #{tpu_custom_call.1} parent=1 // pred_check_branch
      %165 = sbr.rel (0) target = $region69
    $region68: #{tpu_custom_call.1} parent=1 // pred_region
      %166 = dma.done [#allocation12], 8192
    $region69: #{tpu_custom_call.1} parent=1 // pred_fallthru
      _
    // Predicated region
    $region70: #{tpu_custom_call.1} parent=1 // pred_check
      _
    $region71: #{tpu_custom_call.1} parent=1 // pred_check_branch
      %168 = sbr.rel (0) target = $region73
    $region72: #{tpu_custom_call.1} parent=1 // pred_region
      %169 = dma.done [#allocation15], 4096
    $region73: #{tpu_custom_call.1} parent=1 // pred_fallthru
      _
    // Predicated region
    $region74: #{tpu_custom_call.1} parent=1 // pred_check
      _
    $region75: #{tpu_custom_call.1} parent=1 // pred_check_branch
      %171 = sbr.rel (0) target = $region77
    $region76: #{tpu_custom_call.1} parent=1 // pred_region
      %172 = dma.done [#allocation15], 16384
    $region77: #{tpu_custom_call.1} parent=1 // pred_fallthru
      _
    // Predicated region
    $region78: #{tpu_custom_call.1} parent=1 // pred_check
      _
    $region79: #{tpu_custom_call.1} parent=1 // pred_check_branch
      %174 = sbr.rel (0) target = $region81
    $region80: #{tpu_custom_call.1} parent=1 // pred_region
      %175 = dma.done [#allocation18], 4096
    $region81: #{tpu_custom_call.1} parent=1 // pred_fallthru
      _
    %v177 = vld [vmem:[#allocation2] sm:$0xf]
    %v178 = vld [vmem:[#allocation2 + $0x4] sm:$0xf]
    %v179 = vld [vmem:[#allocation8] sm:$0xff]
    %v180 = vld [vmem:[#allocation8 + $0x8] sm:$0xff]
    %v181 = vld [vmem:[#allocation8 + $0x10] sm:$0xff]
    %v182 = vld [vmem:[#allocation8 + $0x18] sm:$0xff]
    %v183 = vld [vmem:[#allocation8 + $0x20] sm:$0xff]
    %v184 = vld [vmem:[#allocation8 + $0x28] sm:$0xff]
    %v185 = vld [vmem:[#allocation8 + $0x30] sm:$0xff]
    %v186 = vld [vmem:[#allocation8 + $0x38] sm:$0xff]
    %v187 = vld [vmem:[#allocation8 + $0x40] sm:$0xff]
    %v188 = vld [vmem:[#allocation8 + $0x48] sm:$0xff]
    %v189 = vld [vmem:[#allocation8 + $0x50] sm:$0xff]
    %v190 = vld [vmem:[#allocation8 + $0x58] sm:$0xff]
    %v191 = vld [vmem:[#allocation8 + $0x60] sm:$0xff]
    %v192 = vld [vmem:[#allocation8 + $0x68] sm:$0xff]
    %v193 = vld [vmem:[#allocation8 + $0x70] sm:$0xff]
    %v194 = vld [vmem:[#allocation8 + $0x78] sm:$0xff]
    %v195 = vld [vmem:[#allocation8 + $0x80] sm:$0xff]
    %v196 = vld [vmem:[#allocation8 + $0x88] sm:$0xff]
    %v197 = vld [vmem:[#allocation8 + $0x90] sm:$0xff]
    %v198 = vld [vmem:[#allocation8 + $0x98] sm:$0xff]
    %v199 = vld [vmem:[#allocation8 + $0xa0] sm:$0xff]
    %v200 = vld [vmem:[#allocation8 + $0xa8] sm:$0xff]
    %v201 = vld [vmem:[#allocation8 + $0xb0] sm:$0xff]
    %v202 = vld [vmem:[#allocation8 + $0xb8] sm:$0xff]
    %v203 = vld [vmem:[#allocation8 + $0xc0] sm:$0xff]
    %v204 = vld [vmem:[#allocation8 + $0xc8] sm:$0xff]
    %v205 = vld [vmem:[#allocation8 + $0xd0] sm:$0xff]
    %v206 = vld [vmem:[#allocation8 + $0xd8] sm:$0xff]
    %v207 = vld [vmem:[#allocation8 + $0xe0] sm:$0xff]
    %v208 = vld [vmem:[#allocation8 + $0xe8] sm:$0xff]
    %v209 = vld [vmem:[#allocation8 + $0xf0] sm:$0xff]
    %v210 = vld [vmem:[#allocation8 + $0xf8] sm:$0xff]
    %v211 = vld [vmem:[#allocation7] ss:$8 sm:$0xf]
    %v213 = vlaneseq
    %v214 = vshrl.u32 %v213, 7
    %v215 = vsub.s32 0, %v214
    %v216 = vrot.slane %v211, %v215
    %v217 = vlaneseq
    %v218 = vshrl.u32 %v217, 7
    %v219 = vsub.s32 1, %v218
    %v220 = vrot.slane %v211, %v219
    %v221 = vlaneseq
    %v222 = vshrl.u32 %v221, 7
    %v223 = vsub.s32 2, %v222
    %v224 = vrot.slane %v211, %v223
    %v225 = vlaneseq
    %v226 = vshrl.u32 %v225, 7
    %v227 = vsub.s32 3, %v226
    %v228 = vrot.slane %v211, %v227
    %v235 = vunpack.c.l.b16 %v177
    %v236 = vunpack.c.l.b16 %v178
    %v237 = vpack.c.b16 %v236, %v235
    %v271 = vunpack.c.l.b16 %v179
    %v272 = vunpack.c.h.b16 %v179
    %v273 = vunpack.c.l.b16 %v180
    %v274 = vunpack.c.h.b16 %v180
    %v275 = vunpack.c.l.b16 %v181
    %v276 = vunpack.c.h.b16 %v181
    %v277 = vunpack.c.l.b16 %v182
    %v278 = vunpack.c.h.b16 %v182
    %v279 = vunpack.c.l.b16 %v183
    %v280 = vunpack.c.h.b16 %v183
    %v281 = vunpack.c.l.b16 %v184
    %v282 = vunpack.c.h.b16 %v184
    %v283 = vunpack.c.l.b16 %v185
    %v284 = vunpack.c.h.b16 %v185
    %v285 = vunpack.c.l.b16 %v186
    %v286 = vunpack.c.h.b16 %v186
    %v287 = vunpack.c.l.b16 %v187
    %v288 = vunpack.c.h.b16 %v187
    %v289 = vunpack.c.l.b16 %v188
    %v290 = vunpack.c.h.b16 %v188
    %v291 = vunpack.c.l.b16 %v189
    %v292 = vunpack.c.h.b16 %v189
    %v293 = vunpack.c.l.b16 %v190
    %v294 = vunpack.c.h.b16 %v190
    %v295 = vunpack.c.l.b16 %v191
    %v296 = vunpack.c.h.b16 %v191
    %v297 = vunpack.c.l.b16 %v192
    %v298 = vunpack.c.h.b16 %v192
    %v299 = vunpack.c.l.b16 %v193
    %v300 = vunpack.c.h.b16 %v193
    %v301 = vunpack.c.l.b16 %v194
    %v302 = vunpack.c.h.b16 %v194
    %v303 = vunpack.c.l.b16 %v195
    %v304 = vunpack.c.h.b16 %v195
    %v305 = vunpack.c.l.b16 %v196
    %v306 = vunpack.c.h.b16 %v196
    %v307 = vunpack.c.l.b16 %v197
    %v308 = vunpack.c.h.b16 %v197
    %v309 = vunpack.c.l.b16 %v198
    %v310 = vunpack.c.h.b16 %v198
    %v311 = vunpack.c.l.b16 %v199
    %v312 = vunpack.c.h.b16 %v199
    %v313 = vunpack.c.l.b16 %v200
    %v314 = vunpack.c.h.b16 %v200
    %v315 = vunpack.c.l.b16 %v201
    %v316 = vunpack.c.h.b16 %v201
    %v317 = vunpack.c.l.b16 %v202
    %v318 = vunpack.c.h.b16 %v202
    %v319 = vunpack.c.l.b16 %v203
    %v320 = vunpack.c.h.b16 %v203
    %v321 = vunpack.c.l.b16 %v204
    %v322 = vunpack.c.h.b16 %v204
    %v323 = vunpack.c.l.b16 %v205
    %v324 = vunpack.c.h.b16 %v205
    %v325 = vunpack.c.l.b16 %v206
    %v326 = vunpack.c.h.b16 %v206
    %v327 = vunpack.c.l.b16 %v207
    %v328 = vunpack.c.h.b16 %v207
    %v329 = vunpack.c.l.b16 %v208
    %v330 = vunpack.c.h.b16 %v208
    %v331 = vunpack.c.l.b16 %v209
    %v332 = vunpack.c.h.b16 %v209
    %v333 = vunpack.c.l.b16 %v210
    %v334 = vunpack.c.h.b16 %v210
    %v335 = vpack.c.b16 %v275, %v271
    %v336 = vpack.c.b16 %v276, %v272
    %v337 = vpack.c.b16 %v277, %v273
    %v338 = vpack.c.b16 %v278, %v274
    %v339 = vpack.c.b16 %v283, %v279
    %v340 = vpack.c.b16 %v284, %v280
    %v341 = vpack.c.b16 %v285, %v281
    %v342 = vpack.c.b16 %v286, %v282
    %v343 = vpack.c.b16 %v291, %v287
    %v344 = vpack.c.b16 %v292, %v288
    %v345 = vpack.c.b16 %v293, %v289
    %v346 = vpack.c.b16 %v294, %v290
    %v347 = vpack.c.b16 %v299, %v295
    %v348 = vpack.c.b16 %v300, %v296
    %v349 = vpack.c.b16 %v301, %v297
    %v350 = vpack.c.b16 %v302, %v298
    %v351 = vpack.c.b16 %v307, %v303
    %v352 = vpack.c.b16 %v308, %v304
    %v353 = vpack.c.b16 %v309, %v305
    %v354 = vpack.c.b16 %v310, %v306
    %v355 = vpack.c.b16 %v315, %v311
    %v356 = vpack.c.b16 %v316, %v312
    %v357 = vpack.c.b16 %v317, %v313
    %v358 = vpack.c.b16 %v318, %v314
    %v359 = vpack.c.b16 %v323, %v319
    %v360 = vpack.c.b16 %v324, %v320
    %v361 = vpack.c.b16 %v325, %v321
    %v362 = vpack.c.b16 %v326, %v322
    %v363 = vpack.c.b16 %v331, %v327
    %v364 = vpack.c.b16 %v332, %v328
    %v365 = vpack.c.b16 %v333, %v329
    %v366 = vpack.c.b16 %v334, %v330
    %399 = vmatprep.subr.bf16.mxu0 %v336
    %400 = vmatpush1.bf16.msra.mxu0 %v335
    %401 = vmatprep.subr.bf16.mxu0 %v340
    %402 = vmatpush1.bf16.msra.mxu0 %v339
    %403 = vmatprep.subr.bf16.mxu0 %v344
    %404 = vmatpush1.bf16.msra.mxu0 %v343
    %405 = vmatprep.subr.bf16.mxu0 %v348
    %406 = vmatpush1.bf16.msra.mxu0 %v347
    %407 = vmatprep.subr.bf16.mxu0 %v352
    %408 = vmatpush1.bf16.msra.mxu0 %v351
    %409 = vmatprep.subr.bf16.mxu0 %v356
    %410 = vmatpush1.bf16.msra.mxu0 %v355
    %411 = vmatprep.subr.bf16.mxu0 %v360
    %412 = vmatpush1.bf16.msra.mxu0 %v359
    %413 = vmatprep.subr.bf16.mxu0 %v364
    %414 = vmatpush1.bf16.msra.mxu0 %v363
    %415 = vmatprep.subr.bf16.mxu0 0
    %416 = vmatpush1.bf16.msra.mxu0 0
    %417 = vmatprep.subr.bf16.mxu0 0
    %418 = vmatpush1.bf16.msra.mxu0 0
    %419 = vmatprep.subr.bf16.mxu0 0
    %420 = vmatpush1.bf16.msra.mxu0 0
    %421 = vmatprep.subr.bf16.mxu0 0
    %422 = vmatpush1.bf16.msra.mxu0 0
    %423 = vmatprep.subr.bf16.mxu0 0
    %424 = vmatpush1.bf16.msra.mxu0 0
    %425 = vmatprep.subr.bf16.mxu0 0
    %426 = vmatpush1.bf16.msra.mxu0 0
    %427 = vmatprep.subr.bf16.mxu0 0
    %428 = vmatpush1.bf16.msra.mxu0 0
    %429 = vmatprep.subr.bf16.mxu0 0
    %430 = vmatpush1.bf16.msra.mxu0 0
    %431 = vmatprep.mubr.bf16.mxu0 0
    %432 = vmatmul.mubr.bf16.gmra.mrb[0].mxu0 %v237
    %v433 = vpop.f32.mrb[0].mxu0
    %v434 = vadd.f32 %v216, %v433
    %v435 = vpop.f32.mrb[0].mxu0
    %v436 = vadd.f32 %v220, %v435
    %v437 = vpop.f32.mrb[0].mxu0
    %v438 = vadd.f32 %v216, %v437
    %v439 = vpop.f32.mrb[0].mxu0
    %v440 = vadd.f32 %v220, %v439
    %441 = vdwg.mxu0
    %442 = vmatprep.subr.bf16.mxu0 %v338
    %443 = vmatpush1.bf16.msra.mxu0 %v337
    %444 = vmatprep.subr.bf16.mxu0 %v342
    %445 = vmatpush1.bf16.msra.mxu0 %v341
    %446 = vmatprep.subr.bf16.mxu0 %v346
    %447 = vmatpush1.bf16.msra.mxu0 %v345
    %448 = vmatprep.subr.bf16.mxu0 %v350
    %449 = vmatpush1.bf16.msra.mxu0 %v349
    %450 = vmatprep.subr.bf16.mxu0 %v354
    %451 = vmatpush1.bf16.msra.mxu0 %v353
    %452 = vmatprep.subr.bf16.mxu0 %v358
    %453 = vmatpush1.bf16.msra.mxu0 %v357
    %454 = vmatprep.subr.bf16.mxu0 %v362
    %455 = vmatpush1.bf16.msra.mxu0 %v361
    %456 = vmatprep.subr.bf16.mxu0 %v366
    %457 = vmatpush1.bf16.msra.mxu0 %v365
    %458 = vmatprep.subr.bf16.mxu0 0
    %459 = vmatpush1.bf16.msra.mxu0 0
    %460 = vmatprep.subr.bf16.mxu0 0
    %461 = vmatpush1.bf16.msra.mxu0 0
    %462 = vmatprep.subr.bf16.mxu0 0
    %463 = vmatpush1.bf16.msra.mxu0 0
    %464 = vmatprep.subr.bf16.mxu0 0
    %465 = vmatpush1.bf16.msra.mxu0 0
    %466 = vmatprep.subr.bf16.mxu0 0
    %467 = vmatpush1.bf16.msra.mxu0 0
    %468 = vmatprep.subr.bf16.mxu0 0
    %469 = vmatpush1.bf16.msra.mxu0 0
    %470 = vmatprep.subr.bf16.mxu0 0
    %471 = vmatpush1.bf16.msra.mxu0 0
    %472 = vmatprep.subr.bf16.mxu0 0
    %473 = vmatpush1.bf16.msra.mxu0 0
    %474 = vmatprep.mubr.bf16.mxu0 0
    %475 = vmatmul.mubr.bf16.gmra.mrb[0].mxu0 %v237
    %v476 = vpop.f32.mrb[0].mxu0
    %v477 = vadd.f32 %v224, %v476
    %v478 = vpop.f32.mrb[0].mxu0
    %v479 = vadd.f32 %v228, %v478
    %v480 = vpop.f32.mrb[0].mxu0
    %v481 = vadd.f32 %v224, %v480
    %v482 = vpop.f32.mrb[0].mxu0
    %v483 = vadd.f32 %v228, %v482
    %484 = vdwg.mxu0
    %v485 = vmax.f32 %v434, 0.0
    %v486 = vmax.f32 %v436, 0.0
    %v487 = vmax.f32 %v477, 0.0
    %v488 = vmax.f32 %v479, 0.0
    %v489 = vmax.f32 %v438, 0.0
    %v490 = vmax.f32 %v440, 0.0
    %v491 = vmax.f32 %v481, 0.0
    %v492 = vmax.f32 %v483, 0.0
    %v493 = vpack.c.bf16 %v489, %v485
    %v494 = vpack.c.bf16 %v490, %v486
    %v495 = vpack.c.bf16 %v491, %v487
    %v496 = vpack.c.bf16 %v492, %v488
    %v497 = vld [vmem:[#allocation10] sm:$0xff]
    %v498 = vld [vmem:[#allocation10 + $0x8] sm:$0xff]
    %v499 = vld [vmem:[#allocation10 + $0x10] sm:$0xff]
    %v500 = vld [vmem:[#allocation10 + $0x18] sm:$0xff]
    %v501 = vld [vmem:[#allocation10 + $0x20] sm:$0xff]
    %v502 = vld [vmem:[#allocation10 + $0x28] sm:$0xff]
    %v503 = vld [vmem:[#allocation10 + $0x30] sm:$0xff]
    %v504 = vld [vmem:[#allocation10 + $0x38] sm:$0xff]
    %v505 = vld [vmem:[#allocation10 + $0x40] sm:$0xff]
    %v506 = vld [vmem:[#allocation10 + $0x48] sm:$0xff]
    %v507 = vld [vmem:[#allocation10 + $0x50] sm:$0xff]
    %v508 = vld [vmem:[#allocation10 + $0x58] sm:$0xff]
    %v509 = vld [vmem:[#allocation10 + $0x60] sm:$0xff]
    %v510 = vld [vmem:[#allocation10 + $0x68] sm:$0xff]
    %v511 = vld [vmem:[#allocation10 + $0x70] sm:$0xff]
    %v512 = vld [vmem:[#allocation10 + $0x78] sm:$0xff]
    %v513 = vld [vmem:[#allocation10 + $0x80] sm:$0xff]
    %v514 = vld [vmem:[#allocation10 + $0x88] sm:$0xff]
    %v515 = vld [vmem:[#allocation10 + $0x90] sm:$0xff]
    %v516 = vld [vmem:[#allocation10 + $0x98] sm:$0xff]
    %v517 = vld [vmem:[#allocation10 + $0xa0] sm:$0xff]
    %v518 = vld [vmem:[#allocation10 + $0xa8] sm:$0xff]
    %v519 = vld [vmem:[#allocation10 + $0xb0] sm:$0xff]
    %v520 = vld [vmem:[#allocation10 + $0xb8] sm:$0xff]
    %v521 = vld [vmem:[#allocation10 + $0xc0] sm:$0xff]
    %v522 = vld [vmem:[#allocation10 + $0xc8] sm:$0xff]
    %v523 = vld [vmem:[#allocation10 + $0xd0] sm:$0xff]
    %v524 = vld [vmem:[#allocation10 + $0xd8] sm:$0xff]
    %v525 = vld [vmem:[#allocation10 + $0xe0] sm:$0xff]
    %v526 = vld [vmem:[#allocation10 + $0xe8] sm:$0xff]
    %v527 = vld [vmem:[#allocation10 + $0xf0] sm:$0xff]
    %v528 = vld [vmem:[#allocation10 + $0xf8] sm:$0xff]
    %v529 = vld [vmem:[#allocation10 + $0x100] sm:$0xff]
    %v530 = vld [vmem:[#allocation10 + $0x108] sm:$0xff]
    %v531 = vld [vmem:[#allocation10 + $0x110] sm:$0xff]
    %v532 = vld [vmem:[#allocation10 + $0x118] sm:$0xff]
    %v533 = vld [vmem:[#allocation10 + $0x120] sm:$0xff]
    %v534 = vld [vmem:[#allocation10 + $0x128] sm:$0xff]
    %v535 = vld [vmem:[#allocation10 + $0x130] sm:$0xff]
    %v536 = vld [vmem:[#allocation10 + $0x138] sm:$0xff]
    %v537 = vld [vmem:[#allocation10 + $0x140] sm:$0xff]
    %v538 = vld [vmem:[#allocation10 + $0x148] sm:$0xff]
    %v539 = vld [vmem:[#allocation10 + $0x150] sm:$0xff]
    %v540 = vld [vmem:[#allocation10 + $0x158] sm:$0xff]
    %v541 = vld [vmem:[#allocation10 + $0x160] sm:$0xff]
    %v542 = vld [vmem:[#allocation10 + $0x168] sm:$0xff]
    %v543 = vld [vmem:[#allocation10 + $0x170] sm:$0xff]
    %v544 = vld [vmem:[#allocation10 + $0x178] sm:$0xff]
    %v545 = vld [vmem:[#allocation10 + $0x180] sm:$0xff]
    %v546 = vld [vmem:[#allocation10 + $0x188] sm:$0xff]
    %v547 = vld [vmem:[#allocation10 + $0x190] sm:$0xff]
    %v548 = vld [vmem:[#allocation10 + $0x198] sm:$0xff]
    %v549 = vld [vmem:[#allocation10 + $0x1a0] sm:$0xff]
    %v550 = vld [vmem:[#allocation10 + $0x1a8] sm:$0xff]
    %v551 = vld [vmem:[#allocation10 + $0x1b0] sm:$0xff]
    %v552 = vld [vmem:[#allocation10 + $0x1b8] sm:$0xff]
    %v553 = vld [vmem:[#allocation10 + $0x1c0] sm:$0xff]
    %v554 = vld [vmem:[#allocation10 + $0x1c8] sm:$0xff]
    %v555 = vld [vmem:[#allocation10 + $0x1d0] sm:$0xff]
    %v556 = vld [vmem:[#allocation10 + $0x1d8] sm:$0xff]
    %v557 = vld [vmem:[#allocation10 + $0x1e0] sm:$0xff]
    %v558 = vld [vmem:[#allocation10 + $0x1e8] sm:$0xff]
    %v559 = vld [vmem:[#allocation10 + $0x1f0] sm:$0xff]
    %v560 = vld [vmem:[#allocation10 + $0x1f8] sm:$0xff]
    %v561 = vld [vmem:[#allocation10 + $0x200] sm:$0xff]
    %v562 = vld [vmem:[#allocation10 + $0x208] sm:$0xff]
    %v563 = vld [vmem:[#allocation10 + $0x210] sm:$0xff]
    %v564 = vld [vmem:[#allocation10 + $0x218] sm:$0xff]
    %v565 = vld [vmem:[#allocation10 + $0x220] sm:$0xff]
    %v566 = vld [vmem:[#allocation10 + $0x228] sm:$0xff]
    %v567 = vld [vmem:[#allocation10 + $0x230] sm:$0xff]
    %v568 = vld [vmem:[#allocation10 + $0x238] sm:$0xff]
    %v569 = vld [vmem:[#allocation10 + $0x240] sm:$0xff]
    %v570 = vld [vmem:[#allocation10 + $0x248] sm:$0xff]
    %v571 = vld [vmem:[#allocation10 + $0x250] sm:$0xff]
    %v572 = vld [vmem:[#allocation10 + $0x258] sm:$0xff]
    %v573 = vld [vmem:[#allocation10 + $0x260] sm:$0xff]
    %v574 = vld [vmem:[#allocation10 + $0x268] sm:$0xff]
    %v575 = vld [vmem:[#allocation10 + $0x270] sm:$0xff]
    %v576 = vld [vmem:[#allocation10 + $0x278] sm:$0xff]
    %v577 = vld [vmem:[#allocation10 + $0x280] sm:$0xff]
    %v578 = vld [vmem:[#allocation10 + $0x288] sm:$0xff]
    %v579 = vld [vmem:[#allocation10 + $0x290] sm:$0xff]
    %v580 = vld [vmem:[#allocation10 + $0x298] sm:$0xff]
    %v581 = vld [vmem:[#allocation10 + $0x2a0] sm:$0xff]
    %v582 = vld [vmem:[#allocation10 + $0x2a8] sm:$0xff]
    %v583 = vld [vmem:[#allocation10 + $0x2b0] sm:$0xff]
    %v584 = vld [vmem:[#allocation10 + $0x2b8] sm:$0xff]
    %v585 = vld [vmem:[#allocation10 + $0x2c0] sm:$0xff]
    %v586 = vld [vmem:[#allocation10 + $0x2c8] sm:$0xff]
    %v587 = vld [vmem:[#allocation10 + $0x2d0] sm:$0xff]
    %v588 = vld [vmem:[#allocation10 + $0x2d8] sm:$0xff]
    %v589 = vld [vmem:[#allocation10 + $0x2e0] sm:$0xff]
    %v590 = vld [vmem:[#allocation10 + $0x2e8] sm:$0xff]
    %v591 = vld [vmem:[#allocation10 + $0x2f0] sm:$0xff]
    %v592 = vld [vmem:[#allocation10 + $0x2f8] sm:$0xff]
    %v593 = vld [vmem:[#allocation10 + $0x300] sm:$0xff]
    %v594 = vld [vmem:[#allocation10 + $0x308] sm:$0xff]
    %v595 = vld [vmem:[#allocation10 + $0x310] sm:$0xff]
    %v596 = vld [vmem:[#allocation10 + $0x318] sm:$0xff]
    %v597 = vld [vmem:[#allocation10 + $0x320] sm:$0xff]
    %v598 = vld [vmem:[#allocation10 + $0x328] sm:$0xff]
    %v599 = vld [vmem:[#allocation10 + $0x330] sm:$0xff]
    %v600 = vld [vmem:[#allocation10 + $0x338] sm:$0xff]
    %v601 = vld [vmem:[#allocation10 + $0x340] sm:$0xff]
    %v602 = vld [vmem:[#allocation10 + $0x348] sm:$0xff]
    %v603 = vld [vmem:[#allocation10 + $0x350] sm:$0xff]
    %v604 = vld [vmem:[#allocation10 + $0x358] sm:$0xff]
    %v605 = vld [vmem:[#allocation10 + $0x360] sm:$0xff]
    %v606 = vld [vmem:[#allocation10 + $0x368] sm:$0xff]
    %v607 = vld [vmem:[#allocation10 + $0x370] sm:$0xff]
    %v608 = vld [vmem:[#allocation10 + $0x378] sm:$0xff]
    %v609 = vld [vmem:[#allocation10 + $0x380] sm:$0xff]
    %v610 = vld [vmem:[#allocation10 + $0x388] sm:$0xff]
    %v611 = vld [vmem:[#allocation10 + $0x390] sm:$0xff]
    %v612 = vld [vmem:[#allocation10 + $0x398] sm:$0xff]
    %v613 = vld [vmem:[#allocation10 + $0x3a0] sm:$0xff]
    %v614 = vld [vmem:[#allocation10 + $0x3a8] sm:$0xff]
    %v615 = vld [vmem:[#allocation10 + $0x3b0] sm:$0xff]
    %v616 = vld [vmem:[#allocation10 + $0x3b8] sm:$0xff]
    %v617 = vld [vmem:[#allocation10 + $0x3c0] sm:$0xff]
    %v618 = vld [vmem:[#allocation10 + $0x3c8] sm:$0xff]
    %v619 = vld [vmem:[#allocation10 + $0x3d0] sm:$0xff]
    %v620 = vld [vmem:[#allocation10 + $0x3d8] sm:$0xff]
    %v621 = vld [vmem:[#allocation10 + $0x3e0] sm:$0xff]
    %v622 = vld [vmem:[#allocation10 + $0x3e8] sm:$0xff]
    %v623 = vld [vmem:[#allocation10 + $0x3f0] sm:$0xff]
    %v624 = vld [vmem:[#allocation10 + $0x3f8] sm:$0xff]
    %s625 = scalar_lea.vmem [#allocation7], 1
    %v626 = vld [vmem:[%s625] ss:$8 sm:$0xf]
    %v628 = vlaneseq
    %v629 = vshrl.u32 %v628, 7
    %v630 = vsub.s32 0, %v629
    %v631 = vrot.slane %v626, %v630
    %v632 = vlaneseq
    %v633 = vshrl.u32 %v632, 7
    %v634 = vsub.s32 1, %v633
    %v635 = vrot.slane %v626, %v634
    %v636 = vlaneseq
    %v637 = vshrl.u32 %v636, 7
    %v638 = vsub.s32 2, %v637
    %v639 = vrot.slane %v626, %v638
    %v640 = vlaneseq
    %v641 = vshrl.u32 %v640, 7
    %v642 = vsub.s32 3, %v641
    %v643 = vrot.slane %v626, %v642
    %v776 = vunpack.c.l.b16 %v497
    %v777 = vunpack.c.h.b16 %v497
    %v778 = vunpack.c.l.b16 %v498
    %v779 = vunpack.c.h.b16 %v498
    %v780 = vunpack.c.l.b16 %v499
    %v781 = vunpack.c.h.b16 %v499
    %v782 = vunpack.c.l.b16 %v500
    %v783 = vunpack.c.h.b16 %v500
    %v784 = vunpack.c.l.b16 %v501
    %v785 = vunpack.c.h.b16 %v501
    %v786 = vunpack.c.l.b16 %v502
    %v787 = vunpack.c.h.b16 %v502
    %v788 = vunpack.c.l.b16 %v503
    %v789 = vunpack.c.h.b16 %v503
    %v790 = vunpack.c.l.b16 %v504
    %v791 = vunpack.c.h.b16 %v504
    %v792 = vunpack.c.l.b16 %v505
    %v793 = vunpack.c.h.b16 %v505
    %v794 = vunpack.c.l.b16 %v506
    %v795 = vunpack.c.h.b16 %v506
    %v796 = vunpack.c.l.b16 %v507
    %v797 = vunpack.c.h.b16 %v507
    %v798 = vunpack.c.l.b16 %v508
    %v799 = vunpack.c.h.b16 %v508
    %v800 = vunpack.c.l.b16 %v509
    %v801 = vunpack.c.h.b16 %v509
    %v802 = vunpack.c.l.b16 %v510
    %v803 = vunpack.c.h.b16 %v510
    %v804 = vunpack.c.l.b16 %v511
    %v805 = vunpack.c.h.b16 %v511
    %v806 = vunpack.c.l.b16 %v512
    %v807 = vunpack.c.h.b16 %v512
    %v808 = vunpack.c.l.b16 %v513
    %v809 = vunpack.c.h.b16 %v513
    %v810 = vunpack.c.l.b16 %v514
    %v811 = vunpack.c.h.b16 %v514
    %v812 = vunpack.c.l.b16 %v515
    %v813 = vunpack.c.h.b16 %v515
    %v814 = vunpack.c.l.b16 %v516
    %v815 = vunpack.c.h.b16 %v516
    %v816 = vunpack.c.l.b16 %v517
    %v817 = vunpack.c.h.b16 %v517
    %v818 = vunpack.c.l.b16 %v518
    %v819 = vunpack.c.h.b16 %v518
    %v820 = vunpack.c.l.b16 %v519
    %v821 = vunpack.c.h.b16 %v519
    %v822 = vunpack.c.l.b16 %v520
    %v823 = vunpack.c.h.b16 %v520
    %v824 = vunpack.c.l.b16 %v521
    %v825 = vunpack.c.h.b16 %v521
    %v826 = vunpack.c.l.b16 %v522
    %v827 = vunpack.c.h.b16 %v522
    %v828 = vunpack.c.l.b16 %v523
    %v829 = vunpack.c.h.b16 %v523
    %v830 = vunpack.c.l.b16 %v524
    %v831 = vunpack.c.h.b16 %v524
    %v832 = vunpack.c.l.b16 %v525
    %v833 = vunpack.c.h.b16 %v525
    %v834 = vunpack.c.l.b16 %v526
    %v835 = vunpack.c.h.b16 %v526
    %v836 = vunpack.c.l.b16 %v527
    %v837 = vunpack.c.h.b16 %v527
    %v838 = vunpack.c.l.b16 %v528
    %v839 = vunpack.c.h.b16 %v528
    %v840 = vunpack.c.l.b16 %v529
    %v841 = vunpack.c.h.b16 %v529
    %v842 = vunpack.c.l.b16 %v530
    %v843 = vunpack.c.h.b16 %v530
    %v844 = vunpack.c.l.b16 %v531
    %v845 = vunpack.c.h.b16 %v531
    %v846 = vunpack.c.l.b16 %v532
    %v847 = vunpack.c.h.b16 %v532
    %v848 = vunpack.c.l.b16 %v533
    %v849 = vunpack.c.h.b16 %v533
    %v850 = vunpack.c.l.b16 %v534
    %v851 = vunpack.c.h.b16 %v534
    %v852 = vunpack.c.l.b16 %v535
    %v853 = vunpack.c.h.b16 %v535
    %v854 = vunpack.c.l.b16 %v536
    %v855 = vunpack.c.h.b16 %v536
    %v856 = vunpack.c.l.b16 %v537
    %v857 = vunpack.c.h.b16 %v537
    %v858 = vunpack.c.l.b16 %v538
    %v859 = vunpack.c.h.b16 %v538
    %v860 = vunpack.c.l.b16 %v539
    %v861 = vunpack.c.h.b16 %v539
    %v862 = vunpack.c.l.b16 %v540
    %v863 = vunpack.c.h.b16 %v540
    %v864 = vunpack.c.l.b16 %v541
    %v865 = vunpack.c.h.b16 %v541
    %v866 = vunpack.c.l.b16 %v542
    %v867 = vunpack.c.h.b16 %v542
    %v868 = vunpack.c.l.b16 %v543
    %v869 = vunpack.c.h.b16 %v543
    %v870 = vunpack.c.l.b16 %v544
    %v871 = vunpack.c.h.b16 %v544
    %v872 = vunpack.c.l.b16 %v545
    %v873 = vunpack.c.h.b16 %v545
    %v874 = vunpack.c.l.b16 %v546
    %v875 = vunpack.c.h.b16 %v546
    %v876 = vunpack.c.l.b16 %v547
    %v877 = vunpack.c.h.b16 %v547
    %v878 = vunpack.c.l.b16 %v548
    %v879 = vunpack.c.h.b16 %v548
    %v880 = vunpack.c.l.b16 %v549
    %v881 = vunpack.c.h.b16 %v549
    %v882 = vunpack.c.l.b16 %v550
    %v883 = vunpack.c.h.b16 %v550
    %v884 = vunpack.c.l.b16 %v551
    %v885 = vunpack.c.h.b16 %v551
    %v886 = vunpack.c.l.b16 %v552
    %v887 = vunpack.c.h.b16 %v552
    %v888 = vunpack.c.l.b16 %v553
    %v889 = vunpack.c.h.b16 %v553
    %v890 = vunpack.c.l.b16 %v554
    %v891 = vunpack.c.h.b16 %v554
    %v892 = vunpack.c.l.b16 %v555
    %v893 = vunpack.c.h.b16 %v555
    %v894 = vunpack.c.l.b16 %v556
    %v895 = vunpack.c.h.b16 %v556
    %v896 = vunpack.c.l.b16 %v557
    %v897 = vunpack.c.h.b16 %v557
    %v898 = vunpack.c.l.b16 %v558
    %v899 = vunpack.c.h.b16 %v558
    %v900 = vunpack.c.l.b16 %v559
    %v901 = vunpack.c.h.b16 %v559
    %v902 = vunpack.c.l.b16 %v560
    %v903 = vunpack.c.h.b16 %v560
    %v904 = vunpack.c.l.b16 %v561
    %v905 = vunpack.c.h.b16 %v561
    %v906 = vunpack.c.l.b16 %v562
    %v907 = vunpack.c.h.b16 %v562
    %v908 = vunpack.c.l.b16 %v563
    %v909 = vunpack.c.h.b16 %v563
    %v910 = vunpack.c.l.b16 %v564
    %v911 = vunpack.c.h.b16 %v564
    %v912 = vunpack.c.l.b16 %v565
    %v913 = vunpack.c.h.b16 %v565
    %v914 = vunpack.c.l.b16 %v566
    %v915 = vunpack.c.h.b16 %v566
    %v916 = vunpack.c.l.b16 %v567
    %v917 = vunpack.c.h.b16 %v567
    %v918 = vunpack.c.l.b16 %v568
    %v919 = vunpack.c.h.b16 %v568
    %v920 = vunpack.c.l.b16 %v569
    %v921 = vunpack.c.h.b16 %v569
    %v922 = vunpack.c.l.b16 %v570
    %v923 = vunpack.c.h.b16 %v570
    %v924 = vunpack.c.l.b16 %v571
    %v925 = vunpack.c.h.b16 %v571
    %v926 = vunpack.c.l.b16 %v572
    %v927 = vunpack.c.h.b16 %v572
    %v928 = vunpack.c.l.b16 %v573
    %v929 = vunpack.c.h.b16 %v573
    %v930 = vunpack.c.l.b16 %v574
    %v931 = vunpack.c.h.b16 %v574
    %v932 = vunpack.c.l.b16 %v575
    %v933 = vunpack.c.h.b16 %v575
    %v934 = vunpack.c.l.b16 %v576
    %v935 = vunpack.c.h.b16 %v576
    %v936 = vunpack.c.l.b16 %v577
    %v937 = vunpack.c.h.b16 %v577
    %v938 = vunpack.c.l.b16 %v578
    %v939 = vunpack.c.h.b16 %v578
    %v940 = vunpack.c.l.b16 %v579
    %v941 = vunpack.c.h.b16 %v579
    %v942 = vunpack.c.l.b16 %v580
    %v943 = vunpack.c.h.b16 %v580
    %v944 = vunpack.c.l.b16 %v581
    %v945 = vunpack.c.h.b16 %v581
    %v946 = vunpack.c.l.b16 %v582
    %v947 = vunpack.c.h.b16 %v582
    %v948 = vunpack.c.l.b16 %v583
    %v949 = vunpack.c.h.b16 %v583
    %v950 = vunpack.c.l.b16 %v584
    %v951 = vunpack.c.h.b16 %v584
    %v952 = vunpack.c.l.b16 %v585
    %v953 = vunpack.c.h.b16 %v585
    %v954 = vunpack.c.l.b16 %v586
    %v955 = vunpack.c.h.b16 %v586
    %v956 = vunpack.c.l.b16 %v587
    %v957 = vunpack.c.h.b16 %v587
    %v958 = vunpack.c.l.b16 %v588
    %v959 = vunpack.c.h.b16 %v588
    %v960 = vunpack.c.l.b16 %v589
    %v961 = vunpack.c.h.b16 %v589
    %v962 = vunpack.c.l.b16 %v590
    %v963 = vunpack.c.h.b16 %v590
    %v964 = vunpack.c.l.b16 %v591
    %v965 = vunpack.c.h.b16 %v591
    %v966 = vunpack.c.l.b16 %v592
    %v967 = vunpack.c.h.b16 %v592
    %v968 = vunpack.c.l.b16 %v593
    %v969 = vunpack.c.h.b16 %v593
    %v970 = vunpack.c.l.b16 %v594
    %v971 = vunpack.c.h.b16 %v594
    %v972 = vunpack.c.l.b16 %v595
    %v973 = vunpack.c.h.b16 %v595
    %v974 = vunpack.c.l.b16 %v596
    %v975 = vunpack.c.h.b16 %v596
    %v976 = vunpack.c.l.b16 %v597
    %v977 = vunpack.c.h.b16 %v597
    %v978 = vunpack.c.l.b16 %v598
    %v979 = vunpack.c.h.b16 %v598
    %v980 = vunpack.c.l.b16 %v599
    %v981 = vunpack.c.h.b16 %v599
    %v982 = vunpack.c.l.b16 %v600
    %v983 = vunpack.c.h.b16 %v600
    %v984 = vunpack.c.l.b16 %v601
    %v985 = vunpack.c.h.b16 %v601
    %v986 = vunpack.c.l.b16 %v602
    %v987 = vunpack.c.h.b16 %v602
    %v988 = vunpack.c.l.b16 %v603
    %v989 = vunpack.c.h.b16 %v603
    %v990 = vunpack.c.l.b16 %v604
    %v991 = vunpack.c.h.b16 %v604
    %v992 = vunpack.c.l.b16 %v605
    %v993 = vunpack.c.h.b16 %v605
    %v994 = vunpack.c.l.b16 %v606
    %v995 = vunpack.c.h.b16 %v606
    %v996 = vunpack.c.l.b16 %v607
    %v997 = vunpack.c.h.b16 %v607
    %v998 = vunpack.c.l.b16 %v608
    %v999 = vunpack.c.h.b16 %v608
    %v1000 = vunpack.c.l.b16 %v609
    %v1001 = vunpack.c.h.b16 %v609
    %v1002 = vunpack.c.l.b16 %v610
    %v1003 = vunpack.c.h.b16 %v610
    %v1004 = vunpack.c.l.b16 %v611
    %v1005 = vunpack.c.h.b16 %v611
    %v1006 = vunpack.c.l.b16 %v612
    %v1007 = vunpack.c.h.b16 %v612
    %v1008 = vunpack.c.l.b16 %v613
    %v1009 = vunpack.c.h.b16 %v613
    %v1010 = vunpack.c.l.b16 %v614
    %v1011 = vunpack.c.h.b16 %v614
    %v1012 = vunpack.c.l.b16 %v615
    %v1013 = vunpack.c.h.b16 %v615
    %v1014 = vunpack.c.l.b16 %v616
    %v1015 = vunpack.c.h.b16 %v616
    %v1016 = vunpack.c.l.b16 %v617
    %v1017 = vunpack.c.h.b16 %v617
    %v1018 = vunpack.c.l.b16 %v618
    %v1019 = vunpack.c.h.b16 %v618
    %v1020 = vunpack.c.l.b16 %v619
    %v1021 = vunpack.c.h.b16 %v619
    %v1022 = vunpack.c.l.b16 %v620
    %v1023 = vunpack.c.h.b16 %v620
    %v1024 = vunpack.c.l.b16 %v621
    %v1025 = vunpack.c.h.b16 %v621
    %v1026 = vunpack.c.l.b16 %v622
    %v1027 = vunpack.c.h.b16 %v622
    %v1028 = vunpack.c.l.b16 %v623
    %v1029 = vunpack.c.h.b16 %v623
    %v1030 = vunpack.c.l.b16 %v624
    %v1031 = vunpack.c.h.b16 %v624
    %v1032 = vpack.c.b16 %v780, %v776
    %v1033 = vpack.c.b16 %v781, %v777
    %v1034 = vpack.c.b16 %v782, %v778
    %v1035 = vpack.c.b16 %v783, %v779
    %v1036 = vpack.c.b16 %v788, %v784
    %v1037 = vpack.c.b16 %v789, %v785
    %v1038 = vpack.c.b16 %v790, %v786
    %v1039 = vpack.c.b16 %v791, %v787
    %v1040 = vpack.c.b16 %v796, %v792
    %v1041 = vpack.c.b16 %v797, %v793
    %v1042 = vpack.c.b16 %v798, %v794
    %v1043 = vpack.c.b16 %v799, %v795
    %v1044 = vpack.c.b16 %v804, %v800
    %v1045 = vpack.c.b16 %v805, %v801
    %v1046 = vpack.c.b16 %v806, %v802
    %v1047 = vpack.c.b16 %v807, %v803
    %v1048 = vpack.c.b16 %v812, %v808
    %v1049 = vpack.c.b16 %v813, %v809
    %v1050 = vpack.c.b16 %v814, %v810
    %v1051 = vpack.c.b16 %v815, %v811
    %v1052 = vpack.c.b16 %v820, %v816
    %v1053 = vpack.c.b16 %v821, %v817
    %v1054 = vpack.c.b16 %v822, %v818
    %v1055 = vpack.c.b16 %v823, %v819
    %v1056 = vpack.c.b16 %v828, %v824
    %v1057 = vpack.c.b16 %v829, %v825
    %v1058 = vpack.c.b16 %v830, %v826
    %v1059 = vpack.c.b16 %v831, %v827
    %v1060 = vpack.c.b16 %v836, %v832
    %v1061 = vpack.c.b16 %v837, %v833
    %v1062 = vpack.c.b16 %v838, %v834
    %v1063 = vpack.c.b16 %v839, %v835
    %v1064 = vpack.c.b16 %v844, %v840
    %v1065 = vpack.c.b16 %v845, %v841
    %v1066 = vpack.c.b16 %v846, %v842
    %v1067 = vpack.c.b16 %v847, %v843
    %v1068 = vpack.c.b16 %v852, %v848
    %v1069 = vpack.c.b16 %v853, %v849
    %v1070 = vpack.c.b16 %v854, %v850
    %v1071 = vpack.c.b16 %v855, %v851
    %v1072 = vpack.c.b16 %v860, %v856
    %v1073 = vpack.c.b16 %v861, %v857
    %v1074 = vpack.c.b16 %v862, %v858
    %v1075 = vpack.c.b16 %v863, %v859
    %v1076 = vpack.c.b16 %v868, %v864
    %v1077 = vpack.c.b16 %v869, %v865
    %v1078 = vpack.c.b16 %v870, %v866
    %v1079 = vpack.c.b16 %v871, %v867
    %v1080 = vpack.c.b16 %v876, %v872
    %v1081 = vpack.c.b16 %v877, %v873
    %v1082 = vpack.c.b16 %v878, %v874
    %v1083 = vpack.c.b16 %v879, %v875
    %v1084 = vpack.c.b16 %v884, %v880
    %v1085 = vpack.c.b16 %v885, %v881
    %v1086 = vpack.c.b16 %v886, %v882
    %v1087 = vpack.c.b16 %v887, %v883
    %v1088 = vpack.c.b16 %v892, %v888
    %v1089 = vpack.c.b16 %v893, %v889
    %v1090 = vpack.c.b16 %v894, %v890
    %v1091 = vpack.c.b16 %v895, %v891
    %v1092 = vpack.c.b16 %v900, %v896
    %v1093 = vpack.c.b16 %v901, %v897
    %v1094 = vpack.c.b16 %v902, %v898
    %v1095 = vpack.c.b16 %v903, %v899
    %v1096 = vpack.c.b16 %v908, %v904
    %v1097 = vpack.c.b16 %v909, %v905
    %v1098 = vpack.c.b16 %v910, %v906
    %v1099 = vpack.c.b16 %v911, %v907
    %v1100 = vpack.c.b16 %v916, %v912
    %v1101 = vpack.c.b16 %v917, %v913
    %v1102 = vpack.c.b16 %v918, %v914
    %v1103 = vpack.c.b16 %v919, %v915
    %v1104 = vpack.c.b16 %v924, %v920
    %v1105 = vpack.c.b16 %v925, %v921
    %v1106 = vpack.c.b16 %v926, %v922
    %v1107 = vpack.c.b16 %v927, %v923
    %v1108 = vpack.c.b16 %v932, %v928
    %v1109 = vpack.c.b16 %v933, %v929
    %v1110 = vpack.c.b16 %v934, %v930
    %v1111 = vpack.c.b16 %v935, %v931
    %v1112 = vpack.c.b16 %v940, %v936
    %v1113 = vpack.c.b16 %v941, %v937
    %v1114 = vpack.c.b16 %v942, %v938
    %v1115 = vpack.c.b16 %v943, %v939
    %v1116 = vpack.c.b16 %v948, %v944
    %v1117 = vpack.c.b16 %v949, %v945
    %v1118 = vpack.c.b16 %v950, %v946
    %v1119 = vpack.c.b16 %v951, %v947
    %v1120 = vpack.c.b16 %v956, %v952
    %v1121 = vpack.c.b16 %v957, %v953
    %v1122 = vpack.c.b16 %v958, %v954
    %v1123 = vpack.c.b16 %v959, %v955
    %v1124 = vpack.c.b16 %v964, %v960
    %v1125 = vpack.c.b16 %v965, %v961
    %v1126 = vpack.c.b16 %v966, %v962
    %v1127 = vpack.c.b16 %v967, %v963
    %v1128 = vpack.c.b16 %v972, %v968
    %v1129 = vpack.c.b16 %v973, %v969
    %v1130 = vpack.c.b16 %v974, %v970
    %v1131 = vpack.c.b16 %v975, %v971
    %v1132 = vpack.c.b16 %v980, %v976
    %v1133 = vpack.c.b16 %v981, %v977
    %v1134 = vpack.c.b16 %v982, %v978
    %v1135 = vpack.c.b16 %v983, %v979
    %v1136 = vpack.c.b16 %v988, %v984
    %v1137 = vpack.c.b16 %v989, %v985
    %v1138 = vpack.c.b16 %v990, %v986
    %v1139 = vpack.c.b16 %v991, %v987
    %v1140 = vpack.c.b16 %v996, %v992
    %v1141 = vpack.c.b16 %v997, %v993
    %v1142 = vpack.c.b16 %v998, %v994
    %v1143 = vpack.c.b16 %v999, %v995
    %v1144 = vpack.c.b16 %v1004, %v1000
    %v1145 = vpack.c.b16 %v1005, %v1001
    %v1146 = vpack.c.b16 %v1006, %v1002
    %v1147 = vpack.c.b16 %v1007, %v1003
    %v1148 = vpack.c.b16 %v1012, %v1008
    %v1149 = vpack.c.b16 %v1013, %v1009
    %v1150 = vpack.c.b16 %v1014, %v1010
    %v1151 = vpack.c.b16 %v1015, %v1011
    %v1152 = vpack.c.b16 %v1020, %v1016
    %v1153 = vpack.c.b16 %v1021, %v1017
    %v1154 = vpack.c.b16 %v1022, %v1018
    %v1155 = vpack.c.b16 %v1023, %v1019
    %v1156 = vpack.c.b16 %v1028, %v1024
    %v1157 = vpack.c.b16 %v1029, %v1025
    %v1158 = vpack.c.b16 %v1030, %v1026
    %v1159 = vpack.c.b16 %v1031, %v1027
    %1288 = vmatprep.subr.bf16.mxu0 %v1033
    %1289 = vmatpush1.bf16.msra.mxu0 %v1032
    %1290 = vmatprep.subr.bf16.mxu0 %v1037
    %1291 = vmatpush1.bf16.msra.mxu0 %v1036
    %1292 = vmatprep.subr.bf16.mxu0 %v1041
    %1293 = vmatpush1.bf16.msra.mxu0 %v1040
    %1294 = vmatprep.subr.bf16.mxu0 %v1045
    %1295 = vmatpush1.bf16.msra.mxu0 %v1044
    %1296 = vmatprep.subr.bf16.mxu0 %v1049
    %1297 = vmatpush1.bf16.msra.mxu0 %v1048
    %1298 = vmatprep.subr.bf16.mxu0 %v1053
    %1299 = vmatpush1.bf16.msra.mxu0 %v1052
    %1300 = vmatprep.subr.bf16.mxu0 %v1057
    %1301 = vmatpush1.bf16.msra.mxu0 %v1056
    %1302 = vmatprep.subr.bf16.mxu0 %v1061
    %1303 = vmatpush1.bf16.msra.mxu0 %v1060
    %1304 = vmatprep.subr.bf16.mxu0 %v1065
    %1305 = vmatpush1.bf16.msra.mxu0 %v1064
    %1306 = vmatprep.subr.bf16.mxu0 %v1069
    %1307 = vmatpush1.bf16.msra.mxu0 %v1068
    %1308 = vmatprep.subr.bf16.mxu0 %v1073
    %1309 = vmatpush1.bf16.msra.mxu0 %v1072
    %1310 = vmatprep.subr.bf16.mxu0 %v1077
    %1311 = vmatpush1.bf16.msra.mxu0 %v1076
    %1312 = vmatprep.subr.bf16.mxu0 %v1081
    %1313 = vmatpush1.bf16.msra.mxu0 %v1080
    %1314 = vmatprep.subr.bf16.mxu0 %v1085
    %1315 = vmatpush1.bf16.msra.mxu0 %v1084
    %1316 = vmatprep.subr.bf16.mxu0 %v1089
    %1317 = vmatpush1.bf16.msra.mxu0 %v1088
    %1318 = vmatprep.subr.bf16.mxu0 %v1093
    %1319 = vmatpush1.bf16.msra.mxu0 %v1092
    %1320 = vmatprep.mubr.bf16.mxu0 %v494
    %1321 = vmatmul.mubr.bf16.gmra.mrb[0].mxu0 %v493
    %v1322 = vpop.f32.mrb[0].mxu0
    %v1323 = vadd.f32 %v631, %v1322
    %v1324 = vpop.f32.mrb[0].mxu0
    %v1325 = vadd.f32 %v635, %v1324
    %v1326 = vpop.f32.mrb[0].mxu0
    %v1327 = vadd.f32 %v631, %v1326
    %v1328 = vpop.f32.mrb[0].mxu0
    %v1329 = vadd.f32 %v635, %v1328
    %1330 = vdwg.mxu0
    %1331 = vmatprep.subr.bf16.mxu0 %v1097
    %1332 = vmatpush1.bf16.msra.mxu0 %v1096
    %1333 = vmatprep.subr.bf16.mxu0 %v1101
    %1334 = vmatpush1.bf16.msra.mxu0 %v1100
    %1335 = vmatprep.subr.bf16.mxu0 %v1105
    %1336 = vmatpush1.bf16.msra.mxu0 %v1104
    %1337 = vmatprep.subr.bf16.mxu0 %v1109
    %1338 = vmatpush1.bf16.msra.mxu0 %v1108
    %1339 = vmatprep.subr.bf16.mxu0 %v1113
    %1340 = vmatpush1.bf16.msra.mxu0 %v1112
    %1341 = vmatprep.subr.bf16.mxu0 %v1117
    %1342 = vmatpush1.bf16.msra.mxu0 %v1116
    %1343 = vmatprep.subr.bf16.mxu0 %v1121
    %1344 = vmatpush1.bf16.msra.mxu0 %v1120
    %1345 = vmatprep.subr.bf16.mxu0 %v1125
    %1346 = vmatpush1.bf16.msra.mxu0 %v1124
    %1347 = vmatprep.subr.bf16.mxu0 %v1129
    %1348 = vmatpush1.bf16.msra.mxu0 %v1128
    %1349 = vmatprep.subr.bf16.mxu0 %v1133
    %1350 = vmatpush1.bf16.msra.mxu0 %v1132
    %1351 = vmatprep.subr.bf16.mxu0 %v1137
    %1352 = vmatpush1.bf16.msra.mxu0 %v1136
    %1353 = vmatprep.subr.bf16.mxu0 %v1141
    %1354 = vmatpush1.bf16.msra.mxu0 %v1140
    %1355 = vmatprep.subr.bf16.mxu0 %v1145
    %1356 = vmatpush1.bf16.msra.mxu0 %v1144
    %1357 = vmatprep.subr.bf16.mxu0 %v1149
    %1358 = vmatpush1.bf16.msra.mxu0 %v1148
    %1359 = vmatprep.subr.bf16.mxu0 %v1153
    %1360 = vmatpush1.bf16.msra.mxu0 %v1152
    %1361 = vmatprep.subr.bf16.mxu0 %v1157
    %1362 = vmatpush1.bf16.msra.mxu0 %v1156
    %1363 = vmatprep.mubr.bf16.mxu0 %v496
    %1364 = vmatmul.mubr.bf16.gmra.mrb[0].mxu0 %v495
    %v1365 = vpop.f32.mrb[0].mxu0
    %v1366 = vadd.f32 %v1323, %v1365
    %v1367 = vpop.f32.mrb[0].mxu0
    %v1368 = vadd.f32 %v1325, %v1367
    %v1369 = vpop.f32.mrb[0].mxu0
    %v1370 = vadd.f32 %v1327, %v1369
    %v1371 = vpop.f32.mrb[0].mxu0
    %v1372 = vadd.f32 %v1329, %v1371
    %1373 = vdwg.mxu0
    %1374 = vmatprep.subr.bf16.mxu0 %v1035
    %1375 = vmatpush1.bf16.msra.mxu0 %v1034
    %1376 = vmatprep.subr.bf16.mxu0 %v1039
    %1377 = vmatpush1.bf16.msra.mxu0 %v1038
    %1378 = vmatprep.subr.bf16.mxu0 %v1043
    %1379 = vmatpush1.bf16.msra.mxu0 %v1042
    %1380 = vmatprep.subr.bf16.mxu0 %v1047
    %1381 = vmatpush1.bf16.msra.mxu0 %v1046
    %1382 = vmatprep.subr.bf16.mxu0 %v1051
    %1383 = vmatpush1.bf16.msra.mxu0 %v1050
    %1384 = vmatprep.subr.bf16.mxu0 %v1055
    %1385 = vmatpush1.bf16.msra.mxu0 %v1054
    %1386 = vmatprep.subr.bf16.mxu0 %v1059
    %1387 = vmatpush1.bf16.msra.mxu0 %v1058
    %1388 = vmatprep.subr.bf16.mxu0 %v1063
    %1389 = vmatpush1.bf16.msra.mxu0 %v1062
    %1390 = vmatprep.subr.bf16.mxu0 %v1067
    %1391 = vmatpush1.bf16.msra.mxu0 %v1066
    %1392 = vmatprep.subr.bf16.mxu0 %v1071
    %1393 = vmatpush1.bf16.msra.mxu0 %v1070
    %1394 = vmatprep.subr.bf16.mxu0 %v1075
    %1395 = vmatpush1.bf16.msra.mxu0 %v1074
    %1396 = vmatprep.subr.bf16.mxu0 %v1079
    %1397 = vmatpush1.bf16.msra.mxu0 %v1078
    %1398 = vmatprep.subr.bf16.mxu0 %v1083
    %1399 = vmatpush1.bf16.msra.mxu0 %v1082
    %1400 = vmatprep.subr.bf16.mxu0 %v1087
    %1401 = vmatpush1.bf16.msra.mxu0 %v1086
    %1402 = vmatprep.subr.bf16.mxu0 %v1091
    %1403 = vmatpush1.bf16.msra.mxu0 %v1090
    %1404 = vmatprep.subr.bf16.mxu0 %v1095
    %1405 = vmatpush1.bf16.msra.mxu0 %v1094
    %1406 = vmatprep.mubr.bf16.mxu0 %v494
    %1407 = vmatmul.mubr.bf16.gmra.mrb[0].mxu0 %v493
    %v1408 = vpop.f32.mrb[0].mxu0
    %v1409 = vadd.f32 %v639, %v1408
    %v1410 = vpop.f32.mrb[0].mxu0
    %v1411 = vadd.f32 %v643, %v1410
    %v1412 = vpop.f32.mrb[0].mxu0
    %v1413 = vadd.f32 %v639, %v1412
    %v1414 = vpop.f32.mrb[0].mxu0
    %v1415 = vadd.f32 %v643, %v1414
    %1416 = vdwg.mxu0
    %1417 = vmatprep.subr.bf16.mxu0 %v1099
    %1418 = vmatpush1.bf16.msra.mxu0 %v1098
    %1419 = vmatprep.subr.bf16.mxu0 %v1103
    %1420 = vmatpush1.bf16.msra.mxu0 %v1102
    %1421 = vmatprep.subr.bf16.mxu0 %v1107
    %1422 = vmatpush1.bf16.msra.mxu0 %v1106
    %1423 = vmatprep.subr.bf16.mxu0 %v1111
    %1424 = vmatpush1.bf16.msra.mxu0 %v1110
    %1425 = vmatprep.subr.bf16.mxu0 %v1115
    %1426 = vmatpush1.bf16.msra.mxu0 %v1114
    %1427 = vmatprep.subr.bf16.mxu0 %v1119
    %1428 = vmatpush1.bf16.msra.mxu0 %v1118
    %1429 = vmatprep.subr.bf16.mxu0 %v1123
    %1430 = vmatpush1.bf16.msra.mxu0 %v1122
    %1431 = vmatprep.subr.bf16.mxu0 %v1127
    %1432 = vmatpush1.bf16.msra.mxu0 %v1126
    %1433 = vmatprep.subr.bf16.mxu0 %v1131
    %1434 = vmatpush1.bf16.msra.mxu0 %v1130
    %1435 = vmatprep.subr.bf16.mxu0 %v1135
    %1436 = vmatpush1.bf16.msra.mxu0 %v1134
    %1437 = vmatprep.subr.bf16.mxu0 %v1139
    %1438 = vmatpush1.bf16.msra.mxu0 %v1138
    %1439 = vmatprep.subr.bf16.mxu0 %v1143
    %1440 = vmatpush1.bf16.msra.mxu0 %v1142
    %1441 = vmatprep.subr.bf16.mxu0 %v1147
    %1442 = vmatpush1.bf16.msra.mxu0 %v1146
    %1443 = vmatprep.subr.bf16.mxu0 %v1151
    %1444 = vmatpush1.bf16.msra.mxu0 %v1150
    %1445 = vmatprep.subr.bf16.mxu0 %v1155
    %1446 = vmatpush1.bf16.msra.mxu0 %v1154
    %1447 = vmatprep.subr.bf16.mxu0 %v1159
    %1448 = vmatpush1.bf16.msra.mxu0 %v1158
    %1449 = vmatprep.mubr.bf16.mxu0 %v496
    %1450 = vmatmul.mubr.bf16.gmra.mrb[0].mxu0 %v495
    %v1451 = vpop.f32.mrb[0].mxu0
    %v1452 = vadd.f32 %v1409, %v1451
    %v1453 = vpop.f32.mrb[0].mxu0
    %v1454 = vadd.f32 %v1411, %v1453
    %v1455 = vpop.f32.mrb[0].mxu0
    %v1456 = vadd.f32 %v1413, %v1455
    %v1457 = vpop.f32.mrb[0].mxu0
    %v1458 = vadd.f32 %v1415, %v1457
    %1459 = vdwg.mxu0
    %v1460 = vmax.f32 %v1366, 0.0
    %v1461 = vmax.f32 %v1368, 0.0
    %v1462 = vmax.f32 %v1452, 0.0
    %v1463 = vmax.f32 %v1454, 0.0
    %v1464 = vmax.f32 %v1370, 0.0
    %v1465 = vmax.f32 %v1372, 0.0
    %v1466 = vmax.f32 %v1456, 0.0
    %v1467 = vmax.f32 %v1458, 0.0
    %v1468 = vpack.c.bf16 %v1464, %v1460
    %v1469 = vpack.c.bf16 %v1465, %v1461
    %v1470 = vpack.c.bf16 %v1466, %v1462
    %v1471 = vpack.c.bf16 %v1467, %v1463
    %v1472 = vld [vmem:[#allocation11] sm:$0xff]
    %v1473 = vld [vmem:[#allocation11 + $0x8] sm:$0xff]
    %v1474 = vld [vmem:[#allocation11 + $0x10] sm:$0xff]
    %v1475 = vld [vmem:[#allocation11 + $0x18] sm:$0xff]
    %v1476 = vld [vmem:[#allocation11 + $0x20] sm:$0xff]
    %v1477 = vld [vmem:[#allocation11 + $0x28] sm:$0xff]
    %v1478 = vld [vmem:[#allocation11 + $0x30] sm:$0xff]
    %v1479 = vld [vmem:[#allocation11 + $0x38] sm:$0xff]
    %v1480 = vld [vmem:[#allocation11 + $0x40] sm:$0xff]
    %v1481 = vld [vmem:[#allocation11 + $0x48] sm:$0xff]
    %v1482 = vld [vmem:[#allocation11 + $0x50] sm:$0xff]
    %v1483 = vld [vmem:[#allocation11 + $0x58] sm:$0xff]
    %v1484 = vld [vmem:[#allocation11 + $0x60] sm:$0xff]
    %v1485 = vld [vmem:[#allocation11 + $0x68] sm:$0xff]
    %v1486 = vld [vmem:[#allocation11 + $0x70] sm:$0xff]
    %v1487 = vld [vmem:[#allocation11 + $0x78] sm:$0xff]
    %v1488 = vld [vmem:[#allocation11 + $0x80] sm:$0xff]
    %v1489 = vld [vmem:[#allocation11 + $0x88] sm:$0xff]
    %v1490 = vld [vmem:[#allocation11 + $0x90] sm:$0xff]
    %v1491 = vld [vmem:[#allocation11 + $0x98] sm:$0xff]
    %v1492 = vld [vmem:[#allocation11 + $0xa0] sm:$0xff]
    %v1493 = vld [vmem:[#allocation11 + $0xa8] sm:$0xff]
    %v1494 = vld [vmem:[#allocation11 + $0xb0] sm:$0xff]
    %v1495 = vld [vmem:[#allocation11 + $0xb8] sm:$0xff]
    %v1496 = vld [vmem:[#allocation11 + $0xc0] sm:$0xff]
    %v1497 = vld [vmem:[#allocation11 + $0xc8] sm:$0xff]
    %v1498 = vld [vmem:[#allocation11 + $0xd0] sm:$0xff]
    %v1499 = vld [vmem:[#allocation11 + $0xd8] sm:$0xff]
    %v1500 = vld [vmem:[#allocation11 + $0xe0] sm:$0xff]
    %v1501 = vld [vmem:[#allocation11 + $0xe8] sm:$0xff]
    %v1502 = vld [vmem:[#allocation11 + $0xf0] sm:$0xff]
    %v1503 = vld [vmem:[#allocation11 + $0xf8] sm:$0xff]
    %v1504 = vld [vmem:[#allocation11 + $0x100] sm:$0xff]
    %v1505 = vld [vmem:[#allocation11 + $0x108] sm:$0xff]
    %v1506 = vld [vmem:[#allocation11 + $0x110] sm:$0xff]
    %v1507 = vld [vmem:[#allocation11 + $0x118] sm:$0xff]
    %v1508 = vld [vmem:[#allocation11 + $0x120] sm:$0xff]
    %v1509 = vld [vmem:[#allocation11 + $0x128] sm:$0xff]
    %v1510 = vld [vmem:[#allocation11 + $0x130] sm:$0xff]
    %v1511 = vld [vmem:[#allocation11 + $0x138] sm:$0xff]
    %v1512 = vld [vmem:[#allocation11 + $0x140] sm:$0xff]
    %v1513 = vld [vmem:[#allocation11 + $0x148] sm:$0xff]
    %v1514 = vld [vmem:[#allocation11 + $0x150] sm:$0xff]
    %v1515 = vld [vmem:[#allocation11 + $0x158] sm:$0xff]
    %v1516 = vld [vmem:[#allocation11 + $0x160] sm:$0xff]
    %v1517 = vld [vmem:[#allocation11 + $0x168] sm:$0xff]
    %v1518 = vld [vmem:[#allocation11 + $0x170] sm:$0xff]
    %v1519 = vld [vmem:[#allocation11 + $0x178] sm:$0xff]
    %v1520 = vld [vmem:[#allocation11 + $0x180] sm:$0xff]
    %v1521 = vld [vmem:[#allocation11 + $0x188] sm:$0xff]
    %v1522 = vld [vmem:[#allocation11 + $0x190] sm:$0xff]
    %v1523 = vld [vmem:[#allocation11 + $0x198] sm:$0xff]
    %v1524 = vld [vmem:[#allocation11 + $0x1a0] sm:$0xff]
    %v1525 = vld [vmem:[#allocation11 + $0x1a8] sm:$0xff]
    %v1526 = vld [vmem:[#allocation11 + $0x1b0] sm:$0xff]
    %v1527 = vld [vmem:[#allocation11 + $0x1b8] sm:$0xff]
    %v1528 = vld [vmem:[#allocation11 + $0x1c0] sm:$0xff]
    %v1529 = vld [vmem:[#allocation11 + $0x1c8] sm:$0xff]
    %v1530 = vld [vmem:[#allocation11 + $0x1d0] sm:$0xff]
    %v1531 = vld [vmem:[#allocation11 + $0x1d8] sm:$0xff]
    %v1532 = vld [vmem:[#allocation11 + $0x1e0] sm:$0xff]
    %v1533 = vld [vmem:[#allocation11 + $0x1e8] sm:$0xff]
    %v1534 = vld [vmem:[#allocation11 + $0x1f0] sm:$0xff]
    %v1535 = vld [vmem:[#allocation11 + $0x1f8] sm:$0xff]
    %v1536 = vld [vmem:[#allocation11 + $0x200] sm:$0xff]
    %v1537 = vld [vmem:[#allocation11 + $0x208] sm:$0xff]
    %v1538 = vld [vmem:[#allocation11 + $0x210] sm:$0xff]
    %v1539 = vld [vmem:[#allocation11 + $0x218] sm:$0xff]
    %v1540 = vld [vmem:[#allocation11 + $0x220] sm:$0xff]
    %v1541 = vld [vmem:[#allocation11 + $0x228] sm:$0xff]
    %v1542 = vld [vmem:[#allocation11 + $0x230] sm:$0xff]
    %v1543 = vld [vmem:[#allocation11 + $0x238] sm:$0xff]
    %v1544 = vld [vmem:[#allocation11 + $0x240] sm:$0xff]
    %v1545 = vld [vmem:[#allocation11 + $0x248] sm:$0xff]
    %v1546 = vld [vmem:[#allocation11 + $0x250] sm:$0xff]
    %v1547 = vld [vmem:[#allocation11 + $0x258] sm:$0xff]
    %v1548 = vld [vmem:[#allocation11 + $0x260] sm:$0xff]
    %v1549 = vld [vmem:[#allocation11 + $0x268] sm:$0xff]
    %v1550 = vld [vmem:[#allocation11 + $0x270] sm:$0xff]
    %v1551 = vld [vmem:[#allocation11 + $0x278] sm:$0xff]
    %v1552 = vld [vmem:[#allocation11 + $0x280] sm:$0xff]
    %v1553 = vld [vmem:[#allocation11 + $0x288] sm:$0xff]
    %v1554 = vld [vmem:[#allocation11 + $0x290] sm:$0xff]
    %v1555 = vld [vmem:[#allocation11 + $0x298] sm:$0xff]
    %v1556 = vld [vmem:[#allocation11 + $0x2a0] sm:$0xff]
    %v1557 = vld [vmem:[#allocation11 + $0x2a8] sm:$0xff]
    %v1558 = vld [vmem:[#allocation11 + $0x2b0] sm:$0xff]
    %v1559 = vld [vmem:[#allocation11 + $0x2b8] sm:$0xff]
    %v1560 = vld [vmem:[#allocation11 + $0x2c0] sm:$0xff]
    %v1561 = vld [vmem:[#allocation11 + $0x2c8] sm:$0xff]
    %v1562 = vld [vmem:[#allocation11 + $0x2d0] sm:$0xff]
    %v1563 = vld [vmem:[#allocation11 + $0x2d8] sm:$0xff]
    %v1564 = vld [vmem:[#allocation11 + $0x2e0] sm:$0xff]
    %v1565 = vld [vmem:[#allocation11 + $0x2e8] sm:$0xff]
    %v1566 = vld [vmem:[#allocation11 + $0x2f0] sm:$0xff]
    %v1567 = vld [vmem:[#allocation11 + $0x2f8] sm:$0xff]
    %v1568 = vld [vmem:[#allocation11 + $0x300] sm:$0xff]
    %v1569 = vld [vmem:[#allocation11 + $0x308] sm:$0xff]
    %v1570 = vld [vmem:[#allocation11 + $0x310] sm:$0xff]
    %v1571 = vld [vmem:[#allocation11 + $0x318] sm:$0xff]
    %v1572 = vld [vmem:[#allocation11 + $0x320] sm:$0xff]
    %v1573 = vld [vmem:[#allocation11 + $0x328] sm:$0xff]
    %v1574 = vld [vmem:[#allocation11 + $0x330] sm:$0xff]
    %v1575 = vld [vmem:[#allocation11 + $0x338] sm:$0xff]
    %v1576 = vld [vmem:[#allocation11 + $0x340] sm:$0xff]
    %v1577 = vld [vmem:[#allocation11 + $0x348] sm:$0xff]
    %v1578 = vld [vmem:[#allocation11 + $0x350] sm:$0xff]
    %v1579 = vld [vmem:[#allocation11 + $0x358] sm:$0xff]
    %v1580 = vld [vmem:[#allocation11 + $0x360] sm:$0xff]
    %v1581 = vld [vmem:[#allocation11 + $0x368] sm:$0xff]
    %v1582 = vld [vmem:[#allocation11 + $0x370] sm:$0xff]
    %v1583 = vld [vmem:[#allocation11 + $0x378] sm:$0xff]
    %v1584 = vld [vmem:[#allocation11 + $0x380] sm:$0xff]
    %v1585 = vld [vmem:[#allocation11 + $0x388] sm:$0xff]
    %v1586 = vld [vmem:[#allocation11 + $0x390] sm:$0xff]
    %v1587 = vld [vmem:[#allocation11 + $0x398] sm:$0xff]
    %v1588 = vld [vmem:[#allocation11 + $0x3a0] sm:$0xff]
    %v1589 = vld [vmem:[#allocation11 + $0x3a8] sm:$0xff]
    %v1590 = vld [vmem:[#allocation11 + $0x3b0] sm:$0xff]
    %v1591 = vld [vmem:[#allocation11 + $0x3b8] sm:$0xff]
    %v1592 = vld [vmem:[#allocation11 + $0x3c0] sm:$0xff]
    %v1593 = vld [vmem:[#allocation11 + $0x3c8] sm:$0xff]
    %v1594 = vld [vmem:[#allocation11 + $0x3d0] sm:$0xff]
    %v1595 = vld [vmem:[#allocation11 + $0x3d8] sm:$0xff]
    %v1596 = vld [vmem:[#allocation11 + $0x3e0] sm:$0xff]
    %v1597 = vld [vmem:[#allocation11 + $0x3e8] sm:$0xff]
    %v1598 = vld [vmem:[#allocation11 + $0x3f0] sm:$0xff]
    %v1599 = vld [vmem:[#allocation11 + $0x3f8] sm:$0xff]
    %s1600 = scalar_lea.vmem [#allocation7], 2
    %v1601 = vld [vmem:[%s1600] ss:$8 sm:$0xf]
    %v1603 = vlaneseq
    %v1604 = vshrl.u32 %v1603, 7
    %v1605 = vsub.s32 0, %v1604
    %v1606 = vrot.slane %v1601, %v1605
    %v1607 = vlaneseq
    %v1608 = vshrl.u32 %v1607, 7
    %v1609 = vsub.s32 1, %v1608
    %v1610 = vrot.slane %v1601, %v1609
    %v1611 = vlaneseq
    %v1612 = vshrl.u32 %v1611, 7
    %v1613 = vsub.s32 2, %v1612
    %v1614 = vrot.slane %v1601, %v1613
    %v1615 = vlaneseq
    %v1616 = vshrl.u32 %v1615, 7
    %v1617 = vsub.s32 3, %v1616
    %v1618 = vrot.slane %v1601, %v1617
    %v1751 = vunpack.c.l.b16 %v1472
    %v1752 = vunpack.c.h.b16 %v1472
    %v1753 = vunpack.c.l.b16 %v1473
    %v1754 = vunpack.c.h.b16 %v1473
    %v1755 = vunpack.c.l.b16 %v1474
    %v1756 = vunpack.c.h.b16 %v1474
    %v1757 = vunpack.c.l.b16 %v1475
    %v1758 = vunpack.c.h.b16 %v1475
    %v1759 = vunpack.c.l.b16 %v1476
    %v1760 = vunpack.c.h.b16 %v1476
    %v1761 = vunpack.c.l.b16 %v1477
    %v1762 = vunpack.c.h.b16 %v1477
    %v1763 = vunpack.c.l.b16 %v1478
    %v1764 = vunpack.c.h.b16 %v1478
    %v1765 = vunpack.c.l.b16 %v1479
    %v1766 = vunpack.c.h.b16 %v1479
    %v1767 = vunpack.c.l.b16 %v1480
    %v1768 = vunpack.c.h.b16 %v1480
    %v1769 = vunpack.c.l.b16 %v1481
    %v1770 = vunpack.c.h.b16 %v1481
    %v1771 = vunpack.c.l.b16 %v1482
    %v1772 = vunpack.c.h.b16 %v1482
    %v1773 = vunpack.c.l.b16 %v1483
    %v1774 = vunpack.c.h.b16 %v1483
    %v1775 = vunpack.c.l.b16 %v1484
    %v1776 = vunpack.c.h.b16 %v1484
    %v1777 = vunpack.c.l.b16 %v1485
    %v1778 = vunpack.c.h.b16 %v1485
    %v1779 = vunpack.c.l.b16 %v1486
    %v1780 = vunpack.c.h.b16 %v1486
    %v1781 = vunpack.c.l.b16 %v1487
    %v1782 = vunpack.c.h.b16 %v1487
    %v1783 = vunpack.c.l.b16 %v1488
    %v1784 = vunpack.c.h.b16 %v1488
    %v1785 = vunpack.c.l.b16 %v1489
    %v1786 = vunpack.c.h.b16 %v1489
    %v1787 = vunpack.c.l.b16 %v1490
    %v1788 = vunpack.c.h.b16 %v1490
    %v1789 = vunpack.c.l.b16 %v1491
    %v1790 = vunpack.c.h.b16 %v1491
    %v1791 = vunpack.c.l.b16 %v1492
    %v1792 = vunpack.c.h.b16 %v1492
    %v1793 = vunpack.c.l.b16 %v1493
    %v1794 = vunpack.c.h.b16 %v1493
    %v1795 = vunpack.c.l.b16 %v1494
    %v1796 = vunpack.c.h.b16 %v1494
    %v1797 = vunpack.c.l.b16 %v1495
    %v1798 = vunpack.c.h.b16 %v1495
    %v1799 = vunpack.c.l.b16 %v1496
    %v1800 = vunpack.c.h.b16 %v1496
    %v1801 = vunpack.c.l.b16 %v1497
    %v1802 = vunpack.c.h.b16 %v1497
    %v1803 = vunpack.c.l.b16 %v1498
    %v1804 = vunpack.c.h.b16 %v1498
    %v1805 = vunpack.c.l.b16 %v1499
    %v1806 = vunpack.c.h.b16 %v1499
    %v1807 = vunpack.c.l.b16 %v1500
    %v1808 = vunpack.c.h.b16 %v1500
    %v1809 = vunpack.c.l.b16 %v1501
    %v1810 = vunpack.c.h.b16 %v1501
    %v1811 = vunpack.c.l.b16 %v1502
    %v1812 = vunpack.c.h.b16 %v1502
    %v1813 = vunpack.c.l.b16 %v1503
    %v1814 = vunpack.c.h.b16 %v1503
    %v1815 = vunpack.c.l.b16 %v1504
    %v1816 = vunpack.c.h.b16 %v1504
    %v1817 = vunpack.c.l.b16 %v1505
    %v1818 = vunpack.c.h.b16 %v1505
    %v1819 = vunpack.c.l.b16 %v1506
    %v1820 = vunpack.c.h.b16 %v1506
    %v1821 = vunpack.c.l.b16 %v1507
    %v1822 = vunpack.c.h.b16 %v1507
    %v1823 = vunpack.c.l.b16 %v1508
    %v1824 = vunpack.c.h.b16 %v1508
    %v1825 = vunpack.c.l.b16 %v1509
    %v1826 = vunpack.c.h.b16 %v1509
    %v1827 = vunpack.c.l.b16 %v1510
    %v1828 = vunpack.c.h.b16 %v1510
    %v1829 = vunpack.c.l.b16 %v1511
    %v1830 = vunpack.c.h.b16 %v1511
    %v1831 = vunpack.c.l.b16 %v1512
    %v1832 = vunpack.c.h.b16 %v1512
    %v1833 = vunpack.c.l.b16 %v1513
    %v1834 = vunpack.c.h.b16 %v1513
    %v1835 = vunpack.c.l.b16 %v1514
    %v1836 = vunpack.c.h.b16 %v1514
    %v1837 = vunpack.c.l.b16 %v1515
    %v1838 = vunpack.c.h.b16 %v1515
    %v1839 = vunpack.c.l.b16 %v1516
    %v1840 = vunpack.c.h.b16 %v1516
    %v1841 = vunpack.c.l.b16 %v1517
    %v1842 = vunpack.c.h.b16 %v1517
    %v1843 = vunpack.c.l.b16 %v1518
    %v1844 = vunpack.c.h.b16 %v1518
    %v1845 = vunpack.c.l.b16 %v1519
    %v1846 = vunpack.c.h.b16 %v1519
    %v1847 = vunpack.c.l.b16 %v1520
    %v1848 = vunpack.c.h.b16 %v1520
    %v1849 = vunpack.c.l.b16 %v1521
    %v1850 = vunpack.c.h.b16 %v1521
    %v1851 = vunpack.c.l.b16 %v1522
    %v1852 = vunpack.c.h.b16 %v1522
    %v1853 = vunpack.c.l.b16 %v1523
    %v1854 = vunpack.c.h.b16 %v1523
    %v1855 = vunpack.c.l.b16 %v1524
    %v1856 = vunpack.c.h.b16 %v1524
    %v1857 = vunpack.c.l.b16 %v1525
    %v1858 = vunpack.c.h.b16 %v1525
    %v1859 = vunpack.c.l.b16 %v1526
    %v1860 = vunpack.c.h.b16 %v1526
    %v1861 = vunpack.c.l.b16 %v1527
    %v1862 = vunpack.c.h.b16 %v1527
    %v1863 = vunpack.c.l.b16 %v1528
    %v1864 = vunpack.c.h.b16 %v1528
    %v1865 = vunpack.c.l.b16 %v1529
    %v1866 = vunpack.c.h.b16 %v1529
    %v1867 = vunpack.c.l.b16 %v1530
    %v1868 = vunpack.c.h.b16 %v1530
    %v1869 = vunpack.c.l.b16 %v1531
    %v1870 = vunpack.c.h.b16 %v1531
    %v1871 = vunpack.c.l.b16 %v1532
    %v1872 = vunpack.c.h.b16 %v1532
    %v1873 = vunpack.c.l.b16 %v1533
    %v1874 = vunpack.c.h.b16 %v1533
    %v1875 = vunpack.c.l.b16 %v1534
    %v1876 = vunpack.c.h.b16 %v1534
    %v1877 = vunpack.c.l.b16 %v1535
    %v1878 = vunpack.c.h.b16 %v1535
    %v1879 = vunpack.c.l.b16 %v1536
    %v1880 = vunpack.c.h.b16 %v1536
    %v1881 = vunpack.c.l.b16 %v1537
    %v1882 = vunpack.c.h.b16 %v1537
    %v1883 = vunpack.c.l.b16 %v1538
    %v1884 = vunpack.c.h.b16 %v1538
    %v1885 = vunpack.c.l.b16 %v1539
    %v1886 = vunpack.c.h.b16 %v1539
    %v1887 = vunpack.c.l.b16 %v1540
    %v1888 = vunpack.c.h.b16 %v1540
    %v1889 = vunpack.c.l.b16 %v1541
    %v1890 = vunpack.c.h.b16 %v1541
    %v1891 = vunpack.c.l.b16 %v1542
    %v1892 = vunpack.c.h.b16 %v1542
    %v1893 = vunpack.c.l.b16 %v1543
    %v1894 = vunpack.c.h.b16 %v1543
    %v1895 = vunpack.c.l.b16 %v1544
    %v1896 = vunpack.c.h.b16 %v1544
    %v1897 = vunpack.c.l.b16 %v1545
    %v1898 = vunpack.c.h.b16 %v1545
    %v1899 = vunpack.c.l.b16 %v1546
    %v1900 = vunpack.c.h.b16 %v1546
    %v1901 = vunpack.c.l.b16 %v1547
    %v1902 = vunpack.c.h.b16 %v1547
    %v1903 = vunpack.c.l.b16 %v1548
    %v1904 = vunpack.c.h.b16 %v1548
    %v1905 = vunpack.c.l.b16 %v1549
    %v1906 = vunpack.c.h.b16 %v1549
    %v1907 = vunpack.c.l.b16 %v1550
    %v1908 = vunpack.c.h.b16 %v1550
    %v1909 = vunpack.c.l.b16 %v1551
    %v1910 = vunpack.c.h.b16 %v1551
    %v1911 = vunpack.c.l.b16 %v1552
    %v1912 = vunpack.c.h.b16 %v1552
    %v1913 = vunpack.c.l.b16 %v1553
    %v1914 = vunpack.c.h.b16 %v1553
    %v1915 = vunpack.c.l.b16 %v1554
    %v1916 = vunpack.c.h.b16 %v1554
    %v1917 = vunpack.c.l.b16 %v1555
    %v1918 = vunpack.c.h.b16 %v1555
    %v1919 = vunpack.c.l.b16 %v1556
    %v1920 = vunpack.c.h.b16 %v1556
    %v1921 = vunpack.c.l.b16 %v1557
    %v1922 = vunpack.c.h.b16 %v1557
    %v1923 = vunpack.c.l.b16 %v1558
    %v1924 = vunpack.c.h.b16 %v1558
    %v1925 = vunpack.c.l.b16 %v1559
    %v1926 = vunpack.c.h.b16 %v1559
    %v1927 = vunpack.c.l.b16 %v1560
    %v1928 = vunpack.c.h.b16 %v1560
    %v1929 = vunpack.c.l.b16 %v1561
    %v1930 = vunpack.c.h.b16 %v1561
    %v1931 = vunpack.c.l.b16 %v1562
    %v1932 = vunpack.c.h.b16 %v1562
    %v1933 = vunpack.c.l.b16 %v1563
    %v1934 = vunpack.c.h.b16 %v1563
    %v1935 = vunpack.c.l.b16 %v1564
    %v1936 = vunpack.c.h.b16 %v1564
    %v1937 = vunpack.c.l.b16 %v1565
    %v1938 = vunpack.c.h.b16 %v1565
    %v1939 = vunpack.c.l.b16 %v1566
    %v1940 = vunpack.c.h.b16 %v1566
    %v1941 = vunpack.c.l.b16 %v1567
    %v1942 = vunpack.c.h.b16 %v1567
    %v1943 = vunpack.c.l.b16 %v1568
    %v1944 = vunpack.c.h.b16 %v1568
    %v1945 = vunpack.c.l.b16 %v1569
    %v1946 = vunpack.c.h.b16 %v1569
    %v1947 = vunpack.c.l.b16 %v1570
    %v1948 = vunpack.c.h.b16 %v1570
    %v1949 = vunpack.c.l.b16 %v1571
    %v1950 = vunpack.c.h.b16 %v1571
    %v1951 = vunpack.c.l.b16 %v1572
    %v1952 = vunpack.c.h.b16 %v1572
    %v1953 = vunpack.c.l.b16 %v1573
    %v1954 = vunpack.c.h.b16 %v1573
    %v1955 = vunpack.c.l.b16 %v1574
    %v1956 = vunpack.c.h.b16 %v1574
    %v1957 = vunpack.c.l.b16 %v1575
    %v1958 = vunpack.c.h.b16 %v1575
    %v1959 = vunpack.c.l.b16 %v1576
    %v1960 = vunpack.c.h.b16 %v1576
    %v1961 = vunpack.c.l.b16 %v1577
    %v1962 = vunpack.c.h.b16 %v1577
    %v1963 = vunpack.c.l.b16 %v1578
    %v1964 = vunpack.c.h.b16 %v1578
    %v1965 = vunpack.c.l.b16 %v1579
    %v1966 = vunpack.c.h.b16 %v1579
    %v1967 = vunpack.c.l.b16 %v1580
    %v1968 = vunpack.c.h.b16 %v1580
    %v1969 = vunpack.c.l.b16 %v1581
    %v1970 = vunpack.c.h.b16 %v1581
    %v1971 = vunpack.c.l.b16 %v1582
    %v1972 = vunpack.c.h.b16 %v1582
    %v1973 = vunpack.c.l.b16 %v1583
    %v1974 = vunpack.c.h.b16 %v1583
    %v1975 = vunpack.c.l.b16 %v1584
    %v1976 = vunpack.c.h.b16 %v1584
    %v1977 = vunpack.c.l.b16 %v1585
    %v1978 = vunpack.c.h.b16 %v1585
    %v1979 = vunpack.c.l.b16 %v1586
    %v1980 = vunpack.c.h.b16 %v1586
    %v1981 = vunpack.c.l.b16 %v1587
    %v1982 = vunpack.c.h.b16 %v1587
    %v1983 = vunpack.c.l.b16 %v1588
    %v1984 = vunpack.c.h.b16 %v1588
    %v1985 = vunpack.c.l.b16 %v1589
    %v1986 = vunpack.c.h.b16 %v1589
    %v1987 = vunpack.c.l.b16 %v1590
    %v1988 = vunpack.c.h.b16 %v1590
    %v1989 = vunpack.c.l.b16 %v1591
    %v1990 = vunpack.c.h.b16 %v1591
    %v1991 = vunpack.c.l.b16 %v1592
    %v1992 = vunpack.c.h.b16 %v1592
    %v1993 = vunpack.c.l.b16 %v1593
    %v1994 = vunpack.c.h.b16 %v1593
    %v1995 = vunpack.c.l.b16 %v1594
    %v1996 = vunpack.c.h.b16 %v1594
    %v1997 = vunpack.c.l.b16 %v1595
    %v1998 = vunpack.c.h.b16 %v1595
    %v1999 = vunpack.c.l.b16 %v1596
    %v2000 = vunpack.c.h.b16 %v1596
    %v2001 = vunpack.c.l.b16 %v1597
    %v2002 = vunpack.c.h.b16 %v1597
    %v2003 = vunpack.c.l.b16 %v1598
    %v2004 = vunpack.c.h.b16 %v1598
    %v2005 = vunpack.c.l.b16 %v1599
    %v2006 = vunpack.c.h.b16 %v1599
    %v2007 = vpack.c.b16 %v1755, %v1751
    %v2008 = vpack.c.b16 %v1756, %v1752
    %v2009 = vpack.c.b16 %v1757, %v1753
    %v2010 = vpack.c.b16 %v1758, %v1754
    %v2011 = vpack.c.b16 %v1763, %v1759
    %v2012 = vpack.c.b16 %v1764, %v1760
    %v2013 = vpack.c.b16 %v1765, %v1761
    %v2014 = vpack.c.b16 %v1766, %v1762
    %v2015 = vpack.c.b16 %v1771, %v1767
    %v2016 = vpack.c.b16 %v1772, %v1768
    %v2017 = vpack.c.b16 %v1773, %v1769
    %v2018 = vpack.c.b16 %v1774, %v1770
    %v2019 = vpack.c.b16 %v1779, %v1775
    %v2020 = vpack.c.b16 %v1780, %v1776
    %v2021 = vpack.c.b16 %v1781, %v1777
    %v2022 = vpack.c.b16 %v1782, %v1778
    %v2023 = vpack.c.b16 %v1787, %v1783
    %v2024 = vpack.c.b16 %v1788, %v1784
    %v2025 = vpack.c.b16 %v1789, %v1785
    %v2026 = vpack.c.b16 %v1790, %v1786
    %v2027 = vpack.c.b16 %v1795, %v1791
    %v2028 = vpack.c.b16 %v1796, %v1792
    %v2029 = vpack.c.b16 %v1797, %v1793
    %v2030 = vpack.c.b16 %v1798, %v1794
    %v2031 = vpack.c.b16 %v1803, %v1799
    %v2032 = vpack.c.b16 %v1804, %v1800
    %v2033 = vpack.c.b16 %v1805, %v1801
    %v2034 = vpack.c.b16 %v1806, %v1802
    %v2035 = vpack.c.b16 %v1811, %v1807
    %v2036 = vpack.c.b16 %v1812, %v1808
    %v2037 = vpack.c.b16 %v1813, %v1809
    %v2038 = vpack.c.b16 %v1814, %v1810
    %v2039 = vpack.c.b16 %v1819, %v1815
    %v2040 = vpack.c.b16 %v1820, %v1816
    %v2041 = vpack.c.b16 %v1821, %v1817
    %v2042 = vpack.c.b16 %v1822, %v1818
    %v2043 = vpack.c.b16 %v1827, %v1823
    %v2044 = vpack.c.b16 %v1828, %v1824
    %v2045 = vpack.c.b16 %v1829, %v1825
    %v2046 = vpack.c.b16 %v1830, %v1826
    %v2047 = vpack.c.b16 %v1835, %v1831
    %v2048 = vpack.c.b16 %v1836, %v1832
    %v2049 = vpack.c.b16 %v1837, %v1833
    %v2050 = vpack.c.b16 %v1838, %v1834
    %v2051 = vpack.c.b16 %v1843, %v1839
    %v2052 = vpack.c.b16 %v1844, %v1840
    %v2053 = vpack.c.b16 %v1845, %v1841
    %v2054 = vpack.c.b16 %v1846, %v1842
    %v2055 = vpack.c.b16 %v1851, %v1847
    %v2056 = vpack.c.b16 %v1852, %v1848
    %v2057 = vpack.c.b16 %v1853, %v1849
    %v2058 = vpack.c.b16 %v1854, %v1850
    %v2059 = vpack.c.b16 %v1859, %v1855
    %v2060 = vpack.c.b16 %v1860, %v1856
    %v2061 = vpack.c.b16 %v1861, %v1857
    %v2062 = vpack.c.b16 %v1862, %v1858
    %v2063 = vpack.c.b16 %v1867, %v1863
    %v2064 = vpack.c.b16 %v1868, %v1864
    %v2065 = vpack.c.b16 %v1869, %v1865
    %v2066 = vpack.c.b16 %v1870, %v1866
    %v2067 = vpack.c.b16 %v1875, %v1871
    %v2068 = vpack.c.b16 %v1876, %v1872
    %v2069 = vpack.c.b16 %v1877, %v1873
    %v2070 = vpack.c.b16 %v1878, %v1874
    %v2071 = vpack.c.b16 %v1883, %v1879
    %v2072 = vpack.c.b16 %v1884, %v1880
    %v2073 = vpack.c.b16 %v1885, %v1881
    %v2074 = vpack.c.b16 %v1886, %v1882
    %v2075 = vpack.c.b16 %v1891, %v1887
    %v2076 = vpack.c.b16 %v1892, %v1888
    %v2077 = vpack.c.b16 %v1893, %v1889
    %v2078 = vpack.c.b16 %v1894, %v1890
    %v2079 = vpack.c.b16 %v1899, %v1895
    %v2080 = vpack.c.b16 %v1900, %v1896
    %v2081 = vpack.c.b16 %v1901, %v1897
    %v2082 = vpack.c.b16 %v1902, %v1898
    %v2083 = vpack.c.b16 %v1907, %v1903
    %v2084 = vpack.c.b16 %v1908, %v1904
    %v2085 = vpack.c.b16 %v1909, %v1905
    %v2086 = vpack.c.b16 %v1910, %v1906
    %v2087 = vpack.c.b16 %v1915, %v1911
    %v2088 = vpack.c.b16 %v1916, %v1912
    %v2089 = vpack.c.b16 %v1917, %v1913
    %v2090 = vpack.c.b16 %v1918, %v1914
    %v2091 = vpack.c.b16 %v1923, %v1919
    %v2092 = vpack.c.b16 %v1924, %v1920
    %v2093 = vpack.c.b16 %v1925, %v1921
    %v2094 = vpack.c.b16 %v1926, %v1922
    %v2095 = vpack.c.b16 %v1931, %v1927
    %v2096 = vpack.c.b16 %v1932, %v1928
    %v2097 = vpack.c.b16 %v1933, %v1929
    %v2098 = vpack.c.b16 %v1934, %v1930
    %v2099 = vpack.c.b16 %v1939, %v1935
    %v2100 = vpack.c.b16 %v1940, %v1936
    %v2101 = vpack.c.b16 %v1941, %v1937
    %v2102 = vpack.c.b16 %v1942, %v1938
    %v2103 = vpack.c.b16 %v1947, %v1943
    %v2104 = vpack.c.b16 %v1948, %v1944
    %v2105 = vpack.c.b16 %v1949, %v1945
    %v2106 = vpack.c.b16 %v1950, %v1946
    %v2107 = vpack.c.b16 %v1955, %v1951
    %v2108 = vpack.c.b16 %v1956, %v1952
    %v2109 = vpack.c.b16 %v1957, %v1953
    %v2110 = vpack.c.b16 %v1958, %v1954
    %v2111 = vpack.c.b16 %v1963, %v1959
    %v2112 = vpack.c.b16 %v1964, %v1960
    %v2113 = vpack.c.b16 %v1965, %v1961
    %v2114 = vpack.c.b16 %v1966, %v1962
    %v2115 = vpack.c.b16 %v1971, %v1967
    %v2116 = vpack.c.b16 %v1972, %v1968
    %v2117 = vpack.c.b16 %v1973, %v1969
    %v2118 = vpack.c.b16 %v1974, %v1970
    %v2119 = vpack.c.b16 %v1979, %v1975
    %v2120 = vpack.c.b16 %v1980, %v1976
    %v2121 = vpack.c.b16 %v1981, %v1977
    %v2122 = vpack.c.b16 %v1982, %v1978
    %v2123 = vpack.c.b16 %v1987, %v1983
    %v2124 = vpack.c.b16 %v1988, %v1984
    %v2125 = vpack.c.b16 %v1989, %v1985
    %v2126 = vpack.c.b16 %v1990, %v1986
    %v2127 = vpack.c.b16 %v1995, %v1991
    %v2128 = vpack.c.b16 %v1996, %v1992
    %v2129 = vpack.c.b16 %v1997, %v1993
    %v2130 = vpack.c.b16 %v1998, %v1994
    %v2131 = vpack.c.b16 %v2003, %v1999
    %v2132 = vpack.c.b16 %v2004, %v2000
    %v2133 = vpack.c.b16 %v2005, %v2001
    %v2134 = vpack.c.b16 %v2006, %v2002
    %2263 = vmatprep.subr.bf16.mxu0 %v2008
    %2264 = vmatpush1.bf16.msra.mxu0 %v2007
    %2265 = vmatprep.subr.bf16.mxu0 %v2012
    %2266 = vmatpush1.bf16.msra.mxu0 %v2011
    %2267 = vmatprep.subr.bf16.mxu0 %v2016
    %2268 = vmatpush1.bf16.msra.mxu0 %v2015
    %2269 = vmatprep.subr.bf16.mxu0 %v2020
    %2270 = vmatpush1.bf16.msra.mxu0 %v2019
    %2271 = vmatprep.subr.bf16.mxu0 %v2024
    %2272 = vmatpush1.bf16.msra.mxu0 %v2023
    %2273 = vmatprep.subr.bf16.mxu0 %v2028
    %2274 = vmatpush1.bf16.msra.mxu0 %v2027
    %2275 = vmatprep.subr.bf16.mxu0 %v2032
    %2276 = vmatpush1.bf16.msra.mxu0 %v2031
    %2277 = vmatprep.subr.bf16.mxu0 %v2036
    %2278 = vmatpush1.bf16.msra.mxu0 %v2035
    %2279 = vmatprep.subr.bf16.mxu0 %v2040
    %2280 = vmatpush1.bf16.msra.mxu0 %v2039
    %2281 = vmatprep.subr.bf16.mxu0 %v2044
    %2282 = vmatpush1.bf16.msra.mxu0 %v2043
    %2283 = vmatprep.subr.bf16.mxu0 %v2048
    %2284 = vmatpush1.bf16.msra.mxu0 %v2047
    %2285 = vmatprep.subr.bf16.mxu0 %v2052
    %2286 = vmatpush1.bf16.msra.mxu0 %v2051
    %2287 = vmatprep.subr.bf16.mxu0 %v2056
    %2288 = vmatpush1.bf16.msra.mxu0 %v2055
    %2289 = vmatprep.subr.bf16.mxu0 %v2060
    %2290 = vmatpush1.bf16.msra.mxu0 %v2059
    %2291 = vmatprep.subr.bf16.mxu0 %v2064
    %2292 = vmatpush1.bf16.msra.mxu0 %v2063
    %2293 = vmatprep.subr.bf16.mxu0 %v2068
    %2294 = vmatpush1.bf16.msra.mxu0 %v2067
    %2295 = vmatprep.mubr.bf16.mxu0 %v1469
    %2296 = vmatmul.mubr.bf16.gmra.mrb[0].mxu0 %v1468
    %v2297 = vpop.f32.mrb[0].mxu0
    %v2298 = vadd.f32 %v1606, %v2297
    %v2299 = vpop.f32.mrb[0].mxu0
    %v2300 = vadd.f32 %v1610, %v2299
    %v2301 = vpop.f32.mrb[0].mxu0
    %v2302 = vadd.f32 %v1606, %v2301
    %v2303 = vpop.f32.mrb[0].mxu0
    %v2304 = vadd.f32 %v1610, %v2303
    %2305 = vdwg.mxu0
    %2306 = vmatprep.subr.bf16.mxu0 %v2072
    %2307 = vmatpush1.bf16.msra.mxu0 %v2071
    %2308 = vmatprep.subr.bf16.mxu0 %v2076
    %2309 = vmatpush1.bf16.msra.mxu0 %v2075
    %2310 = vmatprep.subr.bf16.mxu0 %v2080
    %2311 = vmatpush1.bf16.msra.mxu0 %v2079
    %2312 = vmatprep.subr.bf16.mxu0 %v2084
    %2313 = vmatpush1.bf16.msra.mxu0 %v2083
    %2314 = vmatprep.subr.bf16.mxu0 %v2088
    %2315 = vmatpush1.bf16.msra.mxu0 %v2087
    %2316 = vmatprep.subr.bf16.mxu0 %v2092
    %2317 = vmatpush1.bf16.msra.mxu0 %v2091
    %2318 = vmatprep.subr.bf16.mxu0 %v2096
    %2319 = vmatpush1.bf16.msra.mxu0 %v2095
    %2320 = vmatprep.subr.bf16.mxu0 %v2100
    %2321 = vmatpush1.bf16.msra.mxu0 %v2099
    %2322 = vmatprep.subr.bf16.mxu0 %v2104
    %2323 = vmatpush1.bf16.msra.mxu0 %v2103
    %2324 = vmatprep.subr.bf16.mxu0 %v2108
    %2325 = vmatpush1.bf16.msra.mxu0 %v2107
    %2326 = vmatprep.subr.bf16.mxu0 %v2112
    %2327 = vmatpush1.bf16.msra.mxu0 %v2111
    %2328 = vmatprep.subr.bf16.mxu0 %v2116
    %2329 = vmatpush1.bf16.msra.mxu0 %v2115
    %2330 = vmatprep.subr.bf16.mxu0 %v2120
    %2331 = vmatpush1.bf16.msra.mxu0 %v2119
    %2332 = vmatprep.subr.bf16.mxu0 %v2124
    %2333 = vmatpush1.bf16.msra.mxu0 %v2123
    %2334 = vmatprep.subr.bf16.mxu0 %v2128
    %2335 = vmatpush1.bf16.msra.mxu0 %v2127
    %2336 = vmatprep.subr.bf16.mxu0 %v2132
    %2337 = vmatpush1.bf16.msra.mxu0 %v2131
    %2338 = vmatprep.mubr.bf16.mxu0 %v1471
    %2339 = vmatmul.mubr.bf16.gmra.mrb[0].mxu0 %v1470
    %v2340 = vpop.f32.mrb[0].mxu0
    %v2341 = vadd.f32 %v2298, %v2340
    %v2342 = vpop.f32.mrb[0].mxu0
    %v2343 = vadd.f32 %v2300, %v2342
    %v2344 = vpop.f32.mrb[0].mxu0
    %v2345 = vadd.f32 %v2302, %v2344
    %v2346 = vpop.f32.mrb[0].mxu0
    %v2347 = vadd.f32 %v2304, %v2346
    %2348 = vdwg.mxu0
    %2349 = vmatprep.subr.bf16.mxu0 %v2010
    %2350 = vmatpush1.bf16.msra.mxu0 %v2009
    %2351 = vmatprep.subr.bf16.mxu0 %v2014
    %2352 = vmatpush1.bf16.msra.mxu0 %v2013
    %2353 = vmatprep.subr.bf16.mxu0 %v2018
    %2354 = vmatpush1.bf16.msra.mxu0 %v2017
    %2355 = vmatprep.subr.bf16.mxu0 %v2022
    %2356 = vmatpush1.bf16.msra.mxu0 %v2021
    %2357 = vmatprep.subr.bf16.mxu0 %v2026
    %2358 = vmatpush1.bf16.msra.mxu0 %v2025
    %2359 = vmatprep.subr.bf16.mxu0 %v2030
    %2360 = vmatpush1.bf16.msra.mxu0 %v2029
    %2361 = vmatprep.subr.bf16.mxu0 %v2034
    %2362 = vmatpush1.bf16.msra.mxu0 %v2033
    %2363 = vmatprep.subr.bf16.mxu0 %v2038
    %2364 = vmatpush1.bf16.msra.mxu0 %v2037
    %2365 = vmatprep.subr.bf16.mxu0 %v2042
    %2366 = vmatpush1.bf16.msra.mxu0 %v2041
    %2367 = vmatprep.subr.bf16.mxu0 %v2046
    %2368 = vmatpush1.bf16.msra.mxu0 %v2045
    %2369 = vmatprep.subr.bf16.mxu0 %v2050
    %2370 = vmatpush1.bf16.msra.mxu0 %v2049
    %2371 = vmatprep.subr.bf16.mxu0 %v2054
    %2372 = vmatpush1.bf16.msra.mxu0 %v2053
    %2373 = vmatprep.subr.bf16.mxu0 %v2058
    %2374 = vmatpush1.bf16.msra.mxu0 %v2057
    %2375 = vmatprep.subr.bf16.mxu0 %v2062
    %2376 = vmatpush1.bf16.msra.mxu0 %v2061
    %2377 = vmatprep.subr.bf16.mxu0 %v2066
    %2378 = vmatpush1.bf16.msra.mxu0 %v2065
    %2379 = vmatprep.subr.bf16.mxu0 %v2070
    %2380 = vmatpush1.bf16.msra.mxu0 %v2069
    %2381 = vmatprep.mubr.bf16.mxu0 %v1469
    %2382 = vmatmul.mubr.bf16.gmra.mrb[0].mxu0 %v1468
    %v2383 = vpop.f32.mrb[0].mxu0
    %v2384 = vadd.f32 %v1614, %v2383
    %v2385 = vpop.f32.mrb[0].mxu0
    %v2386 = vadd.f32 %v1618, %v2385
    %v2387 = vpop.f32.mrb[0].mxu0
    %v2388 = vadd.f32 %v1614, %v2387
    %v2389 = vpop.f32.mrb[0].mxu0
    %v2390 = vadd.f32 %v1618, %v2389
    %2391 = vdwg.mxu0
    %2392 = vmatprep.subr.bf16.mxu0 %v2074
    %2393 = vmatpush1.bf16.msra.mxu0 %v2073
    %2394 = vmatprep.subr.bf16.mxu0 %v2078
    %2395 = vmatpush1.bf16.msra.mxu0 %v2077
    %2396 = vmatprep.subr.bf16.mxu0 %v2082
    %2397 = vmatpush1.bf16.msra.mxu0 %v2081
    %2398 = vmatprep.subr.bf16.mxu0 %v2086
    %2399 = vmatpush1.bf16.msra.mxu0 %v2085
    %2400 = vmatprep.subr.bf16.mxu0 %v2090
    %2401 = vmatpush1.bf16.msra.mxu0 %v2089
    %2402 = vmatprep.subr.bf16.mxu0 %v2094
    %2403 = vmatpush1.bf16.msra.mxu0 %v2093
    %2404 = vmatprep.subr.bf16.mxu0 %v2098
    %2405 = vmatpush1.bf16.msra.mxu0 %v2097
    %2406 = vmatprep.subr.bf16.mxu0 %v2102
    %2407 = vmatpush1.bf16.msra.mxu0 %v2101
    %2408 = vmatprep.subr.bf16.mxu0 %v2106
    %2409 = vmatpush1.bf16.msra.mxu0 %v2105
    %2410 = vmatprep.subr.bf16.mxu0 %v2110
    %2411 = vmatpush1.bf16.msra.mxu0 %v2109
    %2412 = vmatprep.subr.bf16.mxu0 %v2114
    %2413 = vmatpush1.bf16.msra.mxu0 %v2113
    %2414 = vmatprep.subr.bf16.mxu0 %v2118
    %2415 = vmatpush1.bf16.msra.mxu0 %v2117
    %2416 = vmatprep.subr.bf16.mxu0 %v2122
    %2417 = vmatpush1.bf16.msra.mxu0 %v2121
    %2418 = vmatprep.subr.bf16.mxu0 %v2126
    %2419 = vmatpush1.bf16.msra.mxu0 %v2125
    %2420 = vmatprep.subr.bf16.mxu0 %v2130
    %2421 = vmatpush1.bf16.msra.mxu0 %v2129
    %2422 = vmatprep.subr.bf16.mxu0 %v2134
    %2423 = vmatpush1.bf16.msra.mxu0 %v2133
    %2424 = vmatprep.mubr.bf16.mxu0 %v1471
    %2425 = vmatmul.mubr.bf16.gmra.mrb[0].mxu0 %v1470
    %v2426 = vpop.f32.mrb[0].mxu0
    %v2427 = vadd.f32 %v2384, %v2426
    %v2428 = vpop.f32.mrb[0].mxu0
    %v2429 = vadd.f32 %v2386, %v2428
    %v2430 = vpop.f32.mrb[0].mxu0
    %v2431 = vadd.f32 %v2388, %v2430
    %v2432 = vpop.f32.mrb[0].mxu0
    %v2433 = vadd.f32 %v2390, %v2432
    %2434 = vdwg.mxu0
    %v2435 = vmax.f32 %v2341, 0.0
    %v2436 = vmax.f32 %v2343, 0.0
    %v2437 = vmax.f32 %v2427, 0.0
    %v2438 = vmax.f32 %v2429, 0.0
    %v2439 = vmax.f32 %v2345, 0.0
    %v2440 = vmax.f32 %v2347, 0.0
    %v2441 = vmax.f32 %v2431, 0.0
    %v2442 = vmax.f32 %v2433, 0.0
    %v2443 = vpack.c.bf16 %v2439, %v2435
    %v2444 = vpack.c.bf16 %v2440, %v2436
    %v2445 = vpack.c.bf16 %v2441, %v2437
    %v2446 = vpack.c.bf16 %v2442, %v2438
    %v2447 = vld [vmem:[#allocation13] sm:$0xff]
    %v2448 = vld [vmem:[#allocation13 + $0x8] sm:$0xff]
    %v2449 = vld [vmem:[#allocation13 + $0x10] sm:$0xff]
    %v2450 = vld [vmem:[#allocation13 + $0x18] sm:$0xff]
    %v2451 = vld [vmem:[#allocation13 + $0x20] sm:$0xff]
    %v2452 = vld [vmem:[#allocation13 + $0x28] sm:$0xff]
    %v2453 = vld [vmem:[#allocation13 + $0x30] sm:$0xff]
    %v2454 = vld [vmem:[#allocation13 + $0x38] sm:$0xff]
    %v2455 = vld [vmem:[#allocation13 + $0x40] sm:$0xff]
    %v2456 = vld [vmem:[#allocation13 + $0x48] sm:$0xff]
    %v2457 = vld [vmem:[#allocation13 + $0x50] sm:$0xff]
    %v2458 = vld [vmem:[#allocation13 + $0x58] sm:$0xff]
    %v2459 = vld [vmem:[#allocation13 + $0x60] sm:$0xff]
    %v2460 = vld [vmem:[#allocation13 + $0x68] sm:$0xff]
    %v2461 = vld [vmem:[#allocation13 + $0x70] sm:$0xff]
    %v2462 = vld [vmem:[#allocation13 + $0x78] sm:$0xff]
    %v2463 = vld [vmem:[#allocation13 + $0x80] sm:$0xff]
    %v2464 = vld [vmem:[#allocation13 + $0x88] sm:$0xff]
    %v2465 = vld [vmem:[#allocation13 + $0x90] sm:$0xff]
    %v2466 = vld [vmem:[#allocation13 + $0x98] sm:$0xff]
    %v2467 = vld [vmem:[#allocation13 + $0xa0] sm:$0xff]
    %v2468 = vld [vmem:[#allocation13 + $0xa8] sm:$0xff]
    %v2469 = vld [vmem:[#allocation13 + $0xb0] sm:$0xff]
    %v2470 = vld [vmem:[#allocation13 + $0xb8] sm:$0xff]
    %v2471 = vld [vmem:[#allocation13 + $0xc0] sm:$0xff]
    %v2472 = vld [vmem:[#allocation13 + $0xc8] sm:$0xff]
    %v2473 = vld [vmem:[#allocation13 + $0xd0] sm:$0xff]
    %v2474 = vld [vmem:[#allocation13 + $0xd8] sm:$0xff]
    %v2475 = vld [vmem:[#allocation13 + $0xe0] sm:$0xff]
    %v2476 = vld [vmem:[#allocation13 + $0xe8] sm:$0xff]
    %v2477 = vld [vmem:[#allocation13 + $0xf0] sm:$0xff]
    %v2478 = vld [vmem:[#allocation13 + $0xf8] sm:$0xff]
    %v2479 = vld [vmem:[#allocation13 + $0x100] sm:$0xff]
    %v2480 = vld [vmem:[#allocation13 + $0x108] sm:$0xff]
    %v2481 = vld [vmem:[#allocation13 + $0x110] sm:$0xff]
    %v2482 = vld [vmem:[#allocation13 + $0x118] sm:$0xff]
    %v2483 = vld [vmem:[#allocation13 + $0x120] sm:$0xff]
    %v2484 = vld [vmem:[#allocation13 + $0x128] sm:$0xff]
    %v2485 = vld [vmem:[#allocation13 + $0x130] sm:$0xff]
    %v2486 = vld [vmem:[#allocation13 + $0x138] sm:$0xff]
    %v2487 = vld [vmem:[#allocation13 + $0x140] sm:$0xff]
    %v2488 = vld [vmem:[#allocation13 + $0x148] sm:$0xff]
    %v2489 = vld [vmem:[#allocation13 + $0x150] sm:$0xff]
    %v2490 = vld [vmem:[#allocation13 + $0x158] sm:$0xff]
    %v2491 = vld [vmem:[#allocation13 + $0x160] sm:$0xff]
    %v2492 = vld [vmem:[#allocation13 + $0x168] sm:$0xff]
    %v2493 = vld [vmem:[#allocation13 + $0x170] sm:$0xff]
    %v2494 = vld [vmem:[#allocation13 + $0x178] sm:$0xff]
    %v2495 = vld [vmem:[#allocation13 + $0x180] sm:$0xff]
    %v2496 = vld [vmem:[#allocation13 + $0x188] sm:$0xff]
    %v2497 = vld [vmem:[#allocation13 + $0x190] sm:$0xff]
    %v2498 = vld [vmem:[#allocation13 + $0x198] sm:$0xff]
    %v2499 = vld [vmem:[#allocation13 + $0x1a0] sm:$0xff]
    %v2500 = vld [vmem:[#allocation13 + $0x1a8] sm:$0xff]
    %v2501 = vld [vmem:[#allocation13 + $0x1b0] sm:$0xff]
    %v2502 = vld [vmem:[#allocation13 + $0x1b8] sm:$0xff]
    %v2503 = vld [vmem:[#allocation13 + $0x1c0] sm:$0xff]
    %v2504 = vld [vmem:[#allocation13 + $0x1c8] sm:$0xff]
    %v2505 = vld [vmem:[#allocation13 + $0x1d0] sm:$0xff]
    %v2506 = vld [vmem:[#allocation13 + $0x1d8] sm:$0xff]
    %v2507 = vld [vmem:[#allocation13 + $0x1e0] sm:$0xff]
    %v2508 = vld [vmem:[#allocation13 + $0x1e8] sm:$0xff]
    %v2509 = vld [vmem:[#allocation13 + $0x1f0] sm:$0xff]
    %v2510 = vld [vmem:[#allocation13 + $0x1f8] sm:$0xff]
    %s2511 = scalar_lea.vmem [#allocation7], 3
    %v2512 = vld [vmem:[%s2511] ss:$8 sm:$0x3]
    %v2514 = vlaneseq
    %v2515 = vshrl.u32 %v2514, 7
    %v2516 = vsub.s32 0, %v2515
    %v2517 = vrot.slane %v2512, %v2516
    %v2518 = vlaneseq
    %v2519 = vshrl.u32 %v2518, 7
    %v2520 = vsub.s32 1, %v2519
    %v2521 = vrot.slane %v2512, %v2520
    %v2588 = vunpack.c.l.b16 %v2447
    %v2589 = vunpack.c.h.b16 %v2447
    %v2590 = vunpack.c.l.b16 %v2448
    %v2591 = vunpack.c.h.b16 %v2448
    %v2592 = vunpack.c.l.b16 %v2449
    %v2593 = vunpack.c.h.b16 %v2449
    %v2594 = vunpack.c.l.b16 %v2450
    %v2595 = vunpack.c.h.b16 %v2450
    %v2596 = vunpack.c.l.b16 %v2451
    %v2597 = vunpack.c.h.b16 %v2451
    %v2598 = vunpack.c.l.b16 %v2452
    %v2599 = vunpack.c.h.b16 %v2452
    %v2600 = vunpack.c.l.b16 %v2453
    %v2601 = vunpack.c.h.b16 %v2453
    %v2602 = vunpack.c.l.b16 %v2454
    %v2603 = vunpack.c.h.b16 %v2454
    %v2604 = vunpack.c.l.b16 %v2455
    %v2605 = vunpack.c.h.b16 %v2455
    %v2606 = vunpack.c.l.b16 %v2456
    %v2607 = vunpack.c.h.b16 %v2456
    %v2608 = vunpack.c.l.b16 %v2457
    %v2609 = vunpack.c.h.b16 %v2457
    %v2610 = vunpack.c.l.b16 %v2458
    %v2611 = vunpack.c.h.b16 %v2458
    %v2612 = vunpack.c.l.b16 %v2459
    %v2613 = vunpack.c.h.b16 %v2459
    %v2614 = vunpack.c.l.b16 %v2460
    %v2615 = vunpack.c.h.b16 %v2460
    %v2616 = vunpack.c.l.b16 %v2461
    %v2617 = vunpack.c.h.b16 %v2461
    %v2618 = vunpack.c.l.b16 %v2462
    %v2619 = vunpack.c.h.b16 %v2462
    %v2620 = vunpack.c.l.b16 %v2463
    %v2621 = vunpack.c.h.b16 %v2463
    %v2622 = vunpack.c.l.b16 %v2464
    %v2623 = vunpack.c.h.b16 %v2464
    %v2624 = vunpack.c.l.b16 %v2465
    %v2625 = vunpack.c.h.b16 %v2465
    %v2626 = vunpack.c.l.b16 %v2466
    %v2627 = vunpack.c.h.b16 %v2466
    %v2628 = vunpack.c.l.b16 %v2467
    %v2629 = vunpack.c.h.b16 %v2467
    %v2630 = vunpack.c.l.b16 %v2468
    %v2631 = vunpack.c.h.b16 %v2468
    %v2632 = vunpack.c.l.b16 %v2469
    %v2633 = vunpack.c.h.b16 %v2469
    %v2634 = vunpack.c.l.b16 %v2470
    %v2635 = vunpack.c.h.b16 %v2470
    %v2636 = vunpack.c.l.b16 %v2471
    %v2637 = vunpack.c.h.b16 %v2471
    %v2638 = vunpack.c.l.b16 %v2472
    %v2639 = vunpack.c.h.b16 %v2472
    %v2640 = vunpack.c.l.b16 %v2473
    %v2641 = vunpack.c.h.b16 %v2473
    %v2642 = vunpack.c.l.b16 %v2474
    %v2643 = vunpack.c.h.b16 %v2474
    %v2644 = vunpack.c.l.b16 %v2475
    %v2645 = vunpack.c.h.b16 %v2475
    %v2646 = vunpack.c.l.b16 %v2476
    %v2647 = vunpack.c.h.b16 %v2476
    %v2648 = vunpack.c.l.b16 %v2477
    %v2649 = vunpack.c.h.b16 %v2477
    %v2650 = vunpack.c.l.b16 %v2478
    %v2651 = vunpack.c.h.b16 %v2478
    %v2652 = vunpack.c.l.b16 %v2479
    %v2653 = vunpack.c.h.b16 %v2479
    %v2654 = vunpack.c.l.b16 %v2480
    %v2655 = vunpack.c.h.b16 %v2480
    %v2656 = vunpack.c.l.b16 %v2481
    %v2657 = vunpack.c.h.b16 %v2481
    %v2658 = vunpack.c.l.b16 %v2482
    %v2659 = vunpack.c.h.b16 %v2482
    %v2660 = vunpack.c.l.b16 %v2483
    %v2661 = vunpack.c.h.b16 %v2483
    %v2662 = vunpack.c.l.b16 %v2484
    %v2663 = vunpack.c.h.b16 %v2484
    %v2664 = vunpack.c.l.b16 %v2485
    %v2665 = vunpack.c.h.b16 %v2485
    %v2666 = vunpack.c.l.b16 %v2486
    %v2667 = vunpack.c.h.b16 %v2486
    %v2668 = vunpack.c.l.b16 %v2487
    %v2669 = vunpack.c.h.b16 %v2487
    %v2670 = vunpack.c.l.b16 %v2488
    %v2671 = vunpack.c.h.b16 %v2488
    %v2672 = vunpack.c.l.b16 %v2489
    %v2673 = vunpack.c.h.b16 %v2489
    %v2674 = vunpack.c.l.b16 %v2490
    %v2675 = vunpack.c.h.b16 %v2490
    %v2676 = vunpack.c.l.b16 %v2491
    %v2677 = vunpack.c.h.b16 %v2491
    %v2678 = vunpack.c.l.b16 %v2492
    %v2679 = vunpack.c.h.b16 %v2492
    %v2680 = vunpack.c.l.b16 %v2493
    %v2681 = vunpack.c.h.b16 %v2493
    %v2682 = vunpack.c.l.b16 %v2494
    %v2683 = vunpack.c.h.b16 %v2494
    %v2684 = vunpack.c.l.b16 %v2495
    %v2685 = vunpack.c.h.b16 %v2495
    %v2686 = vunpack.c.l.b16 %v2496
    %v2687 = vunpack.c.h.b16 %v2496
    %v2688 = vunpack.c.l.b16 %v2497
    %v2689 = vunpack.c.h.b16 %v2497
    %v2690 = vunpack.c.l.b16 %v2498
    %v2691 = vunpack.c.h.b16 %v2498
    %v2692 = vunpack.c.l.b16 %v2499
    %v2693 = vunpack.c.h.b16 %v2499
    %v2694 = vunpack.c.l.b16 %v2500
    %v2695 = vunpack.c.h.b16 %v2500
    %v2696 = vunpack.c.l.b16 %v2501
    %v2697 = vunpack.c.h.b16 %v2501
    %v2698 = vunpack.c.l.b16 %v2502
    %v2699 = vunpack.c.h.b16 %v2502
    %v2700 = vunpack.c.l.b16 %v2503
    %v2701 = vunpack.c.h.b16 %v2503
    %v2702 = vunpack.c.l.b16 %v2504
    %v2703 = vunpack.c.h.b16 %v2504
    %v2704 = vunpack.c.l.b16 %v2505
    %v2705 = vunpack.c.h.b16 %v2505
    %v2706 = vunpack.c.l.b16 %v2506
    %v2707 = vunpack.c.h.b16 %v2506
    %v2708 = vunpack.c.l.b16 %v2507
    %v2709 = vunpack.c.h.b16 %v2507
    %v2710 = vunpack.c.l.b16 %v2508
    %v2711 = vunpack.c.h.b16 %v2508
    %v2712 = vunpack.c.l.b16 %v2509
    %v2713 = vunpack.c.h.b16 %v2509
    %v2714 = vunpack.c.l.b16 %v2510
    %v2715 = vunpack.c.h.b16 %v2510
    %v2716 = vpack.c.b16 %v2590, %v2588
    %v2717 = vpack.c.b16 %v2591, %v2589
    %v2718 = vpack.c.b16 %v2594, %v2592
    %v2719 = vpack.c.b16 %v2595, %v2593
    %v2720 = vpack.c.b16 %v2598, %v2596
    %v2721 = vpack.c.b16 %v2599, %v2597
    %v2722 = vpack.c.b16 %v2602, %v2600
    %v2723 = vpack.c.b16 %v2603, %v2601
    %v2724 = vpack.c.b16 %v2606, %v2604
    %v2725 = vpack.c.b16 %v2607, %v2605
    %v2726 = vpack.c.b16 %v2610, %v2608
    %v2727 = vpack.c.b16 %v2611, %v2609
    %v2728 = vpack.c.b16 %v2614, %v2612
    %v2729 = vpack.c.b16 %v2615, %v2613
    %v2730 = vpack.c.b16 %v2618, %v2616
    %v2731 = vpack.c.b16 %v2619, %v2617
    %v2732 = vpack.c.b16 %v2622, %v2620
    %v2733 = vpack.c.b16 %v2623, %v2621
    %v2734 = vpack.c.b16 %v2626, %v2624
    %v2735 = vpack.c.b16 %v2627, %v2625
    %v2736 = vpack.c.b16 %v2630, %v2628
    %v2737 = vpack.c.b16 %v2631, %v2629
    %v2738 = vpack.c.b16 %v2634, %v2632
    %v2739 = vpack.c.b16 %v2635, %v2633
    %v2740 = vpack.c.b16 %v2638, %v2636
    %v2741 = vpack.c.b16 %v2639, %v2637
    %v2742 = vpack.c.b16 %v2642, %v2640
    %v2743 = vpack.c.b16 %v2643, %v2641
    %v2744 = vpack.c.b16 %v2646, %v2644
    %v2745 = vpack.c.b16 %v2647, %v2645
    %v2746 = vpack.c.b16 %v2650, %v2648
    %v2747 = vpack.c.b16 %v2651, %v2649
    %v2748 = vpack.c.b16 %v2654, %v2652
    %v2749 = vpack.c.b16 %v2655, %v2653
    %v2750 = vpack.c.b16 %v2658, %v2656
    %v2751 = vpack.c.b16 %v2659, %v2657
    %v2752 = vpack.c.b16 %v2662, %v2660
    %v2753 = vpack.c.b16 %v2663, %v2661
    %v2754 = vpack.c.b16 %v2666, %v2664
    %v2755 = vpack.c.b16 %v2667, %v2665
    %v2756 = vpack.c.b16 %v2670, %v2668
    %v2757 = vpack.c.b16 %v2671, %v2669
    %v2758 = vpack.c.b16 %v2674, %v2672
    %v2759 = vpack.c.b16 %v2675, %v2673
    %v2760 = vpack.c.b16 %v2678, %v2676
    %v2761 = vpack.c.b16 %v2679, %v2677
    %v2762 = vpack.c.b16 %v2682, %v2680
    %v2763 = vpack.c.b16 %v2683, %v2681
    %v2764 = vpack.c.b16 %v2686, %v2684
    %v2765 = vpack.c.b16 %v2687, %v2685
    %v2766 = vpack.c.b16 %v2690, %v2688
    %v2767 = vpack.c.b16 %v2691, %v2689
    %v2768 = vpack.c.b16 %v2694, %v2692
    %v2769 = vpack.c.b16 %v2695, %v2693
    %v2770 = vpack.c.b16 %v2698, %v2696
    %v2771 = vpack.c.b16 %v2699, %v2697
    %v2772 = vpack.c.b16 %v2702, %v2700
    %v2773 = vpack.c.b16 %v2703, %v2701
    %v2774 = vpack.c.b16 %v2706, %v2704
    %v2775 = vpack.c.b16 %v2707, %v2705
    %v2776 = vpack.c.b16 %v2710, %v2708
    %v2777 = vpack.c.b16 %v2711, %v2709
    %v2778 = vpack.c.b16 %v2714, %v2712
    %v2779 = vpack.c.b16 %v2715, %v2713
    %2844 = vmatprep.subr.bf16.mxu0 %v2717
    %2845 = vmatpush1.bf16.msra.mxu0 %v2716
    %2846 = vmatprep.subr.bf16.mxu0 %v2719
    %2847 = vmatpush1.bf16.msra.mxu0 %v2718
    %2848 = vmatprep.subr.bf16.mxu0 %v2721
    %2849 = vmatpush1.bf16.msra.mxu0 %v2720
    %2850 = vmatprep.subr.bf16.mxu0 %v2723
    %2851 = vmatpush1.bf16.msra.mxu0 %v2722
    %2852 = vmatprep.subr.bf16.mxu0 %v2725
    %2853 = vmatpush1.bf16.msra.mxu0 %v2724
    %2854 = vmatprep.subr.bf16.mxu0 %v2727
    %2855 = vmatpush1.bf16.msra.mxu0 %v2726
    %2856 = vmatprep.subr.bf16.mxu0 %v2729
    %2857 = vmatpush1.bf16.msra.mxu0 %v2728
    %2858 = vmatprep.subr.bf16.mxu0 %v2731
    %2859 = vmatpush1.bf16.msra.mxu0 %v2730
    %2860 = vmatprep.subr.bf16.mxu0 %v2733
    %2861 = vmatpush1.bf16.msra.mxu0 %v2732
    %2862 = vmatprep.subr.bf16.mxu0 %v2735
    %2863 = vmatpush1.bf16.msra.mxu0 %v2734
    %2864 = vmatprep.subr.bf16.mxu0 %v2737
    %2865 = vmatpush1.bf16.msra.mxu0 %v2736
    %2866 = vmatprep.subr.bf16.mxu0 %v2739
    %2867 = vmatpush1.bf16.msra.mxu0 %v2738
    %2868 = vmatprep.subr.bf16.mxu0 %v2741
    %2869 = vmatpush1.bf16.msra.mxu0 %v2740
    %2870 = vmatprep.subr.bf16.mxu0 %v2743
    %2871 = vmatpush1.bf16.msra.mxu0 %v2742
    %2872 = vmatprep.subr.bf16.mxu0 %v2745
    %2873 = vmatpush1.bf16.msra.mxu0 %v2744
    %2874 = vmatprep.subr.bf16.mxu0 %v2747
    %2875 = vmatpush1.bf16.msra.mxu0 %v2746
    %2876 = vmatprep.mubr.bf16.mxu0 %v2444
    %2877 = vmatmul.mubr.bf16.gmra.mrb[0].mxu0 %v2443
    %v2878 = vpop.f32.mrb[0].mxu0
    %v2879 = vadd.f32 %v2517, %v2878
    %v2880 = vpop.f32.mrb[0].mxu0
    %v2881 = vadd.f32 %v2521, %v2880
    %v2882 = vpop.f32.mrb[0].mxu0
    %v2883 = vadd.f32 %v2517, %v2882
    %v2884 = vpop.f32.mrb[0].mxu0
    %v2885 = vadd.f32 %v2521, %v2884
    %2886 = vdwg.mxu0
    %2887 = vmatprep.subr.bf16.mxu0 %v2749
    %2888 = vmatpush1.bf16.msra.mxu0 %v2748
    %2889 = vmatprep.subr.bf16.mxu0 %v2751
    %2890 = vmatpush1.bf16.msra.mxu0 %v2750
    %2891 = vmatprep.subr.bf16.mxu0 %v2753
    %2892 = vmatpush1.bf16.msra.mxu0 %v2752
    %2893 = vmatprep.subr.bf16.mxu0 %v2755
    %2894 = vmatpush1.bf16.msra.mxu0 %v2754
    %2895 = vmatprep.subr.bf16.mxu0 %v2757
    %2896 = vmatpush1.bf16.msra.mxu0 %v2756
    %2897 = vmatprep.subr.bf16.mxu0 %v2759
    %2898 = vmatpush1.bf16.msra.mxu0 %v2758
    %2899 = vmatprep.subr.bf16.mxu0 %v2761
    %2900 = vmatpush1.bf16.msra.mxu0 %v2760
    %2901 = vmatprep.subr.bf16.mxu0 %v2763
    %2902 = vmatpush1.bf16.msra.mxu0 %v2762
    %2903 = vmatprep.subr.bf16.mxu0 %v2765
    %2904 = vmatpush1.bf16.msra.mxu0 %v2764
    %2905 = vmatprep.subr.bf16.mxu0 %v2767
    %2906 = vmatpush1.bf16.msra.mxu0 %v2766
    %2907 = vmatprep.subr.bf16.mxu0 %v2769
    %2908 = vmatpush1.bf16.msra.mxu0 %v2768
    %2909 = vmatprep.subr.bf16.mxu0 %v2771
    %2910 = vmatpush1.bf16.msra.mxu0 %v2770
    %2911 = vmatprep.subr.bf16.mxu0 %v2773
    %2912 = vmatpush1.bf16.msra.mxu0 %v2772
    %2913 = vmatprep.subr.bf16.mxu0 %v2775
    %2914 = vmatpush1.bf16.msra.mxu0 %v2774
    %2915 = vmatprep.subr.bf16.mxu0 %v2777
    %2916 = vmatpush1.bf16.msra.mxu0 %v2776
    %2917 = vmatprep.subr.bf16.mxu0 %v2779
    %2918 = vmatpush1.bf16.msra.mxu0 %v2778
    %2919 = vmatprep.mubr.bf16.mxu0 %v2446
    %2920 = vmatmul.mubr.bf16.gmra.mrb[0].mxu0 %v2445
    %v2921 = vpop.f32.mrb[0].mxu0
    %v2922 = vadd.f32 %v2879, %v2921
    %v2923 = vpop.f32.mrb[0].mxu0
    %v2924 = vadd.f32 %v2881, %v2923
    %v2925 = vpop.f32.mrb[0].mxu0
    %v2926 = vadd.f32 %v2883, %v2925
    %v2927 = vpop.f32.mrb[0].mxu0
    %v2928 = vadd.f32 %v2885, %v2927
    %2929 = vdwg.mxu0
    %v2930 = vmul.f32 %v2924, 0.5
    %v2931 = vmul.f32 %v2928, 0.5
    %v2932 = vmul.f32 %v2930, 1.442695
    %v2933 = vpow.pop %v2932
    %v2934 = vmul.f32 %v2931, 1.442695
    %v2935 = vpow.pop %v2934
    %v2936 = vld [vmem:[#allocation5] sm:$0xff]
    %v2937 = vld [vmem:[#allocation5 + $0x8] sm:$0xff]
    %v2938 = vmul.f32 %v2936, %v2933
    %v2939 = vmul.f32 %v2937, %v2935
    %v2940 = vadd.f32 %v2938, %v2922
    %v2941 = vadd.f32 %v2939, %v2926
    %v2942 = vpack.c.bf16 %v2941, %v2940
    %v2943 = vld [vmem:[#allocation14] sm:$0xff]
    %v2944 = vld [vmem:[#allocation14 + $0x8] sm:$0xff]
    %v2945 = vld [vmem:[#allocation14 + $0x10] sm:$0xff]
    %v2946 = vld [vmem:[#allocation14 + $0x18] sm:$0xff]
    %v2947 = vld [vmem:[#allocation14 + $0x20] sm:$0xff]
    %v2948 = vld [vmem:[#allocation14 + $0x28] sm:$0xff]
    %v2949 = vld [vmem:[#allocation14 + $0x30] sm:$0xff]
    %v2950 = vld [vmem:[#allocation14 + $0x38] sm:$0xff]
    %v2951 = vld [vmem:[#allocation14 + $0x40] sm:$0xff]
    %v2952 = vld [vmem:[#allocation14 + $0x48] sm:$0xff]
    %v2953 = vld [vmem:[#allocation14 + $0x50] sm:$0xff]
    %v2954 = vld [vmem:[#allocation14 + $0x58] sm:$0xff]
    %v2955 = vld [vmem:[#allocation14 + $0x60] sm:$0xff]
    %v2956 = vld [vmem:[#allocation14 + $0x68] sm:$0xff]
    %v2957 = vld [vmem:[#allocation14 + $0x70] sm:$0xff]
    %v2958 = vld [vmem:[#allocation14 + $0x78] sm:$0xff]
    %v2959 = vld [vmem:[#allocation14 + $0x80] sm:$0xff]
    %v2960 = vld [vmem:[#allocation14 + $0x88] sm:$0xff]
    %v2961 = vld [vmem:[#allocation14 + $0x90] sm:$0xff]
    %v2962 = vld [vmem:[#allocation14 + $0x98] sm:$0xff]
    %v2963 = vld [vmem:[#allocation14 + $0xa0] sm:$0xff]
    %v2964 = vld [vmem:[#allocation14 + $0xa8] sm:$0xff]
    %v2965 = vld [vmem:[#allocation14 + $0xb0] sm:$0xff]
    %v2966 = vld [vmem:[#allocation14 + $0xb8] sm:$0xff]
    %v2967 = vld [vmem:[#allocation14 + $0xc0] sm:$0xff]
    %v2968 = vld [vmem:[#allocation14 + $0xc8] sm:$0xff]
    %v2969 = vld [vmem:[#allocation14 + $0xd0] sm:$0xff]
    %v2970 = vld [vmem:[#allocation14 + $0xd8] sm:$0xff]
    %v2971 = vld [vmem:[#allocation14 + $0xe0] sm:$0xff]
    %v2972 = vld [vmem:[#allocation14 + $0xe8] sm:$0xff]
    %v2973 = vld [vmem:[#allocation14 + $0xf0] sm:$0xff]
    %v2974 = vld [vmem:[#allocation14 + $0xf8] sm:$0xff]
    %s2975 = scalar_lea.vmem [#allocation7], 4
    %v2976 = vld [vmem:[%s2975] ss:$8 sm:$0xf]
    %v2978 = vlaneseq
    %v2979 = vshrl.u32 %v2978, 7
    %v2980 = vsub.s32 0, %v2979
    %v2981 = vrot.slane %v2976, %v2980
    %v2982 = vlaneseq
    %v2983 = vshrl.u32 %v2982, 7
    %v2984 = vsub.s32 1, %v2983
    %v2985 = vrot.slane %v2976, %v2984
    %v2986 = vlaneseq
    %v2987 = vshrl.u32 %v2986, 7
    %v2988 = vsub.s32 2, %v2987
    %v2989 = vrot.slane %v2976, %v2988
    %v2990 = vlaneseq
    %v2991 = vshrl.u32 %v2990, 7
    %v2992 = vsub.s32 3, %v2991
    %v2993 = vrot.slane %v2976, %v2992
    %v3030 = vunpack.c.l.b16 %v2943
    %v3031 = vunpack.c.h.b16 %v2943
    %v3032 = vunpack.c.l.b16 %v2944
    %v3033 = vunpack.c.h.b16 %v2944
    %v3034 = vunpack.c.l.b16 %v2945
    %v3035 = vunpack.c.h.b16 %v2945
    %v3036 = vunpack.c.l.b16 %v2946
    %v3037 = vunpack.c.h.b16 %v2946
    %v3038 = vunpack.c.l.b16 %v2947
    %v3039 = vunpack.c.h.b16 %v2947
    %v3040 = vunpack.c.l.b16 %v2948
    %v3041 = vunpack.c.h.b16 %v2948
    %v3042 = vunpack.c.l.b16 %v2949
    %v3043 = vunpack.c.h.b16 %v2949
    %v3044 = vunpack.c.l.b16 %v2950
    %v3045 = vunpack.c.h.b16 %v2950
    %v3046 = vunpack.c.l.b16 %v2951
    %v3047 = vunpack.c.h.b16 %v2951
    %v3048 = vunpack.c.l.b16 %v2952
    %v3049 = vunpack.c.h.b16 %v2952
    %v3050 = vunpack.c.l.b16 %v2953
    %v3051 = vunpack.c.h.b16 %v2953
    %v3052 = vunpack.c.l.b16 %v2954
    %v3053 = vunpack.c.h.b16 %v2954
    %v3054 = vunpack.c.l.b16 %v2955
    %v3055 = vunpack.c.h.b16 %v2955
    %v3056 = vunpack.c.l.b16 %v2956
    %v3057 = vunpack.c.h.b16 %v2956
    %v3058 = vunpack.c.l.b16 %v2957
    %v3059 = vunpack.c.h.b16 %v2957
    %v3060 = vunpack.c.l.b16 %v2958
    %v3061 = vunpack.c.h.b16 %v2958
    %v3062 = vunpack.c.l.b16 %v2959
    %v3063 = vunpack.c.h.b16 %v2959
    %v3064 = vunpack.c.l.b16 %v2960
    %v3065 = vunpack.c.h.b16 %v2960
    %v3066 = vunpack.c.l.b16 %v2961
    %v3067 = vunpack.c.h.b16 %v2961
    %v3068 = vunpack.c.l.b16 %v2962
    %v3069 = vunpack.c.h.b16 %v2962
    %v3070 = vunpack.c.l.b16 %v2963
    %v3071 = vunpack.c.h.b16 %v2963
    %v3072 = vunpack.c.l.b16 %v2964
    %v3073 = vunpack.c.h.b16 %v2964
    %v3074 = vunpack.c.l.b16 %v2965
    %v3075 = vunpack.c.h.b16 %v2965
    %v3076 = vunpack.c.l.b16 %v2966
    %v3077 = vunpack.c.h.b16 %v2966
    %v3078 = vunpack.c.l.b16 %v2967
    %v3079 = vunpack.c.h.b16 %v2967
    %v3080 = vunpack.c.l.b16 %v2968
    %v3081 = vunpack.c.h.b16 %v2968
    %v3082 = vunpack.c.l.b16 %v2969
    %v3083 = vunpack.c.h.b16 %v2969
    %v3084 = vunpack.c.l.b16 %v2970
    %v3085 = vunpack.c.h.b16 %v2970
    %v3086 = vunpack.c.l.b16 %v2971
    %v3087 = vunpack.c.h.b16 %v2971
    %v3088 = vunpack.c.l.b16 %v2972
    %v3089 = vunpack.c.h.b16 %v2972
    %v3090 = vunpack.c.l.b16 %v2973
    %v3091 = vunpack.c.h.b16 %v2973
    %v3092 = vunpack.c.l.b16 %v2974
    %v3093 = vunpack.c.h.b16 %v2974
    %v3094 = vpack.c.b16 %v3034, %v3030
    %v3095 = vpack.c.b16 %v3035, %v3031
    %v3096 = vpack.c.b16 %v3036, %v3032
    %v3097 = vpack.c.b16 %v3037, %v3033
    %v3098 = vpack.c.b16 %v3042, %v3038
    %v3099 = vpack.c.b16 %v3043, %v3039
    %v3100 = vpack.c.b16 %v3044, %v3040
    %v3101 = vpack.c.b16 %v3045, %v3041
    %v3102 = vpack.c.b16 %v3050, %v3046
    %v3103 = vpack.c.b16 %v3051, %v3047
    %v3104 = vpack.c.b16 %v3052, %v3048
    %v3105 = vpack.c.b16 %v3053, %v3049
    %v3106 = vpack.c.b16 %v3058, %v3054
    %v3107 = vpack.c.b16 %v3059, %v3055
    %v3108 = vpack.c.b16 %v3060, %v3056
    %v3109 = vpack.c.b16 %v3061, %v3057
    %v3110 = vpack.c.b16 %v3066, %v3062
    %v3111 = vpack.c.b16 %v3067, %v3063
    %v3112 = vpack.c.b16 %v3068, %v3064
    %v3113 = vpack.c.b16 %v3069, %v3065
    %v3114 = vpack.c.b16 %v3074, %v3070
    %v3115 = vpack.c.b16 %v3075, %v3071
    %v3116 = vpack.c.b16 %v3076, %v3072
    %v3117 = vpack.c.b16 %v3077, %v3073
    %v3118 = vpack.c.b16 %v3082, %v3078
    %v3119 = vpack.c.b16 %v3083, %v3079
    %v3120 = vpack.c.b16 %v3084, %v3080
    %v3121 = vpack.c.b16 %v3085, %v3081
    %v3122 = vpack.c.b16 %v3090, %v3086
    %v3123 = vpack.c.b16 %v3091, %v3087
    %v3124 = vpack.c.b16 %v3092, %v3088
    %v3125 = vpack.c.b16 %v3093, %v3089
    %3158 = vmatprep.subr.bf16.mxu0 %v3095
    %3159 = vmatpush1.bf16.msra.mxu0 %v3094
    %3160 = vmatprep.subr.bf16.mxu0 %v3099
    %3161 = vmatpush1.bf16.msra.mxu0 %v3098
    %3162 = vmatprep.subr.bf16.mxu0 %v3103
    %3163 = vmatpush1.bf16.msra.mxu0 %v3102
    %3164 = vmatprep.subr.bf16.mxu0 %v3107
    %3165 = vmatpush1.bf16.msra.mxu0 %v3106
    %3166 = vmatprep.subr.bf16.mxu0 %v3111
    %3167 = vmatpush1.bf16.msra.mxu0 %v3110
    %3168 = vmatprep.subr.bf16.mxu0 %v3115
    %3169 = vmatpush1.bf16.msra.mxu0 %v3114
    %3170 = vmatprep.subr.bf16.mxu0 %v3119
    %3171 = vmatpush1.bf16.msra.mxu0 %v3118
    %3172 = vmatprep.subr.bf16.mxu0 %v3123
    %3173 = vmatpush1.bf16.msra.mxu0 %v3122
    %3174 = vmatprep.subr.bf16.mxu0 0
    %3175 = vmatpush1.bf16.msra.mxu0 0
    %3176 = vmatprep.subr.bf16.mxu0 0
    %3177 = vmatpush1.bf16.msra.mxu0 0
    %3178 = vmatprep.subr.bf16.mxu0 0
    %3179 = vmatpush1.bf16.msra.mxu0 0
    %3180 = vmatprep.subr.bf16.mxu0 0
    %3181 = vmatpush1.bf16.msra.mxu0 0
    %3182 = vmatprep.subr.bf16.mxu0 0
    %3183 = vmatpush1.bf16.msra.mxu0 0
    %3184 = vmatprep.subr.bf16.mxu0 0
    %3185 = vmatpush1.bf16.msra.mxu0 0
    %3186 = vmatprep.subr.bf16.mxu0 0
    %3187 = vmatpush1.bf16.msra.mxu0 0
    %3188 = vmatprep.subr.bf16.mxu0 0
    %3189 = vmatpush1.bf16.msra.mxu0 0
    %3190 = vmatprep.mubr.bf16.mxu0 0
    %3191 = vmatmul.mubr.bf16.gmra.mrb[0].mxu0 %v2942
    %v3192 = vpop.f32.mrb[0].mxu0
    %v3193 = vadd.f32 %v2981, %v3192
    %v3194 = vpop.f32.mrb[0].mxu0
    %v3195 = vadd.f32 %v2985, %v3194
    %v3196 = vpop.f32.mrb[0].mxu0
    %v3197 = vadd.f32 %v2981, %v3196
    %v3198 = vpop.f32.mrb[0].mxu0
    %v3199 = vadd.f32 %v2985, %v3198
    %3200 = vdwg.mxu0
    %3201 = vmatprep.subr.bf16.mxu0 %v3097
    %3202 = vmatpush1.bf16.msra.mxu0 %v3096
    %3203 = vmatprep.subr.bf16.mxu0 %v3101
    %3204 = vmatpush1.bf16.msra.mxu0 %v3100
    %3205 = vmatprep.subr.bf16.mxu0 %v3105
    %3206 = vmatpush1.bf16.msra.mxu0 %v3104
    %3207 = vmatprep.subr.bf16.mxu0 %v3109
    %3208 = vmatpush1.bf16.msra.mxu0 %v3108
    %3209 = vmatprep.subr.bf16.mxu0 %v3113
    %3210 = vmatpush1.bf16.msra.mxu0 %v3112
    %3211 = vmatprep.subr.bf16.mxu0 %v3117
    %3212 = vmatpush1.bf16.msra.mxu0 %v3116
    %3213 = vmatprep.subr.bf16.mxu0 %v3121
    %3214 = vmatpush1.bf16.msra.mxu0 %v3120
    %3215 = vmatprep.subr.bf16.mxu0 %v3125
    %3216 = vmatpush1.bf16.msra.mxu0 %v3124
    %3217 = vmatprep.subr.bf16.mxu0 0
    %3218 = vmatpush1.bf16.msra.mxu0 0
    %3219 = vmatprep.subr.bf16.mxu0 0
    %3220 = vmatpush1.bf16.msra.mxu0 0
    %3221 = vmatprep.subr.bf16.mxu0 0
    %3222 = vmatpush1.bf16.msra.mxu0 0
    %3223 = vmatprep.subr.bf16.mxu0 0
    %3224 = vmatpush1.bf16.msra.mxu0 0
    %3225 = vmatprep.subr.bf16.mxu0 0
    %3226 = vmatpush1.bf16.msra.mxu0 0
    %3227 = vmatprep.subr.bf16.mxu0 0
    %3228 = vmatpush1.bf16.msra.mxu0 0
    %3229 = vmatprep.subr.bf16.mxu0 0
    %3230 = vmatpush1.bf16.msra.mxu0 0
    %3231 = vmatprep.subr.bf16.mxu0 0
    %3232 = vmatpush1.bf16.msra.mxu0 0
    %3233 = vmatprep.mubr.bf16.mxu0 0
    %3234 = vmatmul.mubr.bf16.gmra.mrb[0].mxu0 %v2942
    %v3235 = vpop.f32.mrb[0].mxu0
    %v3236 = vadd.f32 %v2989, %v3235
    %v3237 = vpop.f32.mrb[0].mxu0
    %v3238 = vadd.f32 %v2993, %v3237
    %v3239 = vpop.f32.mrb[0].mxu0
    %v3240 = vadd.f32 %v2989, %v3239
    %v3241 = vpop.f32.mrb[0].mxu0
    %v3242 = vadd.f32 %v2993, %v3241
    %3243 = vdwg.mxu0
    %v3244 = vmax.f32 %v3193, 0.0
    %v3245 = vmax.f32 %v3195, 0.0
    %v3246 = vmax.f32 %v3236, 0.0
    %v3247 = vmax.f32 %v3238, 0.0
    %v3248 = vmax.f32 %v3197, 0.0
    %v3249 = vmax.f32 %v3199, 0.0
    %v3250 = vmax.f32 %v3240, 0.0
    %v3251 = vmax.f32 %v3242, 0.0
    %v3252 = vpack.c.bf16 %v3248, %v3244
    %v3253 = vpack.c.bf16 %v3249, %v3245
    %v3254 = vpack.c.bf16 %v3250, %v3246
    %v3255 = vpack.c.bf16 %v3251, %v3247
    %v3256 = vld [vmem:[#allocation16] sm:$0xff]
    %v3257 = vld [vmem:[#allocation16 + $0x8] sm:$0xff]
    %v3258 = vld [vmem:[#allocation16 + $0x10] sm:$0xff]
    %v3259 = vld [vmem:[#allocation16 + $0x18] sm:$0xff]
    %v3260 = vld [vmem:[#allocation16 + $0x20] sm:$0xff]
    %v3261 = vld [vmem:[#allocation16 + $0x28] sm:$0xff]
    %v3262 = vld [vmem:[#allocation16 + $0x30] sm:$0xff]
    %v3263 = vld [vmem:[#allocation16 + $0x38] sm:$0xff]
    %v3264 = vld [vmem:[#allocation16 + $0x40] sm:$0xff]
    %v3265 = vld [vmem:[#allocation16 + $0x48] sm:$0xff]
    %v3266 = vld [vmem:[#allocation16 + $0x50] sm:$0xff]
    %v3267 = vld [vmem:[#allocation16 + $0x58] sm:$0xff]
    %v3268 = vld [vmem:[#allocation16 + $0x60] sm:$0xff]
    %v3269 = vld [vmem:[#allocation16 + $0x68] sm:$0xff]
    %v3270 = vld [vmem:[#allocation16 + $0x70] sm:$0xff]
    %v3271 = vld [vmem:[#allocation16 + $0x78] sm:$0xff]
    %v3272 = vld [vmem:[#allocation16 + $0x80] sm:$0xff]
    %v3273 = vld [vmem:[#allocation16 + $0x88] sm:$0xff]
    %v3274 = vld [vmem:[#allocation16 + $0x90] sm:$0xff]
    %v3275 = vld [vmem:[#allocation16 + $0x98] sm:$0xff]
    %v3276 = vld [vmem:[#allocation16 + $0xa0] sm:$0xff]
    %v3277 = vld [vmem:[#allocation16 + $0xa8] sm:$0xff]
    %v3278 = vld [vmem:[#allocation16 + $0xb0] sm:$0xff]
    %v3279 = vld [vmem:[#allocation16 + $0xb8] sm:$0xff]
    %v3280 = vld [vmem:[#allocation16 + $0xc0] sm:$0xff]
    %v3281 = vld [vmem:[#allocation16 + $0xc8] sm:$0xff]
    %v3282 = vld [vmem:[#allocation16 + $0xd0] sm:$0xff]
    %v3283 = vld [vmem:[#allocation16 + $0xd8] sm:$0xff]
    %v3284 = vld [vmem:[#allocation16 + $0xe0] sm:$0xff]
    %v3285 = vld [vmem:[#allocation16 + $0xe8] sm:$0xff]
    %v3286 = vld [vmem:[#allocation16 + $0xf0] sm:$0xff]
    %v3287 = vld [vmem:[#allocation16 + $0xf8] sm:$0xff]
    %v3288 = vld [vmem:[#allocation16 + $0x100] sm:$0xff]
    %v3289 = vld [vmem:[#allocation16 + $0x108] sm:$0xff]
    %v3290 = vld [vmem:[#allocation16 + $0x110] sm:$0xff]
    %v3291 = vld [vmem:[#allocation16 + $0x118] sm:$0xff]
    %v3292 = vld [vmem:[#allocation16 + $0x120] sm:$0xff]
    %v3293 = vld [vmem:[#allocation16 + $0x128] sm:$0xff]
    %v3294 = vld [vmem:[#allocation16 + $0x130] sm:$0xff]
    %v3295 = vld [vmem:[#allocation16 + $0x138] sm:$0xff]
    %v3296 = vld [vmem:[#allocation16 + $0x140] sm:$0xff]
    %v3297 = vld [vmem:[#allocation16 + $0x148] sm:$0xff]
    %v3298 = vld [vmem:[#allocation16 + $0x150] sm:$0xff]
    %v3299 = vld [vmem:[#allocation16 + $0x158] sm:$0xff]
    %v3300 = vld [vmem:[#allocation16 + $0x160] sm:$0xff]
    %v3301 = vld [vmem:[#allocation16 + $0x168] sm:$0xff]
    %v3302 = vld [vmem:[#allocation16 + $0x170] sm:$0xff]
    %v3303 = vld [vmem:[#allocation16 + $0x178] sm:$0xff]
    %v3304 = vld [vmem:[#allocation16 + $0x180] sm:$0xff]
    %v3305 = vld [vmem:[#allocation16 + $0x188] sm:$0xff]
    %v3306 = vld [vmem:[#allocation16 + $0x190] sm:$0xff]
    %v3307 = vld [vmem:[#allocation16 + $0x198] sm:$0xff]
    %v3308 = vld [vmem:[#allocation16 + $0x1a0] sm:$0xff]
    %v3309 = vld [vmem:[#allocation16 + $0x1a8] sm:$0xff]
    %v3310 = vld [vmem:[#allocation16 + $0x1b0] sm:$0xff]
    %v3311 = vld [vmem:[#allocation16 + $0x1b8] sm:$0xff]
    %v3312 = vld [vmem:[#allocation16 + $0x1c0] sm:$0xff]
    %v3313 = vld [vmem:[#allocation16 + $0x1c8] sm:$0xff]
    %v3314 = vld [vmem:[#allocation16 + $0x1d0] sm:$0xff]
    %v3315 = vld [vmem:[#allocation16 + $0x1d8] sm:$0xff]
    %v3316 = vld [vmem:[#allocation16 + $0x1e0] sm:$0xff]
    %v3317 = vld [vmem:[#allocation16 + $0x1e8] sm:$0xff]
    %v3318 = vld [vmem:[#allocation16 + $0x1f0] sm:$0xff]
    %v3319 = vld [vmem:[#allocation16 + $0x1f8] sm:$0xff]
    %v3320 = vld [vmem:[#allocation16 + $0x200] sm:$0xff]
    %v3321 = vld [vmem:[#allocation16 + $0x208] sm:$0xff]
    %v3322 = vld [vmem:[#allocation16 + $0x210] sm:$0xff]
    %v3323 = vld [vmem:[#allocation16 + $0x218] sm:$0xff]
    %v3324 = vld [vmem:[#allocation16 + $0x220] sm:$0xff]
    %v3325 = vld [vmem:[#allocation16 + $0x228] sm:$0xff]
    %v3326 = vld [vmem:[#allocation16 + $0x230] sm:$0xff]
    %v3327 = vld [vmem:[#allocation16 + $0x238] sm:$0xff]
    %v3328 = vld [vmem:[#allocation16 + $0x240] sm:$0xff]
    %v3329 = vld [vmem:[#allocation16 + $0x248] sm:$0xff]
    %v3330 = vld [vmem:[#allocation16 + $0x250] sm:$0xff]
    %v3331 = vld [vmem:[#allocation16 + $0x258] sm:$0xff]
    %v3332 = vld [vmem:[#allocation16 + $0x260] sm:$0xff]
    %v3333 = vld [vmem:[#allocation16 + $0x268] sm:$0xff]
    %v3334 = vld [vmem:[#allocation16 + $0x270] sm:$0xff]
    %v3335 = vld [vmem:[#allocation16 + $0x278] sm:$0xff]
    %v3336 = vld [vmem:[#allocation16 + $0x280] sm:$0xff]
    %v3337 = vld [vmem:[#allocation16 + $0x288] sm:$0xff]
    %v3338 = vld [vmem:[#allocation16 + $0x290] sm:$0xff]
    %v3339 = vld [vmem:[#allocation16 + $0x298] sm:$0xff]
    %v3340 = vld [vmem:[#allocation16 + $0x2a0] sm:$0xff]
    %v3341 = vld [vmem:[#allocation16 + $0x2a8] sm:$0xff]
    %v3342 = vld [vmem:[#allocation16 + $0x2b0] sm:$0xff]
    %v3343 = vld [vmem:[#allocation16 + $0x2b8] sm:$0xff]
    %v3344 = vld [vmem:[#allocation16 + $0x2c0] sm:$0xff]
    %v3345 = vld [vmem:[#allocation16 + $0x2c8] sm:$0xff]
    %v3346 = vld [vmem:[#allocation16 + $0x2d0] sm:$0xff]
    %v3347 = vld [vmem:[#allocation16 + $0x2d8] sm:$0xff]
    %v3348 = vld [vmem:[#allocation16 + $0x2e0] sm:$0xff]
    %v3349 = vld [vmem:[#allocation16 + $0x2e8] sm:$0xff]
    %v3350 = vld [vmem:[#allocation16 + $0x2f0] sm:$0xff]
    %v3351 = vld [vmem:[#allocation16 + $0x2f8] sm:$0xff]
    %v3352 = vld [vmem:[#allocation16 + $0x300] sm:$0xff]
    %v3353 = vld [vmem:[#allocation16 + $0x308] sm:$0xff]
    %v3354 = vld [vmem:[#allocation16 + $0x310] sm:$0xff]
    %v3355 = vld [vmem:[#allocation16 + $0x318] sm:$0xff]
    %v3356 = vld [vmem:[#allocation16 + $0x320] sm:$0xff]
    %v3357 = vld [vmem:[#allocation16 + $0x328] sm:$0xff]
    %v3358 = vld [vmem:[#allocation16 + $0x330] sm:$0xff]
    %v3359 = vld [vmem:[#allocation16 + $0x338] sm:$0xff]
    %v3360 = vld [vmem:[#allocation16 + $0x340] sm:$0xff]
    %v3361 = vld [vmem:[#allocation16 + $0x348] sm:$0xff]
    %v3362 = vld [vmem:[#allocation16 + $0x350] sm:$0xff]
    %v3363 = vld [vmem:[#allocation16 + $0x358] sm:$0xff]
    %v3364 = vld [vmem:[#allocation16 + $0x360] sm:$0xff]
    %v3365 = vld [vmem:[#allocation16 + $0x368] sm:$0xff]
    %v3366 = vld [vmem:[#allocation16 + $0x370] sm:$0xff]
    %v3367 = vld [vmem:[#allocation16 + $0x378] sm:$0xff]
    %v3368 = vld [vmem:[#allocation16 + $0x380] sm:$0xff]
    %v3369 = vld [vmem:[#allocation16 + $0x388] sm:$0xff]
    %v3370 = vld [vmem:[#allocation16 + $0x390] sm:$0xff]
    %v3371 = vld [vmem:[#allocation16 + $0x398] sm:$0xff]
    %v3372 = vld [vmem:[#allocation16 + $0x3a0] sm:$0xff]
    %v3373 = vld [vmem:[#allocation16 + $0x3a8] sm:$0xff]
    %v3374 = vld [vmem:[#allocation16 + $0x3b0] sm:$0xff]
    %v3375 = vld [vmem:[#allocation16 + $0x3b8] sm:$0xff]
    %v3376 = vld [vmem:[#allocation16 + $0x3c0] sm:$0xff]
    %v3377 = vld [vmem:[#allocation16 + $0x3c8] sm:$0xff]
    %v3378 = vld [vmem:[#allocation16 + $0x3d0] sm:$0xff]
    %v3379 = vld [vmem:[#allocation16 + $0x3d8] sm:$0xff]
    %v3380 = vld [vmem:[#allocation16 + $0x3e0] sm:$0xff]
    %v3381 = vld [vmem:[#allocation16 + $0x3e8] sm:$0xff]
    %v3382 = vld [vmem:[#allocation16 + $0x3f0] sm:$0xff]
    %v3383 = vld [vmem:[#allocation16 + $0x3f8] sm:$0xff]
    %s3384 = scalar_lea.vmem [#allocation7], 5
    %v3385 = vld [vmem:[%s3384] ss:$8 sm:$0xf]
    %v3387 = vlaneseq
    %v3388 = vshrl.u32 %v3387, 7
    %v3389 = vsub.s32 0, %v3388
    %v3390 = vrot.slane %v3385, %v3389
    %v3391 = vlaneseq
    %v3392 = vshrl.u32 %v3391, 7
    %v3393 = vsub.s32 1, %v3392
    %v3394 = vrot.slane %v3385, %v3393
    %v3395 = vlaneseq
    %v3396 = vshrl.u32 %v3395, 7
    %v3397 = vsub.s32 2, %v3396
    %v3398 = vrot.slane %v3385, %v3397
    %v3399 = vlaneseq
    %v3400 = vshrl.u32 %v3399, 7
    %v3401 = vsub.s32 3, %v3400
    %v3402 = vrot.slane %v3385, %v3401
    %v3535 = vunpack.c.l.b16 %v3256
    %v3536 = vunpack.c.h.b16 %v3256
    %v3537 = vunpack.c.l.b16 %v3257
    %v3538 = vunpack.c.h.b16 %v3257
    %v3539 = vunpack.c.l.b16 %v3258
    %v3540 = vunpack.c.h.b16 %v3258
    %v3541 = vunpack.c.l.b16 %v3259
    %v3542 = vunpack.c.h.b16 %v3259
    %v3543 = vunpack.c.l.b16 %v3260
    %v3544 = vunpack.c.h.b16 %v3260
    %v3545 = vunpack.c.l.b16 %v3261
    %v3546 = vunpack.c.h.b16 %v3261
    %v3547 = vunpack.c.l.b16 %v3262
    %v3548 = vunpack.c.h.b16 %v3262
    %v3549 = vunpack.c.l.b16 %v3263
    %v3550 = vunpack.c.h.b16 %v3263
    %v3551 = vunpack.c.l.b16 %v3264
    %v3552 = vunpack.c.h.b16 %v3264
    %v3553 = vunpack.c.l.b16 %v3265
    %v3554 = vunpack.c.h.b16 %v3265
    %v3555 = vunpack.c.l.b16 %v3266
    %v3556 = vunpack.c.h.b16 %v3266
    %v3557 = vunpack.c.l.b16 %v3267
    %v3558 = vunpack.c.h.b16 %v3267
    %v3559 = vunpack.c.l.b16 %v3268
    %v3560 = vunpack.c.h.b16 %v3268
    %v3561 = vunpack.c.l.b16 %v3269
    %v3562 = vunpack.c.h.b16 %v3269
    %v3563 = vunpack.c.l.b16 %v3270
    %v3564 = vunpack.c.h.b16 %v3270
    %v3565 = vunpack.c.l.b16 %v3271
    %v3566 = vunpack.c.h.b16 %v3271
    %v3567 = vunpack.c.l.b16 %v3272
    %v3568 = vunpack.c.h.b16 %v3272
    %v3569 = vunpack.c.l.b16 %v3273
    %v3570 = vunpack.c.h.b16 %v3273
    %v3571 = vunpack.c.l.b16 %v3274
    %v3572 = vunpack.c.h.b16 %v3274
    %v3573 = vunpack.c.l.b16 %v3275
    %v3574 = vunpack.c.h.b16 %v3275
    %v3575 = vunpack.c.l.b16 %v3276
    %v3576 = vunpack.c.h.b16 %v3276
    %v3577 = vunpack.c.l.b16 %v3277
    %v3578 = vunpack.c.h.b16 %v3277
    %v3579 = vunpack.c.l.b16 %v3278
    %v3580 = vunpack.c.h.b16 %v3278
    %v3581 = vunpack.c.l.b16 %v3279
    %v3582 = vunpack.c.h.b16 %v3279
    %v3583 = vunpack.c.l.b16 %v3280
    %v3584 = vunpack.c.h.b16 %v3280
    %v3585 = vunpack.c.l.b16 %v3281
    %v3586 = vunpack.c.h.b16 %v3281
    %v3587 = vunpack.c.l.b16 %v3282
    %v3588 = vunpack.c.h.b16 %v3282
    %v3589 = vunpack.c.l.b16 %v3283
    %v3590 = vunpack.c.h.b16 %v3283
    %v3591 = vunpack.c.l.b16 %v3284
    %v3592 = vunpack.c.h.b16 %v3284
    %v3593 = vunpack.c.l.b16 %v3285
    %v3594 = vunpack.c.h.b16 %v3285
    %v3595 = vunpack.c.l.b16 %v3286
    %v3596 = vunpack.c.h.b16 %v3286
    %v3597 = vunpack.c.l.b16 %v3287
    %v3598 = vunpack.c.h.b16 %v3287
    %v3599 = vunpack.c.l.b16 %v3288
    %v3600 = vunpack.c.h.b16 %v3288
    %v3601 = vunpack.c.l.b16 %v3289
    %v3602 = vunpack.c.h.b16 %v3289
    %v3603 = vunpack.c.l.b16 %v3290
    %v3604 = vunpack.c.h.b16 %v3290
    %v3605 = vunpack.c.l.b16 %v3291
    %v3606 = vunpack.c.h.b16 %v3291
    %v3607 = vunpack.c.l.b16 %v3292
    %v3608 = vunpack.c.h.b16 %v3292
    %v3609 = vunpack.c.l.b16 %v3293
    %v3610 = vunpack.c.h.b16 %v3293
    %v3611 = vunpack.c.l.b16 %v3294
    %v3612 = vunpack.c.h.b16 %v3294
    %v3613 = vunpack.c.l.b16 %v3295
    %v3614 = vunpack.c.h.b16 %v3295
    %v3615 = vunpack.c.l.b16 %v3296
    %v3616 = vunpack.c.h.b16 %v3296
    %v3617 = vunpack.c.l.b16 %v3297
    %v3618 = vunpack.c.h.b16 %v3297
    %v3619 = vunpack.c.l.b16 %v3298
    %v3620 = vunpack.c.h.b16 %v3298
    %v3621 = vunpack.c.l.b16 %v3299
    %v3622 = vunpack.c.h.b16 %v3299
    %v3623 = vunpack.c.l.b16 %v3300
    %v3624 = vunpack.c.h.b16 %v3300
    %v3625 = vunpack.c.l.b16 %v3301
    %v3626 = vunpack.c.h.b16 %v3301
    %v3627 = vunpack.c.l.b16 %v3302
    %v3628 = vunpack.c.h.b16 %v3302
    %v3629 = vunpack.c.l.b16 %v3303
    %v3630 = vunpack.c.h.b16 %v3303
    %v3631 = vunpack.c.l.b16 %v3304
    %v3632 = vunpack.c.h.b16 %v3304
    %v3633 = vunpack.c.l.b16 %v3305
    %v3634 = vunpack.c.h.b16 %v3305
    %v3635 = vunpack.c.l.b16 %v3306
    %v3636 = vunpack.c.h.b16 %v3306
    %v3637 = vunpack.c.l.b16 %v3307
    %v3638 = vunpack.c.h.b16 %v3307
    %v3639 = vunpack.c.l.b16 %v3308
    %v3640 = vunpack.c.h.b16 %v3308
    %v3641 = vunpack.c.l.b16 %v3309
    %v3642 = vunpack.c.h.b16 %v3309
    %v3643 = vunpack.c.l.b16 %v3310
    %v3644 = vunpack.c.h.b16 %v3310
    %v3645 = vunpack.c.l.b16 %v3311
    %v3646 = vunpack.c.h.b16 %v3311
    %v3647 = vunpack.c.l.b16 %v3312
    %v3648 = vunpack.c.h.b16 %v3312
    %v3649 = vunpack.c.l.b16 %v3313
    %v3650 = vunpack.c.h.b16 %v3313
    %v3651 = vunpack.c.l.b16 %v3314
    %v3652 = vunpack.c.h.b16 %v3314
    %v3653 = vunpack.c.l.b16 %v3315
    %v3654 = vunpack.c.h.b16 %v3315
    %v3655 = vunpack.c.l.b16 %v3316
    %v3656 = vunpack.c.h.b16 %v3316
    %v3657 = vunpack.c.l.b16 %v3317
    %v3658 = vunpack.c.h.b16 %v3317
    %v3659 = vunpack.c.l.b16 %v3318
    %v3660 = vunpack.c.h.b16 %v3318
    %v3661 = vunpack.c.l.b16 %v3319
    %v3662 = vunpack.c.h.b16 %v3319
    %v3663 = vunpack.c.l.b16 %v3320
    %v3664 = vunpack.c.h.b16 %v3320
    %v3665 = vunpack.c.l.b16 %v3321
    %v3666 = vunpack.c.h.b16 %v3321
    %v3667 = vunpack.c.l.b16 %v3322
    %v3668 = vunpack.c.h.b16 %v3322
    %v3669 = vunpack.c.l.b16 %v3323
    %v3670 = vunpack.c.h.b16 %v3323
    %v3671 = vunpack.c.l.b16 %v3324
    %v3672 = vunpack.c.h.b16 %v3324
    %v3673 = vunpack.c.l.b16 %v3325
    %v3674 = vunpack.c.h.b16 %v3325
    %v3675 = vunpack.c.l.b16 %v3326
    %v3676 = vunpack.c.h.b16 %v3326
    %v3677 = vunpack.c.l.b16 %v3327
    %v3678 = vunpack.c.h.b16 %v3327
    %v3679 = vunpack.c.l.b16 %v3328
    %v3680 = vunpack.c.h.b16 %v3328
    %v3681 = vunpack.c.l.b16 %v3329
    %v3682 = vunpack.c.h.b16 %v3329
    %v3683 = vunpack.c.l.b16 %v3330
    %v3684 = vunpack.c.h.b16 %v3330
    %v3685 = vunpack.c.l.b16 %v3331
    %v3686 = vunpack.c.h.b16 %v3331
    %v3687 = vunpack.c.l.b16 %v3332
    %v3688 = vunpack.c.h.b16 %v3332
    %v3689 = vunpack.c.l.b16 %v3333
    %v3690 = vunpack.c.h.b16 %v3333
    %v3691 = vunpack.c.l.b16 %v3334
    %v3692 = vunpack.c.h.b16 %v3334
    %v3693 = vunpack.c.l.b16 %v3335
    %v3694 = vunpack.c.h.b16 %v3335
    %v3695 = vunpack.c.l.b16 %v3336
    %v3696 = vunpack.c.h.b16 %v3336
    %v3697 = vunpack.c.l.b16 %v3337
    %v3698 = vunpack.c.h.b16 %v3337
    %v3699 = vunpack.c.l.b16 %v3338
    %v3700 = vunpack.c.h.b16 %v3338
    %v3701 = vunpack.c.l.b16 %v3339
    %v3702 = vunpack.c.h.b16 %v3339
    %v3703 = vunpack.c.l.b16 %v3340
    %v3704 = vunpack.c.h.b16 %v3340
    %v3705 = vunpack.c.l.b16 %v3341
    %v3706 = vunpack.c.h.b16 %v3341
    %v3707 = vunpack.c.l.b16 %v3342
    %v3708 = vunpack.c.h.b16 %v3342
    %v3709 = vunpack.c.l.b16 %v3343
    %v3710 = vunpack.c.h.b16 %v3343
    %v3711 = vunpack.c.l.b16 %v3344
    %v3712 = vunpack.c.h.b16 %v3344
    %v3713 = vunpack.c.l.b16 %v3345
    %v3714 = vunpack.c.h.b16 %v3345
    %v3715 = vunpack.c.l.b16 %v3346
    %v3716 = vunpack.c.h.b16 %v3346
    %v3717 = vunpack.c.l.b16 %v3347
    %v3718 = vunpack.c.h.b16 %v3347
    %v3719 = vunpack.c.l.b16 %v3348
    %v3720 = vunpack.c.h.b16 %v3348
    %v3721 = vunpack.c.l.b16 %v3349
    %v3722 = vunpack.c.h.b16 %v3349
    %v3723 = vunpack.c.l.b16 %v3350
    %v3724 = vunpack.c.h.b16 %v3350
    %v3725 = vunpack.c.l.b16 %v3351
    %v3726 = vunpack.c.h.b16 %v3351
    %v3727 = vunpack.c.l.b16 %v3352
    %v3728 = vunpack.c.h.b16 %v3352
    %v3729 = vunpack.c.l.b16 %v3353
    %v3730 = vunpack.c.h.b16 %v3353
    %v3731 = vunpack.c.l.b16 %v3354
    %v3732 = vunpack.c.h.b16 %v3354
    %v3733 = vunpack.c.l.b16 %v3355
    %v3734 = vunpack.c.h.b16 %v3355
    %v3735 = vunpack.c.l.b16 %v3356
    %v3736 = vunpack.c.h.b16 %v3356
    %v3737 = vunpack.c.l.b16 %v3357
    %v3738 = vunpack.c.h.b16 %v3357
    %v3739 = vunpack.c.l.b16 %v3358
    %v3740 = vunpack.c.h.b16 %v3358
    %v3741 = vunpack.c.l.b16 %v3359
    %v3742 = vunpack.c.h.b16 %v3359
    %v3743 = vunpack.c.l.b16 %v3360
    %v3744 = vunpack.c.h.b16 %v3360
    %v3745 = vunpack.c.l.b16 %v3361
    %v3746 = vunpack.c.h.b16 %v3361
    %v3747 = vunpack.c.l.b16 %v3362
    %v3748 = vunpack.c.h.b16 %v3362
    %v3749 = vunpack.c.l.b16 %v3363
    %v3750 = vunpack.c.h.b16 %v3363
    %v3751 = vunpack.c.l.b16 %v3364
    %v3752 = vunpack.c.h.b16 %v3364
    %v3753 = vunpack.c.l.b16 %v3365
    %v3754 = vunpack.c.h.b16 %v3365
    %v3755 = vunpack.c.l.b16 %v3366
    %v3756 = vunpack.c.h.b16 %v3366
    %v3757 = vunpack.c.l.b16 %v3367
    %v3758 = vunpack.c.h.b16 %v3367
    %v3759 = vunpack.c.l.b16 %v3368
    %v3760 = vunpack.c.h.b16 %v3368
    %v3761 = vunpack.c.l.b16 %v3369
    %v3762 = vunpack.c.h.b16 %v3369
    %v3763 = vunpack.c.l.b16 %v3370
    %v3764 = vunpack.c.h.b16 %v3370
    %v3765 = vunpack.c.l.b16 %v3371
    %v3766 = vunpack.c.h.b16 %v3371
    %v3767 = vunpack.c.l.b16 %v3372
    %v3768 = vunpack.c.h.b16 %v3372
    %v3769 = vunpack.c.l.b16 %v3373
    %v3770 = vunpack.c.h.b16 %v3373
    %v3771 = vunpack.c.l.b16 %v3374
    %v3772 = vunpack.c.h.b16 %v3374
    %v3773 = vunpack.c.l.b16 %v3375
    %v3774 = vunpack.c.h.b16 %v3375
    %v3775 = vunpack.c.l.b16 %v3376
    %v3776 = vunpack.c.h.b16 %v3376
    %v3777 = vunpack.c.l.b16 %v3377
    %v3778 = vunpack.c.h.b16 %v3377
    %v3779 = vunpack.c.l.b16 %v3378
    %v3780 = vunpack.c.h.b16 %v3378
    %v3781 = vunpack.c.l.b16 %v3379
    %v3782 = vunpack.c.h.b16 %v3379
    %v3783 = vunpack.c.l.b16 %v3380
    %v3784 = vunpack.c.h.b16 %v3380
    %v3785 = vunpack.c.l.b16 %v3381
    %v3786 = vunpack.c.h.b16 %v3381
    %v3787 = vunpack.c.l.b16 %v3382
    %v3788 = vunpack.c.h.b16 %v3382
    %v3789 = vunpack.c.l.b16 %v3383
    %v3790 = vunpack.c.h.b16 %v3383
    %v3791 = vpack.c.b16 %v3539, %v3535
    %v3792 = vpack.c.b16 %v3540, %v3536
    %v3793 = vpack.c.b16 %v3541, %v3537
    %v3794 = vpack.c.b16 %v3542, %v3538
    %v3795 = vpack.c.b16 %v3547, %v3543
    %v3796 = vpack.c.b16 %v3548, %v3544
    %v3797 = vpack.c.b16 %v3549, %v3545
    %v3798 = vpack.c.b16 %v3550, %v3546
    %v3799 = vpack.c.b16 %v3555, %v3551
    %v3800 = vpack.c.b16 %v3556, %v3552
    %v3801 = vpack.c.b16 %v3557, %v3553
    %v3802 = vpack.c.b16 %v3558, %v3554
    %v3803 = vpack.c.b16 %v3563, %v3559
    %v3804 = vpack.c.b16 %v3564, %v3560
    %v3805 = vpack.c.b16 %v3565, %v3561
    %v3806 = vpack.c.b16 %v3566, %v3562
    %v3807 = vpack.c.b16 %v3571, %v3567
    %v3808 = vpack.c.b16 %v3572, %v3568
    %v3809 = vpack.c.b16 %v3573, %v3569
    %v3810 = vpack.c.b16 %v3574, %v3570
    %v3811 = vpack.c.b16 %v3579, %v3575
    %v3812 = vpack.c.b16 %v3580, %v3576
    %v3813 = vpack.c.b16 %v3581, %v3577
    %v3814 = vpack.c.b16 %v3582, %v3578
    %v3815 = vpack.c.b16 %v3587, %v3583
    %v3816 = vpack.c.b16 %v3588, %v3584
    %v3817 = vpack.c.b16 %v3589, %v3585
    %v3818 = vpack.c.b16 %v3590, %v3586
    %v3819 = vpack.c.b16 %v3595, %v3591
    %v3820 = vpack.c.b16 %v3596, %v3592
    %v3821 = vpack.c.b16 %v3597, %v3593
    %v3822 = vpack.c.b16 %v3598, %v3594
    %v3823 = vpack.c.b16 %v3603, %v3599
    %v3824 = vpack.c.b16 %v3604, %v3600
    %v3825 = vpack.c.b16 %v3605, %v3601
    %v3826 = vpack.c.b16 %v3606, %v3602
    %v3827 = vpack.c.b16 %v3611, %v3607
    %v3828 = vpack.c.b16 %v3612, %v3608
    %v3829 = vpack.c.b16 %v3613, %v3609
    %v3830 = vpack.c.b16 %v3614, %v3610
    %v3831 = vpack.c.b16 %v3619, %v3615
    %v3832 = vpack.c.b16 %v3620, %v3616
    %v3833 = vpack.c.b16 %v3621, %v3617
    %v3834 = vpack.c.b16 %v3622, %v3618
    %v3835 = vpack.c.b16 %v3627, %v3623
    %v3836 = vpack.c.b16 %v3628, %v3624
    %v3837 = vpack.c.b16 %v3629, %v3625
    %v3838 = vpack.c.b16 %v3630, %v3626
    %v3839 = vpack.c.b16 %v3635, %v3631
    %v3840 = vpack.c.b16 %v3636, %v3632
    %v3841 = vpack.c.b16 %v3637, %v3633
    %v3842 = vpack.c.b16 %v3638, %v3634
    %v3843 = vpack.c.b16 %v3643, %v3639
    %v3844 = vpack.c.b16 %v3644, %v3640
    %v3845 = vpack.c.b16 %v3645, %v3641
    %v3846 = vpack.c.b16 %v3646, %v3642
    %v3847 = vpack.c.b16 %v3651, %v3647
    %v3848 = vpack.c.b16 %v3652, %v3648
    %v3849 = vpack.c.b16 %v3653, %v3649
    %v3850 = vpack.c.b16 %v3654, %v3650
    %v3851 = vpack.c.b16 %v3659, %v3655
    %v3852 = vpack.c.b16 %v3660, %v3656
    %v3853 = vpack.c.b16 %v3661, %v3657
    %v3854 = vpack.c.b16 %v3662, %v3658
    %v3855 = vpack.c.b16 %v3667, %v3663
    %v3856 = vpack.c.b16 %v3668, %v3664
    %v3857 = vpack.c.b16 %v3669, %v3665
    %v3858 = vpack.c.b16 %v3670, %v3666
    %v3859 = vpack.c.b16 %v3675, %v3671
    %v3860 = vpack.c.b16 %v3676, %v3672
    %v3861 = vpack.c.b16 %v3677, %v3673
    %v3862 = vpack.c.b16 %v3678, %v3674
    %v3863 = vpack.c.b16 %v3683, %v3679
    %v3864 = vpack.c.b16 %v3684, %v3680
    %v3865 = vpack.c.b16 %v3685, %v3681
    %v3866 = vpack.c.b16 %v3686, %v3682
    %v3867 = vpack.c.b16 %v3691, %v3687
    %v3868 = vpack.c.b16 %v3692, %v3688
    %v3869 = vpack.c.b16 %v3693, %v3689
    %v3870 = vpack.c.b16 %v3694, %v3690
    %v3871 = vpack.c.b16 %v3699, %v3695
    %v3872 = vpack.c.b16 %v3700, %v3696
    %v3873 = vpack.c.b16 %v3701, %v3697
    %v3874 = vpack.c.b16 %v3702, %v3698
    %v3875 = vpack.c.b16 %v3707, %v3703
    %v3876 = vpack.c.b16 %v3708, %v3704
    %v3877 = vpack.c.b16 %v3709, %v3705
    %v3878 = vpack.c.b16 %v3710, %v3706
    %v3879 = vpack.c.b16 %v3715, %v3711
    %v3880 = vpack.c.b16 %v3716, %v3712
    %v3881 = vpack.c.b16 %v3717, %v3713
    %v3882 = vpack.c.b16 %v3718, %v3714
    %v3883 = vpack.c.b16 %v3723, %v3719
    %v3884 = vpack.c.b16 %v3724, %v3720
    %v3885 = vpack.c.b16 %v3725, %v3721
    %v3886 = vpack.c.b16 %v3726, %v3722
    %v3887 = vpack.c.b16 %v3731, %v3727
    %v3888 = vpack.c.b16 %v3732, %v3728
    %v3889 = vpack.c.b16 %v3733, %v3729
    %v3890 = vpack.c.b16 %v3734, %v3730
    %v3891 = vpack.c.b16 %v3739, %v3735
    %v3892 = vpack.c.b16 %v3740, %v3736
    %v3893 = vpack.c.b16 %v3741, %v3737
    %v3894 = vpack.c.b16 %v3742, %v3738
    %v3895 = vpack.c.b16 %v3747, %v3743
    %v3896 = vpack.c.b16 %v3748, %v3744
    %v3897 = vpack.c.b16 %v3749, %v3745
    %v3898 = vpack.c.b16 %v3750, %v3746
    %v3899 = vpack.c.b16 %v3755, %v3751
    %v3900 = vpack.c.b16 %v3756, %v3752
    %v3901 = vpack.c.b16 %v3757, %v3753
    %v3902 = vpack.c.b16 %v3758, %v3754
    %v3903 = vpack.c.b16 %v3763, %v3759
    %v3904 = vpack.c.b16 %v3764, %v3760
    %v3905 = vpack.c.b16 %v3765, %v3761
    %v3906 = vpack.c.b16 %v3766, %v3762
    %v3907 = vpack.c.b16 %v3771, %v3767
    %v3908 = vpack.c.b16 %v3772, %v3768
    %v3909 = vpack.c.b16 %v3773, %v3769
    %v3910 = vpack.c.b16 %v3774, %v3770
    %v3911 = vpack.c.b16 %v3779, %v3775
    %v3912 = vpack.c.b16 %v3780, %v3776
    %v3913 = vpack.c.b16 %v3781, %v3777
    %v3914 = vpack.c.b16 %v3782, %v3778
    %v3915 = vpack.c.b16 %v3787, %v3783
    %v3916 = vpack.c.b16 %v3788, %v3784
    %v3917 = vpack.c.b16 %v3789, %v3785
    %v3918 = vpack.c.b16 %v3790, %v3786
    %4047 = vmatprep.subr.bf16.mxu0 %v3792
    %4048 = vmatpush1.bf16.msra.mxu0 %v3791
    %4049 = vmatprep.subr.bf16.mxu0 %v3796
    %4050 = vmatpush1.bf16.msra.mxu0 %v3795
    %4051 = vmatprep.subr.bf16.mxu0 %v3800
    %4052 = vmatpush1.bf16.msra.mxu0 %v3799
    %4053 = vmatprep.subr.bf16.mxu0 %v3804
    %4054 = vmatpush1.bf16.msra.mxu0 %v3803
    %4055 = vmatprep.subr.bf16.mxu0 %v3808
    %4056 = vmatpush1.bf16.msra.mxu0 %v3807
    %4057 = vmatprep.subr.bf16.mxu0 %v3812
    %4058 = vmatpush1.bf16.msra.mxu0 %v3811
    %4059 = vmatprep.subr.bf16.mxu0 %v3816
    %4060 = vmatpush1.bf16.msra.mxu0 %v3815
    %4061 = vmatprep.subr.bf16.mxu0 %v3820
    %4062 = vmatpush1.bf16.msra.mxu0 %v3819
    %4063 = vmatprep.subr.bf16.mxu0 %v3824
    %4064 = vmatpush1.bf16.msra.mxu0 %v3823
    %4065 = vmatprep.subr.bf16.mxu0 %v3828
    %4066 = vmatpush1.bf16.msra.mxu0 %v3827
    %4067 = vmatprep.subr.bf16.mxu0 %v3832
    %4068 = vmatpush1.bf16.msra.mxu0 %v3831
    %4069 = vmatprep.subr.bf16.mxu0 %v3836
    %4070 = vmatpush1.bf16.msra.mxu0 %v3835
    %4071 = vmatprep.subr.bf16.mxu0 %v3840
    %4072 = vmatpush1.bf16.msra.mxu0 %v3839
    %4073 = vmatprep.subr.bf16.mxu0 %v3844
    %4074 = vmatpush1.bf16.msra.mxu0 %v3843
    %4075 = vmatprep.subr.bf16.mxu0 %v3848
    %4076 = vmatpush1.bf16.msra.mxu0 %v3847
    %4077 = vmatprep.subr.bf16.mxu0 %v3852
    %4078 = vmatpush1.bf16.msra.mxu0 %v3851
    %4079 = vmatprep.mubr.bf16.mxu0 %v3253
    %4080 = vmatmul.mubr.bf16.gmra.mrb[0].mxu0 %v3252
    %v4081 = vpop.f32.mrb[0].mxu0
    %v4082 = vadd.f32 %v3390, %v4081
    %v4083 = vpop.f32.mrb[0].mxu0
    %v4084 = vadd.f32 %v3394, %v4083
    %v4085 = vpop.f32.mrb[0].mxu0
    %v4086 = vadd.f32 %v3390, %v4085
    %v4087 = vpop.f32.mrb[0].mxu0
    %v4088 = vadd.f32 %v3394, %v4087
    %4089 = vdwg.mxu0
    %4090 = vmatprep.subr.bf16.mxu0 %v3856
    %4091 = vmatpush1.bf16.msra.mxu0 %v3855
    %4092 = vmatprep.subr.bf16.mxu0 %v3860
    %4093 = vmatpush1.bf16.msra.mxu0 %v3859
    %4094 = vmatprep.subr.bf16.mxu0 %v3864
    %4095 = vmatpush1.bf16.msra.mxu0 %v3863
    %4096 = vmatprep.subr.bf16.mxu0 %v3868
    %4097 = vmatpush1.bf16.msra.mxu0 %v3867
    %4098 = vmatprep.subr.bf16.mxu0 %v3872
    %4099 = vmatpush1.bf16.msra.mxu0 %v3871
    %4100 = vmatprep.subr.bf16.mxu0 %v3876
    %4101 = vmatpush1.bf16.msra.mxu0 %v3875
    %4102 = vmatprep.subr.bf16.mxu0 %v3880
    %4103 = vmatpush1.bf16.msra.mxu0 %v3879
    %4104 = vmatprep.subr.bf16.mxu0 %v3884
    %4105 = vmatpush1.bf16.msra.mxu0 %v3883
    %4106 = vmatprep.subr.bf16.mxu0 %v3888
    %4107 = vmatpush1.bf16.msra.mxu0 %v3887
    %4108 = vmatprep.subr.bf16.mxu0 %v3892
    %4109 = vmatpush1.bf16.msra.mxu0 %v3891
    %4110 = vmatprep.subr.bf16.mxu0 %v3896
    %4111 = vmatpush1.bf16.msra.mxu0 %v3895
    %4112 = vmatprep.subr.bf16.mxu0 %v3900
    %4113 = vmatpush1.bf16.msra.mxu0 %v3899
    %4114 = vmatprep.subr.bf16.mxu0 %v3904
    %4115 = vmatpush1.bf16.msra.mxu0 %v3903
    %4116 = vmatprep.subr.bf16.mxu0 %v3908
    %4117 = vmatpush1.bf16.msra.mxu0 %v3907
    %4118 = vmatprep.subr.bf16.mxu0 %v3912
    %4119 = vmatpush1.bf16.msra.mxu0 %v3911
    %4120 = vmatprep.subr.bf16.mxu0 %v3916
    %4121 = vmatpush1.bf16.msra.mxu0 %v3915
    %4122 = vmatprep.mubr.bf16.mxu0 %v3255
    %4123 = vmatmul.mubr.bf16.gmra.mrb[0].mxu0 %v3254
    %v4124 = vpop.f32.mrb[0].mxu0
    %v4125 = vadd.f32 %v4082, %v4124
    %v4126 = vpop.f32.mrb[0].mxu0
    %v4127 = vadd.f32 %v4084, %v4126
    %v4128 = vpop.f32.mrb[0].mxu0
    %v4129 = vadd.f32 %v4086, %v4128
    %v4130 = vpop.f32.mrb[0].mxu0
    %v4131 = vadd.f32 %v4088, %v4130
    %4132 = vdwg.mxu0
    %4133 = vmatprep.subr.bf16.mxu0 %v3794
    %4134 = vmatpush1.bf16.msra.mxu0 %v3793
    %4135 = vmatprep.subr.bf16.mxu0 %v3798
    %4136 = vmatpush1.bf16.msra.mxu0 %v3797
    %4137 = vmatprep.subr.bf16.mxu0 %v3802
    %4138 = vmatpush1.bf16.msra.mxu0 %v3801
    %4139 = vmatprep.subr.bf16.mxu0 %v3806
    %4140 = vmatpush1.bf16.msra.mxu0 %v3805
    %4141 = vmatprep.subr.bf16.mxu0 %v3810
    %4142 = vmatpush1.bf16.msra.mxu0 %v3809
    %4143 = vmatprep.subr.bf16.mxu0 %v3814
    %4144 = vmatpush1.bf16.msra.mxu0 %v3813
    %4145 = vmatprep.subr.bf16.mxu0 %v3818
    %4146 = vmatpush1.bf16.msra.mxu0 %v3817
    %4147 = vmatprep.subr.bf16.mxu0 %v3822
    %4148 = vmatpush1.bf16.msra.mxu0 %v3821
    %4149 = vmatprep.subr.bf16.mxu0 %v3826
    %4150 = vmatpush1.bf16.msra.mxu0 %v3825
    %4151 = vmatprep.subr.bf16.mxu0 %v3830
    %4152 = vmatpush1.bf16.msra.mxu0 %v3829
    %4153 = vmatprep.subr.bf16.mxu0 %v3834
    %4154 = vmatpush1.bf16.msra.mxu0 %v3833
    %4155 = vmatprep.subr.bf16.mxu0 %v3838
    %4156 = vmatpush1.bf16.msra.mxu0 %v3837
    %4157 = vmatprep.subr.bf16.mxu0 %v3842
    %4158 = vmatpush1.bf16.msra.mxu0 %v3841
    %4159 = vmatprep.subr.bf16.mxu0 %v3846
    %4160 = vmatpush1.bf16.msra.mxu0 %v3845
    %4161 = vmatprep.subr.bf16.mxu0 %v3850
    %4162 = vmatpush1.bf16.msra.mxu0 %v3849
    %4163 = vmatprep.subr.bf16.mxu0 %v3854
    %4164 = vmatpush1.bf16.msra.mxu0 %v3853
    %4165 = vmatprep.mubr.bf16.mxu0 %v3253
    %4166 = vmatmul.mubr.bf16.gmra.mrb[0].mxu0 %v3252
    %v4167 = vpop.f32.mrb[0].mxu0
    %v4168 = vadd.f32 %v3398, %v4167
    %v4169 = vpop.f32.mrb[0].mxu0
    %v4170 = vadd.f32 %v3402, %v4169
    %v4171 = vpop.f32.mrb[0].mxu0
    %v4172 = vadd.f32 %v3398, %v4171
    %v4173 = vpop.f32.mrb[0].mxu0
    %v4174 = vadd.f32 %v3402, %v4173
    %4175 = vdwg.mxu0
    %4176 = vmatprep.subr.bf16.mxu0 %v3858
    %4177 = vmatpush1.bf16.msra.mxu0 %v3857
    %4178 = vmatprep.subr.bf16.mxu0 %v3862
    %4179 = vmatpush1.bf16.msra.mxu0 %v3861
    %4180 = vmatprep.subr.bf16.mxu0 %v3866
    %4181 = vmatpush1.bf16.msra.mxu0 %v3865
    %4182 = vmatprep.subr.bf16.mxu0 %v3870
    %4183 = vmatpush1.bf16.msra.mxu0 %v3869
    %4184 = vmatprep.subr.bf16.mxu0 %v3874
    %4185 = vmatpush1.bf16.msra.mxu0 %v3873
    %4186 = vmatprep.subr.bf16.mxu0 %v3878
    %4187 = vmatpush1.bf16.msra.mxu0 %v3877
    %4188 = vmatprep.subr.bf16.mxu0 %v3882
    %4189 = vmatpush1.bf16.msra.mxu0 %v3881
    %4190 = vmatprep.subr.bf16.mxu0 %v3886
    %4191 = vmatpush1.bf16.msra.mxu0 %v3885
    %4192 = vmatprep.subr.bf16.mxu0 %v3890
    %4193 = vmatpush1.bf16.msra.mxu0 %v3889
    %4194 = vmatprep.subr.bf16.mxu0 %v3894
    %4195 = vmatpush1.bf16.msra.mxu0 %v3893
    %4196 = vmatprep.subr.bf16.mxu0 %v3898
    %4197 = vmatpush1.bf16.msra.mxu0 %v3897
    %4198 = vmatprep.subr.bf16.mxu0 %v3902
    %4199 = vmatpush1.bf16.msra.mxu0 %v3901
    %4200 = vmatprep.subr.bf16.mxu0 %v3906
    %4201 = vmatpush1.bf16.msra.mxu0 %v3905
    %4202 = vmatprep.subr.bf16.mxu0 %v3910
    %4203 = vmatpush1.bf16.msra.mxu0 %v3909
    %4204 = vmatprep.subr.bf16.mxu0 %v3914
    %4205 = vmatpush1.bf16.msra.mxu0 %v3913
    %4206 = vmatprep.subr.bf16.mxu0 %v3918
    %4207 = vmatpush1.bf16.msra.mxu0 %v3917
    %4208 = vmatprep.mubr.bf16.mxu0 %v3255
    %4209 = vmatmul.mubr.bf16.gmra.mrb[0].mxu0 %v3254
    %v4210 = vpop.f32.mrb[0].mxu0
    %v4211 = vadd.f32 %v4168, %v4210
    %v4212 = vpop.f32.mrb[0].mxu0
    %v4213 = vadd.f32 %v4170, %v4212
    %v4214 = vpop.f32.mrb[0].mxu0
    %v4215 = vadd.f32 %v4172, %v4214
    %v4216 = vpop.f32.mrb[0].mxu0
    %v4217 = vadd.f32 %v4174, %v4216
    %4218 = vdwg.mxu0
    %v4219 = vmax.f32 %v4125, 0.0
    %v4220 = vmax.f32 %v4127, 0.0
    %v4221 = vmax.f32 %v4211, 0.0
    %v4222 = vmax.f32 %v4213, 0.0
    %v4223 = vmax.f32 %v4129, 0.0
    %v4224 = vmax.f32 %v4131, 0.0
    %v4225 = vmax.f32 %v4215, 0.0
    %v4226 = vmax.f32 %v4217, 0.0
    %v4227 = vpack.c.bf16 %v4223, %v4219
    %v4228 = vpack.c.bf16 %v4224, %v4220
    %v4229 = vpack.c.bf16 %v4225, %v4221
    %v4230 = vpack.c.bf16 %v4226, %v4222
    %v4231 = vld [vmem:[#allocation17] sm:$0xf]
    %v4232 = vld [vmem:[#allocation17 + $0x4] sm:$0xf]
    %v4233 = vld [vmem:[#allocation17 + $0x8] sm:$0xf]
    %v4234 = vld [vmem:[#allocation17 + $0xc] sm:$0xf]
    %v4235 = vld [vmem:[#allocation17 + $0x10] sm:$0xf]
    %v4236 = vld [vmem:[#allocation17 + $0x14] sm:$0xf]
    %v4237 = vld [vmem:[#allocation17 + $0x18] sm:$0xf]
    %v4238 = vld [vmem:[#allocation17 + $0x1c] sm:$0xf]
    %v4239 = vld [vmem:[#allocation17 + $0x20] sm:$0xf]
    %v4240 = vld [vmem:[#allocation17 + $0x24] sm:$0xf]
    %v4241 = vld [vmem:[#allocation17 + $0x28] sm:$0xf]
    %v4242 = vld [vmem:[#allocation17 + $0x2c] sm:$0xf]
    %v4243 = vld [vmem:[#allocation17 + $0x30] sm:$0xf]
    %v4244 = vld [vmem:[#allocation17 + $0x34] sm:$0xf]
    %v4245 = vld [vmem:[#allocation17 + $0x38] sm:$0xf]
    %v4246 = vld [vmem:[#allocation17 + $0x3c] sm:$0xf]
    %v4247 = vld [vmem:[#allocation17 + $0x40] sm:$0xf]
    %v4248 = vld [vmem:[#allocation17 + $0x44] sm:$0xf]
    %v4249 = vld [vmem:[#allocation17 + $0x48] sm:$0xf]
    %v4250 = vld [vmem:[#allocation17 + $0x4c] sm:$0xf]
    %v4251 = vld [vmem:[#allocation17 + $0x50] sm:$0xf]
    %v4252 = vld [vmem:[#allocation17 + $0x54] sm:$0xf]
    %v4253 = vld [vmem:[#allocation17 + $0x58] sm:$0xf]
    %v4254 = vld [vmem:[#allocation17 + $0x5c] sm:$0xf]
    %v4255 = vld [vmem:[#allocation17 + $0x60] sm:$0xf]
    %v4256 = vld [vmem:[#allocation17 + $0x64] sm:$0xf]
    %v4257 = vld [vmem:[#allocation17 + $0x68] sm:$0xf]
    %v4258 = vld [vmem:[#allocation17 + $0x6c] sm:$0xf]
    %v4259 = vld [vmem:[#allocation17 + $0x70] sm:$0xf]
    %v4260 = vld [vmem:[#allocation17 + $0x74] sm:$0xf]
    %v4261 = vld [vmem:[#allocation17 + $0x78] sm:$0xf]
    %v4262 = vld [vmem:[#allocation17 + $0x7c] sm:$0xf]
    %v4263 = vld [vmem:[#allocation17 + $0x80] sm:$0xf]
    %v4264 = vld [vmem:[#allocation17 + $0x84] sm:$0xf]
    %v4265 = vld [vmem:[#allocation17 + $0x88] sm:$0xf]
    %v4266 = vld [vmem:[#allocation17 + $0x8c] sm:$0xf]
    %v4267 = vld [vmem:[#allocation17 + $0x90] sm:$0xf]
    %v4268 = vld [vmem:[#allocation17 + $0x94] sm:$0xf]
    %v4269 = vld [vmem:[#allocation17 + $0x98] sm:$0xf]
    %v4270 = vld [vmem:[#allocation17 + $0x9c] sm:$0xf]
    %v4271 = vld [vmem:[#allocation17 + $0xa0] sm:$0xf]
    %v4272 = vld [vmem:[#allocation17 + $0xa4] sm:$0xf]
    %v4273 = vld [vmem:[#allocation17 + $0xa8] sm:$0xf]
    %v4274 = vld [vmem:[#allocation17 + $0xac] sm:$0xf]
    %v4275 = vld [vmem:[#allocation17 + $0xb0] sm:$0xf]
    %v4276 = vld [vmem:[#allocation17 + $0xb4] sm:$0xf]
    %v4277 = vld [vmem:[#allocation17 + $0xb8] sm:$0xf]
    %v4278 = vld [vmem:[#allocation17 + $0xbc] sm:$0xf]
    %v4279 = vld [vmem:[#allocation17 + $0xc0] sm:$0xf]
    %v4280 = vld [vmem:[#allocation17 + $0xc4] sm:$0xf]
    %v4281 = vld [vmem:[#allocation17 + $0xc8] sm:$0xf]
    %v4282 = vld [vmem:[#allocation17 + $0xcc] sm:$0xf]
    %v4283 = vld [vmem:[#allocation17 + $0xd0] sm:$0xf]
    %v4284 = vld [vmem:[#allocation17 + $0xd4] sm:$0xf]
    %v4285 = vld [vmem:[#allocation17 + $0xd8] sm:$0xf]
    %v4286 = vld [vmem:[#allocation17 + $0xdc] sm:$0xf]
    %v4287 = vld [vmem:[#allocation17 + $0xe0] sm:$0xf]
    %v4288 = vld [vmem:[#allocation17 + $0xe4] sm:$0xf]
    %v4289 = vld [vmem:[#allocation17 + $0xe8] sm:$0xf]
    %v4290 = vld [vmem:[#allocation17 + $0xec] sm:$0xf]
    %v4291 = vld [vmem:[#allocation17 + $0xf0] sm:$0xf]
    %v4292 = vld [vmem:[#allocation17 + $0xf4] sm:$0xf]
    %v4293 = vld [vmem:[#allocation17 + $0xf8] sm:$0xf]
    %v4294 = vld [vmem:[#allocation17 + $0xfc] sm:$0xf]
    %v4295 = vld [vmem:[#allocation7 + $0x6] ss:$0 sm:$0xff]
    %v4360 = vunpack.c.l.b16 %v4231
    %v4361 = vunpack.c.l.b16 %v4232
    %v4362 = vunpack.c.l.b16 %v4233
    %v4363 = vunpack.c.l.b16 %v4234
    %v4364 = vunpack.c.l.b16 %v4235
    %v4365 = vunpack.c.l.b16 %v4236
    %v4366 = vunpack.c.l.b16 %v4237
    %v4367 = vunpack.c.l.b16 %v4238
    %v4368 = vunpack.c.l.b16 %v4239
    %v4369 = vunpack.c.l.b16 %v4240
    %v4370 = vunpack.c.l.b16 %v4241
    %v4371 = vunpack.c.l.b16 %v4242
    %v4372 = vunpack.c.l.b16 %v4243
    %v4373 = vunpack.c.l.b16 %v4244
    %v4374 = vunpack.c.l.b16 %v4245
    %v4375 = vunpack.c.l.b16 %v4246
    %v4376 = vunpack.c.l.b16 %v4247
    %v4377 = vunpack.c.l.b16 %v4248
    %v4378 = vunpack.c.l.b16 %v4249
    %v4379 = vunpack.c.l.b16 %v4250
    %v4380 = vunpack.c.l.b16 %v4251
    %v4381 = vunpack.c.l.b16 %v4252
    %v4382 = vunpack.c.l.b16 %v4253
    %v4383 = vunpack.c.l.b16 %v4254
    %v4384 = vunpack.c.l.b16 %v4255
    %v4385 = vunpack.c.l.b16 %v4256
    %v4386 = vunpack.c.l.b16 %v4257
    %v4387 = vunpack.c.l.b16 %v4258
    %v4388 = vunpack.c.l.b16 %v4259
    %v4389 = vunpack.c.l.b16 %v4260
    %v4390 = vunpack.c.l.b16 %v4261
    %v4391 = vunpack.c.l.b16 %v4262
    %v4392 = vunpack.c.l.b16 %v4263
    %v4393 = vunpack.c.l.b16 %v4264
    %v4394 = vunpack.c.l.b16 %v4265
    %v4395 = vunpack.c.l.b16 %v4266
    %v4396 = vunpack.c.l.b16 %v4267
    %v4397 = vunpack.c.l.b16 %v4268
    %v4398 = vunpack.c.l.b16 %v4269
    %v4399 = vunpack.c.l.b16 %v4270
    %v4400 = vunpack.c.l.b16 %v4271
    %v4401 = vunpack.c.l.b16 %v4272
    %v4402 = vunpack.c.l.b16 %v4273
    %v4403 = vunpack.c.l.b16 %v4274
    %v4404 = vunpack.c.l.b16 %v4275
    %v4405 = vunpack.c.l.b16 %v4276
    %v4406 = vunpack.c.l.b16 %v4277
    %v4407 = vunpack.c.l.b16 %v4278
    %v4408 = vunpack.c.l.b16 %v4279
    %v4409 = vunpack.c.l.b16 %v4280
    %v4410 = vunpack.c.l.b16 %v4281
    %v4411 = vunpack.c.l.b16 %v4282
    %v4412 = vunpack.c.l.b16 %v4283
    %v4413 = vunpack.c.l.b16 %v4284
    %v4414 = vunpack.c.l.b16 %v4285
    %v4415 = vunpack.c.l.b16 %v4286
    %v4416 = vunpack.c.l.b16 %v4287
    %v4417 = vunpack.c.l.b16 %v4288
    %v4418 = vunpack.c.l.b16 %v4289
    %v4419 = vunpack.c.l.b16 %v4290
    %v4420 = vunpack.c.l.b16 %v4291
    %v4421 = vunpack.c.l.b16 %v4292
    %v4422 = vunpack.c.l.b16 %v4293
    %v4423 = vunpack.c.l.b16 %v4294
    %v4424 = vpack.c.b16 %v4361, %v4360
    %v4425 = vpack.c.b16 %v4363, %v4362
    %v4426 = vpack.c.b16 %v4365, %v4364
    %v4427 = vpack.c.b16 %v4367, %v4366
    %v4428 = vpack.c.b16 %v4369, %v4368
    %v4429 = vpack.c.b16 %v4371, %v4370
    %v4430 = vpack.c.b16 %v4373, %v4372
    %v4431 = vpack.c.b16 %v4375, %v4374
    %v4432 = vpack.c.b16 %v4377, %v4376
    %v4433 = vpack.c.b16 %v4379, %v4378
    %v4434 = vpack.c.b16 %v4381, %v4380
    %v4435 = vpack.c.b16 %v4383, %v4382
    %v4436 = vpack.c.b16 %v4385, %v4384
    %v4437 = vpack.c.b16 %v4387, %v4386
    %v4438 = vpack.c.b16 %v4389, %v4388
    %v4439 = vpack.c.b16 %v4391, %v4390
    %v4440 = vpack.c.b16 %v4393, %v4392
    %v4441 = vpack.c.b16 %v4395, %v4394
    %v4442 = vpack.c.b16 %v4397, %v4396
    %v4443 = vpack.c.b16 %v4399, %v4398
    %v4444 = vpack.c.b16 %v4401, %v4400
    %v4445 = vpack.c.b16 %v4403, %v4402
    %v4446 = vpack.c.b16 %v4405, %v4404
    %v4447 = vpack.c.b16 %v4407, %v4406
    %v4448 = vpack.c.b16 %v4409, %v4408
    %v4449 = vpack.c.b16 %v4411, %v4410
    %v4450 = vpack.c.b16 %v4413, %v4412
    %v4451 = vpack.c.b16 %v4415, %v4414
    %v4452 = vpack.c.b16 %v4417, %v4416
    %v4453 = vpack.c.b16 %v4419, %v4418
    %v4454 = vpack.c.b16 %v4421, %v4420
    %v4455 = vpack.c.b16 %v4423, %v4422
    %4488 = vmatprep.subr.bf16.mxu0 0
    %4489 = vmatpush1.bf16.msra.mxu0 %v4424
    %4490 = vmatprep.subr.bf16.mxu0 0
    %4491 = vmatpush1.bf16.msra.mxu0 %v4425
    %4492 = vmatprep.subr.bf16.mxu0 0
    %4493 = vmatpush1.bf16.msra.mxu0 %v4426
    %4494 = vmatprep.subr.bf16.mxu0 0
    %4495 = vmatpush1.bf16.msra.mxu0 %v4427
    %4496 = vmatprep.subr.bf16.mxu0 0
    %4497 = vmatpush1.bf16.msra.mxu0 %v4428
    %4498 = vmatprep.subr.bf16.mxu0 0
    %4499 = vmatpush1.bf16.msra.mxu0 %v4429
    %4500 = vmatprep.subr.bf16.mxu0 0
    %4501 = vmatpush1.bf16.msra.mxu0 %v4430
    %4502 = vmatprep.subr.bf16.mxu0 0
    %4503 = vmatpush1.bf16.msra.mxu0 %v4431
    %4504 = vmatprep.subr.bf16.mxu0 0
    %4505 = vmatpush1.bf16.msra.mxu0 %v4432
    %4506 = vmatprep.subr.bf16.mxu0 0
    %4507 = vmatpush1.bf16.msra.mxu0 %v4433
    %4508 = vmatprep.subr.bf16.mxu0 0
    %4509 = vmatpush1.bf16.msra.mxu0 %v4434
    %4510 = vmatprep.subr.bf16.mxu0 0
    %4511 = vmatpush1.bf16.msra.mxu0 %v4435
    %4512 = vmatprep.subr.bf16.mxu0 0
    %4513 = vmatpush1.bf16.msra.mxu0 %v4436
    %4514 = vmatprep.subr.bf16.mxu0 0
    %4515 = vmatpush1.bf16.msra.mxu0 %v4437
    %4516 = vmatprep.subr.bf16.mxu0 0
    %4517 = vmatpush1.bf16.msra.mxu0 %v4438
    %4518 = vmatprep.subr.bf16.mxu0 0
    %4519 = vmatpush1.bf16.msra.mxu0 %v4439
    %4520 = vmatprep.mubr.bf16.mxu0 %v4228
    %4521 = vmatmul.mubr.bf16.gmra.mrb[0].mxu0 %v4227
    %v4522 = vpop.f32.mrb[0].mxu0
    %v4523 = vadd.f32 %v4295, %v4522
    %v4524 = vpop.f32.mrb[0].mxu0
    %v4525 = vpop.f32.mrb[0].mxu0
    %v4526 = vadd.f32 %v4295, %v4525
    %v4527 = vpop.f32.mrb[0].mxu0
    %4528 = vdwg.mxu0
    %4529 = vmatprep.subr.bf16.mxu0 0
    %4530 = vmatpush1.bf16.msra.mxu0 %v4440
    %4531 = vmatprep.subr.bf16.mxu0 0
    %4532 = vmatpush1.bf16.msra.mxu0 %v4441
    %4533 = vmatprep.subr.bf16.mxu0 0
    %4534 = vmatpush1.bf16.msra.mxu0 %v4442
    %4535 = vmatprep.subr.bf16.mxu0 0
    %4536 = vmatpush1.bf16.msra.mxu0 %v4443
    %4537 = vmatprep.subr.bf16.mxu0 0
    %4538 = vmatpush1.bf16.msra.mxu0 %v4444
    %4539 = vmatprep.subr.bf16.mxu0 0
    %4540 = vmatpush1.bf16.msra.mxu0 %v4445
    %4541 = vmatprep.subr.bf16.mxu0 0
    %4542 = vmatpush1.bf16.msra.mxu0 %v4446
    %4543 = vmatprep.subr.bf16.mxu0 0
    %4544 = vmatpush1.bf16.msra.mxu0 %v4447
    %4545 = vmatprep.subr.bf16.mxu0 0
    %4546 = vmatpush1.bf16.msra.mxu0 %v4448
    %4547 = vmatprep.subr.bf16.mxu0 0
    %4548 = vmatpush1.bf16.msra.mxu0 %v4449
    %4549 = vmatprep.subr.bf16.mxu0 0
    %4550 = vmatpush1.bf16.msra.mxu0 %v4450
    %4551 = vmatprep.subr.bf16.mxu0 0
    %4552 = vmatpush1.bf16.msra.mxu0 %v4451
    %4553 = vmatprep.subr.bf16.mxu0 0
    %4554 = vmatpush1.bf16.msra.mxu0 %v4452
    %4555 = vmatprep.subr.bf16.mxu0 0
    %4556 = vmatpush1.bf16.msra.mxu0 %v4453
    %4557 = vmatprep.subr.bf16.mxu0 0
    %4558 = vmatpush1.bf16.msra.mxu0 %v4454
    %4559 = vmatprep.subr.bf16.mxu0 0
    %4560 = vmatpush1.bf16.msra.mxu0 %v4455
    %4561 = vmatprep.mubr.bf16.mxu0 %v4230
    %4562 = vmatmul.mubr.bf16.gmra.mrb[0].mxu0 %v4229
    %v4563 = vpop.f32.mrb[0].mxu0
    %v4564 = vadd.f32 %v4523, %v4563
    %v4565 = vpop.f32.mrb[0].mxu0
    %v4566 = vpop.f32.mrb[0].mxu0
    %v4567 = vadd.f32 %v4526, %v4566
    %v4568 = vpop.f32.mrb[0].mxu0
    %4569 = vdwg.mxu0
    %v4570 = vxor.u32 %v4564, 2147483648
    %v4571 = vxor.u32 %v4567, 2147483648
    %v4572 = vmul.f32 %v4570, 1.442695
    %v4573 = vpow.pop %v4572
    %v4574 = vmul.f32 %v4571, 1.442695
    %v4575 = vpow.pop %v4574
    %v4576 = vadd.f32 %v4573, 1.0
    %v4577 = vadd.f32 %v4575, 1.0
    %v4578 = vrcp.pop %v4576
    %v4579 = vmul.f32 1.0, %v4578
    %v4580 = vrcp.pop %v4577
    %v4581 = vmul.f32 1.0, %v4580
    %4582 = vst [vmem:[#allocation19] sm:$0xff] %v2940
    %4583 = vst [vmem:[#allocation19 + $0x8] sm:$0xff] %v2941
    %4584 = vst [vmem:[#allocation20] sm:$0xff] %v4579
    %4585 = vst [vmem:[#allocation20 + $0x8] sm:$0xff] %v4581
    %4586 = vst [vmem:[#allocation22] sm:$0xff] %v2922
    %4587 = vst [vmem:[#allocation22 + $0x8] sm:$0xff] %v2926
    %4588 = vst [vmem:[#allocation23] sm:$0xff] %v2924
    %4589 = vst [vmem:[#allocation23 + $0x8] sm:$0xff] %v2928
    // Predicated region
    $region82: #{tpu_custom_call.1} parent=1 // pred_check
      _
    $region83: #{tpu_custom_call.1} parent=1 // pred_check_branch
      %4591 = sbr.rel (0) target = $region85
    $region84: #{tpu_custom_call.1} parent=1 // pred_region
      %s4593 = ssub.s32 256, 256
      %4594 = vsyncadd [#allocation4], %s4593
      %s4595 = sshll.u32 [#allocation19], 4
      %s4596 = int_to_ptr.vmem [resolvable:$true] %s4595
      %4601 = dma.vmem_to_hbm [thread:$0]  %s4596, 256, %s10, [#allocation4], 128, 128, 8
    $region85: #{tpu_custom_call.1} parent=1 // pred_fallthru
      _
    // Predicated region
    $region86: #{tpu_custom_call.1} parent=1 // pred_check
      _
    $region87: #{tpu_custom_call.1} parent=1 // pred_check_branch
      %4603 = sbr.rel (0) target = $region89
    $region88: #{tpu_custom_call.1} parent=1 // pred_region
      %s4605 = ssub.s32 256, 256
      %4606 = vsyncadd [#allocation21], %s4605
      %s4607 = sshll.u32 [#allocation20], 4
      %s4608 = int_to_ptr.vmem [resolvable:$true] %s4607
      %4613 = dma.vmem_to_hbm [thread:$0]  %s4608, 256, %s11, [#allocation21], 128, 128, 8
    $region89: #{tpu_custom_call.1} parent=1 // pred_fallthru
      _
    // Predicated region
    $region90: #{tpu_custom_call.1} parent=1 // pred_check
      _
    $region91: #{tpu_custom_call.1} parent=1 // pred_check_branch
      %4615 = sbr.rel (0) target = $region93
    $region92: #{tpu_custom_call.1} parent=1 // pred_region
      %s4617 = ssub.s32 256, 256
      %4618 = vsyncadd [#allocation21], %s4617
      %s4619 = sshll.u32 [#allocation22], 4
      %s4620 = int_to_ptr.vmem [resolvable:$true] %s4619
      %4625 = dma.vmem_to_hbm [thread:$0]  %s4620, 256, %s12, [#allocation21], 128, 128, 8
    $region93: #{tpu_custom_call.1} parent=1 // pred_fallthru
      _
    // Predicated region
    $region94: #{tpu_custom_call.1} parent=1 // pred_check
      _
    $region95: #{tpu_custom_call.1} parent=1 // pred_check_branch
      %4627 = sbr.rel (0) target = $region97
    $region96: #{tpu_custom_call.1} parent=1 // pred_region
      %s4629 = ssub.s32 256, 256
      %4630 = vsyncadd [#allocation24], %s4629
      %s4631 = sshll.u32 [#allocation23], 4
      %s4632 = int_to_ptr.vmem [resolvable:$true] %s4631
      %4637 = dma.vmem_to_hbm [thread:$0]  %s4632, 256, %s13, [#allocation24], 128, 128, 8
    $region97: #{tpu_custom_call.1} parent=1 // pred_fallthru
      _
    // Predicated region
    $region98: #{tpu_custom_call.1} parent=1 // pred_check
      _
    $region99: #{tpu_custom_call.1} parent=1 // pred_check_branch
      %4639 = sbr.rel (0) target = $region101
    $region100: #{tpu_custom_call.1} parent=1 // pred_region
      %4640 = dma.done [#allocation4], 256
    $region101: #{tpu_custom_call.1} parent=1 // pred_fallthru
      _
    // Predicated region
    $region102: #{tpu_custom_call.1} parent=1 // pred_check
      _
    $region103: #{tpu_custom_call.1} parent=1 // pred_check_branch
      %4642 = sbr.rel (0) target = $region105
    $region104: #{tpu_custom_call.1} parent=1 // pred_region
      %4643 = dma.done [#allocation21], 256
    $region105: #{tpu_custom_call.1} parent=1 // pred_fallthru
      _
    // Predicated region
    $region106: #{tpu_custom_call.1} parent=1 // pred_check
      _
    $region107: #{tpu_custom_call.1} parent=1 // pred_check_branch
      %4645 = sbr.rel (0) target = $region109
    $region108: #{tpu_custom_call.1} parent=1 // pred_region
      %4646 = dma.done [#allocation21], 256
    $region109: #{tpu_custom_call.1} parent=1 // pred_fallthru
      _
    // Predicated region
    $region110: #{tpu_custom_call.1} parent=1 // pred_check
      _
    $region111: #{tpu_custom_call.1} parent=1 // pred_check_branch
      %4648 = sbr.rel (0) target = $region113
    $region112: #{tpu_custom_call.1} parent=1 // pred_region
      %4649 = dma.done [#allocation24], 256
    $region113: #{tpu_custom_call.1} parent=1 // pred_fallthru
      _
    %4650 = vsyncpa [#allocation3], 1
    %4651 = vsyncpa [#allocation6], 1
    %4652 = vsyncpa [#allocation9], 1
    %4653 = vsyncpa [#allocation12], 1
    %4654 = vsyncpa [#allocation15], 1
    %4655 = vsyncpa [#allocation18], 1
    %4656 = vsyncpa [#allocation4], 1
    %4657 = vsyncpa [#allocation21], 1
    %4658 = vsyncpa [#allocation24], 1

// kernel: tpu_custom_call.1
$region0: #{tpu_custom_call.1}
  #allocation0 [shape = 'u32[]', space=smem, size = 0x4, offset = 0x4, fixed_abs, tag = 'smem constant byte address 0x4 - core index']
  #allocation1 [shape = 'u32[144,128]{1,0:T(1,128)}', space=vmem, size = 0x12000, scoped, tag = 'internal scratch']
  %s0 = inlined_call_operand.hbm [shape: bf16[16,128], index: 0, kind: input, shape index: {}]
  %s1 = inlined_call_operand.hbm [shape: f32[16,128], index: 1, kind: input, shape index: {}]
  %s2 = inlined_call_operand.hbm [shape: f32[8,512], index: 2, kind: input, shape index: {}]
  %s3 = inlined_call_operand.hbm [shape: bf16[128,512], index: 3, kind: input, shape index: {}]
  %s4 = inlined_call_operand.hbm [shape: bf16[512,512], index: 4, kind: input, shape index: {}]
  %s5 = inlined_call_operand.hbm [shape: bf16[512,512], index: 5, kind: input, shape index: {}]
  %s6 = inlined_call_operand.hbm [shape: bf16[512,256], index: 6, kind: input, shape index: {}]
  %s7 = inlined_call_operand.hbm [shape: bf16[128,512], index: 7, kind: input, shape index: {}]
  %s8 = inlined_call_operand.hbm [shape: bf16[512,512], index: 8, kind: input, shape index: {}]
  %s9 = inlined_call_operand.hbm [shape: bf16[512,128], index: 9, kind: input, shape index: {}]
  %s10 = inlined_call_operand.hbm [shape: f32[16,128], index: 10, kind: output, shape index: {0}]
  %s11 = inlined_call_operand.hbm [shape: f32[16,128], index: 11, kind: output, shape index: {1}]
  %s12 = inlined_call_operand.hbm [shape: f32[16,128], index: 12, kind: output, shape index: {2}]
  %s13 = inlined_call_operand.hbm [shape: f32[16,128], index: 13, kind: output, shape index: {3}]
  %14 = xla_tuple %s10, %s11, %s12, %s13
  %s15 = sld [smem:[#allocation0]]
  $region114: #{tpu_custom_call.1} parent=0
    _
  %s17 = ssub.s32 1, %s15
  %s18 = scalar_select 0, %s17, %s15
  $region1: #{tpu_custom_call.1} parent=0
    #allocation2 [shape = 'u8[4096]{0}', space=vmem, size = 0x1000, scoped, tag = 'input window, operand 0, single buffered']
    #allocation3 [shape = 's32[1]{0}', space=sflag, size = 0x4, scoped, tag = 'scoped memory for tpu_custom_call.1']
    #allocation4 [shape = 's32[1]{0}', space=sflag, size = 0x4, scoped, tag = 'scoped memory for tpu_custom_call.1']
    #allocation5 [shape = 'u8[8192]{0}', space=vmem, size = 0x2000, scoped, tag = 'input window, operand 1, single buffered']
    #allocation6 [shape = 's32[1]{0}', space=sflag, size = 0x4, scoped, tag = 'scoped memory for tpu_custom_call.1']
    #allocation7 [shape = 'u8[16384]{0}', space=vmem, size = 0x4000, scoped, tag = 'input window, operand 2, single buffered']
    #allocation8 [shape = 'u8[131072]{0}', space=vmem, size = 0x20000, scoped, tag = 'input window, operand 3, single buffered']
    #allocation9 [shape = 's32[1]{0}', space=sflag, size = 0x4, scoped, tag = 'scoped memory for tpu_custom_call.1']
    #allocation10 [shape = 'u8[524288]{0}', space=vmem, size = 0x80000, scoped, tag = 'input window, operand 4, single buffered']
    #allocation11 [shape = 'u8[524288]{0}', space=vmem, size = 0x80000, scoped, tag = 'input window, operand 5, single buffered']
    #allocation12 [shape = 's32[1]{0}', space=sflag, size = 0x4, scoped, tag = 'scoped memory for tpu_custom_call.1']
    #allocation13 [shape = 'u8[262144]{0}', space=vmem, size = 0x40000, scoped, tag = 'input window, operand 6, single buffered']
    #allocation14 [shape = 'u8[131072]{0}', space=vmem, size = 0x20000, scoped, tag = 'input window, operand 7, single buffered']
    #allocation15 [shape = 's32[1]{0}', space=sflag, size = 0x4, scoped, tag = 'scoped memory for tpu_custom_call.1']
    #allocation16 [shape = 'u8[524288]{0}', space=vmem, size = 0x80000, scoped, tag = 'input window, operand 8, single buffered']
    #allocation17 [shape = 'u8[131072]{0}', space=vmem, size = 0x20000, scoped, tag = 'input window, operand 9, single buffered']
    #allocation18 [shape = 's32[1]{0}', space=sflag, size = 0x4, scoped, tag = 'scoped memory for tpu_custom_call.1']
    #allocation19 [shape = 'u8[8192]{0}', space=vmem, size = 0x2000, scoped, tag = 'output window, operand 0, single buffered']
    #allocation20 [shape = 'u8[8192]{0}', space=vmem, size = 0x2000, scoped, tag = 'output window, operand 1, single buffered']
    #allocation21 [shape = 's32[1]{0}', space=sflag, size = 0x4, scoped, tag = 'scoped memory for tpu_custom_call.1']
    #allocation22 [shape = 'u8[8192]{0}', space=vmem, size = 0x2000, scoped, tag = 'output window, operand 2, single buffered']
    #allocation23 [shape = 'u8[8192]{0}', space=vmem, size = 0x2000, scoped, tag = 'output window, operand 3, single buffered']
    #allocation24 [shape = 's32[1]{0}', space=sflag, size = 0x4, scoped, tag = 'scoped memory for tpu_custom_call.1']
    %19 = vsyncpa [#allocation3], 0
    %20 = vsyncpa [#allocation6], 0
    %21 = vsyncpa [#allocation9], 0
    %22 = vsyncpa [#allocation12], 0
    %23 = vsyncpa [#allocation15], 0
    %24 = vsyncpa [#allocation18], 0
    %25 = vsyncpa [#allocation4], 0
    %26 = vsyncpa [#allocation21], 0
    %27 = vsyncpa [#allocation24], 0
    // Predicated region
    $region2: #{tpu_custom_call.1} parent=1 // pred_check
      _
    $region3: #{tpu_custom_call.1} parent=1 // pred_check_branch
      %29 = sbr.rel (0) target = $region5
    $region4: #{tpu_custom_call.1} parent=1 // pred_region
      %s31 = ssub.s32 128, 128
      %32 = vsyncadd [#allocation3], %s31
      %s33 = sshll.u32 [#allocation2], 4
      %s34 = int_to_ptr.vmem [resolvable:$true] %s33
      %39 = dma.hbm_to_vmem [thread:$0]  %s0, 128, %s34, [#allocation3], 64, 64, 4
    $region5: #{tpu_custom_call.1} parent=1 // pred_fallthru
      _
    // Predicated region
    $region6: #{tpu_custom_call.1} parent=1 // pred_check
      _
    $region7: #{tpu_custom_call.1} parent=1 // pred_check_branch
      %41 = sbr.rel (0) target = $region9
    $region8: #{tpu_custom_call.1} parent=1 // pred_region
      %s43 = ssub.s32 256, 256
      %44 = vsyncadd [#allocation6], %s43
      %s45 = sshll.u32 [#allocation5], 4
      %s46 = int_to_ptr.vmem [resolvable:$true] %s45
      %51 = dma.hbm_to_vmem [thread:$0]  %s1, 256, %s46, [#allocation6], 128, 128, 8
    $region9: #{tpu_custom_call.1} parent=1 // pred_fallthru
      _
    // Predicated region
    $region10: #{tpu_custom_call.1} parent=1 // pred_check
      _
    $region11: #{tpu_custom_call.1} parent=1 // pred_check_branch
      %53 = sbr.rel (0) target = $region13
    $region12: #{tpu_custom_call.1} parent=1 // pred_region
      %s55 = ssub.s32 512, 512
      %56 = vsyncadd [#allocation6], %s55
      %s58 = sshll.u32 [#allocation7], 4
      %s59 = int_to_ptr.vmem [resolvable:$true] %s58
      %61 = dma.hbm_to_vmem [thread:$0]  %s2, 512, %s59, [#allocation6]
    $region13: #{tpu_custom_call.1} parent=1 // pred_fallthru
      _
    // Predicated region
    $region14: #{tpu_custom_call.1} parent=1 // pred_check
      _
    $region15: #{tpu_custom_call.1} parent=1 // pred_check_branch
      %63 = sbr.rel (0) target = $region17
    $region16: #{tpu_custom_call.1} parent=1 // pred_region
      %s65 = ssub.s32 4096, 4096
      %66 = vsyncadd [#allocation9], %s65
      %s67 = sshll.u32 [#allocation8], 4
      %s68 = int_to_ptr.vmem [resolvable:$true] %s67
      %73 = dma.hbm_to_vmem [thread:$0]  %s3, 4096, %s68, [#allocation9], 256, 256, 16
    $region17: #{tpu_custom_call.1} parent=1 // pred_fallthru
      _
    // Predicated region
    $region18: #{tpu_custom_call.1} parent=1 // pred_check
      _
    $region19: #{tpu_custom_call.1} parent=1 // pred_check_branch
      %75 = sbr.rel (0) target = $region21
    $region20: #{tpu_custom_call.1} parent=1 // pred_region
      %s77 = ssub.s32 16384, 16384
      %78 = vsyncadd [#allocation9], %s77
      %s79 = sshll.u32 [#allocation10], 4
      %s80 = int_to_ptr.vmem [resolvable:$true] %s79
      %85 = dma.hbm_to_vmem [thread:$0]  %s4, 16384, %s80, [#allocation9], 256, 256, 16
    $region21: #{tpu_custom_call.1} parent=1 // pred_fallthru
      _
    // Predicated region
    $region22: #{tpu_custom_call.1} parent=1 // pred_check
      _
    $region23: #{tpu_custom_call.1} parent=1 // pred_check_branch
      %87 = sbr.rel (0) target = $region25
    $region24: #{tpu_custom_call.1} parent=1 // pred_region
      %s89 = ssub.s32 16384, 16384
      %90 = vsyncadd [#allocation12], %s89
      %s91 = sshll.u32 [#allocation11], 4
      %s92 = int_to_ptr.vmem [resolvable:$true] %s91
      %97 = dma.hbm_to_vmem [thread:$0]  %s5, 16384, %s92, [#allocation12], 256, 256, 16
    $region25: #{tpu_custom_call.1} parent=1 // pred_fallthru
      _
    // Predicated region
    $region26: #{tpu_custom_call.1} parent=1 // pred_check
      _
    $region27: #{tpu_custom_call.1} parent=1 // pred_check_branch
      %99 = sbr.rel (0) target = $region29
    $region28: #{tpu_custom_call.1} parent=1 // pred_region
      %s101 = ssub.s32 8192, 8192
      %102 = vsyncadd [#allocation12], %s101
      %s103 = sshll.u32 [#allocation13], 4
      %s104 = int_to_ptr.vmem [resolvable:$true] %s103
      %109 = dma.hbm_to_vmem [thread:$0]  %s6, 8192, %s104, [#allocation12], 128, 128, 8
    $region29: #{tpu_custom_call.1} parent=1 // pred_fallthru
      _
    // Predicated region
    $region30: #{tpu_custom_call.1} parent=1 // pred_check
      _
    $region31: #{tpu_custom_call.1} parent=1 // pred_check_branch
      %111 = sbr.rel (0) target = $region33
    $region32: #{tpu_custom_call.1} parent=1 // pred_region
      %s113 = ssub.s32 4096, 4096
      %114 = vsyncadd [#allocation15], %s113
      %s115 = sshll.u32 [#allocation14], 4
      %s116 = int_to_ptr.vmem [resolvable:$true] %s115
      %121 = dma.hbm_to_vmem [thread:$0]  %s7, 4096, %s116, [#allocation15], 256, 256, 16
    $region33: #{tpu_custom_call.1} parent=1 // pred_fallthru
      _
    // Predicated region
    $region34: #{tpu_custom_call.1} parent=1 // pred_check
      _
    $region35: #{tpu_custom_call.1} parent=1 // pred_check_branch
      %123 = sbr.rel (0) target = $region37
    $region36: #{tpu_custom_call.1} parent=1 // pred_region
      %s125 = ssub.s32 16384, 16384
      %126 = vsyncadd [#allocation15], %s125
      %s127 = sshll.u32 [#allocation16], 4
      %s128 = int_to_ptr.vmem [resolvable:$true] %s127
      %133 = dma.hbm_to_vmem [thread:$0]  %s8, 16384, %s128, [#allocation15], 256, 256, 16
    $region37: #{tpu_custom_call.1} parent=1 // pred_fallthru
      _
    // Predicated region
    $region38: #{tpu_custom_call.1} parent=1 // pred_check
      _
    $region39: #{tpu_custom_call.1} parent=1 // pred_check_branch
      %135 = sbr.rel (0) target = $region41
    $region40: #{tpu_custom_call.1} parent=1 // pred_region
      %s137 = ssub.s32 4096, 4096
      %138 = vsyncadd [#allocation18], %s137
      %s139 = sshll.u32 [#allocation17], 4
      %s140 = int_to_ptr.vmem [resolvable:$true] %s139
      %145 = dma.hbm_to_vmem [thread:$0]  %s9, 4096, %s140, [#allocation18], 64, 64, 4
    $region41: #{tpu_custom_call.1} parent=1 // pred_fallthru
      _
    // Predicated region
    $region42: #{tpu_custom_call.1} parent=1 // pred_check
      _
    $region43: #{tpu_custom_call.1} parent=1 // pred_check_branch
      %147 = sbr.rel (0) target = $region45
    $region44: #{tpu_custom_call.1} parent=1 // pred_region
      %148 = dma.done [#allocation3], 128
    $region45: #{tpu_custom_call.1} parent=1 // pred_fallthru
      _
    // Predicated region
    $region46: #{tpu_custom_call.1} parent=1 // pred_check
      _
    $region47: #{tpu_custom_call.1} parent=1 // pred_check_branch
      %150 = sbr.rel (0) target = $region49
    $region48: #{tpu_custom_call.1} parent=1 // pred_region
      %151 = dma.done [#allocation6], 256
    $region49: #{tpu_custom_call.1} parent=1 // pred_fallthru
      _
    // Predicated region
    $region50: #{tpu_custom_call.1} parent=1 // pred_check
      _
    $region51: #{tpu_custom_call.1} parent=1 // pred_check_branch
      %153 = sbr.rel (0) target = $region53
    $region52: #{tpu_custom_call.1} parent=1 // pred_region
      %154 = dma.done [#allocation6], 512
    $region53: #{tpu_custom_call.1} parent=1 // pred_fallthru
      _
    // Predicated region
    $region54: #{tpu_custom_call.1} parent=1 // pred_check
      _
    $region55: #{tpu_custom_call.1} parent=1 // pred_check_branch
      %156 = sbr.rel (0) target = $region57
    $region56: #{tpu_custom_call.1} parent=1 // pred_region
      %157 = dma.done [#allocation9], 4096
    $region57: #{tpu_custom_call.1} parent=1 // pred_fallthru
      _
    // Predicated region
    $region58: #{tpu_custom_call.1} parent=1 // pred_check
      _
    $region59: #{tpu_custom_call.1} parent=1 // pred_check_branch
      %159 = sbr.rel (0) target = $region61
    $region60: #{tpu_custom_call.1} parent=1 // pred_region
      %160 = dma.done [#allocation9], 16384
    $region61: #{tpu_custom_call.1} parent=1 // pred_fallthru
      _
    // Predicated region
    $region62: #{tpu_custom_call.1} parent=1 // pred_check
      _
    $region63: #{tpu_custom_call.1} parent=1 // pred_check_branch
      %162 = sbr.rel (0) target = $region65
    $region64: #{tpu_custom_call.1} parent=1 // pred_region
      %163 = dma.done [#allocation12], 16384
    $region65: #{tpu_custom_call.1} parent=1 // pred_fallthru
      _
    // Predicated region
    $region66: #{tpu_custom_call.1} parent=1 // pred_check
      _
    $region67: #{tpu_custom_call.1} parent=1 // pred_check_branch
      %165 = sbr.rel (0) target = $region69
    $region68: #{tpu_custom_call.1} parent=1 // pred_region
      %166 = dma.done [#allocation12], 8192
    $region69: #{tpu_custom_call.1} parent=1 // pred_fallthru
      _
    // Predicated region
    $region70: #{tpu_custom_call.1} parent=1 // pred_check
      _
    $region71: #{tpu_custom_call.1} parent=1 // pred_check_branch
      %168 = sbr.rel (0) target = $region73
    $region72: #{tpu_custom_call.1} parent=1 // pred_region
      %169 = dma.done [#allocation15], 4096
    $region73: #{tpu_custom_call.1} parent=1 // pred_fallthru
      _
    // Predicated region
    $region74: #{tpu_custom_call.1} parent=1 // pred_check
      _
    $region75: #{tpu_custom_call.1} parent=1 // pred_check_branch
      %171 = sbr.rel (0) target = $region77
    $region76: #{tpu_custom_call.1} parent=1 // pred_region
      %172 = dma.done [#allocation15], 16384
    $region77: #{tpu_custom_call.1} parent=1 // pred_fallthru
      _
    // Predicated region
    $region78: #{tpu_custom_call.1} parent=1 // pred_check
      _
    $region79: #{tpu_custom_call.1} parent=1 // pred_check_branch
      %174 = sbr.rel (0) target = $region81
    $region80: #{tpu_custom_call.1} parent=1 // pred_region
      %175 = dma.done [#allocation18], 4096
    $region81: #{tpu_custom_call.1} parent=1 // pred_fallthru
      _
    %v177 = vld [vmem:[#allocation2] sm:$0xf]
    %v178 = vld [vmem:[#allocation2 + $0x4] sm:$0xf]
    %v179 = vld [vmem:[#allocation8] sm:$0xff]
    %v180 = vld [vmem:[#allocation8 + $0x8] sm:$0xff]
    %v181 = vld [vmem:[#allocation8 + $0x10] sm:$0xff]
    %v182 = vld [vmem:[#allocation8 + $0x18] sm:$0xff]
    %v183 = vld [vmem:[#allocation8 + $0x20] sm:$0xff]
    %v184 = vld [vmem:[#allocation8 + $0x28] sm:$0xff]
    %v185 = vld [vmem:[#allocation8 + $0x30] sm:$0xff]
    %v186 = vld [vmem:[#allocation8 + $0x38] sm:$0xff]
    %v187 = vld [vmem:[#allocation8 + $0x40] sm:$0xff]
    %v188 = vld [vmem:[#allocation8 + $0x48] sm:$0xff]
    %v189 = vld [vmem:[#allocation8 + $0x50] sm:$0xff]
    %v190 = vld [vmem:[#allocation8 + $0x58] sm:$0xff]
    %v191 = vld [vmem:[#allocation8 + $0x60] sm:$0xff]
    %v192 = vld [vmem:[#allocation8 + $0x68] sm:$0xff]
    %v193 = vld [vmem:[#allocation8 + $0x70] sm:$0xff]
    %v194 = vld [vmem:[#allocation8 + $0x78] sm:$0xff]
    %v195 = vld [vmem:[#allocation8 + $0x80] sm:$0xff]
    %v196 = vld [vmem:[#allocation8 + $0x88] sm:$0xff]
    %v197 = vld [vmem:[#allocation8 + $0x90] sm:$0xff]
    %v198 = vld [vmem:[#allocation8 + $0x98] sm:$0xff]
    %v199 = vld [vmem:[#allocation8 + $0xa0] sm:$0xff]
    %v200 = vld [vmem:[#allocation8 + $0xa8] sm:$0xff]
    %v201 = vld [vmem:[#allocation8 + $0xb0] sm:$0xff]
    %v202 = vld [vmem:[#allocation8 + $0xb8] sm:$0xff]
    %v203 = vld [vmem:[#allocation8 + $0xc0] sm:$0xff]
    %v204 = vld [vmem:[#allocation8 + $0xc8] sm:$0xff]
    %v205 = vld [vmem:[#allocation8 + $0xd0] sm:$0xff]
    %v206 = vld [vmem:[#allocation8 + $0xd8] sm:$0xff]
    %v207 = vld [vmem:[#allocation8 + $0xe0] sm:$0xff]
    %v208 = vld [vmem:[#allocation8 + $0xe8] sm:$0xff]
    %v209 = vld [vmem:[#allocation8 + $0xf0] sm:$0xff]
    %v210 = vld [vmem:[#allocation8 + $0xf8] sm:$0xff]
    %v211 = vld [vmem:[#allocation7] ss:$8 sm:$0xf]
    %v213 = vlaneseq
    %v214 = vshrl.u32 %v213, 7
    %v215 = vsub.s32 0, %v214
    %v216 = vrot.slane %v211, %v215
    %v217 = vlaneseq
    %v218 = vshrl.u32 %v217, 7
    %v219 = vsub.s32 1, %v218
    %v220 = vrot.slane %v211, %v219
    %v221 = vlaneseq
    %v222 = vshrl.u32 %v221, 7
    %v223 = vsub.s32 2, %v222
    %v224 = vrot.slane %v211, %v223
    %v225 = vlaneseq
    %v226 = vshrl.u32 %v225, 7
    %v227 = vsub.s32 3, %v226
    %v228 = vrot.slane %v211, %v227
    %v235 = vunpack.c.l.b16 %v177
    %v236 = vunpack.c.l.b16 %v178
    %v237 = vpack.c.b16 %v236, %v235
    %v271 = vunpack.c.l.b16 %v179
    %v272 = vunpack.c.h.b16 %v179
    %v273 = vunpack.c.l.b16 %v180
    %v274 = vunpack.c.h.b16 %v180
    %v275 = vunpack.c.l.b16 %v181
    %v276 = vunpack.c.h.b16 %v181
    %v277 = vunpack.c.l.b16 %v182
    %v278 = vunpack.c.h.b16 %v182
    %v279 = vunpack.c.l.b16 %v183
    %v280 = vunpack.c.h.b16 %v183
    %v281 = vunpack.c.l.b16 %v184
    %v282 = vunpack.c.h.b16 %v184
    %v283 = vunpack.c.l.b16 %v185
    %v284 = vunpack.c.h.b16 %v185
    %v285 = vunpack.c.l.b16 %v186
    %v286 = vunpack.c.h.b16 %v186
    %v287 = vunpack.c.l.b16 %v187
    %v288 = vunpack.c.h.b16 %v187
    %v289 = vunpack.c.l.b16 %v188
    %v290 = vunpack.c.h.b16 %v188
    %v291 = vunpack.c.l.b16 %v189
    %v292 = vunpack.c.h.b16 %v189
    %v293 = vunpack.c.l.b16 %v190
    %v294 = vunpack.c.h.b16 %v190
    %v295 = vunpack.c.l.b16 %v191
    %v296 = vunpack.c.h.b16 %v191
    %v297 = vunpack.c.l.b16 %v192
    %v298 = vunpack.c.h.b16 %v192
    %v299 = vunpack.c.l.b16 %v193
    %v300 = vunpack.c.h.b16 %v193
    %v301 = vunpack.c.l.b16 %v194
    %v302 = vunpack.c.h.b16 %v194
    %v303 = vunpack.c.l.b16 %v195
    %v304 = vunpack.c.h.b16 %v195
    %v305 = vunpack.c.l.b16 %v196
    %v306 = vunpack.c.h.b16 %v196
    %v307 = vunpack.c.l.b16 %v197
    %v308 = vunpack.c.h.b16 %v197
    %v309 = vunpack.c.l.b16 %v198
    %v310 = vunpack.c.h.b16 %v198
    %v311 = vunpack.c.l.b16 %v199
    %v312 = vunpack.c.h.b16 %v199
    %v313 = vunpack.c.l.b16 %v200
    %v314 = vunpack.c.h.b16 %v200
    %v315 = vunpack.c.l.b16 %v201
    %v316 = vunpack.c.h.b16 %v201
    %v317 = vunpack.c.l.b16 %v202
    %v318 = vunpack.c.h.b16 %v202
    %v319 = vunpack.c.l.b16 %v203
    %v320 = vunpack.c.h.b16 %v203
    %v321 = vunpack.c.l.b16 %v204
    %v322 = vunpack.c.h.b16 %v204
    %v323 = vunpack.c.l.b16 %v205
    %v324 = vunpack.c.h.b16 %v205
    %v325 = vunpack.c.l.b16 %v206
    %v326 = vunpack.c.h.b16 %v206
    %v327 = vunpack.c.l.b16 %v207
    %v328 = vunpack.c.h.b16 %v207
    %v329 = vunpack.c.l.b16 %v208
    %v330 = vunpack.c.h.b16 %v208
    %v331 = vunpack.c.l.b16 %v209
    %v332 = vunpack.c.h.b16 %v209
    %v333 = vunpack.c.l.b16 %v210
    %v334 = vunpack.c.h.b16 %v210
    %v335 = vpack.c.b16 %v275, %v271
    %v336 = vpack.c.b16 %v276, %v272
    %v337 = vpack.c.b16 %v277, %v273
    %v338 = vpack.c.b16 %v278, %v274
    %v339 = vpack.c.b16 %v283, %v279
    %v340 = vpack.c.b16 %v284, %v280
    %v341 = vpack.c.b16 %v285, %v281
    %v342 = vpack.c.b16 %v286, %v282
    %v343 = vpack.c.b16 %v291, %v287
    %v344 = vpack.c.b16 %v292, %v288
    %v345 = vpack.c.b16 %v293, %v289
    %v346 = vpack.c.b16 %v294, %v290
    %v347 = vpack.c.b16 %v299, %v295
    %v348 = vpack.c.b16 %v300, %v296
    %v349 = vpack.c.b16 %v301, %v297
    %v350 = vpack.c.b16 %v302, %v298
    %v351 = vpack.c.b16 %v307, %v303
    %v352 = vpack.c.b16 %v308, %v304
    %v353 = vpack.c.b16 %v309, %v305
    %v354 = vpack.c.b16 %v310, %v306
    %v355 = vpack.c.b16 %v315, %v311
    %v356 = vpack.c.b16 %v316, %v312
    %v357 = vpack.c.b16 %v317, %v313
    %v358 = vpack.c.b16 %v318, %v314
    %v359 = vpack.c.b16 %v323, %v319
    %v360 = vpack.c.b16 %v324, %v320
    %v361 = vpack.c.b16 %v325, %v321
    %v362 = vpack.c.b16 %v326, %v322
    %v363 = vpack.c.b16 %v331, %v327
    %v364 = vpack.c.b16 %v332, %v328
    %v365 = vpack.c.b16 %v333, %v329
    %v366 = vpack.c.b16 %v334, %v330
    %399 = vmatprep.subr.bf16.mxu0 %v336
    %400 = vmatpush1.bf16.msra.mxu0 %v335
    %401 = vmatprep.subr.bf16.mxu0 %v340
    %402 = vmatpush1.bf16.msra.mxu0 %v339
    %403 = vmatprep.subr.bf16.mxu0 %v344
    %404 = vmatpush1.bf16.msra.mxu0 %v343
    %405 = vmatprep.subr.bf16.mxu0 %v348
    %406 = vmatpush1.bf16.msra.mxu0 %v347
    %407 = vmatprep.subr.bf16.mxu0 %v352
    %408 = vmatpush1.bf16.msra.mxu0 %v351
    %409 = vmatprep.subr.bf16.mxu0 %v356
    %410 = vmatpush1.bf16.msra.mxu0 %v355
    %411 = vmatprep.subr.bf16.mxu0 %v360
    %412 = vmatpush1.bf16.msra.mxu0 %v359
    %413 = vmatprep.subr.bf16.mxu0 %v364
    %414 = vmatpush1.bf16.msra.mxu0 %v363
    %415 = vmatprep.subr.bf16.mxu0 0
    %416 = vmatpush1.bf16.msra.mxu0 0
    %417 = vmatprep.subr.bf16.mxu0 0
    %418 = vmatpush1.bf16.msra.mxu0 0
    %419 = vmatprep.subr.bf16.mxu0 0
    %420 = vmatpush1.bf16.msra.mxu0 0
    %421 = vmatprep.subr.bf16.mxu0 0
    %422 = vmatpush1.bf16.msra.mxu0 0
    %423 = vmatprep.subr.bf16.mxu0 0
    %424 = vmatpush1.bf16.msra.mxu0 0
    %425 = vmatprep.subr.bf16.mxu0 0
    %426 = vmatpush1.bf16.msra.mxu0 0
    %427 = vmatprep.subr.bf16.mxu0 0
    %428 = vmatpush1.bf16.msra.mxu0 0
    %429 = vmatprep.subr.bf16.mxu0 0
    %430 = vmatpush1.bf16.msra.mxu0 0
    %431 = vmatprep.mubr.bf16.mxu0 0
    %432 = vmatmul.mubr.bf16.gmra.mrb[0].mxu0 %v237
    %v433 = vpop.f32.mrb[0].mxu0
    %v434 = vadd.f32 %v216, %v433
    %v435 = vpop.f32.mrb[0].mxu0
    %v436 = vadd.f32 %v220, %v435
    %v437 = vpop.f32.mrb[0].mxu0
    %v438 = vadd.f32 %v216, %v437
    %v439 = vpop.f32.mrb[0].mxu0
    %v440 = vadd.f32 %v220, %v439
    %441 = vdwg.mxu0
    %442 = vmatprep.subr.bf16.mxu0 %v338
    %443 = vmatpush1.bf16.msra.mxu0 %v337
    %444 = vmatprep.subr.bf16.mxu0 %v342
    %445 = vmatpush1.bf16.msra.mxu0 %v341
    %446 = vmatprep.subr.bf16.mxu0 %v346
    %447 = vmatpush1.bf16.msra.mxu0 %v345
    %448 = vmatprep.subr.bf16.mxu0 %v350
    %449 = vmatpush1.bf16.msra.mxu0 %v349
    %450 = vmatprep.subr.bf16.mxu0 %v354
    %451 = vmatpush1.bf16.msra.mxu0 %v353
    %452 = vmatprep.subr.bf16.mxu0 %v358
    %453 = vmatpush1.bf16.msra.mxu0 %v357
    %454 = vmatprep.subr.bf16.mxu0 %v362
    %455 = vmatpush1.bf16.msra.mxu0 %v361
    %456 = vmatprep.subr.bf16.mxu0 %v366
    %457 = vmatpush1.bf16.msra.mxu0 %v365
    %458 = vmatprep.subr.bf16.mxu0 0
    %459 = vmatpush1.bf16.msra.mxu0 0
    %460 = vmatprep.subr.bf16.mxu0 0
    %461 = vmatpush1.bf16.msra.mxu0 0
    %462 = vmatprep.subr.bf16.mxu0 0
    %463 = vmatpush1.bf16.msra.mxu0 0
    %464 = vmatprep.subr.bf16.mxu0 0
    %465 = vmatpush1.bf16.msra.mxu0 0
    %466 = vmatprep.subr.bf16.mxu0 0
    %467 = vmatpush1.bf16.msra.mxu0 0
    %468 = vmatprep.subr.bf16.mxu0 0
    %469 = vmatpush1.bf16.msra.mxu0 0
    %470 = vmatprep.subr.bf16.mxu0 0
    %471 = vmatpush1.bf16.msra.mxu0 0
    %472 = vmatprep.subr.bf16.mxu0 0
    %473 = vmatpush1.bf16.msra.mxu0 0
    %474 = vmatprep.mubr.bf16.mxu0 0
    %475 = vmatmul.mubr.bf16.gmra.mrb[0].mxu0 %v237
    %v476 = vpop.f32.mrb[0].mxu0
    %v477 = vadd.f32 %v224, %v476
    %v478 = vpop.f32.mrb[0].mxu0
    %v479 = vadd.f32 %v228, %v478
    %v480 = vpop.f32.mrb[0].mxu0
    %v481 = vadd.f32 %v224, %v480
    %v482 = vpop.f32.mrb[0].mxu0
    %v483 = vadd.f32 %v228, %v482
    %484 = vdwg.mxu0
    %v485 = vmax.f32 %v434, 0.0
    %v486 = vmax.f32 %v436, 0.0
    %v487 = vmax.f32 %v477, 0.0
    %v488 = vmax.f32 %v479, 0.0
    %v489 = vmax.f32 %v438, 0.0
    %v490 = vmax.f32 %v440, 0.0
    %v491 = vmax.f32 %v481, 0.0
    %v492 = vmax.f32 %v483, 0.0
    %v493 = vpack.c.bf16 %v489, %v485
    %v494 = vpack.c.bf16 %v490, %v486
    %v495 = vpack.c.bf16 %v491, %v487
    %v496 = vpack.c.bf16 %v492, %v488
    %v497 = vld [vmem:[#allocation10] sm:$0xff]
    %v498 = vld [vmem:[#allocation10 + $0x8] sm:$0xff]
    %v499 = vld [vmem:[#allocation10 + $0x10] sm:$0xff]
    %v500 = vld [vmem:[#allocation10 + $0x18] sm:$0xff]
    %v501 = vld [vmem:[#allocation10 + $0x20] sm:$0xff]
    %v502 = vld [vmem:[#allocation10 + $0x28] sm:$0xff]
    %v503 = vld [vmem:[#allocation10 + $0x30] sm:$0xff]
    %v504 = vld [vmem:[#allocation10 + $0x38] sm:$0xff]
    %v505 = vld [vmem:[#allocation10 + $0x40] sm:$0xff]
    %v506 = vld [vmem:[#allocation10 + $0x48] sm:$0xff]
    %v507 = vld [vmem:[#allocation10 + $0x50] sm:$0xff]
    %v508 = vld [vmem:[#allocation10 + $0x58] sm:$0xff]
    %v509 = vld [vmem:[#allocation10 + $0x60] sm:$0xff]
    %v510 = vld [vmem:[#allocation10 + $0x68] sm:$0xff]
    %v511 = vld [vmem:[#allocation10 + $0x70] sm:$0xff]
    %v512 = vld [vmem:[#allocation10 + $0x78] sm:$0xff]
    %v513 = vld [vmem:[#allocation10 + $0x80] sm:$0xff]
    %v514 = vld [vmem:[#allocation10 + $0x88] sm:$0xff]
    %v515 = vld [vmem:[#allocation10 + $0x90] sm:$0xff]
    %v516 = vld [vmem:[#allocation10 + $0x98] sm:$0xff]
    %v517 = vld [vmem:[#allocation10 + $0xa0] sm:$0xff]
    %v518 = vld [vmem:[#allocation10 + $0xa8] sm:$0xff]
    %v519 = vld [vmem:[#allocation10 + $0xb0] sm:$0xff]
    %v520 = vld [vmem:[#allocation10 + $0xb8] sm:$0xff]
    %v521 = vld [vmem:[#allocation10 + $0xc0] sm:$0xff]
    %v522 = vld [vmem:[#allocation10 + $0xc8] sm:$0xff]
    %v523 = vld [vmem:[#allocation10 + $0xd0] sm:$0xff]
    %v524 = vld [vmem:[#allocation10 + $0xd8] sm:$0xff]
    %v525 = vld [vmem:[#allocation10 + $0xe0] sm:$0xff]
    %v526 = vld [vmem:[#allocation10 + $0xe8] sm:$0xff]
    %v527 = vld [vmem:[#allocation10 + $0xf0] sm:$0xff]
    %v528 = vld [vmem:[#allocation10 + $0xf8] sm:$0xff]
    %v529 = vld [vmem:[#allocation10 + $0x100] sm:$0xff]
    %v530 = vld [vmem:[#allocation10 + $0x108] sm:$0xff]
    %v531 = vld [vmem:[#allocation10 + $0x110] sm:$0xff]
    %v532 = vld [vmem:[#allocation10 + $0x118] sm:$0xff]
    %v533 = vld [vmem:[#allocation10 + $0x120] sm:$0xff]
    %v534 = vld [vmem:[#allocation10 + $0x128] sm:$0xff]
    %v535 = vld [vmem:[#allocation10 + $0x130] sm:$0xff]
    %v536 = vld [vmem:[#allocation10 + $0x138] sm:$0xff]
    %v537 = vld [vmem:[#allocation10 + $0x140] sm:$0xff]
    %v538 = vld [vmem:[#allocation10 + $0x148] sm:$0xff]
    %v539 = vld [vmem:[#allocation10 + $0x150] sm:$0xff]
    %v540 = vld [vmem:[#allocation10 + $0x158] sm:$0xff]
    %v541 = vld [vmem:[#allocation10 + $0x160] sm:$0xff]
    %v542 = vld [vmem:[#allocation10 + $0x168] sm:$0xff]
    %v543 = vld [vmem:[#allocation10 + $0x170] sm:$0xff]
    %v544 = vld [vmem:[#allocation10 + $0x178] sm:$0xff]
    %v545 = vld [vmem:[#allocation10 + $0x180] sm:$0xff]
    %v546 = vld [vmem:[#allocation10 + $0x188] sm:$0xff]
    %v547 = vld [vmem:[#allocation10 + $0x190] sm:$0xff]
    %v548 = vld [vmem:[#allocation10 + $0x198] sm:$0xff]
    %v549 = vld [vmem:[#allocation10 + $0x1a0] sm:$0xff]
    %v550 = vld [vmem:[#allocation10 + $0x1a8] sm:$0xff]
    %v551 = vld [vmem:[#allocation10 + $0x1b0] sm:$0xff]
    %v552 = vld [vmem:[#allocation10 + $0x1b8] sm:$0xff]
    %v553 = vld [vmem:[#allocation10 + $0x1c0] sm:$0xff]
    %v554 = vld [vmem:[#allocation10 + $0x1c8] sm:$0xff]
    %v555 = vld [vmem:[#allocation10 + $0x1d0] sm:$0xff]
    %v556 = vld [vmem:[#allocation10 + $0x1d8] sm:$0xff]
    %v557 = vld [vmem:[#allocation10 + $0x1e0] sm:$0xff]
    %v558 = vld [vmem:[#allocation10 + $0x1e8] sm:$0xff]
    %v559 = vld [vmem:[#allocation10 + $0x1f0] sm:$0xff]
    %v560 = vld [vmem:[#allocation10 + $0x1f8] sm:$0xff]
    %v561 = vld [vmem:[#allocation10 + $0x200] sm:$0xff]
    %v562 = vld [vmem:[#allocation10 + $0x208] sm:$0xff]
    %v563 = vld [vmem:[#allocation10 + $0x210] sm:$0xff]
    %v564 = vld [vmem:[#allocation10 + $0x218] sm:$0xff]
    %v565 = vld [vmem:[#allocation10 + $0x220] sm:$0xff]
    %v566 = vld [vmem:[#allocation10 + $0x228] sm:$0xff]
    %v567 = vld [vmem:[#allocation10 + $0x230] sm:$0xff]
    %v568 = vld [vmem:[#allocation10 + $0x238] sm:$0xff]
    %v569 = vld [vmem:[#allocation10 + $0x240] sm:$0xff]
    %v570 = vld [vmem:[#allocation10 + $0x248] sm:$0xff]
    %v571 = vld [vmem:[#allocation10 + $0x250] sm:$0xff]
    %v572 = vld [vmem:[#allocation10 + $0x258] sm:$0xff]
    %v573 = vld [vmem:[#allocation10 + $0x260] sm:$0xff]
    %v574 = vld [vmem:[#allocation10 + $0x268] sm:$0xff]
    %v575 = vld [vmem:[#allocation10 + $0x270] sm:$0xff]
    %v576 = vld [vmem:[#allocation10 + $0x278] sm:$0xff]
    %v577 = vld [vmem:[#allocation10 + $0x280] sm:$0xff]
    %v578 = vld [vmem:[#allocation10 + $0x288] sm:$0xff]
    %v579 = vld [vmem:[#allocation10 + $0x290] sm:$0xff]
    %v580 = vld [vmem:[#allocation10 + $0x298] sm:$0xff]
    %v581 = vld [vmem:[#allocation10 + $0x2a0] sm:$0xff]
    %v582 = vld [vmem:[#allocation10 + $0x2a8] sm:$0xff]
    %v583 = vld [vmem:[#allocation10 + $0x2b0] sm:$0xff]
    %v584 = vld [vmem:[#allocation10 + $0x2b8] sm:$0xff]
    %v585 = vld [vmem:[#allocation10 + $0x2c0] sm:$0xff]
    %v586 = vld [vmem:[#allocation10 + $0x2c8] sm:$0xff]
    %v587 = vld [vmem:[#allocation10 + $0x2d0] sm:$0xff]
    %v588 = vld [vmem:[#allocation10 + $0x2d8] sm:$0xff]
    %v589 = vld [vmem:[#allocation10 + $0x2e0] sm:$0xff]
    %v590 = vld [vmem:[#allocation10 + $0x2e8] sm:$0xff]
    %v591 = vld [vmem:[#allocation10 + $0x2f0] sm:$0xff]
    %v592 = vld [vmem:[#allocation10 + $0x2f8] sm:$0xff]
    %v593 = vld [vmem:[#allocation10 + $0x300] sm:$0xff]
    %v594 = vld [vmem:[#allocation10 + $0x308] sm:$0xff]
    %v595 = vld [vmem:[#allocation10 + $0x310] sm:$0xff]
    %v596 = vld [vmem:[#allocation10 + $0x318] sm:$0xff]
    %v597 = vld [vmem:[#allocation10 + $0x320] sm:$0xff]
    %v598 = vld [vmem:[#allocation10 + $0x328] sm:$0xff]
    %v599 = vld [vmem:[#allocation10 + $0x330] sm:$0xff]
    %v600 = vld [vmem:[#allocation10 + $0x338] sm:$0xff]
    %v601 = vld [vmem:[#allocation10 + $0x340] sm:$0xff]
    %v602 = vld [vmem:[#allocation10 + $0x348] sm:$0xff]
    %v603 = vld [vmem:[#allocation10 + $0x350] sm:$0xff]
    %v604 = vld [vmem:[#allocation10 + $0x358] sm:$0xff]
    %v605 = vld [vmem:[#allocation10 + $0x360] sm:$0xff]
    %v606 = vld [vmem:[#allocation10 + $0x368] sm:$0xff]
    %v607 = vld [vmem:[#allocation10 + $0x370] sm:$0xff]
    %v608 = vld [vmem:[#allocation10 + $0x378] sm:$0xff]
    %v609 = vld [vmem:[#allocation10 + $0x380] sm:$0xff]
    %v610 = vld [vmem:[#allocation10 + $0x388] sm:$0xff]
    %v611 = vld [vmem:[#allocation10 + $0x390] sm:$0xff]
    %v612 = vld [vmem:[#allocation10 + $0x398] sm:$0xff]
    %v613 = vld [vmem:[#allocation10 + $0x3a0] sm:$0xff]
    %v614 = vld [vmem:[#allocation10 + $0x3a8] sm:$0xff]
    %v615 = vld [vmem:[#allocation10 + $0x3b0] sm:$0xff]
    %v616 = vld [vmem:[#allocation10 + $0x3b8] sm:$0xff]
    %v617 = vld [vmem:[#allocation10 + $0x3c0] sm:$0xff]
    %v618 = vld [vmem:[#allocation10 + $0x3c8] sm:$0xff]
    %v619 = vld [vmem:[#allocation10 + $0x3d0] sm:$0xff]
    %v620 = vld [vmem:[#allocation10 + $0x3d8] sm:$0xff]
    %v621 = vld [vmem:[#allocation10 + $0x3e0] sm:$0xff]
    %v622 = vld [vmem:[#allocation10 + $0x3e8] sm:$0xff]
    %v623 = vld [vmem:[#allocation10 + $0x3f0] sm:$0xff]
    %v624 = vld [vmem:[#allocation10 + $0x3f8] sm:$0xff]
    %s625 = scalar_lea.vmem [#allocation7], 1
    %v626 = vld [vmem:[%s625] ss:$8 sm:$0xf]
    %v628 = vlaneseq
    %v629 = vshrl.u32 %v628, 7
    %v630 = vsub.s32 0, %v629
    %v631 = vrot.slane %v626, %v630
    %v632 = vlaneseq
    %v633 = vshrl.u32 %v632, 7
    %v634 = vsub.s32 1, %v633
    %v635 = vrot.slane %v626, %v634
    %v636 = vlaneseq
    %v637 = vshrl.u32 %v636, 7
    %v638 = vsub.s32 2, %v637
    %v639 = vrot.slane %v626, %v638
    %v640 = vlaneseq
    %v641 = vshrl.u32 %v640, 7
    %v642 = vsub.s32 3, %v641
    %v643 = vrot.slane %v626, %v642
    %v776 = vunpack.c.l.b16 %v497
    %v777 = vunpack.c.h.b16 %v497
    %v778 = vunpack.c.l.b16 %v498
    %v779 = vunpack.c.h.b16 %v498
    %v780 = vunpack.c.l.b16 %v499
    %v781 = vunpack.c.h.b16 %v499
    %v782 = vunpack.c.l.b16 %v500
    %v783 = vunpack.c.h.b16 %v500
    %v784 = vunpack.c.l.b16 %v501
    %v785 = vunpack.c.h.b16 %v501
    %v786 = vunpack.c.l.b16 %v502
    %v787 = vunpack.c.h.b16 %v502
    %v788 = vunpack.c.l.b16 %v503
    %v789 = vunpack.c.h.b16 %v503
    %v790 = vunpack.c.l.b16 %v504
    %v791 = vunpack.c.h.b16 %v504
    %v792 = vunpack.c.l.b16 %v505
    %v793 = vunpack.c.h.b16 %v505
    %v794 = vunpack.c.l.b16 %v506
    %v795 = vunpack.c.h.b16 %v506
    %v796 = vunpack.c.l.b16 %v507
    %v797 = vunpack.c.h.b16 %v507
    %v798 = vunpack.c.l.b16 %v508
    %v799 = vunpack.c.h.b16 %v508
    %v800 = vunpack.c.l.b16 %v509
    %v801 = vunpack.c.h.b16 %v509
    %v802 = vunpack.c.l.b16 %v510
    %v803 = vunpack.c.h.b16 %v510
    %v804 = vunpack.c.l.b16 %v511
    %v805 = vunpack.c.h.b16 %v511
    %v806 = vunpack.c.l.b16 %v512
    %v807 = vunpack.c.h.b16 %v512
    %v808 = vunpack.c.l.b16 %v513
    %v809 = vunpack.c.h.b16 %v513
    %v810 = vunpack.c.l.b16 %v514
    %v811 = vunpack.c.h.b16 %v514
    %v812 = vunpack.c.l.b16 %v515
    %v813 = vunpack.c.h.b16 %v515
    %v814 = vunpack.c.l.b16 %v516
    %v815 = vunpack.c.h.b16 %v516
    %v816 = vunpack.c.l.b16 %v517
    %v817 = vunpack.c.h.b16 %v517
    %v818 = vunpack.c.l.b16 %v518
    %v819 = vunpack.c.h.b16 %v518
    %v820 = vunpack.c.l.b16 %v519
    %v821 = vunpack.c.h.b16 %v519
    %v822 = vunpack.c.l.b16 %v520
    %v823 = vunpack.c.h.b16 %v520
    %v824 = vunpack.c.l.b16 %v521
    %v825 = vunpack.c.h.b16 %v521
    %v826 = vunpack.c.l.b16 %v522
    %v827 = vunpack.c.h.b16 %v522
    %v828 = vunpack.c.l.b16 %v523
    %v829 = vunpack.c.h.b16 %v523
    %v830 = vunpack.c.l.b16 %v524
    %v831 = vunpack.c.h.b16 %v524
    %v832 = vunpack.c.l.b16 %v525
    %v833 = vunpack.c.h.b16 %v525
    %v834 = vunpack.c.l.b16 %v526
    %v835 = vunpack.c.h.b16 %v526
    %v836 = vunpack.c.l.b16 %v527
    %v837 = vunpack.c.h.b16 %v527
    %v838 = vunpack.c.l.b16 %v528
    %v839 = vunpack.c.h.b16 %v528
    %v840 = vunpack.c.l.b16 %v529
    %v841 = vunpack.c.h.b16 %v529
    %v842 = vunpack.c.l.b16 %v530
    %v843 = vunpack.c.h.b16 %v530
    %v844 = vunpack.c.l.b16 %v531
    %v845 = vunpack.c.h.b16 %v531
    %v846 = vunpack.c.l.b16 %v532
    %v847 = vunpack.c.h.b16 %v532
    %v848 = vunpack.c.l.b16 %v533
    %v849 = vunpack.c.h.b16 %v533
    %v850 = vunpack.c.l.b16 %v534
    %v851 = vunpack.c.h.b16 %v534
    %v852 = vunpack.c.l.b16 %v535
    %v853 = vunpack.c.h.b16 %v535
    %v854 = vunpack.c.l.b16 %v536
    %v855 = vunpack.c.h.b16 %v536
    %v856 = vunpack.c.l.b16 %v537
    %v857 = vunpack.c.h.b16 %v537
    %v858 = vunpack.c.l.b16 %v538
    %v859 = vunpack.c.h.b16 %v538
    %v860 = vunpack.c.l.b16 %v539
    %v861 = vunpack.c.h.b16 %v539
    %v862 = vunpack.c.l.b16 %v540
    %v863 = vunpack.c.h.b16 %v540
    %v864 = vunpack.c.l.b16 %v541
    %v865 = vunpack.c.h.b16 %v541
    %v866 = vunpack.c.l.b16 %v542
    %v867 = vunpack.c.h.b16 %v542
    %v868 = vunpack.c.l.b16 %v543
    %v869 = vunpack.c.h.b16 %v543
    %v870 = vunpack.c.l.b16 %v544
    %v871 = vunpack.c.h.b16 %v544
    %v872 = vunpack.c.l.b16 %v545
    %v873 = vunpack.c.h.b16 %v545
    %v874 = vunpack.c.l.b16 %v546
    %v875 = vunpack.c.h.b16 %v546
    %v876 = vunpack.c.l.b16 %v547
    %v877 = vunpack.c.h.b16 %v547
    %v878 = vunpack.c.l.b16 %v548
    %v879 = vunpack.c.h.b16 %v548
    %v880 = vunpack.c.l.b16 %v549
    %v881 = vunpack.c.h.b16 %v549
    %v882 = vunpack.c.l.b16 %v550
    %v883 = vunpack.c.h.b16 %v550
    %v884 = vunpack.c.l.b16 %v551
    %v885 = vunpack.c.h.b16 %v551
    %v886 = vunpack.c.l.b16 %v552
    %v887 = vunpack.c.h.b16 %v552
    %v888 = vunpack.c.l.b16 %v553
    %v889 = vunpack.c.h.b16 %v553
    %v890 = vunpack.c.l.b16 %v554
    %v891 = vunpack.c.h.b16 %v554
    %v892 = vunpack.c.l.b16 %v555
    %v893 = vunpack.c.h.b16 %v555
    %v894 = vunpack.c.l.b16 %v556
    %v895 = vunpack.c.h.b16 %v556
    %v896 = vunpack.c.l.b16 %v557
    %v897 = vunpack.c.h.b16 %v557
    %v898 = vunpack.c.l.b16 %v558
    %v899 = vunpack.c.h.b16 %v558
    %v900 = vunpack.c.l.b16 %v559
    %v901 = vunpack.c.h.b16 %v559
    %v902 = vunpack.c.l.b16 %v560
    %v903 = vunpack.c.h.b16 %v560
    %v904 = vunpack.c.l.b16 %v561
    %v905 = vunpack.c.h.b16 %v561
    %v906 = vunpack.c.l.b16 %v562
    %v907 = vunpack.c.h.b16 %v562
    %v908 = vunpack.c.l.b16 %v563
    %v909 = vunpack.c.h.b16 %v563
    %v910 = vunpack.c.l.b16 %v564
    %v911 = vunpack.c.h.b16 %v564
    %v912 = vunpack.c.l.b16 %v565
    %v913 = vunpack.c.h.b16 %v565
    %v914 = vunpack.c.l.b16 %v566
    %v915 = vunpack.c.h.b16 %v566
    %v916 = vunpack.c.l.b16 %v567
    %v917 = vunpack.c.h.b16 %v567
    %v918 = vunpack.c.l.b16 %v568
    %v919 = vunpack.c.h.b16 %v568
    %v920 = vunpack.c.l.b16 %v569
    %v921 = vunpack.c.h.b16 %v569
    %v922 = vunpack.c.l.b16 %v570
    %v923 = vunpack.c.h.b16 %v570
    %v924 = vunpack.c.l.b16 %v571
    %v925 = vunpack.c.h.b16 %v571
    %v926 = vunpack.c.l.b16 %v572
    %v927 = vunpack.c.h.b16 %v572
    %v928 = vunpack.c.l.b16 %v573
    %v929 = vunpack.c.h.b16 %v573
    %v930 = vunpack.c.l.b16 %v574
    %v931 = vunpack.c.h.b16 %v574
    %v932 = vunpack.c.l.b16 %v575
    %v933 = vunpack.c.h.b16 %v575
    %v934 = vunpack.c.l.b16 %v576
    %v935 = vunpack.c.h.b16 %v576
    %v936 = vunpack.c.l.b16 %v577
    %v937 = vunpack.c.h.b16 %v577
    %v938 = vunpack.c.l.b16 %v578
    %v939 = vunpack.c.h.b16 %v578
    %v940 = vunpack.c.l.b16 %v579
    %v941 = vunpack.c.h.b16 %v579
    %v942 = vunpack.c.l.b16 %v580
    %v943 = vunpack.c.h.b16 %v580
    %v944 = vunpack.c.l.b16 %v581
    %v945 = vunpack.c.h.b16 %v581
    %v946 = vunpack.c.l.b16 %v582
    %v947 = vunpack.c.h.b16 %v582
    %v948 = vunpack.c.l.b16 %v583
    %v949 = vunpack.c.h.b16 %v583
    %v950 = vunpack.c.l.b16 %v584
    %v951 = vunpack.c.h.b16 %v584
    %v952 = vunpack.c.l.b16 %v585
    %v953 = vunpack.c.h.b16 %v585
    %v954 = vunpack.c.l.b16 %v586
    %v955 = vunpack.c.h.b16 %v586
    %v956 = vunpack.c.l.b16 %v587
    %v957 = vunpack.c.h.b16 %v587
    %v958 = vunpack.c.l.b16 %v588
    %v959 = vunpack.c.h.b16 %v588
    %v960 = vunpack.c.l.b16 %v589
    %v961 = vunpack.c.h.b16 %v589
    %v962 = vunpack.c.l.b16 %v590
    %v963 = vunpack.c.h.b16 %v590
    %v964 = vunpack.c.l.b16 %v591
    %v965 = vunpack.c.h.b16 %v591
    %v966 = vunpack.c.l.b16 %v592
    %v967 = vunpack.c.h.b16 %v592
    %v968 = vunpack.c.l.b16 %v593
    %v969 = vunpack.c.h.b16 %v593
    %v970 = vunpack.c.l.b16 %v594
    %v971 = vunpack.c.h.b16 %v594
    %v972 = vunpack.c.l.b16 %v595
    %v973 = vunpack.c.h.b16 %v595
    %v974 = vunpack.c.l.b16 %v596
    %v975 = vunpack.c.h.b16 %v596
    %v976 = vunpack.c.l.b16 %v597
    %v977 = vunpack.c.h.b16 %v597
    %v978 = vunpack.c.l.b16 %v598
    %v979 = vunpack.c.h.b16 %v598
    %v980 = vunpack.c.l.b16 %v599
    %v981 = vunpack.c.h.b16 %v599
    %v982 = vunpack.c.l.b16 %v600
    %v983 = vunpack.c.h.b16 %v600
    %v984 = vunpack.c.l.b16 %v601
    %v985 = vunpack.c.h.b16 %v601
    %v986 = vunpack.c.l.b16 %v602
    %v987 = vunpack.c.h.b16 %v602
    %v988 = vunpack.c.l.b16 %v603
    %v989 = vunpack.c.h.b16 %v603
    %v990 = vunpack.c.l.b16 %v604
    %v991 = vunpack.c.h.b16 %v604
    %v992 = vunpack.c.l.b16 %v605
    %v993 = vunpack.c.h.b16 %v605
    %v994 = vunpack.c.l.b16 %v606
    %v995 = vunpack.c.h.b16 %v606
    %v996 = vunpack.c.l.b16 %v607
    %v997 = vunpack.c.h.b16 %v607
    %v998 = vunpack.c.l.b16 %v608
    %v999 = vunpack.c.h.b16 %v608
    %v1000 = vunpack.c.l.b16 %v609
    %v1001 = vunpack.c.h.b16 %v609
    %v1002 = vunpack.c.l.b16 %v610
    %v1003 = vunpack.c.h.b16 %v610
    %v1004 = vunpack.c.l.b16 %v611
    %v1005 = vunpack.c.h.b16 %v611
    %v1006 = vunpack.c.l.b16 %v612
    %v1007 = vunpack.c.h.b16 %v612
    %v1008 = vunpack.c.l.b16 %v613
    %v1009 = vunpack.c.h.b16 %v613
    %v1010 = vunpack.c.l.b16 %v614
    %v1011 = vunpack.c.h.b16 %v614
    %v1012 = vunpack.c.l.b16 %v615
    %v1013 = vunpack.c.h.b16 %v615
    %v1014 = vunpack.c.l.b16 %v616
    %v1015 = vunpack.c.h.b16 %v616
    %v1016 = vunpack.c.l.b16 %v617
    %v1017 = vunpack.c.h.b16 %v617
    %v1018 = vunpack.c.l.b16 %v618
    %v1019 = vunpack.c.h.b16 %v618
    %v1020 = vunpack.c.l.b16 %v619
    %v1021 = vunpack.c.h.b16 %v619
    %v1022 = vunpack.c.l.b16 %v620
    %v1023 = vunpack.c.h.b16 %v620
    %v1024 = vunpack.c.l.b16 %v621
    %v1025 = vunpack.c.h.b16 %v621
    %v1026 = vunpack.c.l.b16 %v622
    %v1027 = vunpack.c.h.b16 %v622
    %v1028 = vunpack.c.l.b16 %v623
    %v1029 = vunpack.c.h.b16 %v623
    %v1030 = vunpack.c.l.b16 %v624
    %v1031 = vunpack.c.h.b16 %v624
    %v1032 = vpack.c.b16 %v780, %v776
    %v1033 = vpack.c.b16 %v781, %v777
    %v1034 = vpack.c.b16 %v782, %v778
    %v1035 = vpack.c.b16 %v783, %v779
    %v1036 = vpack.c.b16 %v788, %v784
    %v1037 = vpack.c.b16 %v789, %v785
    %v1038 = vpack.c.b16 %v790, %v786
    %v1039 = vpack.c.b16 %v791, %v787
    %v1040 = vpack.c.b16 %v796, %v792
    %v1041 = vpack.c.b16 %v797, %v793
    %v1042 = vpack.c.b16 %v798, %v794
    %v1043 = vpack.c.b16 %v799, %v795
    %v1044 = vpack.c.b16 %v804, %v800
    %v1045 = vpack.c.b16 %v805, %v801
    %v1046 = vpack.c.b16 %v806, %v802
    %v1047 = vpack.c.b16 %v807, %v803
    %v1048 = vpack.c.b16 %v812, %v808
    %v1049 = vpack.c.b16 %v813, %v809
    %v1050 = vpack.c.b16 %v814, %v810
    %v1051 = vpack.c.b16 %v815, %v811
    %v1052 = vpack.c.b16 %v820, %v816
    %v1053 = vpack.c.b16 %v821, %v817
    %v1054 = vpack.c.b16 %v822, %v818
    %v1055 = vpack.c.b16 %v823, %v819
    %v1056 = vpack.c.b16 %v828, %v824
    %v1057 = vpack.c.b16 %v829, %v825
    %v1058 = vpack.c.b16 %v830, %v826
    %v1059 = vpack.c.b16 %v831, %v827
    %v1060 = vpack.c.b16 %v836, %v832
    %v1061 = vpack.c.b16 %v837, %v833
    %v1062 = vpack.c.b16 %v838, %v834
    %v1063 = vpack.c.b16 %v839, %v835
    %v1064 = vpack.c.b16 %v844, %v840
    %v1065 = vpack.c.b16 %v845, %v841
    %v1066 = vpack.c.b16 %v846, %v842
    %v1067 = vpack.c.b16 %v847, %v843
    %v1068 = vpack.c.b16 %v852, %v848
    %v1069 = vpack.c.b16 %v853, %v849
    %v1070 = vpack.c.b16 %v854, %v850
    %v1071 = vpack.c.b16 %v855, %v851
    %v1072 = vpack.c.b16 %v860, %v856
    %v1073 = vpack.c.b16 %v861, %v857
    %v1074 = vpack.c.b16 %v862, %v858
    %v1075 = vpack.c.b16 %v863, %v859
    %v1076 = vpack.c.b16 %v868, %v864
    %v1077 = vpack.c.b16 %v869, %v865
    %v1078 = vpack.c.b16 %v870, %v866
    %v1079 = vpack.c.b16 %v871, %v867
    %v1080 = vpack.c.b16 %v876, %v872
    %v1081 = vpack.c.b16 %v877, %v873
    %v1082 = vpack.c.b16 %v878, %v874
    %v1083 = vpack.c.b16 %v879, %v875
    %v1084 = vpack.c.b16 %v884, %v880
    %v1085 = vpack.c.b16 %v885, %v881
    %v1086 = vpack.c.b16 %v886, %v882
    %v1087 = vpack.c.b16 %v887, %v883
    %v1088 = vpack.c.b16 %v892, %v888
    %v1089 = vpack.c.b16 %v893, %v889
    %v1090 = vpack.c.b16 %v894, %v890
    %v1091 = vpack.c.b16 %v895, %v891
    %v1092 = vpack.c.b16 %v900, %v896
    %v1093 = vpack.c.b16 %v901, %v897
    %v1094 = vpack.c.b16 %v902, %v898
    %v1095 = vpack.c.b16 %v903, %v899
    %v1096 = vpack.c.b16 %v908, %v904
    %v1097 = vpack.c.b16 %v909, %v905
    %v1098 = vpack.c.b16 %v910, %v906
    %v1099 = vpack.c.b16 %v911, %v907
    %v1100 = vpack.c.b16 %v916, %v912
    %v1101 = vpack.c.b16 %v917, %v913
    %v1102 = vpack.c.b16 %v918, %v914
    %v1103 = vpack.c.b16 %v919, %v915
    %v1104 = vpack.c.b16 %v924, %v920
    %v1105 = vpack.c.b16 %v925, %v921
    %v1106 = vpack.c.b16 %v926, %v922
    %v1107 = vpack.c.b16 %v927, %v923
    %v1108 = vpack.c.b16 %v932, %v928
    %v1109 = vpack.c.b16 %v933, %v929
    %v1110 = vpack.c.b16 %v934, %v930
    %v1111 = vpack.c.b16 %v935, %v931
    %v1112 = vpack.c.b16 %v940, %v936
    %v1113 = vpack.c.b16 %v941, %v937
    %v1114 = vpack.c.b16 %v942, %v938
    %v1115 = vpack.c.b16 %v943, %v939
    %v1116 = vpack.c.b16 %v948, %v944
    %v1117 = vpack.c.b16 %v949, %v945
    %v1118 = vpack.c.b16 %v950, %v946
    %v1119 = vpack.c.b16 %v951, %v947
    %v1120 = vpack.c.b16 %v956, %v952
    %v1121 = vpack.c.b16 %v957, %v953
    %v1122 = vpack.c.b16 %v958, %v954
    %v1123 = vpack.c.b16 %v959, %v955
    %v1124 = vpack.c.b16 %v964, %v960
    %v1125 = vpack.c.b16 %v965, %v961
    %v1126 = vpack.c.b16 %v966, %v962
    %v1127 = vpack.c.b16 %v967, %v963
    %v1128 = vpack.c.b16 %v972, %v968
    %v1129 = vpack.c.b16 %v973, %v969
    %v1130 = vpack.c.b16 %v974, %v970
    %v1131 = vpack.c.b16 %v975, %v971
    %v1132 = vpack.c.b16 %v980, %v976
    %v1133 = vpack.c.b16 %v981, %v977
    %v1134 = vpack.c.b16 %v982, %v978
    %v1135 = vpack.c.b16 %v983, %v979
    %v1136 = vpack.c.b16 %v988, %v984
    %v1137 = vpack.c.b16 %v989, %v985
    %v1138 = vpack.c.b16 %v990, %v986
    %v1139 = vpack.c.b16 %v991, %v987
    %v1140 = vpack.c.b16 %v996, %v992
    %v1141 = vpack.c.b16 %v997, %v993
    %v1142 = vpack.c.b16 %v998, %v994
    %v1143 = vpack.c.b16 %v999, %v995
    %v1144 = vpack.c.b16 %v1004, %v1000
    %v1145 = vpack.c.b16 %v1005, %v1001
    %v1146 = vpack.c.b16 %v1006, %v1002
    %v1147 = vpack.c.b16 %v1007, %v1003
    %v1148 = vpack.c.b16 %v1012, %v1008
    %v1149 = vpack.c.b16 %v1013, %v1009
    %v1150 = vpack.c.b16 %v1014, %v1010
    %v1151 = vpack.c.b16 %v1015, %v1011
    %v1152 = vpack.c.b16 %v1020, %v1016
    %v1153 = vpack.c.b16 %v1021, %v1017
    %v1154 = vpack.c.b16 %v1022, %v1018
    %v1155 = vpack.c.b16 %v1023, %v1019
    %v1156 = vpack.c.b16 %v1028, %v1024
    %v1157 = vpack.c.b16 %v1029, %v1025
    %v1158 = vpack.c.b16 %v1030, %v1026
    %v1159 = vpack.c.b16 %v1031, %v1027
    %1288 = vmatprep.subr.bf16.mxu0 %v1033
    %1289 = vmatpush1.bf16.msra.mxu0 %v1032
    %1290 = vmatprep.subr.bf16.mxu0 %v1037
    %1291 = vmatpush1.bf16.msra.mxu0 %v1036
    %1292 = vmatprep.subr.bf16.mxu0 %v1041
    %1293 = vmatpush1.bf16.msra.mxu0 %v1040
    %1294 = vmatprep.subr.bf16.mxu0 %v1045
    %1295 = vmatpush1.bf16.msra.mxu0 %v1044
    %1296 = vmatprep.subr.bf16.mxu0 %v1049
    %1297 = vmatpush1.bf16.msra.mxu0 %v1048
    %1298 = vmatprep.subr.bf16.mxu0 %v1053
    %1299 = vmatpush1.bf16.msra.mxu0 %v1052
    %1300 = vmatprep.subr.bf16.mxu0 %v1057
    %1301 = vmatpush1.bf16.msra.mxu0 %v1056
    %1302 = vmatprep.subr.bf16.mxu0 %v1061
    %1303 = vmatpush1.bf16.msra.mxu0 %v1060
    %1304 = vmatprep.subr.bf16.mxu0 %v1065
    %1305 = vmatpush1.bf16.msra.mxu0 %v1064
    %1306 = vmatprep.subr.bf16.mxu0 %v1069
    %1307 = vmatpush1.bf16.msra.mxu0 %v1068
    %1308 = vmatprep.subr.bf16.mxu0 %v1073
    %1309 = vmatpush1.bf16.msra.mxu0 %v1072
    %1310 = vmatprep.subr.bf16.mxu0 %v1077
    %1311 = vmatpush1.bf16.msra.mxu0 %v1076
    %1312 = vmatprep.subr.bf16.mxu0 %v1081
    %1313 = vmatpush1.bf16.msra.mxu0 %v1080
    %1314 = vmatprep.subr.bf16.mxu0 %v1085
    %1315 = vmatpush1.bf16.msra.mxu0 %v1084
    %1316 = vmatprep.subr.bf16.mxu0 %v1089
    %1317 = vmatpush1.bf16.msra.mxu0 %v1088
    %1318 = vmatprep.subr.bf16.mxu0 %v1093
    %1319 = vmatpush1.bf16.msra.mxu0 %v1092
    %1320 = vmatprep.mubr.bf16.mxu0 %v494
    %1321 = vmatmul.mubr.bf16.gmra.mrb[0].mxu0 %v493
    %v1322 = vpop.f32.mrb[0].mxu0
    %v1323 = vadd.f32 %v631, %v1322
    %v1324 = vpop.f32.mrb[0].mxu0
    %v1325 = vadd.f32 %v635, %v1324
    %v1326 = vpop.f32.mrb[0].mxu0
    %v1327 = vadd.f32 %v631, %v1326
    %v1328 = vpop.f32.mrb[0].mxu0
    %v1329 = vadd.f32 %v635, %v1328
    %1330 = vdwg.mxu0
    %1331 = vmatprep.subr.bf16.mxu0 %v1097
    %1332 = vmatpush1.bf16.msra.mxu0 %v1096
    %1333 = vmatprep.subr.bf16.mxu0 %v1101
    %1334 = vmatpush1.bf16.msra.mxu0 %v1100
    %1335 = vmatprep.subr.bf16.mxu0 %v1105
    %1336 = vmatpush1.bf16.msra.mxu0 %v1104
    %1337 = vmatprep.subr.bf16.mxu0 %v1109
    %1338 = vmatpush1.bf16.msra.mxu0 %v1108
    %1339 = vmatprep.subr.bf16.mxu0 %v1113
    %1340 = vmatpush1.bf16.msra.mxu0 %v1112
    %1341 = vmatprep.subr.bf16.mxu0 %v1117
    %1342 = vmatpush1.bf16.msra.mxu0 %v1116
    %1343 = vmatprep.subr.bf16.mxu0 %v1121
    %1344 = vmatpush1.bf16.msra.mxu0 %v1120
    %1345 = vmatprep.subr.bf16.mxu0 %v1125
    %1346 = vmatpush1.bf16.msra.mxu0 %v1124
    %1347 = vmatprep.subr.bf16.mxu0 %v1129
    %1348 = vmatpush1.bf16.msra.mxu0 %v1128
    %1349 = vmatprep.subr.bf16.mxu0 %v1133
    %1350 = vmatpush1.bf16.msra.mxu0 %v1132
    %1351 = vmatprep.subr.bf16.mxu0 %v1137
    %1352 = vmatpush1.bf16.msra.mxu0 %v1136
    %1353 = vmatprep.subr.bf16.mxu0 %v1141
    %1354 = vmatpush1.bf16.msra.mxu0 %v1140
    %1355 = vmatprep.subr.bf16.mxu0 %v1145
    %1356 = vmatpush1.bf16.msra.mxu0 %v1144
    %1357 = vmatprep.subr.bf16.mxu0 %v1149
    %1358 = vmatpush1.bf16.msra.mxu0 %v1148
    %1359 = vmatprep.subr.bf16.mxu0 %v1153
    %1360 = vmatpush1.bf16.msra.mxu0 %v1152
    %1361 = vmatprep.subr.bf16.mxu0 %v1157
    %1362 = vmatpush1.bf16.msra.mxu0 %v1156
    %1363 = vmatprep.mubr.bf16.mxu0 %v496
    %1364 = vmatmul.mubr.bf16.gmra.mrb[0].mxu0 %v495
    %v1365 = vpop.f32.mrb[0].mxu0
    %v1366 = vadd.f32 %v1323, %v1365
    %v1367 = vpop.f32.mrb[0].mxu0
    %v1368 = vadd.f32 %v1325, %v1367
    %v1369 = vpop.f32.mrb[0].mxu0
    %v1370 = vadd.f32 %v1327, %v1369
    %v1371 = vpop.f32.mrb[0].mxu0
    %v1372 = vadd.f32 %v1329, %v1371
    %1373 = vdwg.mxu0
    %1374 = vmatprep.subr.bf16.mxu0 %v1035
    %1375 = vmatpush1.bf16.msra.mxu0 %v1034
    %1376 = vmatprep.subr.bf16.mxu0 %v1039
    %1377 = vmatpush1.bf16.msra.mxu0 %v1038
    %1378 = vmatprep.subr.bf16.mxu0 %v1043
    %1379 = vmatpush1.bf16.msra.mxu0 %v1042
    %1380 = vmatprep.subr.bf16.mxu0 %v1047
    %1381 = vmatpush1.bf16.msra.mxu0 %v1046
    %1382 = vmatprep.subr.bf16.mxu0 %v1051
    %1383 = vmatpush1.bf16.msra.mxu0 %v1050
    %1384 = vmatprep.subr.bf16.mxu0 %v1055
    %1385 = vmatpush1.bf16.msra.mxu0 %v1054
    %1386 = vmatprep.subr.bf16.mxu0 %v1059
    %1387 = vmatpush1.bf16.msra.mxu0 %v1058
    %1388 = vmatprep.subr.bf16.mxu0 %v1063
    %1389 = vmatpush1.bf16.msra.mxu0 %v1062
    %1390 = vmatprep.subr.bf16.mxu0 %v1067
    %1391 = vmatpush1.bf16.msra.mxu0 %v1066
    %1392 = vmatprep.subr.bf16.mxu0 %v1071
    %1393 = vmatpush1.bf16.msra.mxu0 %v1070
    %1394 = vmatprep.subr.bf16.mxu0 %v1075
    %1395 = vmatpush1.bf16.msra.mxu0 %v1074
    %1396 = vmatprep.subr.bf16.mxu0 %v1079
    %1397 = vmatpush1.bf16.msra.mxu0 %v1078
    %1398 = vmatprep.subr.bf16.mxu0 %v1083
    %1399 = vmatpush1.bf16.msra.mxu0 %v1082
    %1400 = vmatprep.subr.bf16.mxu0 %v1087
    %1401 = vmatpush1.bf16.msra.mxu0 %v1086
    %1402 = vmatprep.subr.bf16.mxu0 %v1091
    %1403 = vmatpush1.bf16.msra.mxu0 %v1090
    %1404 = vmatprep.subr.bf16.mxu0 %v1095
    %1405 = vmatpush1.bf16.msra.mxu0 %v1094
    %1406 = vmatprep.mubr.bf16.mxu0 %v494
    %1407 = vmatmul.mubr.bf16.gmra.mrb[0].mxu0 %v493
    %v1408 = vpop.f32.mrb[0].mxu0
    %v1409 = vadd.f32 %v639, %v1408
    %v1410 = vpop.f32.mrb[0].mxu0
    %v1411 = vadd.f32 %v643, %v1410
    %v1412 = vpop.f32.mrb[0].mxu0
    %v1413 = vadd.f32 %v639, %v1412
    %v1414 = vpop.f32.mrb[0].mxu0
    %v1415 = vadd.f32 %v643, %v1414
    %1416 = vdwg.mxu0
    %1417 = vmatprep.subr.bf16.mxu0 %v1099
    %1418 = vmatpush1.bf16.msra.mxu0 %v1098
    %1419 = vmatprep.subr.bf16.mxu0 %v1103
    %1420 = vmatpush1.bf16.msra.mxu0 %v1102
    %1421 = vmatprep.subr.bf16.mxu0 %v1107
    %1422 = vmatpush1.bf16.msra.mxu0 %v1106
    %1423 = vmatprep.subr.bf16.mxu0 %v1111
    %1424 = vmatpush1.bf16.msra.mxu0 %v1110
    %1425 = vmatprep.subr.bf16.mxu0 %v1115
    %1426 = vmatpush1.bf16.msra.mxu0 %v1114
    %1427 = vmatprep.subr.bf16.mxu0 %v1119
    %1428 = vmatpush1.bf16.msra.mxu0 %v1118
    %1429 = vmatprep.subr.bf16.mxu0 %v1123
    %1430 = vmatpush1.bf16.msra.mxu0 %v1122
    %1431 = vmatprep.subr.bf16.mxu0 %v1127
    %1432 = vmatpush1.bf16.msra.mxu0 %v1126
    %1433 = vmatprep.subr.bf16.mxu0 %v1131
    %1434 = vmatpush1.bf16.msra.mxu0 %v1130
    %1435 = vmatprep.subr.bf16.mxu0 %v1135
    %1436 = vmatpush1.bf16.msra.mxu0 %v1134
    %1437 = vmatprep.subr.bf16.mxu0 %v1139
    %1438 = vmatpush1.bf16.msra.mxu0 %v1138
    %1439 = vmatprep.subr.bf16.mxu0 %v1143
    %1440 = vmatpush1.bf16.msra.mxu0 %v1142
    %1441 = vmatprep.subr.bf16.mxu0 %v1147
    %1442 = vmatpush1.bf16.msra.mxu0 %v1146
    %1443 = vmatprep.subr.bf16.mxu0 %v1151
    %1444 = vmatpush1.bf16.msra.mxu0 %v1150
    %1445 = vmatprep.subr.bf16.mxu0 %v1155
    %1446 = vmatpush1.bf16.msra.mxu0 %v1154
    %1447 = vmatprep.subr.bf16.mxu0 %v1159
    %1448 = vmatpush1.bf16.msra.mxu0 %v1158
    %1449 = vmatprep.mubr.bf16.mxu0 %v496
    %1450 = vmatmul.mubr.bf16.gmra.mrb[0].mxu0 %v495
    %v1451 = vpop.f32.mrb[0].mxu0
    %v1452 = vadd.f32 %v1409, %v1451
    %v1453 = vpop.f32.mrb[0].mxu0
    %v1454 = vadd.f32 %v1411, %v1453
    %v1455 = vpop.f32.mrb[0].mxu0
    %v1456 = vadd.f32 %v1413, %v1455
    %v1457 = vpop.f32.mrb[0].mxu0
    %v1458 = vadd.f32 %v1415, %v1457
    %1459 = vdwg.mxu0
    %v1460 = vmax.f32 %v1366, 0.0
    %v1461 = vmax.f32 %v1368, 0.0
    %v1462 = vmax.f32 %v1452, 0.0
    %v1463 = vmax.f32 %v1454, 0.0
    %v1464 = vmax.f32 %v1370, 0.0
    %v1465 = vmax.f32 %v1372, 0.0
    %v1466 = vmax.f32 %v1456, 0.0
    %v1467 = vmax.f32 %v1458, 0.0
    %v1468 = vpack.c.bf16 %v1464, %v1460
    %v1469 = vpack.c.bf16 %v1465, %v1461
    %v1470 = vpack.c.bf16 %v1466, %v1462
    %v1471 = vpack.c.bf16 %v1467, %v1463
    %v1472 = vld [vmem:[#allocation11] sm:$0xff]
    %v1473 = vld [vmem:[#allocation11 + $0x8] sm:$0xff]
    %v1474 = vld [vmem:[#allocation11 + $0x10] sm:$0xff]
    %v1475 = vld [vmem:[#allocation11 + $0x18] sm:$0xff]
    %v1476 = vld [vmem:[#allocation11 + $0x20] sm:$0xff]
    %v1477 = vld [vmem:[#allocation11 + $0x28] sm:$0xff]
    %v1478 = vld [vmem:[#allocation11 + $0x30] sm:$0xff]
    %v1479 = vld [vmem:[#allocation11 + $0x38] sm:$0xff]
    %v1480 = vld [vmem:[#allocation11 + $0x40] sm:$0xff]
    %v1481 = vld [vmem:[#allocation11 + $0x48] sm:$0xff]
    %v1482 = vld [vmem:[#allocation11 + $0x50] sm:$0xff]
    %v1483 = vld [vmem:[#allocation11 + $0x58] sm:$0xff]
    %v1484 = vld [vmem:[#allocation11 + $0x60] sm:$0xff]
    %v1485 = vld [vmem:[#allocation11 + $0x68] sm:$0xff]
    %v1486 = vld [vmem:[#allocation11 + $0x70] sm:$0xff]
    %v1487 = vld [vmem:[#allocation11 + $0x78] sm:$0xff]
    %v1488 = vld [vmem:[#allocation11 + $0x80] sm:$0xff]
    %v1489 = vld [vmem:[#allocation11 + $0x88] sm:$0xff]
    %v1490 = vld [vmem:[#allocation11 + $0x90] sm:$0xff]
    %v1491 = vld [vmem:[#allocation11 + $0x98] sm:$0xff]
    %v1492 = vld [vmem:[#allocation11 + $0xa0] sm:$0xff]
    %v1493 = vld [vmem:[#allocation11 + $0xa8] sm:$0xff]
    %v1494 = vld [vmem:[#allocation11 + $0xb0] sm:$0xff]
    %v1495 = vld [vmem:[#allocation11 + $0xb8] sm:$0xff]
    %v1496 = vld [vmem:[#allocation11 + $0xc0] sm:$0xff]
    %v1497 = vld [vmem:[#allocation11 + $0xc8] sm:$0xff]
    %v1498 = vld [vmem:[#allocation11 + $0xd0] sm:$0xff]
    %v1499 = vld [vmem:[#allocation11 + $0xd8] sm:$0xff]
    %v1500 = vld [vmem:[#allocation11 + $0xe0] sm:$0xff]
    %v1501 = vld [vmem:[#allocation11 + $0xe8] sm:$0xff]
    %v1502 = vld [vmem:[#allocation11 + $0xf0] sm:$0xff]
    %v1503 = vld [vmem:[#allocation11 + $0xf8] sm:$0xff]
    %v1504 = vld [vmem:[#allocation11 + $0x100] sm:$0xff]
    %v1505 = vld [vmem:[#allocation11 + $0x108] sm:$0xff]
    %v1506 = vld [vmem:[#allocation11 + $0x110] sm:$0xff]
    %v1507 = vld [vmem:[#allocation11 + $0x118] sm:$0xff]
    %v1508 = vld [vmem:[#allocation11 + $0x120] sm:$0xff]
    %v1509 = vld [vmem:[#allocation11 + $0x128] sm:$0xff]
    %v1510 = vld [vmem:[#allocation11 + $0x130] sm:$0xff]
    %v1511 = vld [vmem:[#allocation11 + $0x138] sm:$0xff]
    %v1512 = vld [vmem:[#allocation11 + $0x140] sm:$0xff]
    %v1513 = vld [vmem:[#allocation11 + $0x148] sm:$0xff]
    %v1514 = vld [vmem:[#allocation11 + $0x150] sm:$0xff]
    %v1515 = vld [vmem:[#allocation11 + $0x158] sm:$0xff]
    %v1516 = vld [vmem:[#allocation11 + $0x160] sm:$0xff]
    %v1517 = vld [vmem:[#allocation11 + $0x168] sm:$0xff]
    %v1518 = vld [vmem:[#allocation11 + $0x170] sm:$0xff]
    %v1519 = vld [vmem:[#allocation11 + $0x178] sm:$0xff]
    %v1520 = vld [vmem:[#allocation11 + $0x180] sm:$0xff]
    %v1521 = vld [vmem:[#allocation11 + $0x188] sm:$0xff]
    %v1522 = vld [vmem:[#allocation11 + $0x190] sm:$0xff]
    %v1523 = vld [vmem:[#allocation11 + $0x198] sm:$0xff]
    %v1524 = vld [vmem:[#allocation11 + $0x1a0] sm:$0xff]
    %v1525 = vld [vmem:[#allocation11 + $0x1a8] sm:$0xff]
    %v1526 = vld [vmem:[#allocation11 + $0x1b0] sm:$0xff]
    %v1527 = vld [vmem:[#allocation11 + $0x1b8] sm:$0xff]
    %v1528 = vld [vmem:[#allocation11 + $0x1c0] sm:$0xff]
    %v1529 = vld [vmem:[#allocation11 + $0x1c8] sm:$0xff]
    %v1530 = vld [vmem:[#allocation11 + $0x1d0] sm:$0xff]
    %v1531 = vld [vmem:[#allocation11 + $0x1d8] sm:$0xff]
    %v1532 = vld [vmem:[#allocation11 + $0x1e0] sm:$0xff]
    %v1533 = vld [vmem:[#allocation11 + $0x1e8] sm:$0xff]
    %v1534 = vld [vmem:[#allocation11 + $0x1f0] sm:$0xff]
    %v1535 = vld [vmem:[#allocation11 + $0x1f8] sm:$0xff]
    %v1536 = vld [vmem:[#allocation11 + $0x200] sm:$0xff]
    %v1537 = vld [vmem:[#allocation11 + $0x208] sm:$0xff]
    %v1538 = vld [vmem:[#allocation11 + $0x210] sm:$0xff]
    %v1539 = vld [vmem:[#allocation11 + $0x218] sm:$0xff]
    %v1540 = vld [vmem:[#allocation11 + $0x220] sm:$0xff]
    %v1541 = vld [vmem:[#allocation11 + $0x228] sm:$0xff]
    %v1542 = vld [vmem:[#allocation11 + $0x230] sm:$0xff]
    %v1543 = vld [vmem:[#allocation11 + $0x238] sm:$0xff]
    %v1544 = vld [vmem:[#allocation11 + $0x240] sm:$0xff]
    %v1545 = vld [vmem:[#allocation11 + $0x248] sm:$0xff]
    %v1546 = vld [vmem:[#allocation11 + $0x250] sm:$0xff]
    %v1547 = vld [vmem:[#allocation11 + $0x258] sm:$0xff]
    %v1548 = vld [vmem:[#allocation11 + $0x260] sm:$0xff]
    %v1549 = vld [vmem:[#allocation11 + $0x268] sm:$0xff]
    %v1550 = vld [vmem:[#allocation11 + $0x270] sm:$0xff]
    %v1551 = vld [vmem:[#allocation11 + $0x278] sm:$0xff]
    %v1552 = vld [vmem:[#allocation11 + $0x280] sm:$0xff]
    %v1553 = vld [vmem:[#allocation11 + $0x288] sm:$0xff]
    %v1554 = vld [vmem:[#allocation11 + $0x290] sm:$0xff]
    %v1555 = vld [vmem:[#allocation11 + $0x298] sm:$0xff]
    %v1556 = vld [vmem:[#allocation11 + $0x2a0] sm:$0xff]
    %v1557 = vld [vmem:[#allocation11 + $0x2a8] sm:$0xff]
    %v1558 = vld [vmem:[#allocation11 + $0x2b0] sm:$0xff]
    %v1559 = vld [vmem:[#allocation11 + $0x2b8] sm:$0xff]
    %v1560 = vld [vmem:[#allocation11 + $0x2c0] sm:$0xff]
    %v1561 = vld [vmem:[#allocation11 + $0x2c8] sm:$0xff]
    %v1562 = vld [vmem:[#allocation11 + $0x2d0] sm:$0xff]
    %v1563 = vld [vmem:[#allocation11 + $0x2d8] sm:$0xff]
    %v1564 = vld [vmem:[#allocation11 + $0x2e0] sm:$0xff]
    %v1565 = vld [vmem:[#allocation11 + $0x2e8] sm:$0xff]
    %v1566 = vld [vmem:[#allocation11 + $0x2f0] sm:$0xff]
    %v1567 = vld [vmem:[#allocation11 + $0x2f8] sm:$0xff]
    %v1568 = vld [vmem:[#allocation11 + $0x300] sm:$0xff]
    %v1569 = vld [vmem:[#allocation11 + $0x308] sm:$0xff]
    %v1570 = vld [vmem:[#allocation11 + $0x310] sm:$0xff]
    %v1571 = vld [vmem:[#allocation11 + $0x318] sm:$0xff]
    %v1572 = vld [vmem:[#allocation11 + $0x320] sm:$0xff]
    %v1573 = vld [vmem:[#allocation11 + $0x328] sm:$0xff]
    %v1574 = vld [vmem:[#allocation11 + $0x330] sm:$0xff]
    %v1575 = vld [vmem:[#allocation11 + $0x338] sm:$0xff]
    %v1576 = vld [vmem:[#allocation11 + $0x340] sm:$0xff]
    %v1577 = vld [vmem:[#allocation11 + $0x348] sm:$0xff]
    %v1578 = vld [vmem:[#allocation11 + $0x350] sm:$0xff]
    %v1579 = vld [vmem:[#allocation11 + $0x358] sm:$0xff]
    %v1580 = vld [vmem:[#allocation11 + $0x360] sm:$0xff]
    %v1581 = vld [vmem:[#allocation11 + $0x368] sm:$0xff]
    %v1582 = vld [vmem:[#allocation11 + $0x370] sm:$0xff]
    %v1583 = vld [vmem:[#allocation11 + $0x378] sm:$0xff]
    %v1584 = vld [vmem:[#allocation11 + $0x380] sm:$0xff]
    %v1585 = vld [vmem:[#allocation11 + $0x388] sm:$0xff]
    %v1586 = vld [vmem:[#allocation11 + $0x390] sm:$0xff]
    %v1587 = vld [vmem:[#allocation11 + $0x398] sm:$0xff]
    %v1588 = vld [vmem:[#allocation11 + $0x3a0] sm:$0xff]
    %v1589 = vld [vmem:[#allocation11 + $0x3a8] sm:$0xff]
    %v1590 = vld [vmem:[#allocation11 + $0x3b0] sm:$0xff]
    %v1591 = vld [vmem:[#allocation11 + $0x3b8] sm:$0xff]
    %v1592 = vld [vmem:[#allocation11 + $0x3c0] sm:$0xff]
    %v1593 = vld [vmem:[#allocation11 + $0x3c8] sm:$0xff]
    %v1594 = vld [vmem:[#allocation11 + $0x3d0] sm:$0xff]
    %v1595 = vld [vmem:[#allocation11 + $0x3d8] sm:$0xff]
    %v1596 = vld [vmem:[#allocation11 + $0x3e0] sm:$0xff]
    %v1597 = vld [vmem:[#allocation11 + $0x3e8] sm:$0xff]
    %v1598 = vld [vmem:[#allocation11 + $0x3f0] sm:$0xff]
    %v1599 = vld [vmem:[#allocation11 + $0x3f8] sm:$0xff]
    %s1600 = scalar_lea.vmem [#allocation7], 2
    %v1601 = vld [vmem:[%s1600] ss:$8 sm:$0xf]
    %v1603 = vlaneseq
    %v1604 = vshrl.u32 %v1603, 7
    %v1605 = vsub.s32 0, %v1604
    %v1606 = vrot.slane %v1601, %v1605
    %v1607 = vlaneseq
    %v1608 = vshrl.u32 %v1607, 7
    %v1609 = vsub.s32 1, %v1608
    %v1610 = vrot.slane %v1601, %v1609
    %v1611 = vlaneseq
    %v1612 = vshrl.u32 %v1611, 7
    %v1613 = vsub.s32 2, %v1612
    %v1614 = vrot.slane %v1601, %v1613
    %v1615 = vlaneseq
    %v1616 = vshrl.u32 %v1615, 7
    %v1617 = vsub.s32 3, %v1616
    %v1618 = vrot.slane %v1601, %v1617
    %v1751 = vunpack.c.l.b16 %v1472
    %v1752 = vunpack.c.h.b16 %v1472
    %v1753 = vunpack.c.l.b16 %v1473
    %v1754 = vunpack.c.h.b16 %v1473
    %v1755 = vunpack.c.l.b16 %v1474
    %v1756 = vunpack.c.h.b16 %v1474
    %v1757 = vunpack.c.l.b16 %v1475
    %v1758 = vunpack.c.h.b16 %v1475
    %v1759 = vunpack.c.l.b16 %v1476
    %v1760 = vunpack.c.h.b16 %v1476
    %v1761 = vunpack.c.l.b16 %v1477
    %v1762 = vunpack.c.h.b16 %v1477
    %v1763 = vunpack.c.l.b16 %v1478
    %v1764 = vunpack.c.h.b16 %v1478
    %v1765 = vunpack.c.l.b16 %v1479
    %v1766 = vunpack.c.h.b16 %v1479
    %v1767 = vunpack.c.l.b16 %v1480
    %v1768 = vunpack.c.h.b16 %v1480
    %v1769 = vunpack.c.l.b16 %v1481
    %v1770 = vunpack.c.h.b16 %v1481
    %v1771 = vunpack.c.l.b16 %v1482
    %v1772 = vunpack.c.h.b16 %v1482
    %v1773 = vunpack.c.l.b16 %v1483
    %v1774 = vunpack.c.h.b16 %v1483
    %v1775 = vunpack.c.l.b16 %v1484
    %v1776 = vunpack.c.h.b16 %v1484
    %v1777 = vunpack.c.l.b16 %v1485
    %v1778 = vunpack.c.h.b16 %v1485
    %v1779 = vunpack.c.l.b16 %v1486
    %v1780 = vunpack.c.h.b16 %v1486
    %v1781 = vunpack.c.l.b16 %v1487
    %v1782 = vunpack.c.h.b16 %v1487
    %v1783 = vunpack.c.l.b16 %v1488
    %v1784 = vunpack.c.h.b16 %v1488
    %v1785 = vunpack.c.l.b16 %v1489
    %v1786 = vunpack.c.h.b16 %v1489
    %v1787 = vunpack.c.l.b16 %v1490
    %v1788 = vunpack.c.h.b16 %v1490
    %v1789 = vunpack.c.l.b16 %v1491
    %v1790 = vunpack.c.h.b16 %v1491
    %v1791 = vunpack.c.l.b16 %v1492
    %v1792 = vunpack.c.h.b16 %v1492
    %v1793 = vunpack.c.l.b16 %v1493
    %v1794 = vunpack.c.h.b16 %v1493
    %v1795 = vunpack.c.l.b16 %v1494
    %v1796 = vunpack.c.h.b16 %v1494
    %v1797 = vunpack.c.l.b16 %v1495
    %v1798 = vunpack.c.h.b16 %v1495
    %v1799 = vunpack.c.l.b16 %v1496
    %v1800 = vunpack.c.h.b16 %v1496
    %v1801 = vunpack.c.l.b16 %v1497
    %v1802 = vunpack.c.h.b16 %v1497
    %v1803 = vunpack.c.l.b16 %v1498
    %v1804 = vunpack.c.h.b16 %v1498
    %v1805 = vunpack.c.l.b16 %v1499
    %v1806 = vunpack.c.h.b16 %v1499
    %v1807 = vunpack.c.l.b16 %v1500
    %v1808 = vunpack.c.h.b16 %v1500
    %v1809 = vunpack.c.l.b16 %v1501
    %v1810 = vunpack.c.h.b16 %v1501
    %v1811 = vunpack.c.l.b16 %v1502
    %v1812 = vunpack.c.h.b16 %v1502
    %v1813 = vunpack.c.l.b16 %v1503
    %v1814 = vunpack.c.h.b16 %v1503
    %v1815 = vunpack.c.l.b16 %v1504
    %v1816 = vunpack.c.h.b16 %v1504
    %v1817 = vunpack.c.l.b16 %v1505
    %v1818 = vunpack.c.h.b16 %v1505
    %v1819 = vunpack.c.l.b16 %v1506
    %v1820 = vunpack.c.h.b16 %v1506
    %v1821 = vunpack.c.l.b16 %v1507
    %v1822 = vunpack.c.h.b16 %v1507
    %v1823 = vunpack.c.l.b16 %v1508
    %v1824 = vunpack.c.h.b16 %v1508
    %v1825 = vunpack.c.l.b16 %v1509
    %v1826 = vunpack.c.h.b16 %v1509
    %v1827 = vunpack.c.l.b16 %v1510
    %v1828 = vunpack.c.h.b16 %v1510
    %v1829 = vunpack.c.l.b16 %v1511
    %v1830 = vunpack.c.h.b16 %v1511
    %v1831 = vunpack.c.l.b16 %v1512
    %v1832 = vunpack.c.h.b16 %v1512
    %v1833 = vunpack.c.l.b16 %v1513
    %v1834 = vunpack.c.h.b16 %v1513
    %v1835 = vunpack.c.l.b16 %v1514
    %v1836 = vunpack.c.h.b16 %v1514
    %v1837 = vunpack.c.l.b16 %v1515
    %v1838 = vunpack.c.h.b16 %v1515
    %v1839 = vunpack.c.l.b16 %v1516
    %v1840 = vunpack.c.h.b16 %v1516
    %v1841 = vunpack.c.l.b16 %v1517
    %v1842 = vunpack.c.h.b16 %v1517
    %v1843 = vunpack.c.l.b16 %v1518
    %v1844 = vunpack.c.h.b16 %v1518
    %v1845 = vunpack.c.l.b16 %v1519
    %v1846 = vunpack.c.h.b16 %v1519
    %v1847 = vunpack.c.l.b16 %v1520
    %v1848 = vunpack.c.h.b16 %v1520
    %v1849 = vunpack.c.l.b16 %v1521
    %v1850 = vunpack.c.h.b16 %v1521
    %v1851 = vunpack.c.l.b16 %v1522
    %v1852 = vunpack.c.h.b16 %v1522
    %v1853 = vunpack.c.l.b16 %v1523
    %v1854 = vunpack.c.h.b16 %v1523
    %v1855 = vunpack.c.l.b16 %v1524
    %v1856 = vunpack.c.h.b16 %v1524
    %v1857 = vunpack.c.l.b16 %v1525
    %v1858 = vunpack.c.h.b16 %v1525
    %v1859 = vunpack.c.l.b16 %v1526
    %v1860 = vunpack.c.h.b16 %v1526
    %v1861 = vunpack.c.l.b16 %v1527
    %v1862 = vunpack.c.h.b16 %v1527
    %v1863 = vunpack.c.l.b16 %v1528
    %v1864 = vunpack.c.h.b16 %v1528
    %v1865 = vunpack.c.l.b16 %v1529
    %v1866 = vunpack.c.h.b16 %v1529
    %v1867 = vunpack.c.l.b16 %v1530
    %v1868 = vunpack.c.h.b16 %v1530
    %v1869 = vunpack.c.l.b16 %v1531
    %v1870 = vunpack.c.h.b16 %v1531
    %v1871 = vunpack.c.l.b16 %v1532
    %v1872 = vunpack.c.h.b16 %v1532
    %v1873 = vunpack.c.l.b16 %v1533
    %v1874 = vunpack.c.h.b16 %v1533
    %v1875 = vunpack.c.l.b16 %v1534
    %v1876 = vunpack.c.h.b16 %v1534
    %v1877 = vunpack.c.l.b16 %v1535
    %v1878 = vunpack.c.h.b16 %v1535
    %v1879 = vunpack.c.l.b16 %v1536
    %v1880 = vunpack.c.h.b16 %v1536
    %v1881 = vunpack.c.l.b16 %v1537
    %v1882 = vunpack.c.h.b16 %v1537
    %v1883 = vunpack.c.l.b16 %v1538
    %v1884 = vunpack.c.h.b16 %v1538
    %v1885 = vunpack.c.l.b16 %v1539
    %v1886 = vunpack.c.h.b16 %v1539
    %v1887 = vunpack.c.l.b16 %v1540
    %v1888 = vunpack.c.h.b16 %v1540
    %v1889 = vunpack.c.l.b16 %v1541
    %v1890 = vunpack.c.h.b16 %v1541
    %v1891 = vunpack.c.l.b16 %v1542
    %v1892 = vunpack.c.h.b16 %v1542
    %v1893 = vunpack.c.l.b16 %v1543
    %v1894 = vunpack.c.h.b16 %v1543
    %v1895 = vunpack.c.l.b16 %v1544
    %v1896 = vunpack.c.h.b16 %v1544
    %v1897 = vunpack.c.l.b16 %v1545
    %v1898 = vunpack.c.h.b16 %v1545
    %v1899 = vunpack.c.l.b16 %v1546
    %v1900 = vunpack.c.h.b16 %v1546
    %v1901 = vunpack.c.l.b16 %v1547
    %v1902 = vunpack.c.h.b16 %v1547
    %v1903 = vunpack.c.l.b16 %v1548
    %v1904 = vunpack.c.h.b16 %v1548
    %v1905 = vunpack.c.l.b16 %v1549
    %v1906 = vunpack.c.h.b16 %v1549
    %v1907 = vunpack.c.l.b16 %v1550
    %v1908 = vunpack.c.h.b16 %v1550
    %v1909 = vunpack.c.l.b16 %v1551
    %v1910 = vunpack.c.h.b16 %v1551
    %v1911 = vunpack.c.l.b16 %v1552
    %v1912 = vunpack.c.h.b16 %v1552
    %v1913 = vunpack.c.l.b16 %v1553
    %v1914 = vunpack.c.h.b16 %v1553
    %v1915 = vunpack.c.l.b16 %v1554
    %v1916 = vunpack.c.h.b16 %v1554
    %v1917 = vunpack.c.l.b16 %v1555
    %v1918 = vunpack.c.h.b16 %v1555
    %v1919 = vunpack.c.l.b16 %v1556
    %v1920 = vunpack.c.h.b16 %v1556
    %v1921 = vunpack.c.l.b16 %v1557
    %v1922 = vunpack.c.h.b16 %v1557
    %v1923 = vunpack.c.l.b16 %v1558
    %v1924 = vunpack.c.h.b16 %v1558
    %v1925 = vunpack.c.l.b16 %v1559
    %v1926 = vunpack.c.h.b16 %v1559
    %v1927 = vunpack.c.l.b16 %v1560
    %v1928 = vunpack.c.h.b16 %v1560
    %v1929 = vunpack.c.l.b16 %v1561
    %v1930 = vunpack.c.h.b16 %v1561
    %v1931 = vunpack.c.l.b16 %v1562
    %v1932 = vunpack.c.h.b16 %v1562
    %v1933 = vunpack.c.l.b16 %v1563
    %v1934 = vunpack.c.h.b16 %v1563
    %v1935 = vunpack.c.l.b16 %v1564
    %v1936 = vunpack.c.h.b16 %v1564
    %v1937 = vunpack.c.l.b16 %v1565
    %v1938 = vunpack.c.h.b16 %v1565
    %v1939 = vunpack.c.l.b16 %v1566
    %v1940 = vunpack.c.h.b16 %v1566
    %v1941 = vunpack.c.l.b16 %v1567
    %v1942 = vunpack.c.h.b16 %v1567
    %v1943 = vunpack.c.l.b16 %v1568
    %v1944 = vunpack.c.h.b16 %v1568
    %v1945 = vunpack.c.l.b16 %v1569
    %v1946 = vunpack.c.h.b16 %v1569
    %v1947 = vunpack.c.l.b16 %v1570
    %v1948 = vunpack.c.h.b16 %v1570
    %v1949 = vunpack.c.l.b16 %v1571
    %v1950 = vunpack.c.h.b16 %v1571
    %v1951 = vunpack.c.l.b16 %v1572
    %v1952 = vunpack.c.h.b16 %v1572
    %v1953 = vunpack.c.l.b16 %v1573
    %v1954 = vunpack.c.h.b16 %v1573
    %v1955 = vunpack.c.l.b16 %v1574
    %v1956 = vunpack.c.h.b16 %v1574
    %v1957 = vunpack.c.l.b16 %v1575
    %v1958 = vunpack.c.h.b16 %v1575
    %v1959 = vunpack.c.l.b16 %v1576
    %v1960 = vunpack.c.h.b16 %v1576
    %v1961 = vunpack.c.l.b16 %v1577
    %v1962 = vunpack.c.h.b16 %v1577
    %v1963 = vunpack.c.l.b16 %v1578
    %v1964 = vunpack.c.h.b16 %v1578
    %v1965 = vunpack.c.l.b16 %v1579
    %v1966 = vunpack.c.h.b16 %v1579
    %v1967 = vunpack.c.l.b16 %v1580
    %v1968 = vunpack.c.h.b16 %v1580
    %v1969 = vunpack.c.l.b16 %v1581
    %v1970 = vunpack.c.h.b16 %v1581
    %v1971 = vunpack.c.l.b16 %v1582
    %v1972 = vunpack.c.h.b16 %v1582
    %v1973 = vunpack.c.l.b16 %v1583
    %v1974 = vunpack.c.h.b16 %v1583
    %v1975 = vunpack.c.l.b16 %v1584
    %v1976 = vunpack.c.h.b16 %v1584
    %v1977 = vunpack.c.l.b16 %v1585
    %v1978 = vunpack.c.h.b16 %v1585
    %v1979 = vunpack.c.l.b16 %v1586
    %v1980 = vunpack.c.h.b16 %v1586
    %v1981 = vunpack.c.l.b16 %v1587
    %v1982 = vunpack.c.h.b16 %v1587
    %v1983 = vunpack.c.l.b16 %v1588
    %v1984 = vunpack.c.h.b16 %v1588
    %v1985 = vunpack.c.l.b16 %v1589
    %v1986 = vunpack.c.h.b16 %v1589
    %v1987 = vunpack.c.l.b16 %v1590
    %v1988 = vunpack.c.h.b16 %v1590
    %v1989 = vunpack.c.l.b16 %v1591
    %v1990 = vunpack.c.h.b16 %v1591
    %v1991 = vunpack.c.l.b16 %v1592
    %v1992 = vunpack.c.h.b16 %v1592
    %v1993 = vunpack.c.l.b16 %v1593
    %v1994 = vunpack.c.h.b16 %v1593
    %v1995 = vunpack.c.l.b16 %v1594
    %v1996 = vunpack.c.h.b16 %v1594
    %v1997 = vunpack.c.l.b16 %v1595
    %v1998 = vunpack.c.h.b16 %v1595
    %v1999 = vunpack.c.l.b16 %v1596
    %v2000 = vunpack.c.h.b16 %v1596
    %v2001 = vunpack.c.l.b16 %v1597
    %v2002 = vunpack.c.h.b16 %v1597
    %v2003 = vunpack.c.l.b16 %v1598
    %v2004 = vunpack.c.h.b16 %v1598
    %v2005 = vunpack.c.l.b16 %v1599
    %v2006 = vunpack.c.h.b16 %v1599
    %v2007 = vpack.c.b16 %v1755, %v1751
    %v2008 = vpack.c.b16 %v1756, %v1752
    %v2009 = vpack.c.b16 %v1757, %v1753
    %v2010 = vpack.c.b16 %v1758, %v1754
    %v2011 = vpack.c.b16 %v1763, %v1759
    %v2012 = vpack.c.b16 %v1764, %v1760
    %v2013 = vpack.c.b16 %v1765, %v1761
    %v2014 = vpack.c.b16 %v1766, %v1762
    %v2015 = vpack.c.b16 %v1771, %v1767
    %v2016 = vpack.c.b16 %v1772, %v1768
    %v2017 = vpack.c.b16 %v1773, %v1769
    %v2018 = vpack.c.b16 %v1774, %v1770
    %v2019 = vpack.c.b16 %v1779, %v1775
    %v2020 = vpack.c.b16 %v1780, %v1776
    %v2021 = vpack.c.b16 %v1781, %v1777
    %v2022 = vpack.c.b16 %v1782, %v1778
    %v2023 = vpack.c.b16 %v1787, %v1783
    %v2024 = vpack.c.b16 %v1788, %v1784
    %v2025 = vpack.c.b16 %v1789, %v1785
    %v2026 = vpack.c.b16 %v1790, %v1786
    %v2027 = vpack.c.b16 %v1795, %v1791
    %v2028 = vpack.c.b16 %v1796, %v1792
    %v2029 = vpack.c.b16 %v1797, %v1793
    %v2030 = vpack.c.b16 %v1798, %v1794
    %v2031 = vpack.c.b16 %v1803, %v1799
    %v2032 = vpack.c.b16 %v1804, %v1800
    %v2033 = vpack.c.b16 %v1805, %v1801
    %v2034 = vpack.c.b16 %v1806, %v1802
    %v2035 = vpack.c.b16 %v1811, %v1807
    %v2036 = vpack.c.b16 %v1812, %v1808
    %v2037 = vpack.c.b16 %v1813, %v1809
    %v2038 = vpack.c.b16 %v1814, %v1810
    %v2039 = vpack.c.b16 %v1819, %v1815
    %v2040 = vpack.c.b16 %v1820, %v1816
    %v2041 = vpack.c.b16 %v1821, %v1817
    %v2042 = vpack.c.b16 %v1822, %v1818
    %v2043 = vpack.c.b16 %v1827, %v1823
    %v2044 = vpack.c.b16 %v1828, %v1824
    %v2045 = vpack.c.b16 %v1829, %v1825
    %v2046 = vpack.c.b16 %v1830, %v1826
    %v2047 = vpack.c.b16 %v1835, %v1831
    %v2048 = vpack.c.b16 %v1836, %v1832
    %v2049 = vpack.c.b16 %v1837, %v1833
    %v2050 = vpack.c.b16 %v1838, %v1834
    %v2051 = vpack.c.b16 %v1843, %v1839
    %v2052 = vpack.c.b16 %v1844, %v1840
    %v2053 = vpack.c.b16 %v1845, %v1841
    %v2054 = vpack.c.b16 %v1846, %v1842
    %v2055 = vpack.c.b16 %v1851, %v1847
    %v2056 = vpack.c.b16 %v1852, %v1848
    %v2057 = vpack.c.b16 %v1853, %v1849
    %v2058 = vpack.c.b16 %v1854, %v1850
    %v2059 = vpack.c.b16 %v1859, %v1855
    %v2060 = vpack.c.b16 %v1860, %v1856
    %v2061 = vpack.c.b16 %v1861, %v1857
    %v2062 = vpack.c.b16 %v1862, %v1858
    %v2063 = vpack.c.b16 %v1867, %v1863
    %v2064 = vpack.c.b16 %v1868, %v1864
    %v2065 = vpack.c.b16 %v1869, %v1865
    %v2066 = vpack.c.b16 %v1870, %v1866
    %v2067 = vpack.c.b16 %v1875, %v1871
    %v2068 = vpack.c.b16 %v1876, %v1872
    %v2069 = vpack.c.b16 %v1877, %v1873
    %v2070 = vpack.c.b16 %v1878, %v1874
    %v2071 = vpack.c.b16 %v1883, %v1879
    %v2072 = vpack.c.b16 %v1884, %v1880
    %v2073 = vpack.c.b16 %v1885, %v1881
    %v2074 = vpack.c.b16 %v1886, %v1882
    %v2075 = vpack.c.b16 %v1891, %v1887
    %v2076 = vpack.c.b16 %v1892, %v1888
    %v2077 = vpack.c.b16 %v1893, %v1889
    %v2078 = vpack.c.b16 %v1894, %v1890
    %v2079 = vpack.c.b16 %v1899, %v1895
    %v2080 = vpack.c.b16 %v1900, %v1896
    %v2081 = vpack.c.b16 %v1901, %v1897
    %v2082 = vpack.c.b16 %v1902, %v1898
    %v2083 = vpack.c.b16 %v1907, %v1903
    %v2084 = vpack.c.b16 %v1908, %v1904
    %v2085 = vpack.c.b16 %v1909, %v1905
    %v2086 = vpack.c.b16 %v1910, %v1906
    %v2087 = vpack.c.b16 %v1915, %v1911
    %v2088 = vpack.c.b16 %v1916, %v1912
    %v2089 = vpack.c.b16 %v1917, %v1913
    %v2090 = vpack.c.b16 %v1918, %v1914
    %v2091 = vpack.c.b16 %v1923, %v1919
    %v2092 = vpack.c.b16 %v1924, %v1920
    %v2093 = vpack.c.b16 %v1925, %v1921
    %v2094 = vpack.c.b16 %v1926, %v1922
    %v2095 = vpack.c.b16 %v1931, %v1927
    %v2096 = vpack.c.b16 %v1932, %v1928
    %v2097 = vpack.c.b16 %v1933, %v1929
    %v2098 = vpack.c.b16 %v1934, %v1930
    %v2099 = vpack.c.b16 %v1939, %v1935
    %v2100 = vpack.c.b16 %v1940, %v1936
    %v2101 = vpack.c.b16 %v1941, %v1937
    %v2102 = vpack.c.b16 %v1942, %v1938
    %v2103 = vpack.c.b16 %v1947, %v1943
    %v2104 = vpack.c.b16 %v1948, %v1944
    %v2105 = vpack.c.b16 %v1949, %v1945
    %v2106 = vpack.c.b16 %v1950, %v1946
    %v2107 = vpack.c.b16 %v1955, %v1951
    %v2108 = vpack.c.b16 %v1956, %v1952
    %v2109 = vpack.c.b16 %v1957, %v1953
    %v2110 = vpack.c.b16 %v1958, %v1954
    %v2111 = vpack.c.b16 %v1963, %v1959
    %v2112 = vpack.c.b16 %v1964, %v1960
    %v2113 = vpack.c.b16 %v1965, %v1961
    %v2114 = vpack.c.b16 %v1966, %v1962
    %v2115 = vpack.c.b16 %v1971, %v1967
    %v2116 = vpack.c.b16 %v1972, %v1968
    %v2117 = vpack.c.b16 %v1973, %v1969
    %v2118 = vpack.c.b16 %v1974, %v1970
    %v2119 = vpack.c.b16 %v1979, %v1975
    %v2120 = vpack.c.b16 %v1980, %v1976
    %v2121 = vpack.c.b16 %v1981, %v1977
    %v2122 = vpack.c.b16 %v1982, %v1978
    %v2123 = vpack.c.b16 %v1987, %v1983
    %v2124 = vpack.c.b16 %v1988, %v1984
    %v2125 = vpack.c.b16 %v1989, %v1985
    %v2126 = vpack.c.b16 %v1990, %v1986
    %v2127 = vpack.c.b16 %v1995, %v1991
    %v2128 = vpack.c.b16 %v1996, %v1992
    %v2129 = vpack.c.b16 %v1997, %v1993
    %v2130 = vpack.c.b16 %v1998, %v1994
    %v2131 = vpack.c.b16 %v2003, %v1999
    %v2132 = vpack.c.b16 %v2004, %v2000
    %v2133 = vpack.c.b16 %v2005, %v2001
    %v2134 = vpack.c.b16 %v2006, %v2002
    %2263 = vmatprep.subr.bf16.mxu0 %v2008
    %2264 = vmatpush1.bf16.msra.mxu0 %v2007
    %2265 = vmatprep.subr.bf16.mxu0 %v2012
    %2266 = vmatpush1.bf16.msra.mxu0 %v2011
    %2267 = vmatprep.subr.bf16.mxu0 %v2016
    %2268 = vmatpush1.bf16.msra.mxu0 %v2015
    %2269 = vmatprep.subr.bf16.mxu0 %v2020
    %2270 = vmatpush1.bf16.msra.mxu0 %v2019
    %2271 = vmatprep.subr.bf16.mxu0 %v2024
    %2272 = vmatpush1.bf16.msra.mxu0 %v2023
    %2273 = vmatprep.subr.bf16.mxu0 %v2028
    %2274 = vmatpush1.bf16.msra.mxu0 %v2027
    %2275 = vmatprep.subr.bf16.mxu0 %v2032
    %2276 = vmatpush1.bf16.msra.mxu0 %v2031
    %2277 = vmatprep.subr.bf16.mxu0 %v2036
    %2278 = vmatpush1.bf16.msra.mxu0 %v2035
    %2279 = vmatprep.subr.bf16.mxu0 %v2040
    %2280 = vmatpush1.bf16.msra.mxu0 %v2039
    %2281 = vmatprep.subr.bf16.mxu0 %v2044
    %2282 = vmatpush1.bf16.msra.mxu0 %v2043
    %2283 = vmatprep.subr.bf16.mxu0 %v2048
    %2284 = vmatpush1.bf16.msra.mxu0 %v2047
    %2285 = vmatprep.subr.bf16.mxu0 %v2052
    %2286 = vmatpush1.bf16.msra.mxu0 %v2051
    %2287 = vmatprep.subr.bf16.mxu0 %v2056
    %2288 = vmatpush1.bf16.msra.mxu0 %v2055
    %2289 = vmatprep.subr.bf16.mxu0 %v2060
    %2290 = vmatpush1.bf16.msra.mxu0 %v2059
    %2291 = vmatprep.subr.bf16.mxu0 %v2064
    %2292 = vmatpush1.bf16.msra.mxu0 %v2063
    %2293 = vmatprep.subr.bf16.mxu0 %v2068
    %2294 = vmatpush1.bf16.msra.mxu0 %v2067
    %2295 = vmatprep.mubr.bf16.mxu0 %v1469
    %2296 = vmatmul.mubr.bf16.gmra.mrb[0].mxu0 %v1468
    %v2297 = vpop.f32.mrb[0].mxu0
    %v2298 = vadd.f32 %v1606, %v2297
    %v2299 = vpop.f32.mrb[0].mxu0
    %v2300 = vadd.f32 %v1610, %v2299
    %v2301 = vpop.f32.mrb[0].mxu0
    %v2302 = vadd.f32 %v1606, %v2301
    %v2303 = vpop.f32.mrb[0].mxu0
    %v2304 = vadd.f32 %v1610, %v2303
    %2305 = vdwg.mxu0
    %2306 = vmatprep.subr.bf16.mxu0 %v2072
    %2307 = vmatpush1.bf16.msra.mxu0 %v2071
    %2308 = vmatprep.subr.bf16.mxu0 %v2076
    %2309 = vmatpush1.bf16.msra.mxu0 %v2075
    %2310 = vmatprep.subr.bf16.mxu0 %v2080
    %2311 = vmatpush1.bf16.msra.mxu0 %v2079
    %2312 = vmatprep.subr.bf16.mxu0 %v2084
    %2313 = vmatpush1.bf16.msra.mxu0 %v2083
    %2314 = vmatprep.subr.bf16.mxu0 %v2088
    %2315 = vmatpush1.bf16.msra.mxu0 %v2087
    %2316 = vmatprep.subr.bf16.mxu0 %v2092
    %2317 = vmatpush1.bf16.msra.mxu0 %v2091
    %2318 = vmatprep.subr.bf16.mxu0 %v2096
    %2319 = vmatpush1.bf16.msra.mxu0 %v2095
    %2320 = vmatprep.subr.bf16.mxu0 %v2100
    %2321 = vmatpush1.bf16.msra.mxu0 %v2099
    %2322 = vmatprep.subr.bf16.mxu0 %v2104
    %2323 = vmatpush1.bf16.msra.mxu0 %v2103
    %2324 = vmatprep.subr.bf16.mxu0 %v2108
    %2325 = vmatpush1.bf16.msra.mxu0 %v2107
    %2326 = vmatprep.subr.bf16.mxu0 %v2112
    %2327 = vmatpush1.bf16.msra.mxu0 %v2111
    %2328 = vmatprep.subr.bf16.mxu0 %v2116
    %2329 = vmatpush1.bf16.msra.mxu0 %v2115
    %2330 = vmatprep.subr.bf16.mxu0 %v2120
    %2331 = vmatpush1.bf16.msra.mxu0 %v2119
    %2332 = vmatprep.subr.bf16.mxu0 %v2124
    %2333 = vmatpush1.bf16.msra.mxu0 %v2123
    %2334 = vmatprep.subr.bf16.mxu0 %v2128
    %2335 = vmatpush1.bf16.msra.mxu0 %v2127
    %2336 = vmatprep.subr.bf16.mxu0 %v2132
    %2337 = vmatpush1.bf16.msra.mxu0 %v2131
    %2338 = vmatprep.mubr.bf16.mxu0 %v1471
    %2339 = vmatmul.mubr.bf16.gmra.mrb[0].mxu0 %v1470
    %v2340 = vpop.f32.mrb[0].mxu0
    %v2341 = vadd.f32 %v2298, %v2340
    %v2342 = vpop.f32.mrb[0].mxu0
    %v2343 = vadd.f32 %v2300, %v2342
    %v2344 = vpop.f32.mrb[0].mxu0
    %v2345 = vadd.f32 %v2302, %v2344
    %v2346 = vpop.f32.mrb[0].mxu0
    %v2347 = vadd.f32 %v2304, %v2346
    %2348 = vdwg.mxu0
    %2349 = vmatprep.subr.bf16.mxu0 %v2010
    %2350 = vmatpush1.bf16.msra.mxu0 %v2009
    %2351 = vmatprep.subr.bf16.mxu0 %v2014
    %2352 = vmatpush1.bf16.msra.mxu0 %v2013
    %2353 = vmatprep.subr.bf16.mxu0 %v2018
    %2354 = vmatpush1.bf16.msra.mxu0 %v2017
    %2355 = vmatprep.subr.bf16.mxu0 %v2022
    %2356 = vmatpush1.bf16.msra.mxu0 %v2021
    %2357 = vmatprep.subr.bf16.mxu0 %v2026
    %2358 = vmatpush1.bf16.msra.mxu0 %v2025
    %2359 = vmatprep.subr.bf16.mxu0 %v2030
    %2360 = vmatpush1.bf16.msra.mxu0 %v2029
    %2361 = vmatprep.subr.bf16.mxu0 %v2034
    %2362 = vmatpush1.bf16.msra.mxu0 %v2033
    %2363 = vmatprep.subr.bf16.mxu0 %v2038
    %2364 = vmatpush1.bf16.msra.mxu0 %v2037
    %2365 = vmatprep.subr.bf16.mxu0 %v2042
    %2366 = vmatpush1.bf16.msra.mxu0 %v2041
    %2367 = vmatprep.subr.bf16.mxu0 %v2046
    %2368 = vmatpush1.bf16.msra.mxu0 %v2045
    %2369 = vmatprep.subr.bf16.mxu0 %v2050
    %2370 = vmatpush1.bf16.msra.mxu0 %v2049
    %2371 = vmatprep.subr.bf16.mxu0 %v2054
    %2372 = vmatpush1.bf16.msra.mxu0 %v2053
    %2373 = vmatprep.subr.bf16.mxu0 %v2058
    %2374 = vmatpush1.bf16.msra.mxu0 %v2057
    %2375 = vmatprep.subr.bf16.mxu0 %v2062
    %2376 = vmatpush1.bf16.msra.mxu0 %v2061
    %2377 = vmatprep.subr.bf16.mxu0 %v2066
    %2378 = vmatpush1.bf16.msra.mxu0 %v2065
    %2379 = vmatprep.subr.bf16.mxu0 %v2070
    %2380 = vmatpush1.bf16.msra.mxu0 %v2069
    %2381 = vmatprep.mubr.bf16.mxu0 %v1469
    %2382 = vmatmul.mubr.bf16.gmra.mrb[0].mxu0 %v1468
    %v2383 = vpop.f32.mrb[0].mxu0
    %v2384 = vadd.f32 %v1614, %v2383
    %v2385 = vpop.f32.mrb[0].mxu0
    %v2386 = vadd.f32 %v1618, %v2385
    %v2387 = vpop.f32.mrb[0].mxu0
    %v2388 = vadd.f32 %v1614, %v2387
    %v2389 = vpop.f32.mrb[0].mxu0
    %v2390 = vadd.f32 %v1618, %v2389
    %2391 = vdwg.mxu0
    %2392 = vmatprep.subr.bf16.mxu0 %v2074
    %2393 = vmatpush1.bf16.msra.mxu0 %v2073
    %2394 = vmatprep.subr.bf16.mxu0 %v2078
    %2395 = vmatpush1.bf16.msra.mxu0 %v2077
    %2396 = vmatprep.subr.bf16.mxu0 %v2082
    %2397 = vmatpush1.bf16.msra.mxu0 %v2081
    %2398 = vmatprep.subr.bf16.mxu0 %v2086
    %2399 = vmatpush1.bf16.msra.mxu0 %v2085
    %2400 = vmatprep.subr.bf16.mxu0 %v2090
    %2401 = vmatpush1.bf16.msra.mxu0 %v2089
    %2402 = vmatprep.subr.bf16.mxu0 %v2094
    %2403 = vmatpush1.bf16.msra.mxu0 %v2093
    %2404 = vmatprep.subr.bf16.mxu0 %v2098
    %2405 = vmatpush1.bf16.msra.mxu0 %v2097
    %2406 = vmatprep.subr.bf16.mxu0 %v2102
    %2407 = vmatpush1.bf16.msra.mxu0 %v2101
    %2408 = vmatprep.subr.bf16.mxu0 %v2106
    %2409 = vmatpush1.bf16.msra.mxu0 %v2105
    %2410 = vmatprep.subr.bf16.mxu0 %v2110
    %2411 = vmatpush1.bf16.msra.mxu0 %v2109
    %2412 = vmatprep.subr.bf16.mxu0 %v2114
    %2413 = vmatpush1.bf16.msra.mxu0 %v2113
    %2414 = vmatprep.subr.bf16.mxu0 %v2118
    %2415 = vmatpush1.bf16.msra.mxu0 %v2117
    %2416 = vmatprep.subr.bf16.mxu0 %v2122
    %2417 = vmatpush1.bf16.msra.mxu0 %v2121
    %2418 = vmatprep.subr.bf16.mxu0 %v2126
    %2419 = vmatpush1.bf16.msra.mxu0 %v2125
    %2420 = vmatprep.subr.bf16.mxu0 %v2130
    %2421 = vmatpush1.bf16.msra.mxu0 %v2129
    %2422 = vmatprep.subr.bf16.mxu0 %v2134
    %2423 = vmatpush1.bf16.msra.mxu0 %v2133
    %2424 = vmatprep.mubr.bf16.mxu0 %v1471
    %2425 = vmatmul.mubr.bf16.gmra.mrb[0].mxu0 %v1470
    %v2426 = vpop.f32.mrb[0].mxu0
    %v2427 = vadd.f32 %v2384, %v2426
    %v2428 = vpop.f32.mrb[0].mxu0
    %v2429 = vadd.f32 %v2386, %v2428
    %v2430 = vpop.f32.mrb[0].mxu0
    %v2431 = vadd.f32 %v2388, %v2430
    %v2432 = vpop.f32.mrb[0].mxu0
    %v2433 = vadd.f32 %v2390, %v2432
    %2434 = vdwg.mxu0
    %v2435 = vmax.f32 %v2341, 0.0
    %v2436 = vmax.f32 %v2343, 0.0
    %v2437 = vmax.f32 %v2427, 0.0
    %v2438 = vmax.f32 %v2429, 0.0
    %v2439 = vmax.f32 %v2345, 0.0
    %v2440 = vmax.f32 %v2347, 0.0
    %v2441 = vmax.f32 %v2431, 0.0
    %v2442 = vmax.f32 %v2433, 0.0
    %v2443 = vpack.c.bf16 %v2439, %v2435
    %v2444 = vpack.c.bf16 %v2440, %v2436
    %v2445 = vpack.c.bf16 %v2441, %v2437
    %v2446 = vpack.c.bf16 %v2442, %v2438
    %v2447 = vld [vmem:[#allocation13] sm:$0xff]
    %v2448 = vld [vmem:[#allocation13 + $0x8] sm:$0xff]
    %v2449 = vld [vmem:[#allocation13 + $0x10] sm:$0xff]
    %v2450 = vld [vmem:[#allocation13 + $0x18] sm:$0xff]
    %v2451 = vld [vmem:[#allocation13 + $0x20] sm:$0xff]
    %v2452 = vld [vmem:[#allocation13 + $0x28] sm:$0xff]
    %v2453 = vld [vmem:[#allocation13 + $0x30] sm:$0xff]
    %v2454 = vld [vmem:[#allocation13 + $0x38] sm:$0xff]
    %v2455 = vld [vmem:[#allocation13 + $0x40] sm:$0xff]
    %v2456 = vld [vmem:[#allocation13 + $0x48] sm:$0xff]
    %v2457 = vld [vmem:[#allocation13 + $0x50] sm:$0xff]
    %v2458 = vld [vmem:[#allocation13 + $0x58] sm:$0xff]
    %v2459 = vld [vmem:[#allocation13 + $0x60] sm:$0xff]
    %v2460 = vld [vmem:[#allocation13 + $0x68] sm:$0xff]
    %v2461 = vld [vmem:[#allocation13 + $0x70] sm:$0xff]
    %v2462 = vld [vmem:[#allocation13 + $0x78] sm:$0xff]
    %v2463 = vld [vmem:[#allocation13 + $0x80] sm:$0xff]
    %v2464 = vld [vmem:[#allocation13 + $0x88] sm:$0xff]
    %v2465 = vld [vmem:[#allocation13 + $0x90] sm:$0xff]
    %v2466 = vld [vmem:[#allocation13 + $0x98] sm:$0xff]
    %v2467 = vld [vmem:[#allocation13 + $0xa0] sm:$0xff]
    %v2468 = vld [vmem:[#allocation13 + $0xa8] sm:$0xff]
    %v2469 = vld [vmem:[#allocation13 + $0xb0] sm:$0xff]
    %v2470 = vld [vmem:[#allocation13 + $0xb8] sm:$0xff]
    %v2471 = vld [vmem:[#allocation13 + $0xc0] sm:$0xff]
    %v2472 = vld [vmem:[#allocation13 + $0xc8] sm:$0xff]
    %v2473 = vld [vmem:[#allocation13 + $0xd0] sm:$0xff]
    %v2474 = vld [vmem:[#allocation13 + $0xd8] sm:$0xff]
    %v2475 = vld [vmem:[#allocation13 + $0xe0] sm:$0xff]
    %v2476 = vld [vmem:[#allocation13 + $0xe8] sm:$0xff]
    %v2477 = vld [vmem:[#allocation13 + $0xf0] sm:$0xff]
    %v2478 = vld [vmem:[#allocation13 + $0xf8] sm:$0xff]
    %v2479 = vld [vmem:[#allocation13 + $0x100] sm:$0xff]
    %v2480 = vld [vmem:[#allocation13 + $0x108] sm:$0xff]
    %v2481 = vld [vmem:[#allocation13 + $0x110] sm:$0xff]
    %v2482 = vld [vmem:[#allocation13 + $0x118] sm:$0xff]
    %v2483 = vld [vmem:[#allocation13 + $0x120] sm:$0xff]
    %v2484 = vld [vmem:[#allocation13 + $0x128] sm:$0xff]
    %v2485 = vld [vmem:[#allocation13 + $0x130] sm:$0xff]
    %v2486 = vld [vmem:[#allocation13 + $0x138] sm:$0xff]
    %v2487 = vld [vmem:[#allocation13 + $0x140] sm:$0xff]
    %v2488 = vld [vmem:[#allocation13 + $0x148] sm:$0xff]
    %v2489 = vld [vmem:[#allocation13 + $0x150] sm:$0xff]
    %v2490 = vld [vmem:[#allocation13 + $0x158] sm:$0xff]
    %v2491 = vld [vmem:[#allocation13 + $0x160] sm:$0xff]
    %v2492 = vld [vmem:[#allocation13 + $0x168] sm:$0xff]
    %v2493 = vld [vmem:[#allocation13 + $0x170] sm:$0xff]
    %v2494 = vld [vmem:[#allocation13 + $0x178] sm:$0xff]
    %v2495 = vld [vmem:[#allocation13 + $0x180] sm:$0xff]
    %v2496 = vld [vmem:[#allocation13 + $0x188] sm:$0xff]
    %v2497 = vld [vmem:[#allocation13 + $0x190] sm:$0xff]
    %v2498 = vld [vmem:[#allocation13 + $0x198] sm:$0xff]
    %v2499 = vld [vmem:[#allocation13 + $0x1a0] sm:$0xff]
    %v2500 = vld [vmem:[#allocation13 + $0x1a8] sm:$0xff]
    %v2501 = vld [vmem:[#allocation13 + $0x1b0] sm:$0xff]
    %v2502 = vld [vmem:[#allocation13 + $0x1b8] sm:$0xff]
    %v2503 = vld [vmem:[#allocation13 + $0x1c0] sm:$0xff]
    %v2504 = vld [vmem:[#allocation13 + $0x1c8] sm:$0xff]
    %v2505 = vld [vmem:[#allocation13 + $0x1d0] sm:$0xff]
    %v2506 = vld [vmem:[#allocation13 + $0x1d8] sm:$0xff]
    %v2507 = vld [vmem:[#allocation13 + $0x1e0] sm:$0xff]
    %v2508 = vld [vmem:[#allocation13 + $0x1e8] sm:$0xff]
    %v2509 = vld [vmem:[#allocation13 + $0x1f0] sm:$0xff]
    %v2510 = vld [vmem:[#allocation13 + $0x1f8] sm:$0xff]
    %s2511 = scalar_lea.vmem [#allocation7], 3
    %v2512 = vld [vmem:[%s2511] ss:$8 sm:$0x3]
    %v2514 = vlaneseq
    %v2515 = vshrl.u32 %v2514, 7
    %v2516 = vsub.s32 0, %v2515
    %v2517 = vrot.slane %v2512, %v2516
    %v2518 = vlaneseq
    %v2519 = vshrl.u32 %v2518, 7
    %v2520 = vsub.s32 1, %v2519
    %v2521 = vrot.slane %v2512, %v2520
    %v2588 = vunpack.c.l.b16 %v2447
    %v2589 = vunpack.c.h.b16 %v2447
    %v2590 = vunpack.c.l.b16 %v2448
    %v2591 = vunpack.c.h.b16 %v2448
    %v2592 = vunpack.c.l.b16 %v2449
    %v2593 = vunpack.c.h.b16 %v2449
    %v2594 = vunpack.c.l.b16 %v2450
    %v2595 = vunpack.c.h.b16 %v2450
    %v2596 = vunpack.c.l.b16 %v2451
    %v2597 = vunpack.c.h.b16 %v2451
    %v2598 = vunpack.c.l.b16 %v2452
    %v2599 = vunpack.c.h.b16 %v2452
    %v2600 = vunpack.c.l.b16 %v2453
    %v2601 = vunpack.c.h.b16 %v2453
    %v2602 = vunpack.c.l.b16 %v2454
    %v2603 = vunpack.c.h.b16 %v2454
    %v2604 = vunpack.c.l.b16 %v2455
    %v2605 = vunpack.c.h.b16 %v2455
    %v2606 = vunpack.c.l.b16 %v2456
    %v2607 = vunpack.c.h.b16 %v2456
    %v2608 = vunpack.c.l.b16 %v2457
    %v2609 = vunpack.c.h.b16 %v2457
    %v2610 = vunpack.c.l.b16 %v2458
    %v2611 = vunpack.c.h.b16 %v2458
    %v2612 = vunpack.c.l.b16 %v2459
    %v2613 = vunpack.c.h.b16 %v2459
    %v2614 = vunpack.c.l.b16 %v2460
    %v2615 = vunpack.c.h.b16 %v2460
    %v2616 = vunpack.c.l.b16 %v2461
    %v2617 = vunpack.c.h.b16 %v2461
    %v2618 = vunpack.c.l.b16 %v2462
    %v2619 = vunpack.c.h.b16 %v2462
    %v2620 = vunpack.c.l.b16 %v2463
    %v2621 = vunpack.c.h.b16 %v2463
    %v2622 = vunpack.c.l.b16 %v2464
    %v2623 = vunpack.c.h.b16 %v2464
    %v2624 = vunpack.c.l.b16 %v2465
    %v2625 = vunpack.c.h.b16 %v2465
    %v2626 = vunpack.c.l.b16 %v2466
    %v2627 = vunpack.c.h.b16 %v2466
    %v2628 = vunpack.c.l.b16 %v2467
    %v2629 = vunpack.c.h.b16 %v2467
    %v2630 = vunpack.c.l.b16 %v2468
    %v2631 = vunpack.c.h.b16 %v2468
    %v2632 = vunpack.c.l.b16 %v2469
    %v2633 = vunpack.c.h.b16 %v2469
    %v2634 = vunpack.c.l.b16 %v2470
    %v2635 = vunpack.c.h.b16 %v2470
    %v2636 = vunpack.c.l.b16 %v2471
    %v2637 = vunpack.c.h.b16 %v2471
    %v2638 = vunpack.c.l.b16 %v2472
    %v2639 = vunpack.c.h.b16 %v2472
    %v2640 = vunpack.c.l.b16 %v2473
    %v2641 = vunpack.c.h.b16 %v2473
    %v2642 = vunpack.c.l.b16 %v2474
    %v2643 = vunpack.c.h.b16 %v2474
    %v2644 = vunpack.c.l.b16 %v2475
    %v2645 = vunpack.c.h.b16 %v2475
    %v2646 = vunpack.c.l.b16 %v2476
    %v2647 = vunpack.c.h.b16 %v2476
    %v2648 = vunpack.c.l.b16 %v2477
    %v2649 = vunpack.c.h.b16 %v2477
    %v2650 = vunpack.c.l.b16 %v2478
    %v2651 = vunpack.c.h.b16 %v2478
    %v2652 = vunpack.c.l.b16 %v2479
    %v2653 = vunpack.c.h.b16 %v2479
    %v2654 = vunpack.c.l.b16 %v2480
    %v2655 = vunpack.c.h.b16 %v2480
    %v2656 = vunpack.c.l.b16 %v2481
    %v2657 = vunpack.c.h.b16 %v2481
    %v2658 = vunpack.c.l.b16 %v2482
    %v2659 = vunpack.c.h.b16 %v2482
    %v2660 = vunpack.c.l.b16 %v2483
    %v2661 = vunpack.c.h.b16 %v2483
    %v2662 = vunpack.c.l.b16 %v2484
    %v2663 = vunpack.c.h.b16 %v2484
    %v2664 = vunpack.c.l.b16 %v2485
    %v2665 = vunpack.c.h.b16 %v2485
    %v2666 = vunpack.c.l.b16 %v2486
    %v2667 = vunpack.c.h.b16 %v2486
    %v2668 = vunpack.c.l.b16 %v2487
    %v2669 = vunpack.c.h.b16 %v2487
    %v2670 = vunpack.c.l.b16 %v2488
    %v2671 = vunpack.c.h.b16 %v2488
    %v2672 = vunpack.c.l.b16 %v2489
    %v2673 = vunpack.c.h.b16 %v2489
    %v2674 = vunpack.c.l.b16 %v2490
    %v2675 = vunpack.c.h.b16 %v2490
    %v2676 = vunpack.c.l.b16 %v2491
    %v2677 = vunpack.c.h.b16 %v2491
    %v2678 = vunpack.c.l.b16 %v2492
    %v2679 = vunpack.c.h.b16 %v2492
    %v2680 = vunpack.c.l.b16 %v2493
    %v2681 = vunpack.c.h.b16 %v2493
    %v2682 = vunpack.c.l.b16 %v2494
    %v2683 = vunpack.c.h.b16 %v2494
    %v2684 = vunpack.c.l.b16 %v2495
    %v2685 = vunpack.c.h.b16 %v2495
    %v2686 = vunpack.c.l.b16 %v2496
    %v2687 = vunpack.c.h.b16 %v2496
    %v2688 = vunpack.c.l.b16 %v2497
    %v2689 = vunpack.c.h.b16 %v2497
    %v2690 = vunpack.c.l.b16 %v2498
    %v2691 = vunpack.c.h.b16 %v2498
    %v2692 = vunpack.c.l.b16 %v2499
    %v2693 = vunpack.c.h.b16 %v2499
    %v2694 = vunpack.c.l.b16 %v2500
    %v2695 = vunpack.c.h.b16 %v2500
    %v2696 = vunpack.c.l.b16 %v2501
    %v2697 = vunpack.c.h.b16 %v2501
    %v2698 = vunpack.c.l.b16 %v2502
    %v2699 = vunpack.c.h.b16 %v2502
    %v2700 = vunpack.c.l.b16 %v2503
    %v2701 = vunpack.c.h.b16 %v2503
    %v2702 = vunpack.c.l.b16 %v2504
    %v2703 = vunpack.c.h.b16 %v2504
    %v2704 = vunpack.c.l.b16 %v2505
    %v2705 = vunpack.c.h.b16 %v2505
    %v2706 = vunpack.c.l.b16 %v2506
    %v2707 = vunpack.c.h.b16 %v2506
    %v2708 = vunpack.c.l.b16 %v2507
    %v2709 = vunpack.c.h.b16 %v2507
    %v2710 = vunpack.c.l.b16 %v2508
    %v2711 = vunpack.c.h.b16 %v2508
    %v2712 = vunpack.c.l.b16 %v2509
    %v2713 = vunpack.c.h.b16 %v2509
    %v2714 = vunpack.c.l.b16 %v2510
    %v2715 = vunpack.c.h.b16 %v2510
    %v2716 = vpack.c.b16 %v2590, %v2588
    %v2717 = vpack.c.b16 %v2591, %v2589
    %v2718 = vpack.c.b16 %v2594, %v2592
    %v2719 = vpack.c.b16 %v2595, %v2593
    %v2720 = vpack.c.b16 %v2598, %v2596
    %v2721 = vpack.c.b16 %v2599, %v2597
    %v2722 = vpack.c.b16 %v2602, %v2600
    %v2723 = vpack.c.b16 %v2603, %v2601
    %v2724 = vpack.c.b16 %v2606, %v2604
    %v2725 = vpack.c.b16 %v2607, %v2605
    %v2726 = vpack.c.b16 %v2610, %v2608
    %v2727 = vpack.c.b16 %v2611, %v2609
    %v2728 = vpack.c.b16 %v2614, %v2612
    %v2729 = vpack.c.b16 %v2615, %v2613
    %v2730 = vpack.c.b16 %v2618, %v2616
    %v2731 = vpack.c.b16 %v2619, %v2617
    %v2732 = vpack.c.b16 %v2622, %v2620
    %v2733 = vpack.c.b16 %v2623, %v2621
    %v2734 = vpack.c.b16 %v2626, %v2624
    %v2735 = vpack.c.b16 %v2627, %v2625
    %v2736 = vpack.c.b16 %v2630, %v2628
    %v2737 = vpack.c.b16 %v2631, %v2629
    %v2738 = vpack.c.b16 %v2634, %v2632
    %v2739 = vpack.c.b16 %v2635, %v2633
    %v2740 = vpack.c.b16 %v2638, %v2636
    %v2741 = vpack.c.b16 %v2639, %v2637
    %v2742 = vpack.c.b16 %v2642, %v2640
    %v2743 = vpack.c.b16 %v2643, %v2641
    %v2744 = vpack.c.b16 %v2646, %v2644
    %v2745 = vpack.c.b16 %v2647, %v2645
    %v2746 = vpack.c.b16 %v2650, %v2648
    %v2747 = vpack.c.b16 %v2651, %v2649
    %v2748 = vpack.c.b16 %v2654, %v2652
    %v2749 = vpack.c.b16 %v2655, %v2653
    %v2750 = vpack.c.b16 %v2658, %v2656
    %v2751 = vpack.c.b16 %v2659, %v2657
    %v2752 = vpack.c.b16 %v2662, %v2660
    %v2753 = vpack.c.b16 %v2663, %v2661
    %v2754 = vpack.c.b16 %v2666, %v2664
    %v2755 = vpack.c.b16 %v2667, %v2665
    %v2756 = vpack.c.b16 %v2670, %v2668
    %v2757 = vpack.c.b16 %v2671, %v2669
    %v2758 = vpack.c.b16 %v2674, %v2672
    %v2759 = vpack.c.b16 %v2675, %v2673
    %v2760 = vpack.c.b16 %v2678, %v2676
    %v2761 = vpack.c.b16 %v2679, %v2677
    %v2762 = vpack.c.b16 %v2682, %v2680
    %v2763 = vpack.c.b16 %v2683, %v2681
    %v2764 = vpack.c.b16 %v2686, %v2684
    %v2765 = vpack.c.b16 %v2687, %v2685
    %v2766 = vpack.c.b16 %v2690, %v2688
    %v2767 = vpack.c.b16 %v2691, %v2689
    %v2768 = vpack.c.b16 %v2694, %v2692
    %v2769 = vpack.c.b16 %v2695, %v2693
    %v2770 = vpack.c.b16 %v2698, %v2696
    %v2771 = vpack.c.b16 %v2699, %v2697
    %v2772 = vpack.c.b16 %v2702, %v2700
    %v2773 = vpack.c.b16 %v2703, %v2701
    %v2774 = vpack.c.b16 %v2706, %v2704
    %v2775 = vpack.c.b16 %v2707, %v2705
    %v2776 = vpack.c.b16 %v2710, %v2708
    %v2777 = vpack.c.b16 %v2711, %v2709
    %v2778 = vpack.c.b16 %v2714, %v2712
    %v2779 = vpack.c.b16 %v2715, %v2713
    %2844 = vmatprep.subr.bf16.mxu0 %v2717
    %2845 = vmatpush1.bf16.msra.mxu0 %v2716
    %2846 = vmatprep.subr.bf16.mxu0 %v2719
    %2847 = vmatpush1.bf16.msra.mxu0 %v2718
    %2848 = vmatprep.subr.bf16.mxu0 %v2721
    %2849 = vmatpush1.bf16.msra.mxu0 %v2720
    %2850 = vmatprep.subr.bf16.mxu0 %v2723
    %2851 = vmatpush1.bf16.msra.mxu0 %v2722
    %2852 = vmatprep.subr.bf16.mxu0 %v2725
    %2853 = vmatpush1.bf16.msra.mxu0 %v2724
    %2854 = vmatprep.subr.bf16.mxu0 %v2727
    %2855 = vmatpush1.bf16.msra.mxu0 %v2726
    %2856 = vmatprep.subr.bf16.mxu0 %v2729
    %2857 = vmatpush1.bf16.msra.mxu0 %v2728
    %2858 = vmatprep.subr.bf16.mxu0 %v2731
    %2859 = vmatpush1.bf16.msra.mxu0 %v2730
    %2860 = vmatprep.subr.bf16.mxu0 %v2733
    %2861 = vmatpush1.bf16.msra.mxu0 %v2732
    %2862 = vmatprep.subr.bf16.mxu0 %v2735
    %2863 = vmatpush1.bf16.msra.mxu0 %v2734
    %2864 = vmatprep.subr.bf16.mxu0 %v2737
    %2865 = vmatpush1.bf16.msra.mxu0 %v2736
    %2866 = vmatprep.subr.bf16.mxu0 %v2739
    %2867 = vmatpush1.bf16.msra.mxu0 %v2738
    %2868 = vmatprep.subr.bf16.mxu0 %v2741
    %2869 = vmatpush1.bf16.msra.mxu0 %v2740
    %2870 = vmatprep.subr.bf16.mxu0 %v2743
    %2871 = vmatpush1.bf16.msra.mxu0 %v2742
    %2872 = vmatprep.subr.bf16.mxu0 %v2745
    %2873 = vmatpush1.bf16.msra.mxu0 %v2744
    %2874 = vmatprep.subr.bf16.mxu0 %v2747
    %2875 = vmatpush1.bf16.msra.mxu0 %v2746
    %2876 = vmatprep.mubr.bf16.mxu0 %v2444
    %2877 = vmatmul.mubr.bf16.gmra.mrb[0].mxu0 %v2443
    %v2878 = vpop.f32.mrb[0].mxu0
    %v2879 = vadd.f32 %v2517, %v2878
    %v2880 = vpop.f32.mrb[0].mxu0
    %v2881 = vadd.f32 %v2521, %v2880
    %v2882 = vpop.f32.mrb[0].mxu0
    %v2883 = vadd.f32 %v2517, %v2882
    %v2884 = vpop.f32.mrb[0].mxu0
    %v2885 = vadd.f32 %v2521, %v2884
    %2886 = vdwg.mxu0
    %2887 = vmatprep.subr.bf16.mxu0 %v2749
    %2888 = vmatpush1.bf16.msra.mxu0 %v2748
    %2889 = vmatprep.subr.bf16.mxu0 %v2751
    %2890 = vmatpush1.bf16.msra.mxu0 %v2750
    %2891 = vmatprep.subr.bf16.mxu0 %v2753
    %2892 = vmatpush1.bf16.msra.mxu0 %v2752
    %2893 = vmatprep.subr.bf16.mxu0 %v2755
    %2894 = vmatpush1.bf16.msra.mxu0 %v2754
    %2895 = vmatprep.subr.bf16.mxu0 %v2757
    %2896 = vmatpush1.bf16.msra.mxu0 %v2756
    %2897 = vmatprep.subr.bf16.mxu0 %v2759
    %2898 = vmatpush1.bf16.msra.mxu0 %v2758
    %2899 = vmatprep.subr.bf16.mxu0 %v2761
    %2900 = vmatpush1.bf16.msra.mxu0 %v2760
    %2901 = vmatprep.subr.bf16.mxu0 %v2763
    %2902 = vmatpush1.bf16.msra.mxu0 %v2762
    %2903 = vmatprep.subr.bf16.mxu0 %v2765
    %2904 = vmatpush1.bf16.msra.mxu0 %v2764
    %2905 = vmatprep.subr.bf16.mxu0 %v2767
    %2906 = vmatpush1.bf16.msra.mxu0 %v2766
    %2907 = vmatprep.subr.bf16.mxu0 %v2769
    %2908 = vmatpush1.bf16.msra.mxu0 %v2768
    %2909 = vmatprep.subr.bf16.mxu0 %v2771
    %2910 = vmatpush1.bf16.msra.mxu0 %v2770
    %2911 = vmatprep.subr.bf16.mxu0 %v2773
    %2912 = vmatpush1.bf16.msra.mxu0 %v2772
    %2913 = vmatprep.subr.bf16.mxu0 %v2775
    %2914 = vmatpush1.bf16.msra.mxu0 %v2774
    %2915 = vmatprep.subr.bf16.mxu0 %v2777
    %2916 = vmatpush1.bf16.msra.mxu0 %v2776
    %2917 = vmatprep.subr.bf16.mxu0 %v2779
    %2918 = vmatpush1.bf16.msra.mxu0 %v2778
    %2919 = vmatprep.mubr.bf16.mxu0 %v2446
    %2920 = vmatmul.mubr.bf16.gmra.mrb[0].mxu0 %v2445
    %v2921 = vpop.f32.mrb[0].mxu0
    %v2922 = vadd.f32 %v2879, %v2921
    %v2923 = vpop.f32.mrb[0].mxu0
    %v2924 = vadd.f32 %v2881, %v2923
    %v2925 = vpop.f32.mrb[0].mxu0
    %v2926 = vadd.f32 %v2883, %v2925
    %v2927 = vpop.f32.mrb[0].mxu0
    %v2928 = vadd.f32 %v2885, %v2927
    %2929 = vdwg.mxu0
    %v2930 = vmul.f32 %v2924, 0.5
    %v2931 = vmul.f32 %v2928, 0.5
    %v2932 = vmul.f32 %v2930, 1.442695
    %v2933 = vpow.pop %v2932
    %v2934 = vmul.f32 %v2931, 1.442695
    %v2935 = vpow.pop %v2934
    %v2936 = vld [vmem:[#allocation5] sm:$0xff]
    %v2937 = vld [vmem:[#allocation5 + $0x8] sm:$0xff]
    %v2938 = vmul.f32 %v2936, %v2933
    %v2939 = vmul.f32 %v2937, %v2935
    %v2940 = vadd.f32 %v2938, %v2922
    %v2941 = vadd.f32 %v2939, %v2926
    %v2942 = vpack.c.bf16 %v2941, %v2940
    %v2943 = vld [vmem:[#allocation14] sm:$0xff]
    %v2944 = vld [vmem:[#allocation14 + $0x8] sm:$0xff]
    %v2945 = vld [vmem:[#allocation14 + $0x10] sm:$0xff]
    %v2946 = vld [vmem:[#allocation14 + $0x18] sm:$0xff]
    %v2947 = vld [vmem:[#allocation14 + $0x20] sm:$0xff]
    %v2948 = vld [vmem:[#allocation14 + $0x28] sm:$0xff]
    %v2949 = vld [vmem:[#allocation14 + $0x30] sm:$0xff]
    %v2950 = vld [vmem:[#allocation14 + $0x38] sm:$0xff]
    %v2951 = vld [vmem:[#allocation14 + $0x40] sm:$0xff]
    %v2952 = vld [vmem:[#allocation14 + $0x48] sm:$0xff]
    %v2953 = vld [vmem:[#allocation14 + $0x50] sm:$0xff]
    %v2954 = vld [vmem:[#allocation14 + $0x58] sm:$0xff]
    %v2955 = vld [vmem:[#allocation14 + $0x60] sm:$0xff]
    %v2956 = vld [vmem:[#allocation14 + $0x68] sm:$0xff]
    %v2957 = vld [vmem:[#allocation14 + $0x70] sm:$0xff]
    %v2958 = vld [vmem:[#allocation14 + $0x78] sm:$0xff]
    %v2959 = vld [vmem:[#allocation14 + $0x80] sm:$0xff]
    %v2960 = vld [vmem:[#allocation14 + $0x88] sm:$0xff]
    %v2961 = vld [vmem:[#allocation14 + $0x90] sm:$0xff]
    %v2962 = vld [vmem:[#allocation14 + $0x98] sm:$0xff]
    %v2963 = vld [vmem:[#allocation14 + $0xa0] sm:$0xff]
    %v2964 = vld [vmem:[#allocation14 + $0xa8] sm:$0xff]
    %v2965 = vld [vmem:[#allocation14 + $0xb0] sm:$0xff]
    %v2966 = vld [vmem:[#allocation14 + $0xb8] sm:$0xff]
    %v2967 = vld [vmem:[#allocation14 + $0xc0] sm:$0xff]
    %v2968 = vld [vmem:[#allocation14 + $0xc8] sm:$0xff]
    %v2969 = vld [vmem:[#allocation14 + $0xd0] sm:$0xff]
    %v2970 = vld [vmem:[#allocation14 + $0xd8] sm:$0xff]
    %v2971 = vld [vmem:[#allocation14 + $0xe0] sm:$0xff]
    %v2972 = vld [vmem:[#allocation14 + $0xe8] sm:$0xff]
    %v2973 = vld [vmem:[#allocation14 + $0xf0] sm:$0xff]
    %v2974 = vld [vmem:[#allocation14 + $0xf8] sm:$0xff]
    %s2975 = scalar_lea.vmem [#allocation7], 4
    %v2976 = vld [vmem:[%s2975] ss:$8 sm:$0xf]
    %v2978 = vlaneseq
    %v2979 = vshrl.u32 %v2978, 7
    %v2980 = vsub.s32 0, %v2979
    %v2981 = vrot.slane %v2976, %v2980
    %v2982 = vlaneseq
    %v2983 = vshrl.u32 %v2982, 7
    %v2984 = vsub.s32 1, %v2983
    %v2985 = vrot.slane %v2976, %v2984
    %v2986 = vlaneseq
    %v2987 = vshrl.u32 %v2986, 7
    %v2988 = vsub.s32 2, %v2987
    %v2989 = vrot.slane %v2976, %v2988
    %v2990 = vlaneseq
    %v2991 = vshrl.u32 %v2990, 7
    %v2992 = vsub.s32 3, %v2991
    %v2993 = vrot.slane %v2976, %v2992
    %v3030 = vunpack.c.l.b16 %v2943
    %v3031 = vunpack.c.h.b16 %v2943
    %v3032 = vunpack.c.l.b16 %v2944
    %v3033 = vunpack.c.h.b16 %v2944
    %v3034 = vunpack.c.l.b16 %v2945
    %v3035 = vunpack.c.h.b16 %v2945
    %v3036 = vunpack.c.l.b16 %v2946
    %v3037 = vunpack.c.h.b16 %v2946
    %v3038 = vunpack.c.l.b16 %v2947
    %v3039 = vunpack.c.h.b16 %v2947
    %v3040 = vunpack.c.l.b16 %v2948
    %v3041 = vunpack.c.h.b16 %v2948
    %v3042 = vunpack.c.l.b16 %v2949
    %v3043 = vunpack.c.h.b16 %v2949
    %v3044 = vunpack.c.l.b16 %v2950
    %v3045 = vunpack.c.h.b16 %v2950
    %v3046 = vunpack.c.l.b16 %v2951
    %v3047 = vunpack.c.h.b16 %v2951
    %v3048 = vunpack.c.l.b16 %v2952
    %v3049 = vunpack.c.h.b16 %v2952
    %v3050 = vunpack.c.l.b16 %v2953
    %v3051 = vunpack.c.h.b16 %v2953
    %v3052 = vunpack.c.l.b16 %v2954
    %v3053 = vunpack.c.h.b16 %v2954
    %v3054 = vunpack.c.l.b16 %v2955
    %v3055 = vunpack.c.h.b16 %v2955
    %v3056 = vunpack.c.l.b16 %v2956
    %v3057 = vunpack.c.h.b16 %v2956
    %v3058 = vunpack.c.l.b16 %v2957
    %v3059 = vunpack.c.h.b16 %v2957
    %v3060 = vunpack.c.l.b16 %v2958
    %v3061 = vunpack.c.h.b16 %v2958
    %v3062 = vunpack.c.l.b16 %v2959
    %v3063 = vunpack.c.h.b16 %v2959
    %v3064 = vunpack.c.l.b16 %v2960
    %v3065 = vunpack.c.h.b16 %v2960
    %v3066 = vunpack.c.l.b16 %v2961
    %v3067 = vunpack.c.h.b16 %v2961
    %v3068 = vunpack.c.l.b16 %v2962
    %v3069 = vunpack.c.h.b16 %v2962
    %v3070 = vunpack.c.l.b16 %v2963
    %v3071 = vunpack.c.h.b16 %v2963
    %v3072 = vunpack.c.l.b16 %v2964
    %v3073 = vunpack.c.h.b16 %v2964
    %v3074 = vunpack.c.l.b16 %v2965
    %v3075 = vunpack.c.h.b16 %v2965
    %v3076 = vunpack.c.l.b16 %v2966
    %v3077 = vunpack.c.h.b16 %v2966
    %v3078 = vunpack.c.l.b16 %v2967
    %v3079 = vunpack.c.h.b16 %v2967
    %v3080 = vunpack.c.l.b16 %v2968
    %v3081 = vunpack.c.h.b16 %v2968
    %v3082 = vunpack.c.l.b16 %v2969
    %v3083 = vunpack.c.h.b16 %v2969
    %v3084 = vunpack.c.l.b16 %v2970
    %v3085 = vunpack.c.h.b16 %v2970
    %v3086 = vunpack.c.l.b16 %v2971
    %v3087 = vunpack.c.h.b16 %v2971
    %v3088 = vunpack.c.l.b16 %v2972
    %v3089 = vunpack.c.h.b16 %v2972
    %v3090 = vunpack.c.l.b16 %v2973
    %v3091 = vunpack.c.h.b16 %v2973
    %v3092 = vunpack.c.l.b16 %v2974
    %v3093 = vunpack.c.h.b16 %v2974
    %v3094 = vpack.c.b16 %v3034, %v3030
    %v3095 = vpack.c.b16 %v3035, %v3031
    %v3096 = vpack.c.b16 %v3036, %v3032
    %v3097 = vpack.c.b16 %v3037, %v3033
    %v3098 = vpack.c.b16 %v3042, %v3038
    %v3099 = vpack.c.b16 %v3043, %v3039
    %v3100 = vpack.c.b16 %v3044, %v3040
    %v3101 = vpack.c.b16 %v3045, %v3041
    %v3102 = vpack.c.b16 %v3050, %v3046
    %v3103 = vpack.c.b16 %v3051, %v3047
    %v3104 = vpack.c.b16 %v3052, %v3048
    %v3105 = vpack.c.b16 %v3053, %v3049
    %v3106 = vpack.c.b16 %v3058, %v3054
    %v3107 = vpack.c.b16 %v3059, %v3055
    %v3108 = vpack.c.b16 %v3060, %v3056
    %v3109 = vpack.c.b16 %v3061, %v3057
    %v3110 = vpack.c.b16 %v3066, %v3062
    %v3111 = vpack.c.b16 %v3067, %v3063
    %v3112 = vpack.c.b16 %v3068, %v3064
    %v3113 = vpack.c.b16 %v3069, %v3065
    %v3114 = vpack.c.b16 %v3074, %v3070
    %v3115 = vpack.c.b16 %v3075, %v3071
    %v3116 = vpack.c.b16 %v3076, %v3072
    %v3117 = vpack.c.b16 %v3077, %v3073
    %v3118 = vpack.c.b16 %v3082, %v3078
    %v3119 = vpack.c.b16 %v3083, %v3079
    %v3120 = vpack.c.b16 %v3084, %v3080
    %v3121 = vpack.c.b16 %v3085, %v3081
    %v3122 = vpack.c.b16 %v3090, %v3086
    %v3123 = vpack.c.b16 %v3091, %v3087
    %v3124 = vpack.c.b16 %v3092, %v3088
    %v3125 = vpack.c.b16 %v3093, %v3089
    %3158 = vmatprep.subr.bf16.mxu0 %v3095
    %3159 = vmatpush1.bf16.msra.mxu0 %v3094
    %3160 = vmatprep.subr.bf16.mxu0 %v3099
    %3161 = vmatpush1.bf16.msra.mxu0 %v3098
    %3162 = vmatprep.subr.bf16.mxu0 %v3103
    %3163 = vmatpush1.bf16.msra.mxu0 %v3102
    %3164 = vmatprep.subr.bf16.mxu0 %v3107
    %3165 = vmatpush1.bf16.msra.mxu0 %v3106
    %3166 = vmatprep.subr.bf16.mxu0 %v3111
    %3167 = vmatpush1.bf16.msra.mxu0 %v3110
    %3168 = vmatprep.subr.bf16.mxu0 %v3115
    %3169 = vmatpush1.bf16.msra.mxu0 %v3114
    %3170 = vmatprep.subr.bf16.mxu0 %v3119
    %3171 = vmatpush1.bf16.msra.mxu0 %v3118
    %3172 = vmatprep.subr.bf16.mxu0 %v3123
    %3173 = vmatpush1.bf16.msra.mxu0 %v3122
    %3174 = vmatprep.subr.bf16.mxu0 0
    %3175 = vmatpush1.bf16.msra.mxu0 0
    %3176 = vmatprep.subr.bf16.mxu0 0
    %3177 = vmatpush1.bf16.msra.mxu0 0
    %3178 = vmatprep.subr.bf16.mxu0 0
    %3179 = vmatpush1.bf16.msra.mxu0 0
    %3180 = vmatprep.subr.bf16.mxu0 0
    %3181 = vmatpush1.bf16.msra.mxu0 0
    %3182 = vmatprep.subr.bf16.mxu0 0
    %3183 = vmatpush1.bf16.msra.mxu0 0
    %3184 = vmatprep.subr.bf16.mxu0 0
    %3185 = vmatpush1.bf16.msra.mxu0 0
    %3186 = vmatprep.subr.bf16.mxu0 0
    %3187 = vmatpush1.bf16.msra.mxu0 0
    %3188 = vmatprep.subr.bf16.mxu0 0
    %3189 = vmatpush1.bf16.msra.mxu0 0
    %3190 = vmatprep.mubr.bf16.mxu0 0
    %3191 = vmatmul.mubr.bf16.gmra.mrb[0].mxu0 %v2942
    %v3192 = vpop.f32.mrb[0].mxu0
    %v3193 = vadd.f32 %v2981, %v3192
    %v3194 = vpop.f32.mrb[0].mxu0
    %v3195 = vadd.f32 %v2985, %v3194
    %v3196 = vpop.f32.mrb[0].mxu0
    %v3197 = vadd.f32 %v2981, %v3196
    %v3198 = vpop.f32.mrb[0].mxu0
    %v3199 = vadd.f32 %v2985, %v3198
    %3200 = vdwg.mxu0
    %3201 = vmatprep.subr.bf16.mxu0 %v3097
    %3202 = vmatpush1.bf16.msra.mxu0 %v3096
    %3203 = vmatprep.subr.bf16.mxu0 %v3101
    %3204 = vmatpush1.bf16.msra.mxu0 %v3100
    %3205 = vmatprep.subr.bf16.mxu0 %v3105
    %3206 = vmatpush1.bf16.msra.mxu0 %v3104
    %3207 = vmatprep.subr.bf16.mxu0 %v3109
    %3208 = vmatpush1.bf16.msra.mxu0 %v3108
    %3209 = vmatprep.subr.bf16.mxu0 %v3113
    %3210 = vmatpush1.bf16.msra.mxu0 %v3112
    %3211 = vmatprep.subr.bf16.mxu0 %v3117
    %3212 = vmatpush1.bf16.msra.mxu0 %v3116
    %3213 = vmatprep.subr.bf16.mxu0 %v3121
    %3214 = vmatpush1.bf16.msra.mxu0 %v3120
    %3215 = vmatprep.subr.bf16.mxu0 %v3125
    %3216 = vmatpush1.bf16.msra.mxu0 %v3124
    %3217 = vmatprep.subr.bf16.mxu0 0
    %3218 = vmatpush1.bf16.msra.mxu0 0
    %3219 = vmatprep.subr.bf16.mxu0 0
    %3220 = vmatpush1.bf16.msra.mxu0 0
    %3221 = vmatprep.subr.bf16.mxu0 0
    %3222 = vmatpush1.bf16.msra.mxu0 0
    %3223 = vmatprep.subr.bf16.mxu0 0
    %3224 = vmatpush1.bf16.msra.mxu0 0
    %3225 = vmatprep.subr.bf16.mxu0 0
    %3226 = vmatpush1.bf16.msra.mxu0 0
    %3227 = vmatprep.subr.bf16.mxu0 0
    %3228 = vmatpush1.bf16.msra.mxu0 0
    %3229 = vmatprep.subr.bf16.mxu0 0
    %3230 = vmatpush1.bf16.msra.mxu0 0
    %3231 = vmatprep.subr.bf16.mxu0 0
    %3232 = vmatpush1.bf16.msra.mxu0 0
    %3233 = vmatprep.mubr.bf16.mxu0 0
    %3234 = vmatmul.mubr.bf16.gmra.mrb[0].mxu0 %v2942
    %v3235 = vpop.f32.mrb[0].mxu0
    %v3236 = vadd.f32 %v2989, %v3235
    %v3237 = vpop.f32.mrb[0].mxu0
    %v3238 = vadd.f32 %v2993, %v3237
    %v3239 = vpop.f32.mrb[0].mxu0
    %v3240 = vadd.f32 %v2989, %v3239
    %v3241 = vpop.f32.mrb[0].mxu0
    %v3242 = vadd.f32 %v2993, %v3241
    %3243 = vdwg.mxu0
    %v3244 = vmax.f32 %v3193, 0.0
    %v3245 = vmax.f32 %v3195, 0.0
    %v3246 = vmax.f32 %v3236, 0.0
    %v3247 = vmax.f32 %v3238, 0.0
    %v3248 = vmax.f32 %v3197, 0.0
    %v3249 = vmax.f32 %v3199, 0.0
    %v3250 = vmax.f32 %v3240, 0.0
    %v3251 = vmax.f32 %v3242, 0.0
    %v3252 = vpack.c.bf16 %v3248, %v3244
    %v3253 = vpack.c.bf16 %v3249, %v3245
    %v3254 = vpack.c.bf16 %v3250, %v3246
    %v3255 = vpack.c.bf16 %v3251, %v3247
    %v3256 = vld [vmem:[#allocation16] sm:$0xff]
    %v3257 = vld [vmem:[#allocation16 + $0x8] sm:$0xff]
    %v3258 = vld [vmem:[#allocation16 + $0x10] sm:$0xff]
    %v3259 = vld [vmem:[#allocation16 + $0x18] sm:$0xff]
    %v3260 = vld [vmem:[#allocation16 + $0x20] sm:$0xff]
    %v3261 = vld [vmem:[#allocation16 + $0x28] sm:$0xff]
    %v3262 = vld [vmem:[#allocation16 + $0x30] sm:$0xff]
    %v3263 = vld [vmem:[#allocation16 + $0x38] sm:$0xff]
    %v3264 = vld [vmem:[#allocation16 + $0x40] sm:$0xff]
    %v3265 = vld [vmem:[#allocation16 + $0x48] sm:$0xff]
    %v3266 = vld [vmem:[#allocation16 + $0x50] sm:$0xff]
    %v3267 = vld [vmem:[#allocation16 + $0x58] sm:$0xff]
    %v3268 = vld [vmem:[#allocation16 + $0x60] sm:$0xff]
    %v3269 = vld [vmem:[#allocation16 + $0x68] sm:$0xff]
    %v3270 = vld [vmem:[#allocation16 + $0x70] sm:$0xff]
    %v3271 = vld [vmem:[#allocation16 + $0x78] sm:$0xff]
    %v3272 = vld [vmem:[#allocation16 + $0x80] sm:$0xff]
    %v3273 = vld [vmem:[#allocation16 + $0x88] sm:$0xff]
    %v3274 = vld [vmem:[#allocation16 + $0x90] sm:$0xff]
    %v3275 = vld [vmem:[#allocation16 + $0x98] sm:$0xff]
    %v3276 = vld [vmem:[#allocation16 + $0xa0] sm:$0xff]
    %v3277 = vld [vmem:[#allocation16 + $0xa8] sm:$0xff]
    %v3278 = vld [vmem:[#allocation16 + $0xb0] sm:$0xff]
    %v3279 = vld [vmem:[#allocation16 + $0xb8] sm:$0xff]
    %v3280 = vld [vmem:[#allocation16 + $0xc0] sm:$0xff]
    %v3281 = vld [vmem:[#allocation16 + $0xc8] sm:$0xff]
    %v3282 = vld [vmem:[#allocation16 + $0xd0] sm:$0xff]
    %v3283 = vld [vmem:[#allocation16 + $0xd8] sm:$0xff]
    %v3284 = vld [vmem:[#allocation16 + $0xe0] sm:$0xff]
    %v3285 = vld [vmem:[#allocation16 + $0xe8] sm:$0xff]
    %v3286 = vld [vmem:[#allocation16 + $0xf0] sm:$0xff]
    %v3287 = vld [vmem:[#allocation16 + $0xf8] sm:$0xff]
    %v3288 = vld [vmem:[#allocation16 + $0x100] sm:$0xff]
    %v3289 = vld [vmem:[#allocation16 + $0x108] sm:$0xff]
    %v3290 = vld [vmem:[#allocation16 + $0x110] sm:$0xff]
    %v3291 = vld [vmem:[#allocation16 + $0x118] sm:$0xff]
    %v3292 = vld [vmem:[#allocation16 + $0x120] sm:$0xff]
    %v3293 = vld [vmem:[#allocation16 + $0x128] sm:$0xff]
    %v3294 = vld [vmem:[#allocation16 + $0x130] sm:$0xff]
    %v3295 = vld [vmem:[#allocation16 + $0x138] sm:$0xff]
    %v3296 = vld [vmem:[#allocation16 + $0x140] sm:$0xff]
    %v3297 = vld [vmem:[#allocation16 + $0x148] sm:$0xff]
    %v3298 = vld [vmem:[#allocation16 + $0x150] sm:$0xff]
    %v3299 = vld [vmem:[#allocation16 + $0x158] sm:$0xff]
    %v3300 = vld [vmem:[#allocation16 + $0x160] sm:$0xff]
    %v3301 = vld [vmem:[#allocation16 + $0x168] sm:$0xff]
    %v3302 = vld [vmem:[#allocation16 + $0x170] sm:$0xff]
    %v3303 = vld [vmem:[#allocation16 + $0x178] sm:$0xff]
    %v3304 = vld [vmem:[#allocation16 + $0x180] sm:$0xff]
    %v3305 = vld [vmem:[#allocation16 + $0x188] sm:$0xff]
    %v3306 = vld [vmem:[#allocation16 + $0x190] sm:$0xff]
    %v3307 = vld [vmem:[#allocation16 + $0x198] sm:$0xff]
    %v3308 = vld [vmem:[#allocation16 + $0x1a0] sm:$0xff]
    %v3309 = vld [vmem:[#allocation16 + $0x1a8] sm:$0xff]
    %v3310 = vld [vmem:[#allocation16 + $0x1b0] sm:$0xff]
    %v3311 = vld [vmem:[#allocation16 + $0x1b8] sm:$0xff]
    %v3312 = vld [vmem:[#allocation16 + $0x1c0] sm:$0xff]
    %v3313 = vld [vmem:[#allocation16 + $0x1c8] sm:$0xff]
    %v3314 = vld [vmem:[#allocation16 + $0x1d0] sm:$0xff]
    %v3315 = vld [vmem:[#allocation16 + $0x1d8] sm:$0xff]
    %v3316 = vld [vmem:[#allocation16 + $0x1e0] sm:$0xff]
    %v3317 = vld [vmem:[#allocation16 + $0x1e8] sm:$0xff]
    %v3318 = vld [vmem:[#allocation16 + $0x1f0] sm:$0xff]
    %v3319 = vld [vmem:[#allocation16 + $0x1f8] sm:$0xff]
    %v3320 = vld [vmem:[#allocation16 + $0x200] sm:$0xff]
    %v3321 = vld [vmem:[#allocation16 + $0x208] sm:$0xff]
    %v3322 = vld [vmem:[#allocation16 + $0x210] sm:$0xff]
    %v3323 = vld [vmem:[#allocation16 + $0x218] sm:$0xff]
    %v3324 = vld [vmem:[#allocation16 + $0x220] sm:$0xff]
    %v3325 = vld [vmem:[#allocation16 + $0x228] sm:$0xff]
    %v3326 = vld [vmem:[#allocation16 + $0x230] sm:$0xff]
    %v3327 = vld [vmem:[#allocation16 + $0x238] sm:$0xff]
    %v3328 = vld [vmem:[#allocation16 + $0x240] sm:$0xff]
    %v3329 = vld [vmem:[#allocation16 + $0x248] sm:$0xff]
    %v3330 = vld [vmem:[#allocation16 + $0x250] sm:$0xff]
    %v3331 = vld [vmem:[#allocation16 + $0x258] sm:$0xff]
    %v3332 = vld [vmem:[#allocation16 + $0x260] sm:$0xff]
    %v3333 = vld [vmem:[#allocation16 + $0x268] sm:$0xff]
    %v3334 = vld [vmem:[#allocation16 + $0x270] sm:$0xff]
    %v3335 = vld [vmem:[#allocation16 + $0x278] sm:$0xff]
    %v3336 = vld [vmem:[#allocation16 + $0x280] sm:$0xff]
    %v3337 = vld [vmem:[#allocation16 + $0x288] sm:$0xff]
    %v3338 = vld [vmem:[#allocation16 + $0x290] sm:$0xff]
    %v3339 = vld [vmem:[#allocation16 + $0x298] sm:$0xff]
    %v3340 = vld [vmem:[#allocation16 + $0x2a0] sm:$0xff]
    %v3341 = vld [vmem:[#allocation16 + $0x2a8] sm:$0xff]
    %v3342 = vld [vmem:[#allocation16 + $0x2b0] sm:$0xff]
    %v3343 = vld [vmem:[#allocation16 + $0x2b8] sm:$0xff]
    %v3344 = vld [vmem:[#allocation16 + $0x2c0] sm:$0xff]
    %v3345 = vld [vmem:[#allocation16 + $0x2c8] sm:$0xff]
    %v3346 = vld [vmem:[#allocation16 + $0x2d0] sm:$0xff]
    %v3347 = vld [vmem:[#allocation16 + $0x2d8] sm:$0xff]
    %v3348 = vld [vmem:[#allocation16 + $0x2e0] sm:$0xff]
    %v3349 = vld [vmem:[#allocation16 + $0x2e8] sm:$0xff]
    %v3350 = vld [vmem:[#allocation16 + $0x2f0] sm:$0xff]
    %v3351 = vld [vmem:[#allocation16 + $0x2f8] sm:$0xff]
    %v3352 = vld [vmem:[#allocation16 + $0x300] sm:$0xff]
    %v3353 = vld [vmem:[#allocation16 + $0x308] sm:$0xff]
    %v3354 = vld [vmem:[#allocation16 + $0x310] sm:$0xff]
    %v3355 = vld [vmem:[#allocation16 + $0x318] sm:$0xff]
    %v3356 = vld [vmem:[#allocation16 + $0x320] sm:$0xff]
    %v3357 = vld [vmem:[#allocation16 + $0x328] sm:$0xff]
    %v3358 = vld [vmem:[#allocation16 + $0x330] sm:$0xff]
    %v3359 = vld [vmem:[#allocation16 + $0x338] sm:$0xff]
    %v3360 = vld [vmem:[#allocation16 + $0x340] sm:$0xff]
    %v3361 = vld [vmem:[#allocation16 + $0x348] sm:$0xff]
    %v3362 = vld [vmem:[#allocation16 + $0x350] sm:$0xff]
    %v3363 = vld [vmem:[#allocation16 + $0x358] sm:$0xff]
    %v3364 = vld [vmem:[#allocation16 + $0x360] sm:$0xff]
    %v3365 = vld [vmem:[#allocation16 + $0x368] sm:$0xff]
    %v3366 = vld [vmem:[#allocation16 + $0x370] sm:$0xff]
    %v3367 = vld [vmem:[#allocation16 + $0x378] sm:$0xff]
    %v3368 = vld [vmem:[#allocation16 + $0x380] sm:$0xff]
    %v3369 = vld [vmem:[#allocation16 + $0x388] sm:$0xff]
    %v3370 = vld [vmem:[#allocation16 + $0x390] sm:$0xff]
    %v3371 = vld [vmem:[#allocation16 + $0x398] sm:$0xff]
    %v3372 = vld [vmem:[#allocation16 + $0x3a0] sm:$0xff]
    %v3373 = vld [vmem:[#allocation16 + $0x3a8] sm:$0xff]
    %v3374 = vld [vmem:[#allocation16 + $0x3b0] sm:$0xff]
    %v3375 = vld [vmem:[#allocation16 + $0x3b8] sm:$0xff]
    %v3376 = vld [vmem:[#allocation16 + $0x3c0] sm:$0xff]
    %v3377 = vld [vmem:[#allocation16 + $0x3c8] sm:$0xff]
    %v3378 = vld [vmem:[#allocation16 + $0x3d0] sm:$0xff]
    %v3379 = vld [vmem:[#allocation16 + $0x3d8] sm:$0xff]
    %v3380 = vld [vmem:[#allocation16 + $0x3e0] sm:$0xff]
    %v3381 = vld [vmem:[#allocation16 + $0x3e8] sm:$0xff]
    %v3382 = vld [vmem:[#allocation16 + $0x3f0] sm:$0xff]
    %v3383 = vld [vmem:[#allocation16 + $0x3f8] sm:$0xff]
    %s3384 = scalar_lea.vmem [#allocation7], 5
    %v3385 = vld [vmem:[%s3384] ss:$8 sm:$0xf]
    %v3387 = vlaneseq
    %v3388 = vshrl.u32 %v3387, 7
    %v3389 = vsub.s32 0, %v3388
    %v3390 = vrot.slane %v3385, %v3389
    %v3391 = vlaneseq
    %v3392 = vshrl.u32 %v3391, 7
    %v3393 = vsub.s32 1, %v3392
    %v3394 = vrot.slane %v3385, %v3393
    %v3395 = vlaneseq
    %v3396 = vshrl.u32 %v3395, 7
    %v3397 = vsub.s32 2, %v3396
    %v3398 = vrot.slane %v3385, %v3397
    %v3399 = vlaneseq
    %v3400 = vshrl.u32 %v3399, 7
    %v3401 = vsub.s32 3, %v3400
    %v3402 = vrot.slane %v3385, %v3401
    %v3535 = vunpack.c.l.b16 %v3256
    %v3536 = vunpack.c.h.b16 %v3256
    %v3537 = vunpack.c.l.b16 %v3257
    %v3538 = vunpack.c.h.b16 %v3257
    %v3539 = vunpack.c.l.b16 %v3258
    %v3540 = vunpack.c.h.b16 %v3258
    %v3541 = vunpack.c.l.b16 %v3259
    %v3542 = vunpack.c.h.b16 %v3259
    %v3543 = vunpack.c.l.b16 %v3260
    %v3544 = vunpack.c.h.b16 %v3260
    %v3545 = vunpack.c.l.b16 %v3261
    %v3546 = vunpack.c.h.b16 %v3261
    %v3547 = vunpack.c.l.b16 %v3262
    %v3548 = vunpack.c.h.b16 %v3262
    %v3549 = vunpack.c.l.b16 %v3263
    %v3550 = vunpack.c.h.b16 %v3263
    %v3551 = vunpack.c.l.b16 %v3264
    %v3552 = vunpack.c.h.b16 %v3264
    %v3553 = vunpack.c.l.b16 %v3265
    %v3554 = vunpack.c.h.b16 %v3265
    %v3555 = vunpack.c.l.b16 %v3266
    %v3556 = vunpack.c.h.b16 %v3266
    %v3557 = vunpack.c.l.b16 %v3267
    %v3558 = vunpack.c.h.b16 %v3267
    %v3559 = vunpack.c.l.b16 %v3268
    %v3560 = vunpack.c.h.b16 %v3268
    %v3561 = vunpack.c.l.b16 %v3269
    %v3562 = vunpack.c.h.b16 %v3269
    %v3563 = vunpack.c.l.b16 %v3270
    %v3564 = vunpack.c.h.b16 %v3270
    %v3565 = vunpack.c.l.b16 %v3271
    %v3566 = vunpack.c.h.b16 %v3271
    %v3567 = vunpack.c.l.b16 %v3272
    %v3568 = vunpack.c.h.b16 %v3272
    %v3569 = vunpack.c.l.b16 %v3273
    %v3570 = vunpack.c.h.b16 %v3273
    %v3571 = vunpack.c.l.b16 %v3274
    %v3572 = vunpack.c.h.b16 %v3274
    %v3573 = vunpack.c.l.b16 %v3275
    %v3574 = vunpack.c.h.b16 %v3275
    %v3575 = vunpack.c.l.b16 %v3276
    %v3576 = vunpack.c.h.b16 %v3276
    %v3577 = vunpack.c.l.b16 %v3277
    %v3578 = vunpack.c.h.b16 %v3277
    %v3579 = vunpack.c.l.b16 %v3278
    %v3580 = vunpack.c.h.b16 %v3278
    %v3581 = vunpack.c.l.b16 %v3279
    %v3582 = vunpack.c.h.b16 %v3279
    %v3583 = vunpack.c.l.b16 %v3280
    %v3584 = vunpack.c.h.b16 %v3280
    %v3585 = vunpack.c.l.b16 %v3281
    %v3586 = vunpack.c.h.b16 %v3281
    %v3587 = vunpack.c.l.b16 %v3282
    %v3588 = vunpack.c.h.b16 %v3282
    %v3589 = vunpack.c.l.b16 %v3283
    %v3590 = vunpack.c.h.b16 %v3283
    %v3591 = vunpack.c.l.b16 %v3284
    %v3592 = vunpack.c.h.b16 %v3284
    %v3593 = vunpack.c.l.b16 %v3285
    %v3594 = vunpack.c.h.b16 %v3285
    %v3595 = vunpack.c.l.b16 %v3286
    %v3596 = vunpack.c.h.b16 %v3286
    %v3597 = vunpack.c.l.b16 %v3287
    %v3598 = vunpack.c.h.b16 %v3287
    %v3599 = vunpack.c.l.b16 %v3288
    %v3600 = vunpack.c.h.b16 %v3288
    %v3601 = vunpack.c.l.b16 %v3289
    %v3602 = vunpack.c.h.b16 %v3289
    %v3603 = vunpack.c.l.b16 %v3290
    %v3604 = vunpack.c.h.b16 %v3290
    %v3605 = vunpack.c.l.b16 %v3291
    %v3606 = vunpack.c.h.b16 %v3291
    %v3607 = vunpack.c.l.b16 %v3292
    %v3608 = vunpack.c.h.b16 %v3292
    %v3609 = vunpack.c.l.b16 %v3293
    %v3610 = vunpack.c.h.b16 %v3293
    %v3611 = vunpack.c.l.b16 %v3294
    %v3612 = vunpack.c.h.b16 %v3294
    %v3613 = vunpack.c.l.b16 %v3295
    %v3614 = vunpack.c.h.b16 %v3295
    %v3615 = vunpack.c.l.b16 %v3296
    %v3616 = vunpack.c.h.b16 %v3296
    %v3617 = vunpack.c.l.b16 %v3297
    %v3618 = vunpack.c.h.b16 %v3297
    %v3619 = vunpack.c.l.b16 %v3298
    %v3620 = vunpack.c.h.b16 %v3298
    %v3621 = vunpack.c.l.b16 %v3299
    %v3622 = vunpack.c.h.b16 %v3299
    %v3623 = vunpack.c.l.b16 %v3300
    %v3624 = vunpack.c.h.b16 %v3300
    %v3625 = vunpack.c.l.b16 %v3301
    %v3626 = vunpack.c.h.b16 %v3301
    %v3627 = vunpack.c.l.b16 %v3302
    %v3628 = vunpack.c.h.b16 %v3302
    %v3629 = vunpack.c.l.b16 %v3303
    %v3630 = vunpack.c.h.b16 %v3303
    %v3631 = vunpack.c.l.b16 %v3304
    %v3632 = vunpack.c.h.b16 %v3304
    %v3633 = vunpack.c.l.b16 %v3305
    %v3634 = vunpack.c.h.b16 %v3305
    %v3635 = vunpack.c.l.b16 %v3306
    %v3636 = vunpack.c.h.b16 %v3306
    %v3637 = vunpack.c.l.b16 %v3307
    %v3638 = vunpack.c.h.b16 %v3307
    %v3639 = vunpack.c.l.b16 %v3308
    %v3640 = vunpack.c.h.b16 %v3308
    %v3641 = vunpack.c.l.b16 %v3309
    %v3642 = vunpack.c.h.b16 %v3309
    %v3643 = vunpack.c.l.b16 %v3310
    %v3644 = vunpack.c.h.b16 %v3310
    %v3645 = vunpack.c.l.b16 %v3311
    %v3646 = vunpack.c.h.b16 %v3311
    %v3647 = vunpack.c.l.b16 %v3312
    %v3648 = vunpack.c.h.b16 %v3312
    %v3649 = vunpack.c.l.b16 %v3313
    %v3650 = vunpack.c.h.b16 %v3313
    %v3651 = vunpack.c.l.b16 %v3314
    %v3652 = vunpack.c.h.b16 %v3314
    %v3653 = vunpack.c.l.b16 %v3315
    %v3654 = vunpack.c.h.b16 %v3315
    %v3655 = vunpack.c.l.b16 %v3316
    %v3656 = vunpack.c.h.b16 %v3316
    %v3657 = vunpack.c.l.b16 %v3317
    %v3658 = vunpack.c.h.b16 %v3317
    %v3659 = vunpack.c.l.b16 %v3318
    %v3660 = vunpack.c.h.b16 %v3318
    %v3661 = vunpack.c.l.b16 %v3319
    %v3662 = vunpack.c.h.b16 %v3319
    %v3663 = vunpack.c.l.b16 %v3320
    %v3664 = vunpack.c.h.b16 %v3320
    %v3665 = vunpack.c.l.b16 %v3321
    %v3666 = vunpack.c.h.b16 %v3321
    %v3667 = vunpack.c.l.b16 %v3322
    %v3668 = vunpack.c.h.b16 %v3322
    %v3669 = vunpack.c.l.b16 %v3323
    %v3670 = vunpack.c.h.b16 %v3323
    %v3671 = vunpack.c.l.b16 %v3324
    %v3672 = vunpack.c.h.b16 %v3324
    %v3673 = vunpack.c.l.b16 %v3325
    %v3674 = vunpack.c.h.b16 %v3325
    %v3675 = vunpack.c.l.b16 %v3326
    %v3676 = vunpack.c.h.b16 %v3326
    %v3677 = vunpack.c.l.b16 %v3327
    %v3678 = vunpack.c.h.b16 %v3327
    %v3679 = vunpack.c.l.b16 %v3328
    %v3680 = vunpack.c.h.b16 %v3328
    %v3681 = vunpack.c.l.b16 %v3329
    %v3682 = vunpack.c.h.b16 %v3329
    %v3683 = vunpack.c.l.b16 %v3330
    %v3684 = vunpack.c.h.b16 %v3330
    %v3685 = vunpack.c.l.b16 %v3331
    %v3686 = vunpack.c.h.b16 %v3331
    %v3687 = vunpack.c.l.b16 %v3332
    %v3688 = vunpack.c.h.b16 %v3332
    %v3689 = vunpack.c.l.b16 %v3333
    %v3690 = vunpack.c.h.b16 %v3333
    %v3691 = vunpack.c.l.b16 %v3334
    %v3692 = vunpack.c.h.b16 %v3334
    %v3693 = vunpack.c.l.b16 %v3335
    %v3694 = vunpack.c.h.b16 %v3335
    %v3695 = vunpack.c.l.b16 %v3336
    %v3696 = vunpack.c.h.b16 %v3336
    %v3697 = vunpack.c.l.b16 %v3337
    %v3698 = vunpack.c.h.b16 %v3337
    %v3699 = vunpack.c.l.b16 %v3338
    %v3700 = vunpack.c.h.b16 %v3338
    %v3701 = vunpack.c.l.b16 %v3339
    %v3702 = vunpack.c.h.b16 %v3339
    %v3703 = vunpack.c.l.b16 %v3340
    %v3704 = vunpack.c.h.b16 %v3340
    %v3705 = vunpack.c.l.b16 %v3341
    %v3706 = vunpack.c.h.b16 %v3341
    %v3707 = vunpack.c.l.b16 %v3342
    %v3708 = vunpack.c.h.b16 %v3342
    %v3709 = vunpack.c.l.b16 %v3343
    %v3710 = vunpack.c.h.b16 %v3343
    %v3711 = vunpack.c.l.b16 %v3344
    %v3712 = vunpack.c.h.b16 %v3344
    %v3713 = vunpack.c.l.b16 %v3345
    %v3714 = vunpack.c.h.b16 %v3345
    %v3715 = vunpack.c.l.b16 %v3346
    %v3716 = vunpack.c.h.b16 %v3346
    %v3717 = vunpack.c.l.b16 %v3347
    %v3718 = vunpack.c.h.b16 %v3347
    %v3719 = vunpack.c.l.b16 %v3348
    %v3720 = vunpack.c.h.b16 %v3348
    %v3721 = vunpack.c.l.b16 %v3349
    %v3722 = vunpack.c.h.b16 %v3349
    %v3723 = vunpack.c.l.b16 %v3350
    %v3724 = vunpack.c.h.b16 %v3350
    %v3725 = vunpack.c.l.b16 %v3351
    %v3726 = vunpack.c.h.b16 %v3351
    %v3727 = vunpack.c.l.b16 %v3352
    %v3728 = vunpack.c.h.b16 %v3352
    %v3729 = vunpack.c.l.b16 %v3353
    %v3730 = vunpack.c.h.b16 %v3353
    %v3731 = vunpack.c.l.b16 %v3354
    %v3732 = vunpack.c.h.b16 %v3354
    %v3733 = vunpack.c.l.b16 %v3355
    %v3734 = vunpack.c.h.b16 %v3355
    %v3735 = vunpack.c.l.b16 %v3356
    %v3736 = vunpack.c.h.b16 %v3356
    %v3737 = vunpack.c.l.b16 %v3357
    %v3738 = vunpack.c.h.b16 %v3357
    %v3739 = vunpack.c.l.b16 %v3358
    %v3740 = vunpack.c.h.b16 %v3358
    %v3741 = vunpack.c.l.b16 %v3359
    %v3742 = vunpack.c.h.b16 %v3359
    %v3743 = vunpack.c.l.b16 %v3360
    %v3744 = vunpack.c.h.b16 %v3360
    %v3745 = vunpack.c.l.b16 %v3361
    %v3746 = vunpack.c.h.b16 %v3361
    %v3747 = vunpack.c.l.b16 %v3362
    %v3748 = vunpack.c.h.b16 %v3362
    %v3749 = vunpack.c.l.b16 %v3363
    %v3750 = vunpack.c.h.b16 %v3363
    %v3751 = vunpack.c.l.b16 %v3364
    %v3752 = vunpack.c.h.b16 %v3364
    %v3753 = vunpack.c.l.b16 %v3365
    %v3754 = vunpack.c.h.b16 %v3365
    %v3755 = vunpack.c.l.b16 %v3366
    %v3756 = vunpack.c.h.b16 %v3366
    %v3757 = vunpack.c.l.b16 %v3367
    %v3758 = vunpack.c.h.b16 %v3367
    %v3759 = vunpack.c.l.b16 %v3368
    %v3760 = vunpack.c.h.b16 %v3368
    %v3761 = vunpack.c.l.b16 %v3369
    %v3762 = vunpack.c.h.b16 %v3369
    %v3763 = vunpack.c.l.b16 %v3370
    %v3764 = vunpack.c.h.b16 %v3370
    %v3765 = vunpack.c.l.b16 %v3371
    %v3766 = vunpack.c.h.b16 %v3371
    %v3767 = vunpack.c.l.b16 %v3372
    %v3768 = vunpack.c.h.b16 %v3372
    %v3769 = vunpack.c.l.b16 %v3373
    %v3770 = vunpack.c.h.b16 %v3373
    %v3771 = vunpack.c.l.b16 %v3374
    %v3772 = vunpack.c.h.b16 %v3374
    %v3773 = vunpack.c.l.b16 %v3375
    %v3774 = vunpack.c.h.b16 %v3375
    %v3775 = vunpack.c.l.b16 %v3376
    %v3776 = vunpack.c.h.b16 %v3376
    %v3777 = vunpack.c.l.b16 %v3377
    %v3778 = vunpack.c.h.b16 %v3377
    %v3779 = vunpack.c.l.b16 %v3378
    %v3780 = vunpack.c.h.b16 %v3378
    %v3781 = vunpack.c.l.b16 %v3379
    %v3782 = vunpack.c.h.b16 %v3379
    %v3783 = vunpack.c.l.b16 %v3380
    %v3784 = vunpack.c.h.b16 %v3380
    %v3785 = vunpack.c.l.b16 %v3381
    %v3786 = vunpack.c.h.b16 %v3381
    %v3787 = vunpack.c.l.b16 %v3382
    %v3788 = vunpack.c.h.b16 %v3382
    %v3789 = vunpack.c.l.b16 %v3383
    %v3790 = vunpack.c.h.b16 %v3383
    %v3791 = vpack.c.b16 %v3539, %v3535
    %v3792 = vpack.c.b16 %v3540, %v3536
    %v3793 = vpack.c.b16 %v3541, %v3537
    %v3794 = vpack.c.b16 %v3542, %v3538
    %v3795 = vpack.c.b16 %v3547, %v3543
    %v3796 = vpack.c.b16 %v3548, %v3544
    %v3797 = vpack.c.b16 %v3549, %v3545
    %v3798 = vpack.c.b16 %v3550, %v3546
    %v3799 = vpack.c.b16 %v3555, %v3551
    %v3800 = vpack.c.b16 %v3556, %v3552
    %v3801 = vpack.c.b16 %v3557, %v3553
    %v3802 = vpack.c.b16 %v3558, %v3554
    %v3803 = vpack.c.b16 %v3563, %v3559
    %v3804 = vpack.c.b16 %v3564, %v3560
    %v3805 = vpack.c.b16 %v3565, %v3561
    %v3806 = vpack.c.b16 %v3566, %v3562
    %v3807 = vpack.c.b16 %v3571, %v3567
    %v3808 = vpack.c.b16 %v3572, %v3568
    %v3809 = vpack.c.b16 %v3573, %v3569
    %v3810 = vpack.c.b16 %v3574, %v3570
    %v3811 = vpack.c.b16 %v3579, %v3575
    %v3812 = vpack.c.b16 %v3580, %v3576
    %v3813 = vpack.c.b16 %v3581, %v3577
    %v3814 = vpack.c.b16 %v3582, %v3578
    %v3815 = vpack.c.b16 %v3587, %v3583
    %v3816 = vpack.c.b16 %v3588, %v3584
    %v3817 = vpack.c.b16 %v3589, %v3585
    %v3818 = vpack.c.b16 %v3590, %v3586
    %v3819 = vpack.c.b16 %v3595, %v3591
    %v3820 = vpack.c.b16 %v3596, %v3592
    %v3821 = vpack.c.b16 %v3597, %v3593
    %v3822 = vpack.c.b16 %v3598, %v3594
    %v3823 = vpack.c.b16 %v3603, %v3599
    %v3824 = vpack.c.b16 %v3604, %v3600
    %v3825 = vpack.c.b16 %v3605, %v3601
    %v3826 = vpack.c.b16 %v3606, %v3602
    %v3827 = vpack.c.b16 %v3611, %v3607
    %v3828 = vpack.c.b16 %v3612, %v3608
    %v3829 = vpack.c.b16 %v3613, %v3609
    %v3830 = vpack.c.b16 %v3614, %v3610
    %v3831 = vpack.c.b16 %v3619, %v3615
    %v3832 = vpack.c.b16 %v3620, %v3616
    %v3833 = vpack.c.b16 %v3621, %v3617
    %v3834 = vpack.c.b16 %v3622, %v3618
    %v3835 = vpack.c.b16 %v3627, %v3623
    %v3836 = vpack.c.b16 %v3628, %v3624
    %v3837 = vpack.c.b16 %v3629, %v3625
    %v3838 = vpack.c.b16 %v3630, %v3626
    %v3839 = vpack.c.b16 %v3635, %v3631
    %v3840 = vpack.c.b16 %v3636, %v3632
    %v3841 = vpack.c.b16 %v3637, %v3633
    %v3842 = vpack.c.b16 %v3638, %v3634
    %v3843 = vpack.c.b16 %v3643, %v3639
    %v3844 = vpack.c.b16 %v3644, %v3640
    %v3845 = vpack.c.b16 %v3645, %v3641
    %v3846 = vpack.c.b16 %v3646, %v3642
    %v3847 = vpack.c.b16 %v3651, %v3647
    %v3848 = vpack.c.b16 %v3652, %v3648
    %v3849 = vpack.c.b16 %v3653, %v3649
    %v3850 = vpack.c.b16 %v3654, %v3650
    %v3851 = vpack.c.b16 %v3659, %v3655
    %v3852 = vpack.c.b16 %v3660, %v3656
    %v3853 = vpack.c.b16 %v3661, %v3657
    %v3854 = vpack.c.b16 %v3662, %v3658
    %v3855 = vpack.c.b16 %v3667, %v3663
    %v3856 = vpack.c.b16 %v3668, %v3664
    %v3857 = vpack.c.b16 %v3669, %v3665
    %v3858 = vpack.c.b16 %v3670, %v3666
    %v3859 = vpack.c.b16 %v3675, %v3671
    %v3860 = vpack.c.b16 %v3676, %v3672
    %v3861 = vpack.c.b16 %v3677, %v3673
    %v3862 = vpack.c.b16 %v3678, %v3674
    %v3863 = vpack.c.b16 %v3683, %v3679
    %v3864 = vpack.c.b16 %v3684, %v3680
    %v3865 = vpack.c.b16 %v3685, %v3681
    %v3866 = vpack.c.b16 %v3686, %v3682
    %v3867 = vpack.c.b16 %v3691, %v3687
    %v3868 = vpack.c.b16 %v3692, %v3688
    %v3869 = vpack.c.b16 %v3693, %v3689
    %v3870 = vpack.c.b16 %v3694, %v3690
    %v3871 = vpack.c.b16 %v3699, %v3695
    %v3872 = vpack.c.b16 %v3700, %v3696
    %v3873 = vpack.c.b16 %v3701, %v3697
    %v3874 = vpack.c.b16 %v3702, %v3698
    %v3875 = vpack.c.b16 %v3707, %v3703
    %v3876 = vpack.c.b16 %v3708, %v3704
    %v3877 = vpack.c.b16 %v3709, %v3705
    %v3878 = vpack.c.b16 %v3710, %v3706
    %v3879 = vpack.c.b16 %v3715, %v3711
    %v3880 = vpack.c.b16 %v3716, %v3712
    %v3881 = vpack.c.b16 %v3717, %v3713
    %v3882 = vpack.c.b16 %v3718, %v3714
    %v3883 = vpack.c.b16 %v3723, %v3719
    %v3884 = vpack.c.b16 %v3724, %v3720
    %v3885 = vpack.c.b16 %v3725, %v3721
    %v3886 = vpack.c.b16 %v3726, %v3722
    %v3887 = vpack.c.b16 %v3731, %v3727
    %v3888 = vpack.c.b16 %v3732, %v3728
    %v3889 = vpack.c.b16 %v3733, %v3729
    %v3890 = vpack.c.b16 %v3734, %v3730
    %v3891 = vpack.c.b16 %v3739, %v3735
    %v3892 = vpack.c.b16 %v3740, %v3736
    %v3893 = vpack.c.b16 %v3741, %v3737
    %v3894 = vpack.c.b16 %v3742, %v3738
    %v3895 = vpack.c.b16 %v3747, %v3743
    %v3896 = vpack.c.b16 %v3748, %v3744
    %v3897 = vpack.c.b16 %v3749, %v3745
    %v3898 = vpack.c.b16 %v3750, %v3746
    %v3899 = vpack.c.b16 %v3755, %v3751
    %v3900 = vpack.c.b16 %v3756, %v3752
    %v3901 = vpack.c.b16 %v3757, %v3753
    %v3902 = vpack.c.b16 %v3758, %v3754
    %v3903 = vpack.c.b16 %v3763, %v3759
    %v3904 = vpack.c.b16 %v3764, %v3760
    %v3905 = vpack.c.b16 %v3765, %v3761
    %v3906 = vpack.c.b16 %v3766, %v3762
    %v3907 = vpack.c.b16 %v3771, %v3767
    %v3908 = vpack.c.b16 %v3772, %v3768
    %v3909 = vpack.c.b16 %v3773, %v3769
    %v3910 = vpack.c.b16 %v3774, %v3770
    %v3911 = vpack.c.b16 %v3779, %v3775
    %v3912 = vpack.c.b16 %v3780, %v3776
    %v3913 = vpack.c.b16 %v3781, %v3777
    %v3914 = vpack.c.b16 %v3782, %v3778
    %v3915 = vpack.c.b16 %v3787, %v3783
    %v3916 = vpack.c.b16 %v3788, %v3784
    %v3917 = vpack.c.b16 %v3789, %v3785
    %v3918 = vpack.c.b16 %v3790, %v3786
    %4047 = vmatprep.subr.bf16.mxu0 %v3792
    %4048 = vmatpush1.bf16.msra.mxu0 %v3791
    %4049 = vmatprep.subr.bf16.mxu0 %v3796
    %4050 = vmatpush1.bf16.msra.mxu0 %v3795
    %4051 = vmatprep.subr.bf16.mxu0 %v3800
    %4052 = vmatpush1.bf16.msra.mxu0 %v3799
    %4053 = vmatprep.subr.bf16.mxu0 %v3804
    %4054 = vmatpush1.bf16.msra.mxu0 %v3803
    %4055 = vmatprep.subr.bf16.mxu0 %v3808
    %4056 = vmatpush1.bf16.msra.mxu0 %v3807
    %4057 = vmatprep.subr.bf16.mxu0 %v3812
    %4058 = vmatpush1.bf16.msra.mxu0 %v3811
    %4059 = vmatprep.subr.bf16.mxu0 %v3816
    %4060 = vmatpush1.bf16.msra.mxu0 %v3815
    %4061 = vmatprep.subr.bf16.mxu0 %v3820
    %4062 = vmatpush1.bf16.msra.mxu0 %v3819
    %4063 = vmatprep.subr.bf16.mxu0 %v3824
    %4064 = vmatpush1.bf16.msra.mxu0 %v3823
    %4065 = vmatprep.subr.bf16.mxu0 %v3828
    %4066 = vmatpush1.bf16.msra.mxu0 %v3827
    %4067 = vmatprep.subr.bf16.mxu0 %v3832
    %4068 = vmatpush1.bf16.msra.mxu0 %v3831
    %4069 = vmatprep.subr.bf16.mxu0 %v3836
    %4070 = vmatpush1.bf16.msra.mxu0 %v3835
    %4071 = vmatprep.subr.bf16.mxu0 %v3840
    %4072 = vmatpush1.bf16.msra.mxu0 %v3839
    %4073 = vmatprep.subr.bf16.mxu0 %v3844
    %4074 = vmatpush1.bf16.msra.mxu0 %v3843
    %4075 = vmatprep.subr.bf16.mxu0 %v3848
    %4076 = vmatpush1.bf16.msra.mxu0 %v3847
    %4077 = vmatprep.subr.bf16.mxu0 %v3852
    %4078 = vmatpush1.bf16.msra.mxu0 %v3851
    %4079 = vmatprep.mubr.bf16.mxu0 %v3253
    %4080 = vmatmul.mubr.bf16.gmra.mrb[0].mxu0 %v3252
    %v4081 = vpop.f32.mrb[0].mxu0
    %v4082 = vadd.f32 %v3390, %v4081
    %v4083 = vpop.f32.mrb[0].mxu0
    %v4084 = vadd.f32 %v3394, %v4083
    %v4085 = vpop.f32.mrb[0].mxu0
    %v4086 = vadd.f32 %v3390, %v4085
    %v4087 = vpop.f32.mrb[0].mxu0
    %v4088 = vadd.f32 %v3394, %v4087
    %4089 = vdwg.mxu0
    %4090 = vmatprep.subr.bf16.mxu0 %v3856
    %4091 = vmatpush1.bf16.msra.mxu0 %v3855
    %4092 = vmatprep.subr.bf16.mxu0 %v3860
    %4093 = vmatpush1.bf16.msra.mxu0 %v3859
    %4094 = vmatprep.subr.bf16.mxu0 %v3864
    %4095 = vmatpush1.bf16.msra.mxu0 %v3863
    %4096 = vmatprep.subr.bf16.mxu0 %v3868
    %4097 = vmatpush1.bf16.msra.mxu0 %v3867
    %4098 = vmatprep.subr.bf16.mxu0 %v3872
    %4099 = vmatpush1.bf16.msra.mxu0 %v3871
    %4100 = vmatprep.subr.bf16.mxu0 %v3876
    %4101 = vmatpush1.bf16.msra.mxu0 %v3875
    %4102 = vmatprep.subr.bf16.mxu0 %v3880
    %4103 = vmatpush1.bf16.msra.mxu0 %v3879
    %4104 = vmatprep.subr.bf16.mxu0 %v3884
    %4105 = vmatpush1.bf16.msra.mxu0 %v3883
    %4106 = vmatprep.subr.bf16.mxu0 %v3888
    %4107 = vmatpush1.bf16.msra.mxu0 %v3887
    %4108 = vmatprep.subr.bf16.mxu0 %v3892
    %4109 = vmatpush1.bf16.msra.mxu0 %v3891
    %4110 = vmatprep.subr.bf16.mxu0 %v3896
    %4111 = vmatpush1.bf16.msra.mxu0 %v3895
    %4112 = vmatprep.subr.bf16.mxu0 %v3900
    %4113 = vmatpush1.bf16.msra.mxu0 %v3899
    %4114 = vmatprep.subr.bf16.mxu0 %v3904
    %4115 = vmatpush1.bf16.msra.mxu0 %v3903
    %4116 = vmatprep.subr.bf16.mxu0 %v3908
    %4117 = vmatpush1.bf16.msra.mxu0 %v3907
    %4118 = vmatprep.subr.bf16.mxu0 %v3912
    %4119 = vmatpush1.bf16.msra.mxu0 %v3911
    %4120 = vmatprep.subr.bf16.mxu0 %v3916
    %4121 = vmatpush1.bf16.msra.mxu0 %v3915
    %4122 = vmatprep.mubr.bf16.mxu0 %v3255
    %4123 = vmatmul.mubr.bf16.gmra.mrb[0].mxu0 %v3254
    %v4124 = vpop.f32.mrb[0].mxu0
    %v4125 = vadd.f32 %v4082, %v4124
    %v4126 = vpop.f32.mrb[0].mxu0
    %v4127 = vadd.f32 %v4084, %v4126
    %v4128 = vpop.f32.mrb[0].mxu0
    %v4129 = vadd.f32 %v4086, %v4128
    %v4130 = vpop.f32.mrb[0].mxu0
    %v4131 = vadd.f32 %v4088, %v4130
    %4132 = vdwg.mxu0
    %4133 = vmatprep.subr.bf16.mxu0 %v3794
    %4134 = vmatpush1.bf16.msra.mxu0 %v3793
    %4135 = vmatprep.subr.bf16.mxu0 %v3798
    %4136 = vmatpush1.bf16.msra.mxu0 %v3797
    %4137 = vmatprep.subr.bf16.mxu0 %v3802
    %4138 = vmatpush1.bf16.msra.mxu0 %v3801
    %4139 = vmatprep.subr.bf16.mxu0 %v3806
    %4140 = vmatpush1.bf16.msra.mxu0 %v3805
    %4141 = vmatprep.subr.bf16.mxu0 %v3810
    %4142 = vmatpush1.bf16.msra.mxu0 %v3809
    %4143 = vmatprep.subr.bf16.mxu0 %v3814
    %4144 = vmatpush1.bf16.msra.mxu0 %v3813
    %4145 = vmatprep.subr.bf16.mxu0 %v3818
    %4146 = vmatpush1.bf16.msra.mxu0 %v3817
    %4147 = vmatprep.subr.bf16.mxu0 %v3822
    %4148 = vmatpush1.bf16.msra.mxu0 %v3821
    %4149 = vmatprep.subr.bf16.mxu0 %v3826
    %4150 = vmatpush1.bf16.msra.mxu0 %v3825
    %4151 = vmatprep.subr.bf16.mxu0 %v3830
    %4152 = vmatpush1.bf16.msra.mxu0 %v3829
    %4153 = vmatprep.subr.bf16.mxu0 %v3834
    %4154 = vmatpush1.bf16.msra.mxu0 %v3833
    %4155 = vmatprep.subr.bf16.mxu0 %v3838
    %4156 = vmatpush1.bf16.msra.mxu0 %v3837
    %4157 = vmatprep.subr.bf16.mxu0 %v3842
    %4158 = vmatpush1.bf16.msra.mxu0 %v3841
    %4159 = vmatprep.subr.bf16.mxu0 %v3846
    %4160 = vmatpush1.bf16.msra.mxu0 %v3845
    %4161 = vmatprep.subr.bf16.mxu0 %v3850
    %4162 = vmatpush1.bf16.msra.mxu0 %v3849
    %4163 = vmatprep.subr.bf16.mxu0 %v3854
    %4164 = vmatpush1.bf16.msra.mxu0 %v3853
    %4165 = vmatprep.mubr.bf16.mxu0 %v3253
    %4166 = vmatmul.mubr.bf16.gmra.mrb[0].mxu0 %v3252
    %v4167 = vpop.f32.mrb[0].mxu0
    %v4168 = vadd.f32 %v3398, %v4167
    %v4169 = vpop.f32.mrb[0].mxu0
    %v4170 = vadd.f32 %v3402, %v4169
    %v4171 = vpop.f32.mrb[0].mxu0
    %v4172 = vadd.f32 %v3398, %v4171
    %v4173 = vpop.f32.mrb[0].mxu0
    %v4174 = vadd.f32 %v3402, %v4173
    %4175 = vdwg.mxu0
    %4176 = vmatprep.subr.bf16.mxu0 %v3858
    %4177 = vmatpush1.bf16.msra.mxu0 %v3857
    %4178 = vmatprep.subr.bf16.mxu0 %v3862
    %4179 = vmatpush1.bf16.msra.mxu0 %v3861
    %4180 = vmatprep.subr.bf16.mxu0 %v3866
    %4181 = vmatpush1.bf16.msra.mxu0 %v3865
    %4182 = vmatprep.subr.bf16.mxu0 %v3870
    %4183 = vmatpush1.bf16.msra.mxu0 %v3869
    %4184 = vmatprep.subr.bf16.mxu0 %v3874
    %4185 = vmatpush1.bf16.msra.mxu0 %v3873
    %4186 = vmatprep.subr.bf16.mxu0 %v3878
    %4187 = vmatpush1.bf16.msra.mxu0 %v3877
    %4188 = vmatprep.subr.bf16.mxu0 %v3882
    %4189 = vmatpush1.bf16.msra.mxu0 %v3881
    %4190 = vmatprep.subr.bf16.mxu0 %v3886
    %4191 = vmatpush1.bf16.msra.mxu0 %v3885
    %4192 = vmatprep.subr.bf16.mxu0 %v3890
    %4193 = vmatpush1.bf16.msra.mxu0 %v3889
    %4194 = vmatprep.subr.bf16.mxu0 %v3894
    %4195 = vmatpush1.bf16.msra.mxu0 %v3893
    %4196 = vmatprep.subr.bf16.mxu0 %v3898
    %4197 = vmatpush1.bf16.msra.mxu0 %v3897
    %4198 = vmatprep.subr.bf16.mxu0 %v3902
    %4199 = vmatpush1.bf16.msra.mxu0 %v3901
    %4200 = vmatprep.subr.bf16.mxu0 %v3906
    %4201 = vmatpush1.bf16.msra.mxu0 %v3905
    %4202 = vmatprep.subr.bf16.mxu0 %v3910
    %4203 = vmatpush1.bf16.msra.mxu0 %v3909
    %4204 = vmatprep.subr.bf16.mxu0 %v3914
    %4205 = vmatpush1.bf16.msra.mxu0 %v3913
    %4206 = vmatprep.subr.bf16.mxu0 %v3918
    %4207 = vmatpush1.bf16.msra.mxu0 %v3917
    %4208 = vmatprep.mubr.bf16.mxu0 %v3255
    %4209 = vmatmul.mubr.bf16.gmra.mrb[0].mxu0 %v3254
    %v4210 = vpop.f32.mrb[0].mxu0
    %v4211 = vadd.f32 %v4168, %v4210
    %v4212 = vpop.f32.mrb[0].mxu0
    %v4213 = vadd.f32 %v4170, %v4212
    %v4214 = vpop.f32.mrb[0].mxu0
    %v4215 = vadd.f32 %v4172, %v4214
    %v4216 = vpop.f32.mrb[0].mxu0
    %v4217 = vadd.f32 %v4174, %v4216
    %4218 = vdwg.mxu0
    %v4219 = vmax.f32 %v4125, 0.0
    %v4220 = vmax.f32 %v4127, 0.0
    %v4221 = vmax.f32 %v4211, 0.0
    %v4222 = vmax.f32 %v4213, 0.0
    %v4223 = vmax.f32 %v4129, 0.0
    %v4224 = vmax.f32 %v4131, 0.0
    %v4225 = vmax.f32 %v4215, 0.0
    %v4226 = vmax.f32 %v4217, 0.0
    %v4227 = vpack.c.bf16 %v4223, %v4219
    %v4228 = vpack.c.bf16 %v4224, %v4220
    %v4229 = vpack.c.bf16 %v4225, %v4221
    %v4230 = vpack.c.bf16 %v4226, %v4222
    %v4231 = vld [vmem:[#allocation17] sm:$0xf]
    %v4232 = vld [vmem:[#allocation17 + $0x4] sm:$0xf]
    %v4233 = vld [vmem:[#allocation17 + $0x8] sm:$0xf]
    %v4234 = vld [vmem:[#allocation17 + $0xc] sm:$0xf]
    %v4235 = vld [vmem:[#allocation17 + $0x10] sm:$0xf]
    %v4236 = vld [vmem:[#allocation17 + $0x14] sm:$0xf]
    %v4237 = vld [vmem:[#allocation17 + $0x18] sm:$0xf]
    %v4238 = vld [vmem:[#allocation17 + $0x1c] sm:$0xf]
    %v4239 = vld [vmem:[#allocation17 + $0x20] sm:$0xf]
    %v4240 = vld [vmem:[#allocation17 + $0x24] sm:$0xf]
    %v4241 = vld [vmem:[#allocation17 + $0x28] sm:$0xf]
    %v4242 = vld [vmem:[#allocation17 + $0x2c] sm:$0xf]
    %v4243 = vld [vmem:[#allocation17 + $0x30] sm:$0xf]
    %v4244 = vld [vmem:[#allocation17 + $0x34] sm:$0xf]
    %v4245 = vld [vmem:[#allocation17 + $0x38] sm:$0xf]
    %v4246 = vld [vmem:[#allocation17 + $0x3c] sm:$0xf]
    %v4247 = vld [vmem:[#allocation17 + $0x40] sm:$0xf]
    %v4248 = vld [vmem:[#allocation17 + $0x44] sm:$0xf]
    %v4249 = vld [vmem:[#allocation17 + $0x48] sm:$0xf]
    %v4250 = vld [vmem:[#allocation17 + $0x4c] sm:$0xf]
    %v4251 = vld [vmem:[#allocation17 + $0x50] sm:$0xf]
    %v4252 = vld [vmem:[#allocation17 + $0x54] sm:$0xf]
    %v4253 = vld [vmem:[#allocation17 + $0x58] sm:$0xf]
    %v4254 = vld [vmem:[#allocation17 + $0x5c] sm:$0xf]
    %v4255 = vld [vmem:[#allocation17 + $0x60] sm:$0xf]
    %v4256 = vld [vmem:[#allocation17 + $0x64] sm:$0xf]
    %v4257 = vld [vmem:[#allocation17 + $0x68] sm:$0xf]
    %v4258 = vld [vmem:[#allocation17 + $0x6c] sm:$0xf]
    %v4259 = vld [vmem:[#allocation17 + $0x70] sm:$0xf]
    %v4260 = vld [vmem:[#allocation17 + $0x74] sm:$0xf]
    %v4261 = vld [vmem:[#allocation17 + $0x78] sm:$0xf]
    %v4262 = vld [vmem:[#allocation17 + $0x7c] sm:$0xf]
    %v4263 = vld [vmem:[#allocation17 + $0x80] sm:$0xf]
    %v4264 = vld [vmem:[#allocation17 + $0x84] sm:$0xf]
    %v4265 = vld [vmem:[#allocation17 + $0x88] sm:$0xf]
    %v4266 = vld [vmem:[#allocation17 + $0x8c] sm:$0xf]
    %v4267 = vld [vmem:[#allocation17 + $0x90] sm:$0xf]
    %v4268 = vld [vmem:[#allocation17 + $0x94] sm:$0xf]
    %v4269 = vld [vmem:[#allocation17 + $0x98] sm:$0xf]
    %v4270 = vld [vmem:[#allocation17 + $0x9c] sm:$0xf]
    %v4271 = vld [vmem:[#allocation17 + $0xa0] sm:$0xf]
    %v4272 = vld [vmem:[#allocation17 + $0xa4] sm:$0xf]
    %v4273 = vld [vmem:[#allocation17 + $0xa8] sm:$0xf]
    %v4274 = vld [vmem:[#allocation17 + $0xac] sm:$0xf]
    %v4275 = vld [vmem:[#allocation17 + $0xb0] sm:$0xf]
    %v4276 = vld [vmem:[#allocation17 + $0xb4] sm:$0xf]
    %v4277 = vld [vmem:[#allocation17 + $0xb8] sm:$0xf]
    %v4278 = vld [vmem:[#allocation17 + $0xbc] sm:$0xf]
    %v4279 = vld [vmem:[#allocation17 + $0xc0] sm:$0xf]
    %v4280 = vld [vmem:[#allocation17 + $0xc4] sm:$0xf]
    %v4281 = vld [vmem:[#allocation17 + $0xc8] sm:$0xf]
    %v4282 = vld [vmem:[#allocation17 + $0xcc] sm:$0xf]
    %v4283 = vld [vmem:[#allocation17 + $0xd0] sm:$0xf]
    %v4284 = vld [vmem:[#allocation17 + $0xd4] sm:$0xf]
    %v4285 = vld [vmem:[#allocation17 + $0xd8] sm:$0xf]
    %v4286 = vld [vmem:[#allocation17 + $0xdc] sm:$0xf]
    %v4287 = vld [vmem:[#allocation17 + $0xe0] sm:$0xf]
    %v4288 = vld [vmem:[#allocation17 + $0xe4] sm:$0xf]
    %v4289 = vld [vmem:[#allocation17 + $0xe8] sm:$0xf]
    %v4290 = vld [vmem:[#allocation17 + $0xec] sm:$0xf]
    %v4291 = vld [vmem:[#allocation17 + $0xf0] sm:$0xf]
    %v4292 = vld [vmem:[#allocation17 + $0xf4] sm:$0xf]
    %v4293 = vld [vmem:[#allocation17 + $0xf8] sm:$0xf]
    %v4294 = vld [vmem:[#allocation17 + $0xfc] sm:$0xf]
    %v4295 = vld [vmem:[#allocation7 + $0x6] ss:$0 sm:$0xff]
    %v4360 = vunpack.c.l.b16 %v4231
    %v4361 = vunpack.c.l.b16 %v4232
    %v4362 = vunpack.c.l.b16 %v4233
    %v4363 = vunpack.c.l.b16 %v4234
    %v4364 = vunpack.c.l.b16 %v4235
    %v4365 = vunpack.c.l.b16 %v4236
    %v4366 = vunpack.c.l.b16 %v4237
    %v4367 = vunpack.c.l.b16 %v4238
    %v4368 = vunpack.c.l.b16 %v4239
    %v4369 = vunpack.c.l.b16 %v4240
    %v4370 = vunpack.c.l.b16 %v4241
    %v4371 = vunpack.c.l.b16 %v4242
    %v4372 = vunpack.c.l.b16 %v4243
    %v4373 = vunpack.c.l.b16 %v4244
    %v4374 = vunpack.c.l.b16 %v4245
    %v4375 = vunpack.c.l.b16 %v4246
    %v4376 = vunpack.c.l.b16 %v4247
    %v4377 = vunpack.c.l.b16 %v4248
    %v4378 = vunpack.c.l.b16 %v4249
    %v4379 = vunpack.c.l.b16 %v4250
    %v4380 = vunpack.c.l.b16 %v4251
    %v4381 = vunpack.c.l.b16 %v4252
    %v4382 = vunpack.c.l.b16 %v4253
    %v4383 = vunpack.c.l.b16 %v4254
    %v4384 = vunpack.c.l.b16 %v4255
    %v4385 = vunpack.c.l.b16 %v4256
    %v4386 = vunpack.c.l.b16 %v4257
    %v4387 = vunpack.c.l.b16 %v4258
    %v4388 = vunpack.c.l.b16 %v4259
    %v4389 = vunpack.c.l.b16 %v4260
    %v4390 = vunpack.c.l.b16 %v4261
    %v4391 = vunpack.c.l.b16 %v4262
    %v4392 = vunpack.c.l.b16 %v4263
    %v4393 = vunpack.c.l.b16 %v4264
    %v4394 = vunpack.c.l.b16 %v4265
    %v4395 = vunpack.c.l.b16 %v4266
    %v4396 = vunpack.c.l.b16 %v4267
    %v4397 = vunpack.c.l.b16 %v4268
    %v4398 = vunpack.c.l.b16 %v4269
    %v4399 = vunpack.c.l.b16 %v4270
    %v4400 = vunpack.c.l.b16 %v4271
    %v4401 = vunpack.c.l.b16 %v4272
    %v4402 = vunpack.c.l.b16 %v4273
    %v4403 = vunpack.c.l.b16 %v4274
    %v4404 = vunpack.c.l.b16 %v4275
    %v4405 = vunpack.c.l.b16 %v4276
    %v4406 = vunpack.c.l.b16 %v4277
    %v4407 = vunpack.c.l.b16 %v4278
    %v4408 = vunpack.c.l.b16 %v4279
    %v4409 = vunpack.c.l.b16 %v4280
    %v4410 = vunpack.c.l.b16 %v4281
    %v4411 = vunpack.c.l.b16 %v4282
    %v4412 = vunpack.c.l.b16 %v4283
    %v4413 = vunpack.c.l.b16 %v4284
    %v4414 = vunpack.c.l.b16 %v4285
    %v4415 = vunpack.c.l.b16 %v4286
    %v4416 = vunpack.c.l.b16 %v4287
    %v4417 = vunpack.c.l.b16 %v4288
    %v4418 = vunpack.c.l.b16 %v4289
    %v4419 = vunpack.c.l.b16 %v4290
    %v4420 = vunpack.c.l.b16 %v4291
    %v4421 = vunpack.c.l.b16 %v4292
    %v4422 = vunpack.c.l.b16 %v4293
    %v4423 = vunpack.c.l.b16 %v4294
    %v4424 = vpack.c.b16 %v4361, %v4360
    %v4425 = vpack.c.b16 %v4363, %v4362
    %v4426 = vpack.c.b16 %v4365, %v4364
    %v4427 = vpack.c.b16 %v4367, %v4366
    %v4428 = vpack.c.b16 %v4369, %v4368
    %v4429 = vpack.c.b16 %v4371, %v4370
    %v4430 = vpack.c.b16 %v4373, %v4372
    %v4431 = vpack.c.b16 %v4375, %v4374
    %v4432 = vpack.c.b16 %v4377, %v4376
    %v4433 = vpack.c.b16 %v4379, %v4378
    %v4434 = vpack.c.b16 %v4381, %v4380
    %v4435 = vpack.c.b16 %v4383, %v4382
    %v4436 = vpack.c.b16 %v4385, %v4384
    %v4437 = vpack.c.b16 %v4387, %v4386
    %v4438 = vpack.c.b16 %v4389, %v4388
    %v4439 = vpack.c.b16 %v4391, %v4390
    %v4440 = vpack.c.b16 %v4393, %v4392
    %v4441 = vpack.c.b16 %v4395, %v4394
    %v4442 = vpack.c.b16 %v4397, %v4396
    %v4443 = vpack.c.b16 %v4399, %v4398
    %v4444 = vpack.c.b16 %v4401, %v4400
    %v4445 = vpack.c.b16 %v4403, %v4402
    %v4446 = vpack.c.b16 %v4405, %v4404
    %v4447 = vpack.c.b16 %v4407, %v4406
    %v4448 = vpack.c.b16 %v4409, %v4408
    %v4449 = vpack.c.b16 %v4411, %v4410
    %v4450 = vpack.c.b16 %v4413, %v4412
    %v4451 = vpack.c.b16 %v4415, %v4414
    %v4452 = vpack.c.b16 %v4417, %v4416
    %v4453 = vpack.c.b16 %v4419, %v4418
    %v4454 = vpack.c.b16 %v4421, %v4420
    %v4455 = vpack.c.b16 %v4423, %v4422
    %4488 = vmatprep.subr.bf16.mxu0 0
    %4489 = vmatpush1.bf16.msra.mxu0 %v4424
    %4490 = vmatprep.subr.bf16.mxu0 0
    %4491 = vmatpush1.bf16.msra.mxu0 %v4425
    %4492 = vmatprep.subr.bf16.mxu0 0
    %4493 = vmatpush1.bf16.msra.mxu0 %v4426
    %4494 = vmatprep.subr.bf16.mxu0 0
    %4495 = vmatpush1.bf16.msra.mxu0 %v4427
    %4496 = vmatprep.subr.bf16.mxu0 0
    %4497 = vmatpush1.bf16.msra.mxu0 %v4428
    %4498 = vmatprep.subr.bf16.mxu0 0
    %4499 = vmatpush1.bf16.msra.mxu0 %v4429
    %4500 = vmatprep.subr.bf16.mxu0 0
    %4501 = vmatpush1.bf16.msra.mxu0 %v4430
    %4502 = vmatprep.subr.bf16.mxu0 0
    %4503 = vmatpush1.bf16.msra.mxu0 %v4431
    %4504 = vmatprep.subr.bf16.mxu0 0
    %4505 = vmatpush1.bf16.msra.mxu0 %v4432
    %4506 = vmatprep.subr.bf16.mxu0 0
    %4507 = vmatpush1.bf16.msra.mxu0 %v4433
    %4508 = vmatprep.subr.bf16.mxu0 0
    %4509 = vmatpush1.bf16.msra.mxu0 %v4434
    %4510 = vmatprep.subr.bf16.mxu0 0
    %4511 = vmatpush1.bf16.msra.mxu0 %v4435
    %4512 = vmatprep.subr.bf16.mxu0 0
    %4513 = vmatpush1.bf16.msra.mxu0 %v4436
    %4514 = vmatprep.subr.bf16.mxu0 0
    %4515 = vmatpush1.bf16.msra.mxu0 %v4437
    %4516 = vmatprep.subr.bf16.mxu0 0
    %4517 = vmatpush1.bf16.msra.mxu0 %v4438
    %4518 = vmatprep.subr.bf16.mxu0 0
    %4519 = vmatpush1.bf16.msra.mxu0 %v4439
    %4520 = vmatprep.mubr.bf16.mxu0 %v4228
    %4521 = vmatmul.mubr.bf16.gmra.mrb[0].mxu0 %v4227
    %v4522 = vpop.f32.mrb[0].mxu0
    %v4523 = vadd.f32 %v4295, %v4522
    %v4524 = vpop.f32.mrb[0].mxu0
    %v4525 = vpop.f32.mrb[0].mxu0
    %v4526 = vadd.f32 %v4295, %v4525
    %v4527 = vpop.f32.mrb[0].mxu0
    %4528 = vdwg.mxu0
    %4529 = vmatprep.subr.bf16.mxu0 0
    %4530 = vmatpush1.bf16.msra.mxu0 %v4440
    %4531 = vmatprep.subr.bf16.mxu0 0
    %4532 = vmatpush1.bf16.msra.mxu0 %v4441
    %4533 = vmatprep.subr.bf16.mxu0 0
    %4534 = vmatpush1.bf16.msra.mxu0 %v4442
    %4535 = vmatprep.subr.bf16.mxu0 0
    %4536 = vmatpush1.bf16.msra.mxu0 %v4443
    %4537 = vmatprep.subr.bf16.mxu0 0
    %4538 = vmatpush1.bf16.msra.mxu0 %v4444
    %4539 = vmatprep.subr.bf16.mxu0 0
    %4540 = vmatpush1.bf16.msra.mxu0 %v4445
    %4541 = vmatprep.subr.bf16.mxu0 0
    %4542 = vmatpush1.bf16.msra.mxu0 %v4446
    %4543 = vmatprep.subr.bf16.mxu0 0
    %4544 = vmatpush1.bf16.msra.mxu0 %v4447
    %4545 = vmatprep.subr.bf16.mxu0 0
    %4546 = vmatpush1.bf16.msra.mxu0 %v4448
    %4547 = vmatprep.subr.bf16.mxu0 0
    %4548 = vmatpush1.bf16.msra.mxu0 %v4449
    %4549 = vmatprep.subr.bf16.mxu0 0
    %4550 = vmatpush1.bf16.msra.mxu0 %v4450
    %4551 = vmatprep.subr.bf16.mxu0 0
    %4552 = vmatpush1.bf16.msra.mxu0 %v4451
    %4553 = vmatprep.subr.bf16.mxu0 0
    %4554 = vmatpush1.bf16.msra.mxu0 %v4452
    %4555 = vmatprep.subr.bf16.mxu0 0
    %4556 = vmatpush1.bf16.msra.mxu0 %v4453
    %4557 = vmatprep.subr.bf16.mxu0 0
    %4558 = vmatpush1.bf16.msra.mxu0 %v4454
    %4559 = vmatprep.subr.bf16.mxu0 0
    %4560 = vmatpush1.bf16.msra.mxu0 %v4455
    %4561 = vmatprep.mubr.bf16.mxu0 %v4230
    %4562 = vmatmul.mubr.bf16.gmra.mrb[0].mxu0 %v4229
    %v4563 = vpop.f32.mrb[0].mxu0
    %v4564 = vadd.f32 %v4523, %v4563
    %v4565 = vpop.f32.mrb[0].mxu0
    %v4566 = vpop.f32.mrb[0].mxu0
    %v4567 = vadd.f32 %v4526, %v4566
    %v4568 = vpop.f32.mrb[0].mxu0
    %4569 = vdwg.mxu0
    %v4570 = vxor.u32 %v4564, 2147483648
    %v4571 = vxor.u32 %v4567, 2147483648
    %v4572 = vmul.f32 %v4570, 1.442695
    %v4573 = vpow.pop %v4572
    %v4574 = vmul.f32 %v4571, 1.442695
    %v4575 = vpow.pop %v4574
    %v4576 = vadd.f32 %v4573, 1.0
    %v4577 = vadd.f32 %v4575, 1.0
    %v4578 = vrcp.pop %v4576
    %v4579 = vmul.f32 1.0, %v4578
    %v4580 = vrcp.pop %v4577
    %v4581 = vmul.f32 1.0, %v4580
    %4582 = vst [vmem:[#allocation19] sm:$0xff] %v2940
    %4583 = vst [vmem:[#allocation19 + $0x8] sm:$0xff] %v2941
    %4584 = vst [vmem:[#allocation20] sm:$0xff] %v4579
    %4585 = vst [vmem:[#allocation20 + $0x8] sm:$0xff] %v4581
    %4586 = vst [vmem:[#allocation22] sm:$0xff] %v2922
    %4587 = vst [vmem:[#allocation22 + $0x8] sm:$0xff] %v2926
    %4588 = vst [vmem:[#allocation23] sm:$0xff] %v2924
    %4589 = vst [vmem:[#allocation23 + $0x8] sm:$0xff] %v2928
    // Predicated region
    $region82: #{tpu_custom_call.1} parent=1 // pred_check
      _
    $region83: #{tpu_custom_call.1} parent=1 // pred_check_branch
      %4591 = sbr.rel (0) target = $region85
    $region84: #{tpu_custom_call.1} parent=1 // pred_region
      %s4593 = ssub.s32 256, 256
      %4594 = vsyncadd [#allocation4], %s4593
      %s4595 = sshll.u32 [#allocation19], 4
      %s4596 = int_to_ptr.vmem [resolvable:$true] %s4595
      %4601 = dma.vmem_to_hbm [thread:$0]  %s4596, 256, %s10, [#allocation4], 128, 128, 8
    $region85: #{tpu_custom_call.1} parent=1 // pred_fallthru
      _
    // Predicated region
    $region86: #{tpu_custom_call.1} parent=1 // pred_check
      _
    $region87: #{tpu_custom_call.1} parent=1 // pred_check_branch
      %4603 = sbr.rel (0) target = $region89
    $region88: #{tpu_custom_call.1} parent=1 // pred_region
      %s4605 = ssub.s32 256, 256
      %4606 = vsyncadd [#allocation21], %s4605
      %s4607 = sshll.u32 [#allocation20], 4
      %s4608 = int_to_ptr.vmem [resolvable:$true] %s4607
      %4613 = dma.vmem_to_hbm [thread:$0]  %s4608, 256, %s11, [#allocation21], 128, 128, 8
    $region89: #{tpu_custom_call.1} parent=1 // pred_fallthru
      _
    // Predicated region
    $region90: #{tpu_custom_call.1} parent=1 // pred_check
      _
    $region91: #{tpu_custom_call.1} parent=1 // pred_check_branch
      %4615 = sbr.rel (0) target = $region93
    $region92: #{tpu_custom_call.1} parent=1 // pred_region
      %s4617 = ssub.s32 256, 256
      %4618 = vsyncadd [#allocation21], %s4617
      %s4619 = sshll.u32 [#allocation22], 4
      %s4620 = int_to_ptr.vmem [resolvable:$true] %s4619
      %4625 = dma.vmem_to_hbm [thread:$0]  %s4620, 256, %s12, [#allocation21], 128, 128, 8
    $region93: #{tpu_custom_call.1} parent=1 // pred_fallthru
      _
    // Predicated region
    $region94: #{tpu_custom_call.1} parent=1 // pred_check
      _
    $region95: #{tpu_custom_call.1} parent=1 // pred_check_branch
      %4627 = sbr.rel (0) target = $region97
    $region96: #{tpu_custom_call.1} parent=1 // pred_region
      %s4629 = ssub.s32 256, 256
      %4630 = vsyncadd [#allocation24], %s4629
      %s4631 = sshll.u32 [#allocation23], 4
      %s4632 = int_to_ptr.vmem [resolvable:$true] %s4631
      %4637 = dma.vmem_to_hbm [thread:$0]  %s4632, 256, %s13, [#allocation24], 128, 128, 8
    $region97: #{tpu_custom_call.1} parent=1 // pred_fallthru
      _
    // Predicated region
    $region98: #{tpu_custom_call.1} parent=1 // pred_check
      _
    $region99: #{tpu_custom_call.1} parent=1 // pred_check_branch
      %4639 = sbr.rel (0) target = $region101
    $region100: #{tpu_custom_call.1} parent=1 // pred_region
      %4640 = dma.done [#allocation4], 256
    $region101: #{tpu_custom_call.1} parent=1 // pred_fallthru
      _
    // Predicated region
    $region102: #{tpu_custom_call.1} parent=1 // pred_check
      _
    $region103: #{tpu_custom_call.1} parent=1 // pred_check_branch
      %4642 = sbr.rel (0) target = $region105
    $region104: #{tpu_custom_call.1} parent=1 // pred_region
      %4643 = dma.done [#allocation21], 256
    $region105: #{tpu_custom_call.1} parent=1 // pred_fallthru
      _
    // Predicated region
    $region106: #{tpu_custom_call.1} parent=1 // pred_check
      _
    $region107: #{tpu_custom_call.1} parent=1 // pred_check_branch
      %4645 = sbr.rel (0) target = $region109
    $region108: #{tpu_custom_call.1} parent=1 // pred_region
      %4646 = dma.done [#allocation21], 256
    $region109: #{tpu_custom_call.1} parent=1 // pred_fallthru
      _
    // Predicated region
    $region110: #{tpu_custom_call.1} parent=1 // pred_check
      _
    $region111: #{tpu_custom_call.1} parent=1 // pred_check_branch
      %4648 = sbr.rel (0) target = $region113
    $region112: #{tpu_custom_call.1} parent=1 // pred_region
      %4649 = dma.done [#allocation24], 256
    $region113: #{tpu_custom_call.1} parent=1 // pred_fallthru
      _
    %4650 = vsyncpa [#allocation3], 1
    %4651 = vsyncpa [#allocation6], 1
    %4652 = vsyncpa [#allocation9], 1
    %4653 = vsyncpa [#allocation12], 1
    %4654 = vsyncpa [#allocation15], 1
    %4655 = vsyncpa [#allocation18], 1
    %4656 = vsyncpa [#allocation4], 1
    %4657 = vsyncpa [#allocation21], 1
    %4658 = vsyncpa [#allocation24], 1

</llo_original>
